<compile_context>
chip_gen: v7x
topology: tpu7x:2x2x1
jax: 0.10.0
libtpu: 0.0.40
codegen_flags: <defaults>
</compile_context>

<pallas_src>
import functools

import jax
import jax.numpy as jnp
import numpy as np
from jax.experimental import pallas as pl
from jax.experimental.pallas import tpu as pltpu


def _unet_up_kernel(x1_ref, x2_ref, wd_ref, w1_ref, b1_ref, w2_ref, b2_ref,
                    o_ref, cat_ref, *, pad, h2, w2):
    """Fused deconv(2,2) + pad + concat + (3x3 conv + ReLU) x2 for one image."""
    h1, w1, c1 = x1_ref.shape[1], x1_ref.shape[2], x1_ref.shape[3]
    hu, wu, ctot = cat_ref.shape          # upsampled spatial size, concat channels
    c2 = ctot - c1
    cm = o_ref.shape[3]
    ho1 = hu - 2                          # conv1 valid output rows
    ho2, wo2 = hu - 4, wu - 4             # conv2 valid output rows / cols
    cdt = cat_ref.dtype                   # bf16 compute dtype

    # ---- F.pad(inputs1): zero only the pad border of the scratch (full channel
    # width so stores stay lane-dense), then copy the interior.  The up-channel
    # range of the border is overwritten by the deconv below.
    if pad > 0:
        zrow = jnp.zeros((pad, wu, ctot), cdt)
        cat_ref[0:pad] = zrow
        cat_ref[hu - pad:hu] = zrow
        zcol = jnp.zeros((hu, pad, ctot), cdt)
        cat_ref[:, 0:pad] = zcol
        cat_ref[:, wu - pad:wu] = zcol
    cat_ref[pad:pad + h1, pad:pad + w1, 0:c1] = x1_ref[0]

    # ---- ConvTranspose2d(kernel=2, stride=2): 4 parity matmuls (bias folded
    # into conv1's bias), interleaved into the up-channel slice of the scratch.
    x2f = x2_ref[0]                                        # (h2*w2, cin) bf16
    rows = []
    for a in range(2):
        cols = []
        for b in range(2):
            t = jnp.dot(x2f, wd_ref[2 * a + b],
                        preferred_element_type=jnp.float32)
            cols.append(t.astype(cdt).reshape(h2, w2, c2))
        rows.append(jnp.stack(cols, axis=2).reshape(h2, 2 * w2, c2))
    up = jnp.stack(rows, axis=1).reshape(hu, wu, c2)
    cat_ref[:, :, c1:ctot] = up

    # ---- conv1 + ReLU: 9 merged-K taps (K = c1 + c2); dx shift via pltpu.roll,
    # no per-tap crop.  Roll wrap / partial-window garbage lands only in the
    # last 2 columns, which conv2's valid outputs never read.
    n1 = ho1 * wu
    acc1 = jnp.zeros((n1, cm), jnp.float32)
    for dy in range(3):
        slab = cat_ref[dy:dy + ho1].reshape(n1, ctot)
        for dx in range(3):
            prod = jnp.dot(slab, w1_ref[3 * dy + dx],
                           preferred_element_type=jnp.float32)
            if dx:
                prod = pltpu.roll(prod, n1 - dx, 0)        # shift back by dx
            acc1 = acc1 + prod
    hmid = jnp.maximum(acc1 + b1_ref[...], 0.0).astype(cdt)  # (ho1*wu, cm) bf16

    # ---- conv2 + ReLU: same scheme; single crop at the output store.
    n2 = ho2 * wu
    acc2 = jnp.zeros((n2, cm), jnp.float32)
    for dy in range(3):
        slab = hmid[dy * wu:dy * wu + n2]                  # aligned sublane slice
        for dx in range(3):
            prod = jnp.dot(slab, w2_ref[3 * dy + dx],
                           preferred_element_type=jnp.float32)
            if dx:
                prod = pltpu.roll(prod, n2 - dx, 0)
            acc2 = acc2 + prod
    y = jnp.maximum(acc2 + b2_ref[...], 0.0).reshape(ho2, wu, cm)
    o_ref[0] = y[:, 0:wo2, :]                              # the one and only crop


@jax.jit
def unet_up_forward(inputs1, inputs2, params):
    f32, bf16 = jnp.float32, jnp.bfloat16

    x1 = jnp.transpose(inputs1, (0, 2, 3, 1)).astype(bf16)   # NCHW -> NHWC
    x2 = jnp.transpose(inputs2, (0, 2, 3, 1)).astype(bf16)
    n, h1, w1, c1 = x1.shape
    _, h2, w2, cin = x2.shape

    up_w, up_b = params["up_w"].astype(f32), params["up_b"].astype(f32)
    c2 = up_w.shape[1]
    hu, wu = 2 * h2, 2 * w2
    offset = hu - h1
    assert offset >= 0 and offset % 2 == 0, "unetUp: pad offset must be even and >= 0"
    p = offset // 2
    assert wu == w1 + 2 * p, "unetUp: width inconsistent with symmetric padding"

    # Deconv weights (cin, c2, a, b) -> (4, cin, c2), tap index 2*a + b.
    wd = jnp.transpose(up_w, (2, 3, 0, 1)).reshape(4, cin, c2).astype(bf16)

    c1_w, c1_b = params["c1_w"].astype(f32), params["c1_b"].astype(f32)
    cm, ctot = c1_w.shape[0], c1_w.shape[1]
    assert ctot == c1 + c2, "unetUp: conv1 in-channels must equal c1 + c2"

    # Merged-K conv1 taps: (ky, kx, c1+c2, cm); channel order [skip, up] matches
    # torch.cat([outputs1, outputs2], 1).
    w1m = jnp.transpose(c1_w, (2, 3, 1, 0)).reshape(9, ctot, cm).astype(bf16)
    # Fold the deconv bias into conv1's bias: b1_eff = b1 + up_b @ sum_tap W1[up].
    # Use the bf16-rounded weights (what the MXU will actually see).
    w1b_r = w1m[:, c1:, :].astype(f32)
    b1_eff = (c1_b + up_b @ jnp.sum(w1b_r, axis=0)).reshape(1, cm)

    w2m = jnp.transpose(params["c2_w"].astype(f32),
                        (2, 3, 1, 0)).reshape(9, cm, cm).astype(bf16)
    b2 = params["c2_b"].astype(f32).reshape(1, cm)

    x2f = x2.reshape(n, h2 * w2, cin)                    # pixels x channels
    ho2, wo2 = hu - 4, wu - 4

    out = pl.pallas_call(
        functools.partial(_unet_up_kernel, pad=p, h2=h2, w2=w2),
        out_shape=jax.ShapeDtypeStruct((n, ho2, wo2, cm), jnp.float32),
        grid=(n,),
        in_specs=[
            pl.BlockSpec((1, h1, w1, c1), lambda i: (i, 0, 0, 0)),
            pl.BlockSpec((1, h2 * w2, cin), lambda i: (i, 0, 0)),
            pl.BlockSpec((4, cin, c2), lambda i: (0, 0, 0)),
            pl.BlockSpec((9, ctot, cm), lambda i: (0, 0, 0)),
            pl.BlockSpec((1, cm), lambda i: (0, 0)),
            pl.BlockSpec((9, cm, cm), lambda i: (0, 0, 0)),
            pl.BlockSpec((1, cm), lambda i: (0, 0)),
        ],
        out_specs=pl.BlockSpec((1, ho2, wo2, cm), lambda i: (i, 0, 0, 0)),
        scratch_shapes=[pltpu.VMEM((hu, wu, ctot), jnp.bfloat16)],
        compiler_params=pltpu.CompilerParams(
            dimension_semantics=("parallel",),
            # v5e/v6e: 128 MiB VMEM; v7x: 64 MiB -- this leaves headroom there.
            vmem_limit_bytes=64 * 1024 * 1024,
        ),
    )(x1, x2f, wd, w1m, b1_eff, w2m, b2)

    return jnp.transpose(out, (0, 3, 1, 2))               # NHWC -> NCHW


# ----------------------------------------------------------------------------
# Reference: the module's math in f32, with operands / intermediates rounded
# through bf16 at exactly the points the kernel does (MXU bf16 in, f32 accum),
# so the comparison stays tight.
# ----------------------------------------------------------------------------
def ref_forward(inputs1, inputs2, params):
    f32 = jnp.float32
    r = lambda t: t.astype(jnp.bfloat16).astype(f32)
    hp = jax.lax.Precision.HIGHEST

    x1, x2 = r(inputs1), r(inputs2)
    up_w, up_b = r(params["up_w"]), params["up_b"].astype(f32)
    N, _, H2, W2 = inputs2.shape
    Cout = up_w.shape[1]
    up_lin = jnp.einsum("ncij,cdab->ndiajb", x2, up_w, precision=hp)
    up_lin = up_lin.reshape(N, Cout, 2 * H2, 2 * W2)
    # Kernel rounds the bias-free deconv output to bf16 and folds the bias into
    # conv1's bias, i.e. the bias is added in f32 after the rounding.
    y = r(up_lin) + up_b[None, :, None, None]

    offset = y.shape[2] - inputs1.shape[2]
    p = offset // 2
    x1p = jnp.pad(x1, ((0, 0), (0, 0), (p, p), (p, p)))
    cat = jnp.concatenate([x1p, y], axis=1)

    def conv_relu(x, w, b):
        out = jax.lax.conv_general_dilated(
            x, w, (1, 1), "VALID",
            dimension_numbers=("NCHW", "OIHW", "NCHW"), precision=hp)
        return jnp.maximum(out + b[None, :, None, None], 0.0)

    h = conv_relu(cat, r(params["c1_w"]), params["c1_b"].astype(f32))
    h = r(h)                                  # kernel feeds conv2 bf16 activations
    return conv_relu(h, r(params["c2_w"]), params["c2_b"].astype(f32))


def init_params(key, in_size, out_size):
    ks = jax.random.split(key, 6)

    def w(k, shape, fan_in):
        return jax.random.normal(k, shape, jnp.float32) * np.sqrt(2.0 / fan_in)

    return {
        # ConvTranspose2d(in_size, out_size, 2, 2): weight (in_size, out_size, 2, 2)
        "up_w": w(ks[0], (in_size, out_size, 2, 2), in_size * 4),
        "up_b": 0.01 * jax.random.normal(ks[1], (out_size,), jnp.float32),
        # Conv2d(in_size, out_size, 3): weight (out_size, in_size, 3, 3)
        "c1_w": w(ks[2], (out_size, in_size, 3, 3), in_size * 9),
        "c1_b": 0.01 * jax.random.normal(ks[3], (out_size,), jnp.float32),
        # Conv2d(out_size, out_size, 3)
        "c2_w": w(ks[4], (out_size, out_size, 3, 3), out_size * 9),
        "c2_b": 0.01 * jax.random.normal(ks[5], (out_size,), jnp.float32),
    }


if __name__ == "__main__":
    key = jax.random.PRNGKey(0)
    k1, k2, kp = jax.random.split(key, 3)

    in_size, out_size = 8, 4  # is_deconv=True branch
    # skip connection (encoder feature) and decoder feature (to be upsampled)
    inputs1 = jax.random.normal(k1, (2, out_size, 12, 12), jnp.float32)  # NCHW
    inputs2 = jax.random.normal(k2, (2, in_size, 8, 8), jnp.float32)     # NCHW
    params = init_params(kp, in_size, out_size)

    out = jax.block_until_ready(unet_up_forward(inputs1, inputs2, params))

    ref = ref_forward(inputs1, inputs2, params)
    assert out.shape == (2, out_size, 12, 12), out.shape
    np.testing.assert_allclose(np.asarray(out), np.asarray(ref),
                               rtol=5e-3, atol=5e-3)

    print("KERNEL_OK")
</pallas_src>

<mosaic_0001>
module attributes {stable_mosaic.version = 11 : i64} {
  func.func @_unet_up_kernel(%arg0: i32, %arg1: memref<1x12x12x4xbf16, #tpu.memory_space<vmem>>, %arg2: memref<1x64x8xbf16, #tpu.memory_space<vmem>>, %arg3: memref<4x8x4xbf16, #tpu.memory_space<vmem>>, %arg4: memref<9x8x4xbf16, #tpu.memory_space<vmem>>, %arg5: memref<1x4xf32, #tpu.memory_space<vmem>>, %arg6: memref<9x4x4xbf16, #tpu.memory_space<vmem>>, %arg7: memref<1x4xf32, #tpu.memory_space<vmem>>, %arg8: memref<1x12x12x4xf32, #tpu.memory_space<vmem>>, %arg9: memref<16x16x8xbf16, #tpu.memory_space<vmem>>) attributes {dimension_semantics = [#tpu.dimension_semantics<parallel>], iteration_bounds = array<i64: 2>, scalar_prefetch = 0 : i64, scratch_operands = 1 : i64, tpu.core_type = #tpu.core_type<tc>, window_params = [{transform_indices = @transform_0, window_bounds = array<i64: 1, 12, 12, 4>}, {transform_indices = @transform_1, window_bounds = array<i64: 1, 64, 8>}, {pipeline_mode = #tpu.pipeline_mode<synchronous>, transform_indices = @transform_2, window_bounds = array<i64: 4, 8, 4>}, {pipeline_mode = #tpu.pipeline_mode<synchronous>, transform_indices = @transform_3, window_bounds = array<i64: 9, 8, 4>}, {pipeline_mode = #tpu.pipeline_mode<synchronous>, transform_indices = @transform_4, window_bounds = array<i64: 1, 4>}, {pipeline_mode = #tpu.pipeline_mode<synchronous>, transform_indices = @transform_5, window_bounds = array<i64: 9, 4, 4>}, {pipeline_mode = #tpu.pipeline_mode<synchronous>, transform_indices = @transform_6, window_bounds = array<i64: 1, 4>}, {transform_indices = @transform_7, window_bounds = array<i64: 1, 12, 12, 4>}]} {
    %cst = arith.constant 0.000000e+00 : bf16
    %0 = vector.broadcast %cst : bf16 to vector<2x16x8xbf16>
    %c0 = arith.constant 0 : index
    %c0_0 = arith.constant 0 : index
    %c0_1 = arith.constant 0 : index
    %1 = vector.load %arg9[%c0, %c0_0, %c0_1] : memref<16x16x8xbf16, #tpu.memory_space<vmem>>, vector<2x16x8xbf16>
    tpu.vector_store %arg9[%c0, %c0_0, %c0_1], %0 {strides = array<i32>} : memref<16x16x8xbf16, #tpu.memory_space<vmem>>, vector<2x16x8xbf16>,
    %c14 = arith.constant 14 : index
    %c0_2 = arith.constant 0 : index
    %c0_3 = arith.constant 0 : index
    %2 = vector.load %arg9[%c14, %c0_2, %c0_3] : memref<16x16x8xbf16, #tpu.memory_space<vmem>>, vector<2x16x8xbf16>
    tpu.vector_store %arg9[%c14, %c0_2, %c0_3], %0 {strides = array<i32>} : memref<16x16x8xbf16, #tpu.memory_space<vmem>>, vector<2x16x8xbf16>,
    %cst_4 = arith.constant 0.000000e+00 : bf16
    %3 = vector.broadcast %cst_4 : bf16 to vector<16x2x8xbf16>
    %c0_5 = arith.constant 0 : index
    %c0_6 = arith.constant 0 : index
    %c0_7 = arith.constant 0 : index
    %4 = vector.load %arg9[%c0_5, %c0_6, %c0_7] : memref<16x16x8xbf16, #tpu.memory_space<vmem>>, vector<16x2x8xbf16>
    tpu.vector_store %arg9[%c0_5, %c0_6, %c0_7], %3 {strides = array<i32>} : memref<16x16x8xbf16, #tpu.memory_space<vmem>>, vector<16x2x8xbf16>,
    %c0_8 = arith.constant 0 : index
    %c14_9 = arith.constant 14 : index
    %c0_10 = arith.constant 0 : index
    %5 = vector.load %arg9[%c0_8, %c14_9, %c0_10] : memref<16x16x8xbf16, #tpu.memory_space<vmem>>, vector<16x2x8xbf16>
    tpu.vector_store %arg9[%c0_8, %c14_9, %c0_10], %3 {strides = array<i32>} : memref<16x16x8xbf16, #tpu.memory_space<vmem>>, vector<16x2x8xbf16>,
    %c0_11 = arith.constant 0 : index
    %c0_12 = arith.constant 0 : index
    %c0_13 = arith.constant 0 : index
    %c0_14 = arith.constant 0 : index
    %6 = vector.load %arg1[%c0_11, %c0_12, %c0_13, %c0_14] : memref<1x12x12x4xbf16, #tpu.memory_space<vmem>>, vector<1x12x12x4xbf16>
    %7 = vector.shape_cast %6 : vector<1x12x12x4xbf16> to vector<12x12x4xbf16>
    %c2 = arith.constant 2 : index
    %c2_15 = arith.constant 2 : index
    %c0_16 = arith.constant 0 : index
    %8 = vector.load %arg9[%c2, %c2_15, %c0_16] : memref<16x16x8xbf16, #tpu.memory_space<vmem>>, vector<12x12x4xbf16>
    tpu.vector_store %arg9[%c2, %c2_15, %c0_16], %7 {strides = array<i32>} : memref<16x16x8xbf16, #tpu.memory_space<vmem>>, vector<12x12x4xbf16>,
    %c0_17 = arith.constant 0 : index
    %c0_18 = arith.constant 0 : index
    %c0_19 = arith.constant 0 : index
    %9 = vector.load %arg2[%c0_17, %c0_18, %c0_19] : memref<1x64x8xbf16, #tpu.memory_space<vmem>>, vector<1x64x8xbf16>
    %10 = vector.shape_cast %9 : vector<1x64x8xbf16> to vector<64x8xbf16>
    %c0_20 = arith.constant 0 : index
    %c0_21 = arith.constant 0 : index
    %c0_22 = arith.constant 0 : index
    %11 = vector.load %arg3[%c0_20, %c0_21, %c0_22] : memref<4x8x4xbf16, #tpu.memory_space<vmem>>, vector<1x8x4xbf16>
    %12 = vector.shape_cast %11 : vector<1x8x4xbf16> to vector<8x4xbf16>
    %cst_23 = arith.constant dense<0.000000e+00> : vector<64x4xf32>
    %13 = tpu.matmul %10, %12, %cst_23 {dimension_numbers = #tpu.dot_dimension_numbers<[1], [0], [0], [1], [0, 0, 1, 1], [], []>} : vector<64x8xbf16>, vector<8x4xbf16>, vector<64x4xf32> -> vector<64x4xf32>
    %14 = arith.truncf %13 : vector<64x4xf32> to vector<64x4xbf16>
    %15 = vector.shape_cast %14 : vector<64x4xbf16> to vector<8x8x4xbf16>
    %c1 = arith.constant 1 : index
    %c0_24 = arith.constant 0 : index
    %c0_25 = arith.constant 0 : index
    %16 = vector.load %arg3[%c1, %c0_24, %c0_25] : memref<4x8x4xbf16, #tpu.memory_space<vmem>>, vector<1x8x4xbf16>
    %17 = vector.shape_cast %16 : vector<1x8x4xbf16> to vector<8x4xbf16>
    %cst_26 = arith.constant dense<0.000000e+00> : vector<64x4xf32>
    %18 = tpu.matmul %10, %17, %cst_26 {dimension_numbers = #tpu.dot_dimension_numbers<[1], [0], [0], [1], [0, 0, 1, 1], [], []>} : vector<64x8xbf16>, vector<8x4xbf16>, vector<64x4xf32> -> vector<64x4xf32>
    %19 = arith.truncf %18 : vector<64x4xf32> to vector<64x4xbf16>
    %20 = vector.shape_cast %19 : vector<64x4xbf16> to vector<8x8x4xbf16>
    %21 = vector.shape_cast %15 : vector<8x8x4xbf16> to vector<8x8x1x4xbf16>
    %22 = vector.shape_cast %20 : vector<8x8x4xbf16> to vector<8x8x1x4xbf16>
    %23 = tpu.concatenate %21, %22 in 2 : vector<8x8x1x4xbf16>, vector<8x8x1x4xbf16> -> vector<8x8x2x4xbf16>
    %24 = vector.shape_cast %23 : vector<8x8x2x4xbf16> to vector<8x16x4xbf16>
    %c2_27 = arith.constant 2 : index
    %c0_28 = arith.constant 0 : index
    %c0_29 = arith.constant 0 : index
    %25 = vector.load %arg3[%c2_27, %c0_28, %c0_29] : memref<4x8x4xbf16, #tpu.memory_space<vmem>>, vector<1x8x4xbf16>
    %26 = vector.shape_cast %25 : vector<1x8x4xbf16> to vector<8x4xbf16>
    %cst_30 = arith.constant dense<0.000000e+00> : vector<64x4xf32>
    %27 = tpu.matmul %10, %26, %cst_30 {dimension_numbers = #tpu.dot_dimension_numbers<[1], [0], [0], [1], [0, 0, 1, 1], [], []>} : vector<64x8xbf16>, vector<8x4xbf16>, vector<64x4xf32> -> vector<64x4xf32>
    %28 = arith.truncf %27 : vector<64x4xf32> to vector<64x4xbf16>
    %29 = vector.shape_cast %28 : vector<64x4xbf16> to vector<8x8x4xbf16>
    %c3 = arith.constant 3 : index
    %c0_31 = arith.constant 0 : index
    %c0_32 = arith.constant 0 : index
    %30 = vector.load %arg3[%c3, %c0_31, %c0_32] : memref<4x8x4xbf16, #tpu.memory_space<vmem>>, vector<1x8x4xbf16>
    %31 = vector.shape_cast %30 : vector<1x8x4xbf16> to vector<8x4xbf16>
    %cst_33 = arith.constant dense<0.000000e+00> : vector<64x4xf32>
    %32 = tpu.matmul %10, %31, %cst_33 {dimension_numbers = #tpu.dot_dimension_numbers<[1], [0], [0], [1], [0, 0, 1, 1], [], []>} : vector<64x8xbf16>, vector<8x4xbf16>, vector<64x4xf32> -> vector<64x4xf32>
    %33 = arith.truncf %32 : vector<64x4xf32> to vector<64x4xbf16>
    %34 = vector.shape_cast %33 : vector<64x4xbf16> to vector<8x8x4xbf16>
    %35 = vector.shape_cast %29 : vector<8x8x4xbf16> to vector<8x8x1x4xbf16>
    %36 = vector.shape_cast %34 : vector<8x8x4xbf16> to vector<8x8x1x4xbf16>
    %37 = tpu.concatenate %35, %36 in 2 : vector<8x8x1x4xbf16>, vector<8x8x1x4xbf16> -> vector<8x8x2x4xbf16>
    %38 = vector.shape_cast %37 : vector<8x8x2x4xbf16> to vector<8x16x4xbf16>
    %39 = vector.shape_cast %24 : vector<8x16x4xbf16> to vector<8x1x16x4xbf16>
    %40 = vector.shape_cast %38 : vector<8x16x4xbf16> to vector<8x1x16x4xbf16>
    %41 = tpu.concatenate %39, %40 in 1 : vector<8x1x16x4xbf16>, vector<8x1x16x4xbf16> -> vector<8x2x16x4xbf16>
    %42 = vector.shape_cast %41 : vector<8x2x16x4xbf16> to vector<16x16x4xbf16>
    %c0_34 = arith.constant 0 : index
    %c0_35 = arith.constant 0 : index
    %c4 = arith.constant 4 : index
    %43 = vector.load %arg9[%c0_34, %c0_35, %c4] : memref<16x16x8xbf16, #tpu.memory_space<vmem>>, vector<16x16x4xbf16>
    tpu.vector_store %arg9[%c0_34, %c0_35, %c4], %42 {strides = array<i32>} : memref<16x16x8xbf16, #tpu.memory_space<vmem>>, vector<16x16x4xbf16>,
    %cst_36 = arith.constant 0.000000e+00 : f32
    %44 = vector.broadcast %cst_36 : f32 to vector<224x4xf32>
    %c0_37 = arith.constant 0 : index
    %c0_38 = arith.constant 0 : index
    %c0_39 = arith.constant 0 : index
    %45 = vector.load %arg9[%c0_37, %c0_38, %c0_39] : memref<16x16x8xbf16, #tpu.memory_space<vmem>>, vector<14x16x8xbf16>
    %46 = vector.shape_cast %45 : vector<14x16x8xbf16> to vector<224x8xbf16>
    %c0_40 = arith.constant 0 : index
    %c0_41 = arith.constant 0 : index
    %c0_42 = arith.constant 0 : index
    %47 = vector.load %arg4[%c0_40, %c0_41, %c0_42] : memref<9x8x4xbf16, #tpu.memory_space<vmem>>, vector<1x8x4xbf16>
    %48 = vector.shape_cast %47 : vector<1x8x4xbf16> to vector<8x4xbf16>
    %cst_43 = arith.constant dense<0.000000e+00> : vector<224x4xf32>
    %49 = tpu.matmul %46, %48, %cst_43 {dimension_numbers = #tpu.dot_dimension_numbers<[1], [0], [0], [1], [0, 0, 1, 1], [], []>} : vector<224x8xbf16>, vector<8x4xbf16>, vector<224x4xf32> -> vector<224x4xf32>
    %50 = arith.addf %44, %49 : vector<224x4xf32>
    %c1_44 = arith.constant 1 : index
    %c0_45 = arith.constant 0 : index
    %c0_46 = arith.constant 0 : index
    %51 = vector.load %arg4[%c1_44, %c0_45, %c0_46] : memref<9x8x4xbf16, #tpu.memory_space<vmem>>, vector<1x8x4xbf16>
    %52 = vector.shape_cast %51 : vector<1x8x4xbf16> to vector<8x4xbf16>
    %cst_47 = arith.constant dense<0.000000e+00> : vector<224x4xf32>
    %53 = tpu.matmul %46, %52, %cst_47 {dimension_numbers = #tpu.dot_dimension_numbers<[1], [0], [0], [1], [0, 0, 1, 1], [], []>} : vector<224x8xbf16>, vector<8x4xbf16>, vector<224x4xf32> -> vector<224x4xf32>
    %c223_i32 = arith.constant 223 : i32
    %54 = tpu.dynamic_rotate %53 by %c223_i32 dim 0 : vector<224x4xf32>, i32 -> vector<224x4xf32>
    %55 = arith.addf %50, %54 : vector<224x4xf32>
    %c2_48 = arith.constant 2 : index
    %c0_49 = arith.constant 0 : index
    %c0_50 = arith.constant 0 : index
    %56 = vector.load %arg4[%c2_48, %c0_49, %c0_50] : memref<9x8x4xbf16, #tpu.memory_space<vmem>>, vector<1x8x4xbf16>
    %57 = vector.shape_cast %56 : vector<1x8x4xbf16> to vector<8x4xbf16>
    %cst_51 = arith.constant dense<0.000000e+00> : vector<224x4xf32>
    %58 = tpu.matmul %46, %57, %cst_51 {dimension_numbers = #tpu.dot_dimension_numbers<[1], [0], [0], [1], [0, 0, 1, 1], [], []>} : vector<224x8xbf16>, vector<8x4xbf16>, vector<224x4xf32> -> vector<224x4xf32>
    %c222_i32 = arith.constant 222 : i32
    %59 = tpu.dynamic_rotate %58 by %c222_i32 dim 0 : vector<224x4xf32>, i32 -> vector<224x4xf32>
    %60 = arith.addf %55, %59 : vector<224x4xf32>
    %c1_52 = arith.constant 1 : index
    %c0_53 = arith.constant 0 : index
    %c0_54 = arith.constant 0 : index
    %61 = vector.load %arg9[%c1_52, %c0_53, %c0_54] : memref<16x16x8xbf16, #tpu.memory_space<vmem>>, vector<14x16x8xbf16>
    %62 = vector.shape_cast %61 : vector<14x16x8xbf16> to vector<224x8xbf16>
    %c3_55 = arith.constant 3 : index
    %c0_56 = arith.constant 0 : index
    %c0_57 = arith.constant 0 : index
    %63 = vector.load %arg4[%c3_55, %c0_56, %c0_57] : memref<9x8x4xbf16, #tpu.memory_space<vmem>>, vector<1x8x4xbf16>
    %64 = vector.shape_cast %63 : vector<1x8x4xbf16> to vector<8x4xbf16>
    %cst_58 = arith.constant dense<0.000000e+00> : vector<224x4xf32>
    %65 = tpu.matmul %62, %64, %cst_58 {dimension_numbers = #tpu.dot_dimension_numbers<[1], [0], [0], [1], [0, 0, 1, 1], [], []>} : vector<224x8xbf16>, vector<8x4xbf16>, vector<224x4xf32> -> vector<224x4xf32>
    %66 = arith.addf %60, %65 : vector<224x4xf32>
    %c4_59 = arith.constant 4 : index
    %c0_60 = arith.constant 0 : index
    %c0_61 = arith.constant 0 : index
    %67 = vector.load %arg4[%c4_59, %c0_60, %c0_61] : memref<9x8x4xbf16, #tpu.memory_space<vmem>>, vector<1x8x4xbf16>
    %68 = vector.shape_cast %67 : vector<1x8x4xbf16> to vector<8x4xbf16>
    %cst_62 = arith.constant dense<0.000000e+00> : vector<224x4xf32>
    %69 = tpu.matmul %62, %68, %cst_62 {dimension_numbers = #tpu.dot_dimension_numbers<[1], [0], [0], [1], [0, 0, 1, 1], [], []>} : vector<224x8xbf16>, vector<8x4xbf16>, vector<224x4xf32> -> vector<224x4xf32>
    %c223_i32_63 = arith.constant 223 : i32
    %70 = tpu.dynamic_rotate %69 by %c223_i32_63 dim 0 : vector<224x4xf32>, i32 -> vector<224x4xf32>
    %71 = arith.addf %66, %70 : vector<224x4xf32>
    %c5 = arith.constant 5 : index
    %c0_64 = arith.constant 0 : index
    %c0_65 = arith.constant 0 : index
    %72 = vector.load %arg4[%c5, %c0_64, %c0_65] : memref<9x8x4xbf16, #tpu.memory_space<vmem>>, vector<1x8x4xbf16>
    %73 = vector.shape_cast %72 : vector<1x8x4xbf16> to vector<8x4xbf16>
    %cst_66 = arith.constant dense<0.000000e+00> : vector<224x4xf32>
    %74 = tpu.matmul %62, %73, %cst_66 {dimension_numbers = #tpu.dot_dimension_numbers<[1], [0], [0], [1], [0, 0, 1, 1], [], []>} : vector<224x8xbf16>, vector<8x4xbf16>, vector<224x4xf32> -> vector<224x4xf32>
    %c222_i32_67 = arith.constant 222 : i32
    %75 = tpu.dynamic_rotate %74 by %c222_i32_67 dim 0 : vector<224x4xf32>, i32 -> vector<224x4xf32>
    %76 = arith.addf %71, %75 : vector<224x4xf32>
    %c2_68 = arith.constant 2 : index
    %c0_69 = arith.constant 0 : index
    %c0_70 = arith.constant 0 : index
    %77 = vector.load %arg9[%c2_68, %c0_69, %c0_70] : memref<16x16x8xbf16, #tpu.memory_space<vmem>>, vector<14x16x8xbf16>
    %78 = vector.shape_cast %77 : vector<14x16x8xbf16> to vector<224x8xbf16>
    %c6 = arith.constant 6 : index
    %c0_71 = arith.constant 0 : index
    %c0_72 = arith.constant 0 : index
    %79 = vector.load %arg4[%c6, %c0_71, %c0_72] : memref<9x8x4xbf16, #tpu.memory_space<vmem>>, vector<1x8x4xbf16>
    %80 = vector.shape_cast %79 : vector<1x8x4xbf16> to vector<8x4xbf16>
    %cst_73 = arith.constant dense<0.000000e+00> : vector<224x4xf32>
    %81 = tpu.matmul %78, %80, %cst_73 {dimension_numbers = #tpu.dot_dimension_numbers<[1], [0], [0], [1], [0, 0, 1, 1], [], []>} : vector<224x8xbf16>, vector<8x4xbf16>, vector<224x4xf32> -> vector<224x4xf32>
    %82 = arith.addf %76, %81 : vector<224x4xf32>
    %c7 = arith.constant 7 : index
    %c0_74 = arith.constant 0 : index
    %c0_75 = arith.constant 0 : index
    %83 = vector.load %arg4[%c7, %c0_74, %c0_75] : memref<9x8x4xbf16, #tpu.memory_space<vmem>>, vector<1x8x4xbf16>
    %84 = vector.shape_cast %83 : vector<1x8x4xbf16> to vector<8x4xbf16>
    %cst_76 = arith.constant dense<0.000000e+00> : vector<224x4xf32>
    %85 = tpu.matmul %78, %84, %cst_76 {dimension_numbers = #tpu.dot_dimension_numbers<[1], [0], [0], [1], [0, 0, 1, 1], [], []>} : vector<224x8xbf16>, vector<8x4xbf16>, vector<224x4xf32> -> vector<224x4xf32>
    %c223_i32_77 = arith.constant 223 : i32
    %86 = tpu.dynamic_rotate %85 by %c223_i32_77 dim 0 : vector<224x4xf32>, i32 -> vector<224x4xf32>
    %87 = arith.addf %82, %86 : vector<224x4xf32>
    %c8 = arith.constant 8 : index
    %c0_78 = arith.constant 0 : index
    %c0_79 = arith.constant 0 : index
    %88 = vector.load %arg4[%c8, %c0_78, %c0_79] : memref<9x8x4xbf16, #tpu.memory_space<vmem>>, vector<1x8x4xbf16>
    %89 = vector.shape_cast %88 : vector<1x8x4xbf16> to vector<8x4xbf16>
    %cst_80 = arith.constant dense<0.000000e+00> : vector<224x4xf32>
    %90 = tpu.matmul %78, %89, %cst_80 {dimension_numbers = #tpu.dot_dimension_numbers<[1], [0], [0], [1], [0, 0, 1, 1], [], []>} : vector<224x8xbf16>, vector<8x4xbf16>, vector<224x4xf32> -> vector<224x4xf32>
    %c222_i32_81 = arith.constant 222 : i32
    %91 = tpu.dynamic_rotate %90 by %c222_i32_81 dim 0 : vector<224x4xf32>, i32 -> vector<224x4xf32>
    %92 = arith.addf %87, %91 : vector<224x4xf32>
    %c0_82 = arith.constant 0 : index
    %c0_83 = arith.constant 0 : index
    %93 = vector.load %arg5[%c0_82, %c0_83] : memref<1x4xf32, #tpu.memory_space<vmem>>, vector<1x4xf32>
    %94 = vector.broadcast %93 : vector<1x4xf32> to vector<224x4xf32>
    %95 = arith.addf %92, %94 : vector<224x4xf32>
    %cst_84 = arith.constant 0.000000e+00 : f32
    %96 = vector.broadcast %cst_84 : f32 to vector<224x4xf32>
    %97 = arith.maximumf %95, %96 : vector<224x4xf32>
    %98 = arith.truncf %97 : vector<224x4xf32> to vector<224x4xbf16>
    %cst_85 = arith.constant 0.000000e+00 : f32
    %99 = vector.broadcast %cst_85 : f32 to vector<192x4xf32>
    %100 = vector.extract_strided_slice %98 {offsets = [0, 0], sizes = [192, 4], strides = [1, 1]} : vector<224x4xbf16> to vector<192x4xbf16>
    %c0_86 = arith.constant 0 : index
    %c0_87 = arith.constant 0 : index
    %c0_88 = arith.constant 0 : index
    %101 = vector.load %arg6[%c0_86, %c0_87, %c0_88] : memref<9x4x4xbf16, #tpu.memory_space<vmem>>, vector<1x4x4xbf16>
    %102 = vector.shape_cast %101 : vector<1x4x4xbf16> to vector<4x4xbf16>
    %cst_89 = arith.constant dense<0.000000e+00> : vector<192x4xf32>
    %103 = tpu.matmul %100, %102, %cst_89 {dimension_numbers = #tpu.dot_dimension_numbers<[1], [0], [0], [1], [0, 0, 1, 1], [], []>} : vector<192x4xbf16>, vector<4x4xbf16>, vector<192x4xf32> -> vector<192x4xf32>
    %104 = arith.addf %99, %103 : vector<192x4xf32>
    %c1_90 = arith.constant 1 : index
    %c0_91 = arith.constant 0 : index
    %c0_92 = arith.constant 0 : index
    %105 = vector.load %arg6[%c1_90, %c0_91, %c0_92] : memref<9x4x4xbf16, #tpu.memory_space<vmem>>, vector<1x4x4xbf16>
    %106 = vector.shape_cast %105 : vector<1x4x4xbf16> to vector<4x4xbf16>
    %cst_93 = arith.constant dense<0.000000e+00> : vector<192x4xf32>
    %107 = tpu.matmul %100, %106, %cst_93 {dimension_numbers = #tpu.dot_dimension_numbers<[1], [0], [0], [1], [0, 0, 1, 1], [], []>} : vector<192x4xbf16>, vector<4x4xbf16>, vector<192x4xf32> -> vector<192x4xf32>
    %c191_i32 = arith.constant 191 : i32
    %108 = tpu.dynamic_rotate %107 by %c191_i32 dim 0 : vector<192x4xf32>, i32 -> vector<192x4xf32>
    %109 = arith.addf %104, %108 : vector<192x4xf32>
    %c2_94 = arith.constant 2 : index
    %c0_95 = arith.constant 0 : index
    %c0_96 = arith.constant 0 : index
    %110 = vector.load %arg6[%c2_94, %c0_95, %c0_96] : memref<9x4x4xbf16, #tpu.memory_space<vmem>>, vector<1x4x4xbf16>
    %111 = vector.shape_cast %110 : vector<1x4x4xbf16> to vector<4x4xbf16>
    %cst_97 = arith.constant dense<0.000000e+00> : vector<192x4xf32>
    %112 = tpu.matmul %100, %111, %cst_97 {dimension_numbers = #tpu.dot_dimension_numbers<[1], [0], [0], [1], [0, 0, 1, 1], [], []>} : vector<192x4xbf16>, vector<4x4xbf16>, vector<192x4xf32> -> vector<192x4xf32>
    %c190_i32 = arith.constant 190 : i32
    %113 = tpu.dynamic_rotate %112 by %c190_i32 dim 0 : vector<192x4xf32>, i32 -> vector<192x4xf32>
    %114 = arith.addf %109, %113 : vector<192x4xf32>
    %115 = vector.extract_strided_slice %98 {offsets = [16, 0], sizes = [192, 4], strides = [1, 1]} : vector<224x4xbf16> to vector<192x4xbf16>
    %c3_98 = arith.constant 3 : index
    %c0_99 = arith.constant 0 : index
    %c0_100 = arith.constant 0 : index
    %116 = vector.load %arg6[%c3_98, %c0_99, %c0_100] : memref<9x4x4xbf16, #tpu.memory_space<vmem>>, vector<1x4x4xbf16>
    %117 = vector.shape_cast %116 : vector<1x4x4xbf16> to vector<4x4xbf16>
    %cst_101 = arith.constant dense<0.000000e+00> : vector<192x4xf32>
    %118 = tpu.matmul %115, %117, %cst_101 {dimension_numbers = #tpu.dot_dimension_numbers<[1], [0], [0], [1], [0, 0, 1, 1], [], []>} : vector<192x4xbf16>, vector<4x4xbf16>, vector<192x4xf32> -> vector<192x4xf32>
    %119 = arith.addf %114, %118 : vector<192x4xf32>
    %c4_102 = arith.constant 4 : index
    %c0_103 = arith.constant 0 : index
    %c0_104 = arith.constant 0 : index
    %120 = vector.load %arg6[%c4_102, %c0_103, %c0_104] : memref<9x4x4xbf16, #tpu.memory_space<vmem>>, vector<1x4x4xbf16>
    %121 = vector.shape_cast %120 : vector<1x4x4xbf16> to vector<4x4xbf16>
    %cst_105 = arith.constant dense<0.000000e+00> : vector<192x4xf32>
    %122 = tpu.matmul %115, %121, %cst_105 {dimension_numbers = #tpu.dot_dimension_numbers<[1], [0], [0], [1], [0, 0, 1, 1], [], []>} : vector<192x4xbf16>, vector<4x4xbf16>, vector<192x4xf32> -> vector<192x4xf32>
    %c191_i32_106 = arith.constant 191 : i32
    %123 = tpu.dynamic_rotate %122 by %c191_i32_106 dim 0 : vector<192x4xf32>, i32 -> vector<192x4xf32>
    %124 = arith.addf %119, %123 : vector<192x4xf32>
    %c5_107 = arith.constant 5 : index
    %c0_108 = arith.constant 0 : index
    %c0_109 = arith.constant 0 : index
    %125 = vector.load %arg6[%c5_107, %c0_108, %c0_109] : memref<9x4x4xbf16, #tpu.memory_space<vmem>>, vector<1x4x4xbf16>
    %126 = vector.shape_cast %125 : vector<1x4x4xbf16> to vector<4x4xbf16>
    %cst_110 = arith.constant dense<0.000000e+00> : vector<192x4xf32>
    %127 = tpu.matmul %115, %126, %cst_110 {dimension_numbers = #tpu.dot_dimension_numbers<[1], [0], [0], [1], [0, 0, 1, 1], [], []>} : vector<192x4xbf16>, vector<4x4xbf16>, vector<192x4xf32> -> vector<192x4xf32>
    %c190_i32_111 = arith.constant 190 : i32
    %128 = tpu.dynamic_rotate %127 by %c190_i32_111 dim 0 : vector<192x4xf32>, i32 -> vector<192x4xf32>
    %129 = arith.addf %124, %128 : vector<192x4xf32>
    %130 = vector.extract_strided_slice %98 {offsets = [32, 0], sizes = [192, 4], strides = [1, 1]} : vector<224x4xbf16> to vector<192x4xbf16>
    %c6_112 = arith.constant 6 : index
    %c0_113 = arith.constant 0 : index
    %c0_114 = arith.constant 0 : index
    %131 = vector.load %arg6[%c6_112, %c0_113, %c0_114] : memref<9x4x4xbf16, #tpu.memory_space<vmem>>, vector<1x4x4xbf16>
    %132 = vector.shape_cast %131 : vector<1x4x4xbf16> to vector<4x4xbf16>
    %cst_115 = arith.constant dense<0.000000e+00> : vector<192x4xf32>
    %133 = tpu.matmul %130, %132, %cst_115 {dimension_numbers = #tpu.dot_dimension_numbers<[1], [0], [0], [1], [0, 0, 1, 1], [], []>} : vector<192x4xbf16>, vector<4x4xbf16>, vector<192x4xf32> -> vector<192x4xf32>
    %134 = arith.addf %129, %133 : vector<192x4xf32>
    %c7_116 = arith.constant 7 : index
    %c0_117 = arith.constant 0 : index
    %c0_118 = arith.constant 0 : index
    %135 = vector.load %arg6[%c7_116, %c0_117, %c0_118] : memref<9x4x4xbf16, #tpu.memory_space<vmem>>, vector<1x4x4xbf16>
    %136 = vector.shape_cast %135 : vector<1x4x4xbf16> to vector<4x4xbf16>
    %cst_119 = arith.constant dense<0.000000e+00> : vector<192x4xf32>
    %137 = tpu.matmul %130, %136, %cst_119 {dimension_numbers = #tpu.dot_dimension_numbers<[1], [0], [0], [1], [0, 0, 1, 1], [], []>} : vector<192x4xbf16>, vector<4x4xbf16>, vector<192x4xf32> -> vector<192x4xf32>
    %c191_i32_120 = arith.constant 191 : i32
    %138 = tpu.dynamic_rotate %137 by %c191_i32_120 dim 0 : vector<192x4xf32>, i32 -> vector<192x4xf32>
    %139 = arith.addf %134, %138 : vector<192x4xf32>
    %c8_121 = arith.constant 8 : index
    %c0_122 = arith.constant 0 : index
    %c0_123 = arith.constant 0 : index
    %140 = vector.load %arg6[%c8_121, %c0_122, %c0_123] : memref<9x4x4xbf16, #tpu.memory_space<vmem>>, vector<1x4x4xbf16>
    %141 = vector.shape_cast %140 : vector<1x4x4xbf16> to vector<4x4xbf16>
    %cst_124 = arith.constant dense<0.000000e+00> : vector<192x4xf32>
    %142 = tpu.matmul %130, %141, %cst_124 {dimension_numbers = #tpu.dot_dimension_numbers<[1], [0], [0], [1], [0, 0, 1, 1], [], []>} : vector<192x4xbf16>, vector<4x4xbf16>, vector<192x4xf32> -> vector<192x4xf32>
    %c190_i32_125 = arith.constant 190 : i32
    %143 = tpu.dynamic_rotate %142 by %c190_i32_125 dim 0 : vector<192x4xf32>, i32 -> vector<192x4xf32>
    %144 = arith.addf %139, %143 : vector<192x4xf32>
    %c0_126 = arith.constant 0 : index
    %c0_127 = arith.constant 0 : index
    %145 = vector.load %arg7[%c0_126, %c0_127] : memref<1x4xf32, #tpu.memory_space<vmem>>, vector<1x4xf32>
    %146 = vector.broadcast %145 : vector<1x4xf32> to vector<192x4xf32>
    %147 = arith.addf %144, %146 : vector<192x4xf32>
    %cst_128 = arith.constant 0.000000e+00 : f32
    %148 = vector.broadcast %cst_128 : f32 to vector<192x4xf32>
    %149 = arith.maximumf %147, %148 : vector<192x4xf32>
    %150 = vector.shape_cast %149 : vector<192x4xf32> to vector<12x16x4xf32>
    %151 = vector.extract_strided_slice %150 {offsets = [0, 0, 0], sizes = [12, 12, 4], strides = [1, 1, 1]} : vector<12x16x4xf32> to vector<12x12x4xf32>
    %c0_129 = arith.constant 0 : index
    %c0_130 = arith.constant 0 : index
    %c0_131 = arith.constant 0 : index
    %c0_132 = arith.constant 0 : index
    %152 = vector.load %arg8[%c0_129, %c0_130, %c0_131, %c0_132] : memref<1x12x12x4xf32, #tpu.memory_space<vmem>>, vector<1x12x12x4xf32>
    %153 = vector.shape_cast %152 : vector<1x12x12x4xf32> to vector<12x12x4xf32>
    %154 = vector.shape_cast %151 : vector<12x12x4xf32> to vector<1x12x12x4xf32>
    tpu.vector_store %arg8[%c0_129, %c0_130, %c0_131, %c0_132], %154 {strides = array<i32>} : memref<1x12x12x4xf32, #tpu.memory_space<vmem>>, vector<1x12x12x4xf32>,
    return
  }
  func.func @transform_0(%arg0: i32) -> (i32, i32, i32, i32) {
    %c0_i32 = arith.constant 0 : i32
    %c0_i32_0 = arith.constant 0 : i32
    %c0_i32_1 = arith.constant 0 : i32
    %c0_i32_2 = arith.constant 0 : i32
    return %arg0, %c0_i32, %c0_i32_0, %c0_i32_1 : i32, i32, i32, i32
  }
  func.func @transform_1(%arg0: i32) -> (i32, i32, i32) {
    %c0_i32 = arith.constant 0 : i32
    %c0_i32_0 = arith.constant 0 : i32
    %c0_i32_1 = arith.constant 0 : i32
    return %arg0, %c0_i32, %c0_i32_0 : i32, i32, i32
  }
  func.func @transform_2(%arg0: i32) -> (i32, i32, i32) {
    %c0_i32 = arith.constant 0 : i32
    %c0_i32_0 = arith.constant 0 : i32
    %c0_i32_1 = arith.constant 0 : i32
    %c0_i32_2 = arith.constant 0 : i32
    return %c0_i32, %c0_i32_0, %c0_i32_1 : i32, i32, i32
  }
  func.func @transform_3(%arg0: i32) -> (i32, i32, i32) {
    %c0_i32 = arith.constant 0 : i32
    %c0_i32_0 = arith.constant 0 : i32
    %c0_i32_1 = arith.constant 0 : i32
    %c0_i32_2 = arith.constant 0 : i32
    return %c0_i32, %c0_i32_0, %c0_i32_1 : i32, i32, i32
  }
  func.func @transform_4(%arg0: i32) -> (i32, i32) {
    %c0_i32 = arith.constant 0 : i32
    %c0_i32_0 = arith.constant 0 : i32
    %c0_i32_1 = arith.constant 0 : i32
    return %c0_i32, %c0_i32_0 : i32, i32
  }
  func.func @transform_5(%arg0: i32) -> (i32, i32, i32) {
    %c0_i32 = arith.constant 0 : i32
    %c0_i32_0 = arith.constant 0 : i32
    %c0_i32_1 = arith.constant 0 : i32
    %c0_i32_2 = arith.constant 0 : i32
    return %c0_i32, %c0_i32_0, %c0_i32_1 : i32, i32, i32
  }
  func.func @transform_6(%arg0: i32) -> (i32, i32) {
    %c0_i32 = arith.constant 0 : i32
    %c0_i32_0 = arith.constant 0 : i32
    %c0_i32_1 = arith.constant 0 : i32
    return %c0_i32, %c0_i32_0 : i32, i32
  }
  func.func @transform_7(%arg0: i32) -> (i32, i32, i32, i32) {
    %c0_i32 = arith.constant 0 : i32
    %c0_i32_0 = arith.constant 0 : i32
    %c0_i32_1 = arith.constant 0 : i32
    %c0_i32_2 = arith.constant 0 : i32
    return %arg0, %c0_i32, %c0_i32_0, %c0_i32_1 : i32, i32, i32, i32
  }
}

</mosaic_0001>

<llo_original>
// kernel: unet_up_forward.1
$region0: #{unet_up_forward.1}
  #allocation0 [shape = 'u32[]', space=smem, size = 0x4, offset = 0x4, fixed_abs, tag = 'smem constant byte address 0x4 - core index']
  #allocation1 [shape = 'u32[144,128]{1,0:T(1,128)}', space=vmem, size = 0x12000, scoped, tag = 'internal scratch']
  #allocation2 [shape = 'bf16[16,16,8]{2,1,0:T(16,128)(2,1)}', space=vmem, size = 0x10000, scoped, tag = 'scratch operand']
  %s0 = inlined_call_operand.hbm [shape: bf16[2,12,12,4], index: 0, kind: input, shape index: {}]
  %s1 = inlined_call_operand.hbm [shape: bf16[2,64,8], index: 1, kind: input, shape index: {}]
  %s2 = inlined_call_operand.hbm [shape: bf16[4,8,4], index: 2, kind: input, shape index: {}]
  %s3 = inlined_call_operand.hbm [shape: bf16[9,8,4], index: 3, kind: input, shape index: {}]
  %s4 = inlined_call_operand.hbm [shape: f32[1,4], index: 4, kind: input, shape index: {}]
  %s5 = inlined_call_operand.hbm [shape: bf16[9,4,4], index: 5, kind: input, shape index: {}]
  %s6 = inlined_call_operand.hbm [shape: f32[1,4], index: 6, kind: input, shape index: {}]
  %s7 = inlined_call_operand.hbm [shape: f32[2,12,12,4], index: 7, kind: output, shape index: {}]
  %s8 = sld [smem:[#allocation0]]
  $region89: #{unet_up_forward.1} parent=0
    _
  %s10 = ssub.s32 1, %s8
  %s11 = scalar_select 0, %s10, %s8
  $region1: #{unet_up_forward.1} parent=0
    #allocation3 [shape = 'u8[98304]{0}', space=vmem, size = 0x18000, scoped, tag = 'input window, operand 0']
    #allocation4 [shape = 's32[2]{0}', space=sflag, size = 0x8, scoped, tag = 'scoped memory for unet_up_forward.1']
    #allocation5 [shape = 's32[2]{0}', space=sflag, size = 0x8, scoped, tag = 'scoped memory for unet_up_forward.1']
    #allocation6 [shape = 'u8[32768]{0}', space=vmem, size = 0x8000, scoped, tag = 'input window, operand 1']
    #allocation7 [shape = 's32[2]{0}', space=sflag, size = 0x8, scoped, tag = 'scoped memory for unet_up_forward.1']
    #allocation8 [shape = 'u8[8192]{0}', space=vmem, size = 0x2000, scoped, tag = 'input window, operand 2, single buffered']
    #allocation9 [shape = 'u8[18432]{0}', space=vmem, size = 0x4800, scoped, tag = 'input window, operand 3, single buffered']
    #allocation10 [shape = 's32[1]{0}', space=sflag, size = 0x4, scoped, tag = 'scoped memory for unet_up_forward.1']
    #allocation11 [shape = 'u8[512]{0}', space=vmem, size = 0x400, scoped, tag = 'input window, operand 4, single buffered']
    #allocation12 [shape = 'u8[9216]{0}', space=vmem, size = 0x2400, scoped, tag = 'input window, operand 5, single buffered']
    #allocation13 [shape = 's32[1]{0}', space=sflag, size = 0x4, scoped, tag = 'scoped memory for unet_up_forward.1']
    #allocation14 [shape = 'u8[512]{0}', space=vmem, size = 0x400, scoped, tag = 'input window, operand 6, single buffered']
    #allocation15 [shape = 'u8[196608]{0}', space=vmem, size = 0x30000, scoped, tag = 'output window, operand 0']
    %12 = vsyncpa [#allocation4], 0
    %s13 = scalar_lea.sflag [#allocation4], 1
    %14 = vsyncpa %s13, 0
    %15 = vsyncpa [#allocation7], 0
    %s16 = scalar_lea.sflag [#allocation7], 1
    %17 = vsyncpa %s16, 0
    %18 = vsyncpa [#allocation10], 0
    %19 = vsyncpa [#allocation13], 0
    %20 = vsyncpa [#allocation5], 0
    %s21 = scalar_lea.sflag [#allocation5], 1
    %22 = vsyncpa %s21, 0
    loop: start=0, step=1, limit=4
    $region2: #{unet_up_forward.1} parent=1 // loop_pre_header
      _
    $region3: #{unet_up_forward.1} parent=1 // loop_header
      %s24 = sphi 0, %s28
      %p25 = scmp.ge.s32.totalorder %s24, 4
      %s34 = sphi 0, %s36
      %s37 = sphi 0, %s34
      %s38 = sphi 0, %s37
      %s54 = sphi 0, %s38
      %s60 = sphi 0, %s62
      %s63 = sphi 0, %s60
      %s64 = sphi 0, %s63
      %s80 = sphi 0, %s64
      %s84 = sphi 0, %s84
      %s86 = sphi 0, %s84
      %s87 = sphi 0, %s86
      %s101 = sphi 0, %s87
      %s105 = sphi 0, %s105
      %s107 = sphi 0, %s105
      %s108 = sphi 0, %s107
      %s122 = sphi 0, %s108
      %s126 = sphi 0, %s126
      %s128 = sphi 0, %s126
      %s129 = sphi 0, %s128
      %s143 = sphi 0, %s129
      %s147 = sphi 0, %s147
      %s149 = sphi 0, %s147
      %s150 = sphi 0, %s149
      %s164 = sphi 0, %s150
      %s168 = sphi 0, %s168
      %s170 = sphi 0, %s168
      %s171 = sphi 0, %s170
      %s185 = sphi 0, %s171
      %s191 = sphi 0, %s193
      %s194 = sphi 0, %s191
      %s195 = sphi 0, %s194
      %s211 = sphi 0, %s195
    $region4: #{unet_up_forward.1} parent=1 // loop_header_branch
      %27 = sbr.rel (%p25) target = $region8
    $region5: #{unet_up_forward.1} parent=1 // loop_body
      %s29 = ssub.s32 %s24, 1
      %s30 = ssub.s32 %s24, 2
      %s31 = sadd.s32 %s24, 1
      %s32 = ssub.s32 %s24, %s31
      %p33 = scmp.eq.s32.totalorder %s32, 0
      %s35 = sadd.s32 %s34, 1
      %s36 = scalar_select %p33, %s34, %s35
      %p39 = pneg %p33
      %p40 = scmp.eq.s32.totalorder %s24, 1
      %p41 = por %p39, %p40
      %p42 = scmp.ne.s32.totalorder %s34, %s37
      %p43 = scmp.eq.s32.totalorder %s24, 0
      %p44 = por %p42, %p43
      %p45 = scmp.ne.s32.totalorder %s34, %s37
      %p46 = scmp.eq.s32.totalorder %s29, 1
      %p47 = por %p45, %p46
      %p48 = scmp.ne.s32.totalorder %s37, %s38
      %p49 = scmp.eq.s32.totalorder %s29, 0
      %p50 = por %p48, %p49
      %p51 = scmp.ne.s32.totalorder %s37, %s38
      %p52 = scmp.eq.s32.totalorder %s30, 1
      %p53 = por %p51, %p52
      %p55 = scmp.ne.s32.totalorder %s38, %s54
      %p56 = scmp.eq.s32.totalorder %s30, 0
      %p57 = por %p55, %p56
      %s58 = ssub.s32 %s24, %s31
      %p59 = scmp.eq.s32.totalorder %s58, 0
      %s61 = sadd.s32 %s60, 1
      %s62 = scalar_select %p59, %s60, %s61
      %p65 = pneg %p59
      %p66 = scmp.eq.s32.totalorder %s24, 1
      %p67 = por %p65, %p66
      %p68 = scmp.ne.s32.totalorder %s60, %s63
      %p69 = scmp.eq.s32.totalorder %s24, 0
      %p70 = por %p68, %p69
      %p71 = scmp.ne.s32.totalorder %s60, %s63
      %p72 = scmp.eq.s32.totalorder %s29, 1
      %p73 = por %p71, %p72
      %p74 = scmp.ne.s32.totalorder %s63, %s64
      %p75 = scmp.eq.s32.totalorder %s29, 0
      %p76 = por %p74, %p75
      %p77 = scmp.ne.s32.totalorder %s63, %s64
      %p78 = scmp.eq.s32.totalorder %s30, 1
      %p79 = por %p77, %p78
      %p81 = scmp.ne.s32.totalorder %s64, %s80
      %p82 = scmp.eq.s32.totalorder %s30, 0
      %p83 = por %p81, %p82
      %s85 = sadd.s32 %s84, 1
      %p88 = scmp.eq.s32.totalorder %s24, 1
      %p89 = scmp.ne.s32.totalorder %s84, %s86
      %p90 = scmp.eq.s32.totalorder %s24, 0
      %p91 = por %p89, %p90
      %p92 = scmp.ne.s32.totalorder %s84, %s86
      %p93 = scmp.eq.s32.totalorder %s29, 1
      %p94 = por %p92, %p93
      %p95 = scmp.ne.s32.totalorder %s86, %s87
      %p96 = scmp.eq.s32.totalorder %s29, 0
      %p97 = por %p95, %p96
      %p98 = scmp.ne.s32.totalorder %s86, %s87
      %p99 = scmp.eq.s32.totalorder %s30, 1
      %p100 = por %p98, %p99
      %p102 = scmp.ne.s32.totalorder %s87, %s101
      %p103 = scmp.eq.s32.totalorder %s30, 0
      %p104 = por %p102, %p103
      %s106 = sadd.s32 %s105, 1
      %p109 = scmp.eq.s32.totalorder %s24, 1
      %p110 = scmp.ne.s32.totalorder %s105, %s107
      %p111 = scmp.eq.s32.totalorder %s24, 0
      %p112 = por %p110, %p111
      %p113 = scmp.ne.s32.totalorder %s105, %s107
      %p114 = scmp.eq.s32.totalorder %s29, 1
      %p115 = por %p113, %p114
      %p116 = scmp.ne.s32.totalorder %s107, %s108
      %p117 = scmp.eq.s32.totalorder %s29, 0
      %p118 = por %p116, %p117
      %p119 = scmp.ne.s32.totalorder %s107, %s108
      %p120 = scmp.eq.s32.totalorder %s30, 1
      %p121 = por %p119, %p120
      %p123 = scmp.ne.s32.totalorder %s108, %s122
      %p124 = scmp.eq.s32.totalorder %s30, 0
      %p125 = por %p123, %p124
      %s127 = sadd.s32 %s126, 1
      %p130 = scmp.eq.s32.totalorder %s24, 1
      %p131 = scmp.ne.s32.totalorder %s126, %s128
      %p132 = scmp.eq.s32.totalorder %s24, 0
      %p133 = por %p131, %p132
      %p134 = scmp.ne.s32.totalorder %s126, %s128
      %p135 = scmp.eq.s32.totalorder %s29, 1
      %p136 = por %p134, %p135
      %p137 = scmp.ne.s32.totalorder %s128, %s129
      %p138 = scmp.eq.s32.totalorder %s29, 0
      %p139 = por %p137, %p138
      %p140 = scmp.ne.s32.totalorder %s128, %s129
      %p141 = scmp.eq.s32.totalorder %s30, 1
      %p142 = por %p140, %p141
      %p144 = scmp.ne.s32.totalorder %s129, %s143
      %p145 = scmp.eq.s32.totalorder %s30, 0
      %p146 = por %p144, %p145
      %s148 = sadd.s32 %s147, 1
      %p151 = scmp.eq.s32.totalorder %s24, 1
      %p152 = scmp.ne.s32.totalorder %s147, %s149
      %p153 = scmp.eq.s32.totalorder %s24, 0
      %p154 = por %p152, %p153
      %p155 = scmp.ne.s32.totalorder %s147, %s149
      %p156 = scmp.eq.s32.totalorder %s29, 1
      %p157 = por %p155, %p156
      %p158 = scmp.ne.s32.totalorder %s149, %s150
      %p159 = scmp.eq.s32.totalorder %s29, 0
      %p160 = por %p158, %p159
      %p161 = scmp.ne.s32.totalorder %s149, %s150
      %p162 = scmp.eq.s32.totalorder %s30, 1
      %p163 = por %p161, %p162
      %p165 = scmp.ne.s32.totalorder %s150, %s164
      %p166 = scmp.eq.s32.totalorder %s30, 0
      %p167 = por %p165, %p166
      %s169 = sadd.s32 %s168, 1
      %p172 = scmp.eq.s32.totalorder %s24, 1
      %p173 = scmp.ne.s32.totalorder %s168, %s170
      %p174 = scmp.eq.s32.totalorder %s24, 0
      %p175 = por %p173, %p174
      %p176 = scmp.ne.s32.totalorder %s168, %s170
      %p177 = scmp.eq.s32.totalorder %s29, 1
      %p178 = por %p176, %p177
      %p179 = scmp.ne.s32.totalorder %s170, %s171
      %p180 = scmp.eq.s32.totalorder %s29, 0
      %p181 = por %p179, %p180
      %p182 = scmp.ne.s32.totalorder %s170, %s171
      %p183 = scmp.eq.s32.totalorder %s30, 1
      %p184 = por %p182, %p183
      %p186 = scmp.ne.s32.totalorder %s171, %s185
      %p187 = scmp.eq.s32.totalorder %s30, 0
      %p188 = por %p186, %p187
      %s189 = ssub.s32 %s24, %s31
      %p190 = scmp.eq.s32.totalorder %s189, 0
      %s192 = sadd.s32 %s191, 1
      %s193 = scalar_select %p190, %s191, %s192
      %p196 = pneg %p190
      %p197 = scmp.eq.s32.totalorder %s24, 1
      %p198 = por %p196, %p197
      %p199 = scmp.ne.s32.totalorder %s191, %s194
      %p200 = scmp.eq.s32.totalorder %s24, 0
      %p201 = por %p199, %p200
      %p202 = scmp.ne.s32.totalorder %s191, %s194
      %p203 = scmp.eq.s32.totalorder %s29, 1
      %p204 = por %p202, %p203
      %p205 = scmp.ne.s32.totalorder %s194, %s195
      %p206 = scmp.eq.s32.totalorder %s29, 0
      %p207 = por %p205, %p206
      %p208 = scmp.ne.s32.totalorder %s194, %s195
      %p209 = scmp.eq.s32.totalorder %s30, 1
      %p210 = por %p208, %p209
      %p212 = scmp.ne.s32.totalorder %s195, %s211
      %p213 = scmp.eq.s32.totalorder %s30, 0
      %p214 = por %p212, %p213
      %p215 = scmp.le.s32.totalorder 1, %s24
      %p216 = scmp.lt.s32.totalorder %s24, 3
      %p217 = pnand %p215, %p216
      %p218 = pneg %p217
      // Predicated region
      $region9: #{unet_up_forward.1} parent=5 // pred_check
        _
      $region10: #{unet_up_forward.1} parent=5 // pred_check_branch
        %220 = sbr.rel (%p217) target = $region12
      $region11: #{unet_up_forward.1} parent=5 // pred_region
        %s221 = ssub.s32 %s24, 1
        // Predicated region
        $region13: #{unet_up_forward.1} parent=11 // pred_check
          %p222 = pneg %p97
        $region14: #{unet_up_forward.1} parent=11 // pred_check_branch
          %224 = sbr.rel (%p222) target = $region16
        $region15: #{unet_up_forward.1} parent=11 // pred_region
          %s226 = ssub.s32 256, 256
          %227 = vsyncadd [#allocation7], %s226
          %s228 = sshll.u32 [#allocation8], 4
          %s229 = int_to_ptr.vmem [resolvable:$true] %s228
          %234 = dma.hbm_to_vmem [thread:$0]  %s2, 256, %s229, [#allocation7], 64, 64, 4
        $region16: #{unet_up_forward.1} parent=11 // pred_fallthru
          _
        // Predicated region
        $region17: #{unet_up_forward.1} parent=11 // pred_check
          %p235 = pneg %p118
        $region18: #{unet_up_forward.1} parent=11 // pred_check_branch
          %237 = sbr.rel (%p235) target = $region20
        $region19: #{unet_up_forward.1} parent=11 // pred_region
          %s239 = ssub.s32 576, 576
          %240 = vsyncadd [#allocation10], %s239
          %s241 = sshll.u32 [#allocation9], 4
          %s242 = int_to_ptr.vmem [resolvable:$true] %s241
          %247 = dma.hbm_to_vmem [thread:$0]  %s3, 576, %s242, [#allocation10], 64, 64, 4
        $region20: #{unet_up_forward.1} parent=11 // pred_fallthru
          _
        // Predicated region
        $region21: #{unet_up_forward.1} parent=11 // pred_check
          %p248 = pneg %p139
        $region22: #{unet_up_forward.1} parent=11 // pred_check_branch
          %250 = sbr.rel (%p248) target = $region24
        $region23: #{unet_up_forward.1} parent=11 // pred_region
          %s252 = ssub.s32 16, 16
          %253 = vsyncadd [#allocation10], %s252
          %s255 = sshll.u32 [#allocation11], 4
          %s256 = int_to_ptr.vmem [resolvable:$true] %s255
          %258 = dma.hbm_to_vmem [thread:$0]  %s4, 16, %s256, [#allocation10]
        $region24: #{unet_up_forward.1} parent=11 // pred_fallthru
          _
        // Predicated region
        $region25: #{unet_up_forward.1} parent=11 // pred_check
          %p259 = pneg %p160
        $region26: #{unet_up_forward.1} parent=11 // pred_check_branch
          %261 = sbr.rel (%p259) target = $region28
        $region27: #{unet_up_forward.1} parent=11 // pred_region
          %s263 = ssub.s32 288, 288
          %264 = vsyncadd [#allocation13], %s263
          %s265 = sshll.u32 [#allocation12], 4
          %s266 = int_to_ptr.vmem [resolvable:$true] %s265
          %271 = dma.hbm_to_vmem [thread:$0]  %s5, 288, %s266, [#allocation13], 32, 32, 2
        $region28: #{unet_up_forward.1} parent=11 // pred_fallthru
          _
        // Predicated region
        $region29: #{unet_up_forward.1} parent=11 // pred_check
          %p272 = pneg %p181
        $region30: #{unet_up_forward.1} parent=11 // pred_check_branch
          %274 = sbr.rel (%p272) target = $region32
        $region31: #{unet_up_forward.1} parent=11 // pred_region
          %s276 = ssub.s32 16, 16
          %277 = vsyncadd [#allocation13], %s276
          %s279 = sshll.u32 [#allocation14], 4
          %s280 = int_to_ptr.vmem [resolvable:$true] %s279
          %282 = dma.hbm_to_vmem [thread:$0]  %s6, 16, %s280, [#allocation13]
        $region32: #{unet_up_forward.1} parent=11 // pred_fallthru
          _
      $region12: #{unet_up_forward.1} parent=5 // pred_fallthru
        _
      %p283 = scmp.lt.s32.totalorder %s24, 2
      // Predicated region
      $region33: #{unet_up_forward.1} parent=5 // pred_check
        %p284 = pneg %p283
      $region34: #{unet_up_forward.1} parent=5 // pred_check_branch
        %286 = sbr.rel (%p284) target = $region36
      $region35: #{unet_up_forward.1} parent=5 // pred_region
        // Predicated region
        $region37: #{unet_up_forward.1} parent=35 // pred_check
          %p287 = pneg %p44
        $region38: #{unet_up_forward.1} parent=35 // pred_check_branch
          %289 = sbr.rel (%p287) target = $region40
        $region39: #{unet_up_forward.1} parent=35 // pred_region
          %s290 = sand.u32 %s34, 1
          %s291 = scalar_lea.sflag [#allocation4], %s290
          %s292 = sand.u32 %s34, 1
          %s293 = smul.addr %s292, 96
          %s294 = scalar_lea.vmem [#allocation3], %s293
          %s296 = ssub.s32 1536, 1536
          %297 = vsyncadd %s291, %s296
          %s298 = smul.addr %s24, 24
          %s299 = smul.addr %s298, 64
          %s300 = scalar_lea.hbm %s0, %s299
          %s301 = sshll.u32 %s294, 4
          %s302 = int_to_ptr.vmem [resolvable:$true] %s301
          %307 = dma.hbm_to_vmem [thread:$0]  %s300, 1536, %s302, %s291, 64, 64, 4
        $region40: #{unet_up_forward.1} parent=35 // pred_fallthru
          _
        // Predicated region
        $region41: #{unet_up_forward.1} parent=35 // pred_check
          %p308 = pneg %p70
        $region42: #{unet_up_forward.1} parent=35 // pred_check_branch
          %310 = sbr.rel (%p308) target = $region44
        $region43: #{unet_up_forward.1} parent=35 // pred_region
          %s311 = sand.u32 %s24, 1
          %s312 = scalar_lea.sflag [#allocation7], %s311
          %s313 = sand.u32 %s60, 1
          %s314 = smul.addr %s313, 32
          %s315 = scalar_lea.vmem [#allocation6], %s314
          %s317 = ssub.s32 512, 512
          %318 = vsyncadd %s312, %s317
          %s319 = smul.addr %s24, 8
          %s320 = smul.addr %s319, 64
          %s321 = scalar_lea.hbm %s1, %s320
          %s322 = sshll.u32 %s315, 4
          %s323 = int_to_ptr.vmem [resolvable:$true] %s322
          %328 = dma.hbm_to_vmem [thread:$0]  %s321, 512, %s323, %s312, 64, 64, 4
        $region44: #{unet_up_forward.1} parent=35 // pred_fallthru
          _
      $region36: #{unet_up_forward.1} parent=5 // pred_fallthru
        _
      %p329 = scmp.le.s32.totalorder 1, %s24
      %p330 = scmp.lt.s32.totalorder %s24, 3
      %p331 = pnand %p329, %p330
      %p332 = pneg %p331
      // Predicated region
      $region45: #{unet_up_forward.1} parent=5 // pred_check
        _
      $region46: #{unet_up_forward.1} parent=5 // pred_check_branch
        %334 = sbr.rel (%p331) target = $region48
      $region47: #{unet_up_forward.1} parent=5 // pred_region
        %s335 = ssub.s32 %s24, 1
        %s336 = sand.u32 %s37, 1
        %s337 = scalar_lea.sflag [#allocation4], %s336
        %s338 = sand.u32 %s37, 1
        %s339 = smul.addr %s338, 96
        %s340 = scalar_lea.vmem [#allocation3], %s339
        // Predicated region
        $region49: #{unet_up_forward.1} parent=47 // pred_check
          %p341 = pneg %p50
        $region50: #{unet_up_forward.1} parent=47 // pred_check_branch
          %343 = sbr.rel (%p341) target = $region52
        $region51: #{unet_up_forward.1} parent=47 // pred_region
          %344 = dma.done %s337, 1536
        $region52: #{unet_up_forward.1} parent=47 // pred_fallthru
          _
        %s345 = sand.u32 %s29, 1
        %s346 = scalar_lea.sflag [#allocation7], %s345
        %s347 = sand.u32 %s63, 1
        %s348 = smul.addr %s347, 32
        %s349 = scalar_lea.vmem [#allocation6], %s348
        // Predicated region
        $region53: #{unet_up_forward.1} parent=47 // pred_check
          %p350 = pneg %p76
        $region54: #{unet_up_forward.1} parent=47 // pred_check_branch
          %352 = sbr.rel (%p350) target = $region56
        $region55: #{unet_up_forward.1} parent=47 // pred_region
          %353 = dma.done %s346, 512
        $region56: #{unet_up_forward.1} parent=47 // pred_fallthru
          _
        // Predicated region
        $region57: #{unet_up_forward.1} parent=47 // pred_check
          %p354 = pneg %p97
        $region58: #{unet_up_forward.1} parent=47 // pred_check_branch
          %356 = sbr.rel (%p354) target = $region60
        $region59: #{unet_up_forward.1} parent=47 // pred_region
          %357 = dma.done [#allocation7], 256
        $region60: #{unet_up_forward.1} parent=47 // pred_fallthru
          _
        // Predicated region
        $region61: #{unet_up_forward.1} parent=47 // pred_check
          %p358 = pneg %p118
        $region62: #{unet_up_forward.1} parent=47 // pred_check_branch
          %360 = sbr.rel (%p358) target = $region64
        $region63: #{unet_up_forward.1} parent=47 // pred_region
          %361 = dma.done [#allocation10], 576
        $region64: #{unet_up_forward.1} parent=47 // pred_fallthru
          _
        // Predicated region
        $region65: #{unet_up_forward.1} parent=47 // pred_check
          %p362 = pneg %p139
        $region66: #{unet_up_forward.1} parent=47 // pred_check_branch
          %364 = sbr.rel (%p362) target = $region68
        $region67: #{unet_up_forward.1} parent=47 // pred_region
          %365 = dma.done [#allocation10], 16
        $region68: #{unet_up_forward.1} parent=47 // pred_fallthru
          _
        // Predicated region
        $region69: #{unet_up_forward.1} parent=47 // pred_check
          %p366 = pneg %p160
        $region70: #{unet_up_forward.1} parent=47 // pred_check_branch
          %368 = sbr.rel (%p366) target = $region72
        $region71: #{unet_up_forward.1} parent=47 // pred_region
          %369 = dma.done [#allocation13], 288
        $region72: #{unet_up_forward.1} parent=47 // pred_fallthru
          _
        // Predicated region
        $region73: #{unet_up_forward.1} parent=47 // pred_check
          %p370 = pneg %p181
        $region74: #{unet_up_forward.1} parent=47 // pred_check_branch
          %372 = sbr.rel (%p370) target = $region76
        $region75: #{unet_up_forward.1} parent=47 // pred_region
          %373 = dma.done [#allocation13], 16
        $region76: #{unet_up_forward.1} parent=47 // pred_fallthru
          _
        %s374 = sand.u32 %s37, 1
        %s375 = scalar_lea.sflag [#allocation4], %s374
        %s376 = sand.u32 %s37, 1
        %s377 = smul.addr %s376, 96
        %s378 = scalar_lea.vmem [#allocation3], %s377
        %p379 = pneg %p50
        %p380 = pneg %p47
        %s381 = sand.u32 %s29, 1
        %s382 = scalar_lea.sflag [#allocation7], %s381
        %s383 = sand.u32 %s63, 1
        %s384 = smul.addr %s383, 32
        %s385 = scalar_lea.vmem [#allocation6], %s384
        %p386 = pneg %p76
        %p387 = pneg %p73
        %p388 = pneg %p97
        %p389 = pneg %p94
        %p390 = pneg %p118
        %p391 = pneg %p115
        %p392 = pneg %p139
        %p393 = pneg %p136
        %p394 = pneg %p160
        %p395 = pneg %p157
        %p396 = pneg %p181
        %p397 = pneg %p178
        %p398 = pneg %p207
        %p399 = pneg %p204
        %s400 = sand.u32 %s194, 1
        %s401 = scalar_lea.sflag [#allocation5], %s400
        %s402 = sand.u32 %s194, 1
        %s403 = smul.addr %s402, 192
        %s404 = scalar_lea.vmem [#allocation15], %s403
        %vm406 = vcmask 64512
        %407 = vst.msk [vmem:[#allocation2] sm:$0xff] %vm406, 0
        %408 = vst.msk [vmem:[#allocation2 + $0x8] sm:$0xff] %vm406, 0
        %s409 = scalar_lea.vmem [#allocation2], 112
        %410 = vst.msk [vmem:[%s409] sm:$0xff] %vm406, 0
        %411 = vst.msk [vmem:[%s409 + $0x8] sm:$0xff] %vm406, 0
        %vm412 = vcmask 57344
        %413 = vst.msk [vmem:[#allocation2] sm:$0x1] %vm412, 0
        %414 = vst.msk [vmem:[#allocation2 + $0x8] sm:$0x1] %vm412, 0
        %415 = vst.msk [vmem:[#allocation2 + $0x10] sm:$0x1] %vm412, 0
        %416 = vst.msk [vmem:[#allocation2 + $0x18] sm:$0x1] %vm412, 0
        %417 = vst.msk [vmem:[#allocation2 + $0x20] sm:$0x1] %vm412, 0
        %418 = vst.msk [vmem:[#allocation2 + $0x28] sm:$0x1] %vm412, 0
        %419 = vst.msk [vmem:[#allocation2 + $0x30] sm:$0x1] %vm412, 0
        %420 = vst.msk [vmem:[#allocation2 + $0x38] sm:$0x1] %vm412, 0
        %421 = vst.msk [vmem:[#allocation2 + $0x40] sm:$0x1] %vm412, 0
        %422 = vst.msk [vmem:[#allocation2 + $0x48] sm:$0x1] %vm412, 0
        %423 = vst.msk [vmem:[#allocation2 + $0x50] sm:$0x1] %vm412, 0
        %424 = vst.msk [vmem:[#allocation2 + $0x58] sm:$0x1] %vm412, 0
        %425 = vst.msk [vmem:[#allocation2 + $0x60] sm:$0x1] %vm412, 0
        %426 = vst.msk [vmem:[#allocation2 + $0x68] sm:$0x1] %vm412, 0
        %427 = vst.msk [vmem:[#allocation2 + $0x70] sm:$0x1] %vm412, 0
        %428 = vst.msk [vmem:[#allocation2 + $0x78] sm:$0x1] %vm412, 0
        %vm429 = vcmask 64519
        %430 = vst.msk [vmem:[#allocation2] sm:$0x80] %vm429, 0
        %431 = vst.msk [vmem:[#allocation2 + $0x8] sm:$0x80] %vm429, 0
        %432 = vst.msk [vmem:[#allocation2 + $0x10] sm:$0x80] %vm429, 0
        %433 = vst.msk [vmem:[#allocation2 + $0x18] sm:$0x80] %vm429, 0
        %434 = vst.msk [vmem:[#allocation2 + $0x20] sm:$0x80] %vm429, 0
        %435 = vst.msk [vmem:[#allocation2 + $0x28] sm:$0x80] %vm429, 0
        %436 = vst.msk [vmem:[#allocation2 + $0x30] sm:$0x80] %vm429, 0
        %437 = vst.msk [vmem:[#allocation2 + $0x38] sm:$0x80] %vm429, 0
        %438 = vst.msk [vmem:[#allocation2 + $0x40] sm:$0x80] %vm429, 0
        %439 = vst.msk [vmem:[#allocation2 + $0x48] sm:$0x80] %vm429, 0
        %440 = vst.msk [vmem:[#allocation2 + $0x50] sm:$0x80] %vm429, 0
        %441 = vst.msk [vmem:[#allocation2 + $0x58] sm:$0x80] %vm429, 0
        %442 = vst.msk [vmem:[#allocation2 + $0x60] sm:$0x80] %vm429, 0
        %443 = vst.msk [vmem:[#allocation2 + $0x68] sm:$0x80] %vm429, 0
        %444 = vst.msk [vmem:[#allocation2 + $0x70] sm:$0x80] %vm429, 0
        %445 = vst.msk [vmem:[#allocation2 + $0x78] sm:$0x80] %vm429, 0
        %v446 = vld [vmem:[%s340] sm:$0xf]
        %v447 = vld [vmem:[%s340 + $0x4] sm:$0x3]
        %v448 = vld [vmem:[%s340 + $0x8] sm:$0xf]
        %v449 = vld [vmem:[%s340 + $0xc] sm:$0x3]
        %v450 = vld [vmem:[%s340 + $0x10] sm:$0xf]
        %v451 = vld [vmem:[%s340 + $0x14] sm:$0x3]
        %v452 = vld [vmem:[%s340 + $0x18] sm:$0xf]
        %v453 = vld [vmem:[%s340 + $0x1c] sm:$0x3]
        %v454 = vld [vmem:[%s340 + $0x20] sm:$0xf]
        %v455 = vld [vmem:[%s340 + $0x24] sm:$0x3]
        %v456 = vld [vmem:[%s340 + $0x28] sm:$0xf]
        %v457 = vld [vmem:[%s340 + $0x2c] sm:$0x3]
        %v458 = vld [vmem:[%s340 + $0x30] sm:$0xf]
        %v459 = vld [vmem:[%s340 + $0x34] sm:$0x3]
        %v460 = vld [vmem:[%s340 + $0x38] sm:$0xf]
        %v461 = vld [vmem:[%s340 + $0x3c] sm:$0x3]
        %v462 = vld [vmem:[%s340 + $0x40] sm:$0xf]
        %v463 = vld [vmem:[%s340 + $0x44] sm:$0x3]
        %v464 = vld [vmem:[%s340 + $0x48] sm:$0xf]
        %v465 = vld [vmem:[%s340 + $0x4c] sm:$0x3]
        %v466 = vld [vmem:[%s340 + $0x50] sm:$0xf]
        %v467 = vld [vmem:[%s340 + $0x54] sm:$0x3]
        %v468 = vld [vmem:[%s340 + $0x58] sm:$0xf]
        %v469 = vld [vmem:[%s340 + $0x5c] sm:$0x3]
        %v494 = vunpack.c.l.b16 %v446
        %v495 = vunpack.c.l.b16 %v447
        %v496 = vunpack.c.l.b16 %v448
        %v497 = vunpack.c.l.b16 %v449
        %v498 = vunpack.c.l.b16 %v450
        %v499 = vunpack.c.l.b16 %v451
        %v500 = vunpack.c.l.b16 %v452
        %v501 = vunpack.c.l.b16 %v453
        %v502 = vunpack.c.l.b16 %v454
        %v503 = vunpack.c.l.b16 %v455
        %v504 = vunpack.c.l.b16 %v456
        %v505 = vunpack.c.l.b16 %v457
        %v506 = vunpack.c.l.b16 %v458
        %v507 = vunpack.c.l.b16 %v459
        %v508 = vunpack.c.l.b16 %v460
        %v509 = vunpack.c.l.b16 %v461
        %v510 = vunpack.c.l.b16 %v462
        %v511 = vunpack.c.l.b16 %v463
        %v512 = vunpack.c.l.b16 %v464
        %v513 = vunpack.c.l.b16 %v465
        %v514 = vunpack.c.l.b16 %v466
        %v515 = vunpack.c.l.b16 %v467
        %v516 = vunpack.c.l.b16 %v468
        %v517 = vunpack.c.l.b16 %v469
        %v518 = vpack.c.b16 %v495, %v494
        %v519 = vpack.c.b16 %v497, %v496
        %v520 = vpack.c.b16 %v499, %v498
        %v521 = vpack.c.b16 %v501, %v500
        %v522 = vpack.c.b16 %v503, %v502
        %v523 = vpack.c.b16 %v505, %v504
        %v524 = vpack.c.b16 %v507, %v506
        %v525 = vpack.c.b16 %v509, %v508
        %v526 = vpack.c.b16 %v511, %v510
        %v527 = vpack.c.b16 %v513, %v512
        %v528 = vpack.c.b16 %v515, %v514
        %v529 = vpack.c.b16 %v517, %v516
        %v530 = vrot.slane %v518, 7
        %v531 = vrot.slane %v519, 7
        %v532 = vrot.slane %v520, 7
        %v533 = vrot.slane %v521, 7
        %v534 = vrot.slane %v522, 7
        %v535 = vrot.slane %v523, 7
        %v536 = vrot.slane %v524, 7
        %v537 = vrot.slane %v525, 7
        %v538 = vrot.slane %v526, 7
        %v539 = vrot.slane %v527, 7
        %v540 = vrot.slane %v528, 7
        %v541 = vrot.slane %v529, 7
        %s554 = scalar_lea.vmem [#allocation2], 16
        %vm555 = vcmask 30721
        %556 = vst.msk [vmem:[%s554] sm:$0x7e] %vm555, %v530
        %557 = vst.msk [vmem:[%s554 + $0x8] sm:$0x7e] %vm555, %v531
        %558 = vst.msk [vmem:[%s554 + $0x10] sm:$0x7e] %vm555, %v532
        %559 = vst.msk [vmem:[%s554 + $0x18] sm:$0x7e] %vm555, %v533
        %560 = vst.msk [vmem:[%s554 + $0x20] sm:$0x7e] %vm555, %v534
        %561 = vst.msk [vmem:[%s554 + $0x28] sm:$0x7e] %vm555, %v535
        %562 = vst.msk [vmem:[%s554 + $0x30] sm:$0x7e] %vm555, %v536
        %563 = vst.msk [vmem:[%s554 + $0x38] sm:$0x7e] %vm555, %v537
        %564 = vst.msk [vmem:[%s554 + $0x40] sm:$0x7e] %vm555, %v538
        %565 = vst.msk [vmem:[%s554 + $0x48] sm:$0x7e] %vm555, %v539
        %566 = vst.msk [vmem:[%s554 + $0x50] sm:$0x7e] %vm555, %v540
        %567 = vst.msk [vmem:[%s554 + $0x58] sm:$0x7e] %vm555, %v541
        %v568 = vld [vmem:[%s349] sm:$0xf]
        %v569 = vld [vmem:[%s349 + $0x4] sm:$0xf]
        %v570 = vld [vmem:[%s349 + $0x8] sm:$0xf]
        %v571 = vld [vmem:[%s349 + $0xc] sm:$0xf]
        %v572 = vld [vmem:[%s349 + $0x10] sm:$0xf]
        %v573 = vld [vmem:[%s349 + $0x14] sm:$0xf]
        %v574 = vld [vmem:[%s349 + $0x18] sm:$0xf]
        %v575 = vld [vmem:[%s349 + $0x1c] sm:$0xf]
        %v576 = vld [vmem:[#allocation8] sm:$0xf]
        %v585 = vunpack.c.l.b16 %v568
        %v586 = vunpack.c.l.b16 %v569
        %v587 = vunpack.c.l.b16 %v570
        %v588 = vunpack.c.l.b16 %v571
        %v589 = vunpack.c.l.b16 %v572
        %v590 = vunpack.c.l.b16 %v573
        %v591 = vunpack.c.l.b16 %v574
        %v592 = vunpack.c.l.b16 %v575
        %v593 = vpack.c.b16 %v586, %v585
        %v594 = vpack.c.b16 %v588, %v587
        %v595 = vpack.c.b16 %v590, %v589
        %v596 = vpack.c.b16 %v592, %v591
        %v598 = vsel %vm406, %v593, 0
        %v601 = vsel %vm406, %v594, 0
        %v604 = vsel %vm406, %v595, 0
        %v607 = vsel %vm406, %v596, 0
        %vm609 = vcmask 1043456
        %v611 = vsel %vm609, %v576, 0
        %613 = vmatprep.subr.bf16.mxu0 0
        %614 = vmatpush1.bf16.msra.mxu0 %v611
        %615 = vmatprep.subr.bf16.mxu0 0
        %616 = vmatpush1.bf16.msra.mxu0 0
        %617 = vmatprep.subr.bf16.mxu0 0
        %618 = vmatpush1.bf16.msra.mxu0 0
        %619 = vmatprep.subr.bf16.mxu0 0
        %620 = vmatpush1.bf16.msra.mxu0 0
        %621 = vmatprep.subr.bf16.mxu0 0
        %622 = vmatpush1.bf16.msra.mxu0 0
        %623 = vmatprep.subr.bf16.mxu0 0
        %624 = vmatpush1.bf16.msra.mxu0 0
        %625 = vmatprep.subr.bf16.mxu0 0
        %626 = vmatpush1.bf16.msra.mxu0 0
        %627 = vmatprep.subr.bf16.mxu0 0
        %628 = vmatpush1.bf16.msra.mxu0 0
        %629 = vmatprep.subr.bf16.mxu0 0
        %630 = vmatpush1.bf16.msra.mxu0 0
        %631 = vmatprep.subr.bf16.mxu0 0
        %632 = vmatpush1.bf16.msra.mxu0 0
        %633 = vmatprep.subr.bf16.mxu0 0
        %634 = vmatpush1.bf16.msra.mxu0 0
        %635 = vmatprep.subr.bf16.mxu0 0
        %636 = vmatpush1.bf16.msra.mxu0 0
        %637 = vmatprep.subr.bf16.mxu0 0
        %638 = vmatpush1.bf16.msra.mxu0 0
        %639 = vmatprep.subr.bf16.mxu0 0
        %640 = vmatpush1.bf16.msra.mxu0 0
        %641 = vmatprep.subr.bf16.mxu0 0
        %642 = vmatpush1.bf16.msra.mxu0 0
        %643 = vmatprep.subr.bf16.mxu0 0
        %644 = vmatpush1.bf16.msra.mxu0 0
        %645 = vmatprep.mubr.bf16.mxu0 0
        %646 = vmatmul.mubr.bf16.gmra.mrb[0].mxu0 %v598
        %v647 = vpop.f32.mrb[0].mxu0
        %v648 = vadd.f32 0.0, %v647
        %v649 = vpop.f32.mrb[0].mxu0
        %v650 = vpop.f32.mrb[0].mxu0
        %v651 = vadd.f32 0.0, %v650
        %v652 = vpop.f32.mrb[0].mxu0
        %653 = vmatprep.mubr.bf16.mxu0 0
        %654 = vmatmul.mubr.bf16.gmra.mrb[0].mxu0 %v601
        %v655 = vpop.f32.mrb[0].mxu0
        %v656 = vadd.f32 0.0, %v655
        %v657 = vpop.f32.mrb[0].mxu0
        %v658 = vpop.f32.mrb[0].mxu0
        %v659 = vadd.f32 0.0, %v658
        %v660 = vpop.f32.mrb[0].mxu0
        %661 = vmatprep.mubr.bf16.mxu0 0
        %662 = vmatmul.mubr.bf16.gmra.mrb[0].mxu0 %v604
        %v663 = vpop.f32.mrb[0].mxu0
        %v664 = vadd.f32 0.0, %v663
        %v665 = vpop.f32.mrb[0].mxu0
        %v666 = vpop.f32.mrb[0].mxu0
        %v667 = vadd.f32 0.0, %v666
        %v668 = vpop.f32.mrb[0].mxu0
        %669 = vmatprep.mubr.bf16.mxu0 0
        %670 = vmatmul.mubr.bf16.gmra.mrb[0].mxu0 %v607
        %v671 = vpop.f32.mrb[0].mxu0
        %v672 = vadd.f32 0.0, %v671
        %v673 = vpop.f32.mrb[0].mxu0
        %v674 = vpop.f32.mrb[0].mxu0
        %v675 = vadd.f32 0.0, %v674
        %v676 = vpop.f32.mrb[0].mxu0
        %677 = vdwg.mxu0
        %v678 = vpack.c.bf16 %v651, %v648
        %v679 = vpack.c.bf16 %v659, %v656
        %v680 = vpack.c.bf16 %v667, %v664
        %v681 = vpack.c.bf16 %v675, %v672
        %s682 = scalar_lea.vmem [#allocation8], 4
        %v683 = vld [vmem:[%s682] sm:$0xf]
        %v685 = vsel %vm609, %v683, 0
        %687 = vmatprep.subr.bf16.mxu0 0
        %688 = vmatpush1.bf16.msra.mxu0 %v685
        %689 = vmatprep.subr.bf16.mxu0 0
        %690 = vmatpush1.bf16.msra.mxu0 0
        %691 = vmatprep.subr.bf16.mxu0 0
        %692 = vmatpush1.bf16.msra.mxu0 0
        %693 = vmatprep.subr.bf16.mxu0 0
        %694 = vmatpush1.bf16.msra.mxu0 0
        %695 = vmatprep.subr.bf16.mxu0 0
        %696 = vmatpush1.bf16.msra.mxu0 0
        %697 = vmatprep.subr.bf16.mxu0 0
        %698 = vmatpush1.bf16.msra.mxu0 0
        %699 = vmatprep.subr.bf16.mxu0 0
        %700 = vmatpush1.bf16.msra.mxu0 0
        %701 = vmatprep.subr.bf16.mxu0 0
        %702 = vmatpush1.bf16.msra.mxu0 0
        %703 = vmatprep.subr.bf16.mxu0 0
        %704 = vmatpush1.bf16.msra.mxu0 0
        %705 = vmatprep.subr.bf16.mxu0 0
        %706 = vmatpush1.bf16.msra.mxu0 0
        %707 = vmatprep.subr.bf16.mxu0 0
        %708 = vmatpush1.bf16.msra.mxu0 0
        %709 = vmatprep.subr.bf16.mxu0 0
        %710 = vmatpush1.bf16.msra.mxu0 0
        %711 = vmatprep.subr.bf16.mxu0 0
        %712 = vmatpush1.bf16.msra.mxu0 0
        %713 = vmatprep.subr.bf16.mxu0 0
        %714 = vmatpush1.bf16.msra.mxu0 0
        %715 = vmatprep.subr.bf16.mxu0 0
        %716 = vmatpush1.bf16.msra.mxu0 0
        %717 = vmatprep.subr.bf16.mxu0 0
        %718 = vmatpush1.bf16.msra.mxu0 0
        %719 = vmatprep.mubr.bf16.mxu0 0
        %720 = vmatmul.mubr.bf16.gmra.mrb[0].mxu0 %v598
        %v721 = vpop.f32.mrb[0].mxu0
        %v722 = vadd.f32 0.0, %v721
        %v723 = vpop.f32.mrb[0].mxu0
        %v724 = vpop.f32.mrb[0].mxu0
        %v725 = vadd.f32 0.0, %v724
        %v726 = vpop.f32.mrb[0].mxu0
        %727 = vmatprep.mubr.bf16.mxu0 0
        %728 = vmatmul.mubr.bf16.gmra.mrb[0].mxu0 %v601
        %v729 = vpop.f32.mrb[0].mxu0
        %v730 = vadd.f32 0.0, %v729
        %v731 = vpop.f32.mrb[0].mxu0
        %v732 = vpop.f32.mrb[0].mxu0
        %v733 = vadd.f32 0.0, %v732
        %v734 = vpop.f32.mrb[0].mxu0
        %735 = vmatprep.mubr.bf16.mxu0 0
        %736 = vmatmul.mubr.bf16.gmra.mrb[0].mxu0 %v604
        %v737 = vpop.f32.mrb[0].mxu0
        %v738 = vadd.f32 0.0, %v737
        %v739 = vpop.f32.mrb[0].mxu0
        %v740 = vpop.f32.mrb[0].mxu0
        %v741 = vadd.f32 0.0, %v740
        %v742 = vpop.f32.mrb[0].mxu0
        %743 = vmatprep.mubr.bf16.mxu0 0
        %744 = vmatmul.mubr.bf16.gmra.mrb[0].mxu0 %v607
        %v745 = vpop.f32.mrb[0].mxu0
        %v746 = vadd.f32 0.0, %v745
        %v747 = vpop.f32.mrb[0].mxu0
        %v748 = vpop.f32.mrb[0].mxu0
        %v749 = vadd.f32 0.0, %v748
        %v750 = vpop.f32.mrb[0].mxu0
        %751 = vdwg.mxu0
        %v752 = vpack.c.bf16 %v725, %v722
        %v753 = vpack.c.bf16 %v733, %v730
        %v754 = vpack.c.bf16 %v741, %v738
        %v755 = vpack.c.bf16 %v749, %v746
        %v760 = vcombine.high %v678, %v678
        %v762 = vunpack.c.l.s4 1966171168
        %v763 = vunpack.c.0.s8 %v762
        %v764 = vlaneseq
        %v765 = vshrl.u32 %v764, 7
        %v766 = vsub.s32 %v763, %v765
        %v767 = vrot.slane %v678, %v766
        %v769 = vunpack.c.l.s4 1966171168
        %v770 = vunpack.c.0.s8 %v769
        %v771 = vlaneseq
        %v772 = vshrl.u32 %v771, 7
        %v773 = vsub.s32 %v770, %v772
        %v774 = vrot.slane %v760, %v773
        %v775 = vcombine.high %v767, %v767
        %v776 = vcombine.high %v774, %v774
        %v778 = vunpack.c.l.s4 1966171168
        %v779 = vunpack.c.0.s8 %v778
        %v780 = vlaneseq
        %v781 = vshrl.u32 %v780, 7
        %v782 = vsub.s32 %v779, %v781
        %v783 = vrot.slane %v767, %v782
        %v785 = vunpack.c.l.s4 1966171168
        %v786 = vunpack.c.0.s8 %v785
        %v787 = vlaneseq
        %v788 = vshrl.u32 %v787, 7
        %v789 = vsub.s32 %v786, %v788
        %v790 = vrot.slane %v774, %v789
        %v792 = vunpack.c.l.s4 1966171168
        %v793 = vunpack.c.0.s8 %v792
        %v794 = vlaneseq
        %v795 = vshrl.u32 %v794, 7
        %v796 = vsub.s32 %v793, %v795
        %v797 = vrot.slane %v775, %v796
        %v799 = vunpack.c.l.s4 1966171168
        %v800 = vunpack.c.0.s8 %v799
        %v801 = vlaneseq
        %v802 = vshrl.u32 %v801, 7
        %v803 = vsub.s32 %v800, %v802
        %v804 = vrot.slane %v776, %v803
        %v805 = vcombine.high %v783, %v783
        %v806 = vcombine.high %v790, %v790
        %v807 = vcombine.high %v797, %v797
        %v808 = vcombine.high %v804, %v804
        %v809 = vcombine.high %v679, %v679
        %v811 = vunpack.c.l.s4 1966171168
        %v812 = vunpack.c.0.s8 %v811
        %v813 = vlaneseq
        %v814 = vshrl.u32 %v813, 7
        %v815 = vsub.s32 %v812, %v814
        %v816 = vrot.slane %v679, %v815
        %v818 = vunpack.c.l.s4 1966171168
        %v819 = vunpack.c.0.s8 %v818
        %v820 = vlaneseq
        %v821 = vshrl.u32 %v820, 7
        %v822 = vsub.s32 %v819, %v821
        %v823 = vrot.slane %v809, %v822
        %v824 = vcombine.high %v816, %v816
        %v825 = vcombine.high %v823, %v823
        %v827 = vunpack.c.l.s4 1966171168
        %v828 = vunpack.c.0.s8 %v827
        %v829 = vlaneseq
        %v830 = vshrl.u32 %v829, 7
        %v831 = vsub.s32 %v828, %v830
        %v832 = vrot.slane %v816, %v831
        %v834 = vunpack.c.l.s4 1966171168
        %v835 = vunpack.c.0.s8 %v834
        %v836 = vlaneseq
        %v837 = vshrl.u32 %v836, 7
        %v838 = vsub.s32 %v835, %v837
        %v839 = vrot.slane %v823, %v838
        %v841 = vunpack.c.l.s4 1966171168
        %v842 = vunpack.c.0.s8 %v841
        %v843 = vlaneseq
        %v844 = vshrl.u32 %v843, 7
        %v845 = vsub.s32 %v842, %v844
        %v846 = vrot.slane %v824, %v845
        %v848 = vunpack.c.l.s4 1966171168
        %v849 = vunpack.c.0.s8 %v848
        %v850 = vlaneseq
        %v851 = vshrl.u32 %v850, 7
        %v852 = vsub.s32 %v849, %v851
        %v853 = vrot.slane %v825, %v852
        %v854 = vcombine.high %v832, %v832
        %v855 = vcombine.high %v839, %v839
        %v856 = vcombine.high %v846, %v846
        %v857 = vcombine.high %v853, %v853
        %v858 = vcombine.high %v680, %v680
        %v860 = vunpack.c.l.s4 1966171168
        %v861 = vunpack.c.0.s8 %v860
        %v862 = vlaneseq
        %v863 = vshrl.u32 %v862, 7
        %v864 = vsub.s32 %v861, %v863
        %v865 = vrot.slane %v680, %v864
        %v867 = vunpack.c.l.s4 1966171168
        %v868 = vunpack.c.0.s8 %v867
        %v869 = vlaneseq
        %v870 = vshrl.u32 %v869, 7
        %v871 = vsub.s32 %v868, %v870
        %v872 = vrot.slane %v858, %v871
        %v873 = vcombine.high %v865, %v865
        %v874 = vcombine.high %v872, %v872
        %v876 = vunpack.c.l.s4 1966171168
        %v877 = vunpack.c.0.s8 %v876
        %v878 = vlaneseq
        %v879 = vshrl.u32 %v878, 7
        %v880 = vsub.s32 %v877, %v879
        %v881 = vrot.slane %v865, %v880
        %v883 = vunpack.c.l.s4 1966171168
        %v884 = vunpack.c.0.s8 %v883
        %v885 = vlaneseq
        %v886 = vshrl.u32 %v885, 7
        %v887 = vsub.s32 %v884, %v886
        %v888 = vrot.slane %v872, %v887
        %v890 = vunpack.c.l.s4 1966171168
        %v891 = vunpack.c.0.s8 %v890
        %v892 = vlaneseq
        %v893 = vshrl.u32 %v892, 7
        %v894 = vsub.s32 %v891, %v893
        %v895 = vrot.slane %v873, %v894
        %v897 = vunpack.c.l.s4 1966171168
        %v898 = vunpack.c.0.s8 %v897
        %v899 = vlaneseq
        %v900 = vshrl.u32 %v899, 7
        %v901 = vsub.s32 %v898, %v900
        %v902 = vrot.slane %v874, %v901
        %v903 = vcombine.high %v881, %v881
        %v904 = vcombine.high %v888, %v888
        %v905 = vcombine.high %v895, %v895
        %v906 = vcombine.high %v902, %v902
        %v907 = vcombine.high %v681, %v681
        %v909 = vunpack.c.l.s4 1966171168
        %v910 = vunpack.c.0.s8 %v909
        %v911 = vlaneseq
        %v912 = vshrl.u32 %v911, 7
        %v913 = vsub.s32 %v910, %v912
        %v914 = vrot.slane %v681, %v913
        %v916 = vunpack.c.l.s4 1966171168
        %v917 = vunpack.c.0.s8 %v916
        %v918 = vlaneseq
        %v919 = vshrl.u32 %v918, 7
        %v920 = vsub.s32 %v917, %v919
        %v921 = vrot.slane %v907, %v920
        %v922 = vcombine.high %v914, %v914
        %v923 = vcombine.high %v921, %v921
        %v925 = vunpack.c.l.s4 1966171168
        %v926 = vunpack.c.0.s8 %v925
        %v927 = vlaneseq
        %v928 = vshrl.u32 %v927, 7
        %v929 = vsub.s32 %v926, %v928
        %v930 = vrot.slane %v914, %v929
        %v932 = vunpack.c.l.s4 1966171168
        %v933 = vunpack.c.0.s8 %v932
        %v934 = vlaneseq
        %v935 = vshrl.u32 %v934, 7
        %v936 = vsub.s32 %v933, %v935
        %v937 = vrot.slane %v921, %v936
        %v939 = vunpack.c.l.s4 1966171168
        %v940 = vunpack.c.0.s8 %v939
        %v941 = vlaneseq
        %v942 = vshrl.u32 %v941, 7
        %v943 = vsub.s32 %v940, %v942
        %v944 = vrot.slane %v922, %v943
        %v946 = vunpack.c.l.s4 1966171168
        %v947 = vunpack.c.0.s8 %v946
        %v948 = vlaneseq
        %v949 = vshrl.u32 %v948, 7
        %v950 = vsub.s32 %v947, %v949
        %v951 = vrot.slane %v923, %v950
        %v952 = vcombine.high %v930, %v930
        %v953 = vcombine.high %v937, %v937
        %v954 = vcombine.high %v944, %v944
        %v955 = vcombine.high %v951, %v951
        %v956 = vunpack.i.l.s16 %v783
        %v957 = vunpack.i.h.s16 %v783
        %v958 = vunpack.i.l.s16 %v797
        %v959 = vunpack.i.h.s16 %v797
        %v960 = vunpack.i.l.s16 %v805
        %v961 = vunpack.i.h.s16 %v805
        %v962 = vunpack.i.l.s16 %v807
        %v963 = vunpack.i.h.s16 %v807
        %v964 = vunpack.i.l.s16 %v790
        %v965 = vunpack.i.h.s16 %v790
        %v966 = vunpack.i.l.s16 %v804
        %v967 = vunpack.i.h.s16 %v804
        %v968 = vunpack.i.l.s16 %v806
        %v969 = vunpack.i.h.s16 %v806
        %v970 = vunpack.i.l.s16 %v808
        %v971 = vunpack.i.h.s16 %v808
        %v972 = vunpack.i.l.s16 %v832
        %v973 = vunpack.i.h.s16 %v832
        %v974 = vunpack.i.l.s16 %v846
        %v975 = vunpack.i.h.s16 %v846
        %v976 = vunpack.i.l.s16 %v854
        %v977 = vunpack.i.h.s16 %v854
        %v978 = vunpack.i.l.s16 %v856
        %v979 = vunpack.i.h.s16 %v856
        %v980 = vunpack.i.l.s16 %v839
        %v981 = vunpack.i.h.s16 %v839
        %v982 = vunpack.i.l.s16 %v853
        %v983 = vunpack.i.h.s16 %v853
        %v984 = vunpack.i.l.s16 %v855
        %v985 = vunpack.i.h.s16 %v855
        %v986 = vunpack.i.l.s16 %v857
        %v987 = vunpack.i.h.s16 %v857
        %v988 = vunpack.i.l.s16 %v881
        %v989 = vunpack.i.h.s16 %v881
        %v990 = vunpack.i.l.s16 %v895
        %v991 = vunpack.i.h.s16 %v895
        %v992 = vunpack.i.l.s16 %v903
        %v993 = vunpack.i.h.s16 %v903
        %v994 = vunpack.i.l.s16 %v905
        %v995 = vunpack.i.h.s16 %v905
        %v996 = vunpack.i.l.s16 %v888
        %v997 = vunpack.i.h.s16 %v888
        %v998 = vunpack.i.l.s16 %v902
        %v999 = vunpack.i.h.s16 %v902
        %v1000 = vunpack.i.l.s16 %v904
        %v1001 = vunpack.i.h.s16 %v904
        %v1002 = vunpack.i.l.s16 %v906
        %v1003 = vunpack.i.h.s16 %v906
        %v1004 = vunpack.i.l.s16 %v930
        %v1005 = vunpack.i.h.s16 %v930
        %v1006 = vunpack.i.l.s16 %v944
        %v1007 = vunpack.i.h.s16 %v944
        %v1008 = vunpack.i.l.s16 %v952
        %v1009 = vunpack.i.h.s16 %v952
        %v1010 = vunpack.i.l.s16 %v954
        %v1011 = vunpack.i.h.s16 %v954
        %v1012 = vunpack.i.l.s16 %v937
        %v1013 = vunpack.i.h.s16 %v937
        %v1014 = vunpack.i.l.s16 %v951
        %v1015 = vunpack.i.h.s16 %v951
        %v1016 = vunpack.i.l.s16 %v953
        %v1017 = vunpack.i.h.s16 %v953
        %v1018 = vunpack.i.l.s16 %v955
        %v1019 = vunpack.i.h.s16 %v955
        %v1024 = vcombine.high %v752, %v752
        %v1026 = vunpack.c.l.s4 1966171168
        %v1027 = vunpack.c.0.s8 %v1026
        %v1028 = vlaneseq
        %v1029 = vshrl.u32 %v1028, 7
        %v1030 = vsub.s32 %v1027, %v1029
        %v1031 = vrot.slane %v752, %v1030
        %v1033 = vunpack.c.l.s4 1966171168
        %v1034 = vunpack.c.0.s8 %v1033
        %v1035 = vlaneseq
        %v1036 = vshrl.u32 %v1035, 7
        %v1037 = vsub.s32 %v1034, %v1036
        %v1038 = vrot.slane %v1024, %v1037
        %v1039 = vcombine.high %v1031, %v1031
        %v1040 = vcombine.high %v1038, %v1038
        %v1042 = vunpack.c.l.s4 1966171168
        %v1043 = vunpack.c.0.s8 %v1042
        %v1044 = vlaneseq
        %v1045 = vshrl.u32 %v1044, 7
        %v1046 = vsub.s32 %v1043, %v1045
        %v1047 = vrot.slane %v1031, %v1046
        %v1049 = vunpack.c.l.s4 1966171168
        %v1050 = vunpack.c.0.s8 %v1049
        %v1051 = vlaneseq
        %v1052 = vshrl.u32 %v1051, 7
        %v1053 = vsub.s32 %v1050, %v1052
        %v1054 = vrot.slane %v1038, %v1053
        %v1056 = vunpack.c.l.s4 1966171168
        %v1057 = vunpack.c.0.s8 %v1056
        %v1058 = vlaneseq
        %v1059 = vshrl.u32 %v1058, 7
        %v1060 = vsub.s32 %v1057, %v1059
        %v1061 = vrot.slane %v1039, %v1060
        %v1063 = vunpack.c.l.s4 1966171168
        %v1064 = vunpack.c.0.s8 %v1063
        %v1065 = vlaneseq
        %v1066 = vshrl.u32 %v1065, 7
        %v1067 = vsub.s32 %v1064, %v1066
        %v1068 = vrot.slane %v1040, %v1067
        %v1069 = vcombine.high %v1047, %v1047
        %v1070 = vcombine.high %v1054, %v1054
        %v1071 = vcombine.high %v1061, %v1061
        %v1072 = vcombine.high %v1068, %v1068
        %v1073 = vcombine.high %v753, %v753
        %v1075 = vunpack.c.l.s4 1966171168
        %v1076 = vunpack.c.0.s8 %v1075
        %v1077 = vlaneseq
        %v1078 = vshrl.u32 %v1077, 7
        %v1079 = vsub.s32 %v1076, %v1078
        %v1080 = vrot.slane %v753, %v1079
        %v1082 = vunpack.c.l.s4 1966171168
        %v1083 = vunpack.c.0.s8 %v1082
        %v1084 = vlaneseq
        %v1085 = vshrl.u32 %v1084, 7
        %v1086 = vsub.s32 %v1083, %v1085
        %v1087 = vrot.slane %v1073, %v1086
        %v1088 = vcombine.high %v1080, %v1080
        %v1089 = vcombine.high %v1087, %v1087
        %v1091 = vunpack.c.l.s4 1966171168
        %v1092 = vunpack.c.0.s8 %v1091
        %v1093 = vlaneseq
        %v1094 = vshrl.u32 %v1093, 7
        %v1095 = vsub.s32 %v1092, %v1094
        %v1096 = vrot.slane %v1080, %v1095
        %v1098 = vunpack.c.l.s4 1966171168
        %v1099 = vunpack.c.0.s8 %v1098
        %v1100 = vlaneseq
        %v1101 = vshrl.u32 %v1100, 7
        %v1102 = vsub.s32 %v1099, %v1101
        %v1103 = vrot.slane %v1087, %v1102
        %v1105 = vunpack.c.l.s4 1966171168
        %v1106 = vunpack.c.0.s8 %v1105
        %v1107 = vlaneseq
        %v1108 = vshrl.u32 %v1107, 7
        %v1109 = vsub.s32 %v1106, %v1108
        %v1110 = vrot.slane %v1088, %v1109
        %v1112 = vunpack.c.l.s4 1966171168
        %v1113 = vunpack.c.0.s8 %v1112
        %v1114 = vlaneseq
        %v1115 = vshrl.u32 %v1114, 7
        %v1116 = vsub.s32 %v1113, %v1115
        %v1117 = vrot.slane %v1089, %v1116
        %v1118 = vcombine.high %v1096, %v1096
        %v1119 = vcombine.high %v1103, %v1103
        %v1120 = vcombine.high %v1110, %v1110
        %v1121 = vcombine.high %v1117, %v1117
        %v1122 = vcombine.high %v754, %v754
        %v1124 = vunpack.c.l.s4 1966171168
        %v1125 = vunpack.c.0.s8 %v1124
        %v1126 = vlaneseq
        %v1127 = vshrl.u32 %v1126, 7
        %v1128 = vsub.s32 %v1125, %v1127
        %v1129 = vrot.slane %v754, %v1128
        %v1131 = vunpack.c.l.s4 1966171168
        %v1132 = vunpack.c.0.s8 %v1131
        %v1133 = vlaneseq
        %v1134 = vshrl.u32 %v1133, 7
        %v1135 = vsub.s32 %v1132, %v1134
        %v1136 = vrot.slane %v1122, %v1135
        %v1137 = vcombine.high %v1129, %v1129
        %v1138 = vcombine.high %v1136, %v1136
        %v1140 = vunpack.c.l.s4 1966171168
        %v1141 = vunpack.c.0.s8 %v1140
        %v1142 = vlaneseq
        %v1143 = vshrl.u32 %v1142, 7
        %v1144 = vsub.s32 %v1141, %v1143
        %v1145 = vrot.slane %v1129, %v1144
        %v1147 = vunpack.c.l.s4 1966171168
        %v1148 = vunpack.c.0.s8 %v1147
        %v1149 = vlaneseq
        %v1150 = vshrl.u32 %v1149, 7
        %v1151 = vsub.s32 %v1148, %v1150
        %v1152 = vrot.slane %v1136, %v1151
        %v1154 = vunpack.c.l.s4 1966171168
        %v1155 = vunpack.c.0.s8 %v1154
        %v1156 = vlaneseq
        %v1157 = vshrl.u32 %v1156, 7
        %v1158 = vsub.s32 %v1155, %v1157
        %v1159 = vrot.slane %v1137, %v1158
        %v1161 = vunpack.c.l.s4 1966171168
        %v1162 = vunpack.c.0.s8 %v1161
        %v1163 = vlaneseq
        %v1164 = vshrl.u32 %v1163, 7
        %v1165 = vsub.s32 %v1162, %v1164
        %v1166 = vrot.slane %v1138, %v1165
        %v1167 = vcombine.high %v1145, %v1145
        %v1168 = vcombine.high %v1152, %v1152
        %v1169 = vcombine.high %v1159, %v1159
        %v1170 = vcombine.high %v1166, %v1166
        %v1171 = vcombine.high %v755, %v755
        %v1173 = vunpack.c.l.s4 1966171168
        %v1174 = vunpack.c.0.s8 %v1173
        %v1175 = vlaneseq
        %v1176 = vshrl.u32 %v1175, 7
        %v1177 = vsub.s32 %v1174, %v1176
        %v1178 = vrot.slane %v755, %v1177
        %v1180 = vunpack.c.l.s4 1966171168
        %v1181 = vunpack.c.0.s8 %v1180
        %v1182 = vlaneseq
        %v1183 = vshrl.u32 %v1182, 7
        %v1184 = vsub.s32 %v1181, %v1183
        %v1185 = vrot.slane %v1171, %v1184
        %v1186 = vcombine.high %v1178, %v1178
        %v1187 = vcombine.high %v1185, %v1185
        %v1189 = vunpack.c.l.s4 1966171168
        %v1190 = vunpack.c.0.s8 %v1189
        %v1191 = vlaneseq
        %v1192 = vshrl.u32 %v1191, 7
        %v1193 = vsub.s32 %v1190, %v1192
        %v1194 = vrot.slane %v1178, %v1193
        %v1196 = vunpack.c.l.s4 1966171168
        %v1197 = vunpack.c.0.s8 %v1196
        %v1198 = vlaneseq
        %v1199 = vshrl.u32 %v1198, 7
        %v1200 = vsub.s32 %v1197, %v1199
        %v1201 = vrot.slane %v1185, %v1200
        %v1203 = vunpack.c.l.s4 1966171168
        %v1204 = vunpack.c.0.s8 %v1203
        %v1205 = vlaneseq
        %v1206 = vshrl.u32 %v1205, 7
        %v1207 = vsub.s32 %v1204, %v1206
        %v1208 = vrot.slane %v1186, %v1207
        %v1210 = vunpack.c.l.s4 1966171168
        %v1211 = vunpack.c.0.s8 %v1210
        %v1212 = vlaneseq
        %v1213 = vshrl.u32 %v1212, 7
        %v1214 = vsub.s32 %v1211, %v1213
        %v1215 = vrot.slane %v1187, %v1214
        %v1216 = vcombine.high %v1194, %v1194
        %v1217 = vcombine.high %v1201, %v1201
        %v1218 = vcombine.high %v1208, %v1208
        %v1219 = vcombine.high %v1215, %v1215
        %v1220 = vunpack.i.l.s16 %v1047
        %v1221 = vunpack.i.h.s16 %v1047
        %v1222 = vunpack.i.l.s16 %v1061
        %v1223 = vunpack.i.h.s16 %v1061
        %v1224 = vunpack.i.l.s16 %v1069
        %v1225 = vunpack.i.h.s16 %v1069
        %v1226 = vunpack.i.l.s16 %v1071
        %v1227 = vunpack.i.h.s16 %v1071
        %v1228 = vunpack.i.l.s16 %v1054
        %v1229 = vunpack.i.h.s16 %v1054
        %v1230 = vunpack.i.l.s16 %v1068
        %v1231 = vunpack.i.h.s16 %v1068
        %v1232 = vunpack.i.l.s16 %v1070
        %v1233 = vunpack.i.h.s16 %v1070
        %v1234 = vunpack.i.l.s16 %v1072
        %v1235 = vunpack.i.h.s16 %v1072
        %v1236 = vunpack.i.l.s16 %v1096
        %v1237 = vunpack.i.h.s16 %v1096
        %v1238 = vunpack.i.l.s16 %v1110
        %v1239 = vunpack.i.h.s16 %v1110
        %v1240 = vunpack.i.l.s16 %v1118
        %v1241 = vunpack.i.h.s16 %v1118
        %v1242 = vunpack.i.l.s16 %v1120
        %v1243 = vunpack.i.h.s16 %v1120
        %v1244 = vunpack.i.l.s16 %v1103
        %v1245 = vunpack.i.h.s16 %v1103
        %v1246 = vunpack.i.l.s16 %v1117
        %v1247 = vunpack.i.h.s16 %v1117
        %v1248 = vunpack.i.l.s16 %v1119
        %v1249 = vunpack.i.h.s16 %v1119
        %v1250 = vunpack.i.l.s16 %v1121
        %v1251 = vunpack.i.h.s16 %v1121
        %v1252 = vunpack.i.l.s16 %v1145
        %v1253 = vunpack.i.h.s16 %v1145
        %v1254 = vunpack.i.l.s16 %v1159
        %v1255 = vunpack.i.h.s16 %v1159
        %v1256 = vunpack.i.l.s16 %v1167
        %v1257 = vunpack.i.h.s16 %v1167
        %v1258 = vunpack.i.l.s16 %v1169
        %v1259 = vunpack.i.h.s16 %v1169
        %v1260 = vunpack.i.l.s16 %v1152
        %v1261 = vunpack.i.h.s16 %v1152
        %v1262 = vunpack.i.l.s16 %v1166
        %v1263 = vunpack.i.h.s16 %v1166
        %v1264 = vunpack.i.l.s16 %v1168
        %v1265 = vunpack.i.h.s16 %v1168
        %v1266 = vunpack.i.l.s16 %v1170
        %v1267 = vunpack.i.h.s16 %v1170
        %v1268 = vunpack.i.l.s16 %v1194
        %v1269 = vunpack.i.h.s16 %v1194
        %v1270 = vunpack.i.l.s16 %v1208
        %v1271 = vunpack.i.h.s16 %v1208
        %v1272 = vunpack.i.l.s16 %v1216
        %v1273 = vunpack.i.h.s16 %v1216
        %v1274 = vunpack.i.l.s16 %v1218
        %v1275 = vunpack.i.h.s16 %v1218
        %v1276 = vunpack.i.l.s16 %v1201
        %v1277 = vunpack.i.h.s16 %v1201
        %v1278 = vunpack.i.l.s16 %v1215
        %v1279 = vunpack.i.h.s16 %v1215
        %v1280 = vunpack.i.l.s16 %v1217
        %v1281 = vunpack.i.h.s16 %v1217
        %v1282 = vunpack.i.l.s16 %v1219
        %v1283 = vunpack.i.h.s16 %v1219
        %v1284 = vpack.i.b16 %v956, %v956
        %v1285 = vpack.i.b16 %v957, %v957
        %v1286 = vpack.i.b16 %v958, %v958
        %v1287 = vpack.i.b16 %v959, %v959
        %v1288 = vpack.i.b16 %v960, %v960
        %v1289 = vpack.i.b16 %v961, %v961
        %v1290 = vpack.i.b16 %v962, %v962
        %v1291 = vpack.i.b16 %v963, %v963
        %v1292 = vpack.i.b16 %v964, %v964
        %v1293 = vpack.i.b16 %v965, %v965
        %v1294 = vpack.i.b16 %v966, %v966
        %v1295 = vpack.i.b16 %v967, %v967
        %v1296 = vpack.i.b16 %v968, %v968
        %v1297 = vpack.i.b16 %v969, %v969
        %v1298 = vpack.i.b16 %v970, %v970
        %v1299 = vpack.i.b16 %v971, %v971
        %v1300 = vpack.i.b16 %v972, %v972
        %v1301 = vpack.i.b16 %v973, %v973
        %v1302 = vpack.i.b16 %v974, %v974
        %v1303 = vpack.i.b16 %v975, %v975
        %v1304 = vpack.i.b16 %v976, %v976
        %v1305 = vpack.i.b16 %v977, %v977
        %v1306 = vpack.i.b16 %v978, %v978
        %v1307 = vpack.i.b16 %v979, %v979
        %v1308 = vpack.i.b16 %v980, %v980
        %v1309 = vpack.i.b16 %v981, %v981
        %v1310 = vpack.i.b16 %v982, %v982
        %v1311 = vpack.i.b16 %v983, %v983
        %v1312 = vpack.i.b16 %v984, %v984
        %v1313 = vpack.i.b16 %v985, %v985
        %v1314 = vpack.i.b16 %v986, %v986
        %v1315 = vpack.i.b16 %v987, %v987
        %v1316 = vpack.i.b16 %v988, %v988
        %v1317 = vpack.i.b16 %v989, %v989
        %v1318 = vpack.i.b16 %v990, %v990
        %v1319 = vpack.i.b16 %v991, %v991
        %v1320 = vpack.i.b16 %v992, %v992
        %v1321 = vpack.i.b16 %v993, %v993
        %v1322 = vpack.i.b16 %v994, %v994
        %v1323 = vpack.i.b16 %v995, %v995
        %v1324 = vpack.i.b16 %v996, %v996
        %v1325 = vpack.i.b16 %v997, %v997
        %v1326 = vpack.i.b16 %v998, %v998
        %v1327 = vpack.i.b16 %v999, %v999
        %v1328 = vpack.i.b16 %v1000, %v1000
        %v1329 = vpack.i.b16 %v1001, %v1001
        %v1330 = vpack.i.b16 %v1002, %v1002
        %v1331 = vpack.i.b16 %v1003, %v1003
        %v1332 = vpack.i.b16 %v1004, %v1004
        %v1333 = vpack.i.b16 %v1005, %v1005
        %v1334 = vpack.i.b16 %v1006, %v1006
        %v1335 = vpack.i.b16 %v1007, %v1007
        %v1336 = vpack.i.b16 %v1008, %v1008
        %v1337 = vpack.i.b16 %v1009, %v1009
        %v1338 = vpack.i.b16 %v1010, %v1010
        %v1339 = vpack.i.b16 %v1011, %v1011
        %v1340 = vpack.i.b16 %v1012, %v1012
        %v1341 = vpack.i.b16 %v1013, %v1013
        %v1342 = vpack.i.b16 %v1014, %v1014
        %v1343 = vpack.i.b16 %v1015, %v1015
        %v1344 = vpack.i.b16 %v1016, %v1016
        %v1345 = vpack.i.b16 %v1017, %v1017
        %v1346 = vpack.i.b16 %v1018, %v1018
        %v1347 = vpack.i.b16 %v1019, %v1019
        %v1348 = vlaneseq
        %v1349 = vshrl.u32 %v1348, 7
        %v1350 = vsub.s32 0, %v1349
        %v1351 = vrot.slane %v1284, %v1350
        %v1352 = vlaneseq
        %v1353 = vshrl.u32 %v1352, 7
        %v1354 = vsub.s32 0, %v1353
        %v1355 = vrot.slane %v1285, %v1354
        %v1356 = vlaneseq
        %v1357 = vshrl.u32 %v1356, 7
        %v1358 = vsub.s32 0, %v1357
        %v1359 = vrot.slane %v1286, %v1358
        %v1360 = vlaneseq
        %v1361 = vshrl.u32 %v1360, 7
        %v1362 = vsub.s32 0, %v1361
        %v1363 = vrot.slane %v1287, %v1362
        %v1364 = vlaneseq
        %v1365 = vshrl.u32 %v1364, 7
        %v1366 = vsub.s32 0, %v1365
        %v1367 = vrot.slane %v1288, %v1366
        %v1368 = vlaneseq
        %v1369 = vshrl.u32 %v1368, 7
        %v1370 = vsub.s32 0, %v1369
        %v1371 = vrot.slane %v1289, %v1370
        %v1372 = vlaneseq
        %v1373 = vshrl.u32 %v1372, 7
        %v1374 = vsub.s32 0, %v1373
        %v1375 = vrot.slane %v1290, %v1374
        %v1376 = vlaneseq
        %v1377 = vshrl.u32 %v1376, 7
        %v1378 = vsub.s32 0, %v1377
        %v1379 = vrot.slane %v1291, %v1378
        %v1380 = vlaneseq
        %v1381 = vshrl.u32 %v1380, 7
        %v1382 = vsub.s32 0, %v1381
        %v1383 = vrot.slane %v1292, %v1382
        %v1384 = vlaneseq
        %v1385 = vshrl.u32 %v1384, 7
        %v1386 = vsub.s32 0, %v1385
        %v1387 = vrot.slane %v1293, %v1386
        %v1388 = vlaneseq
        %v1389 = vshrl.u32 %v1388, 7
        %v1390 = vsub.s32 0, %v1389
        %v1391 = vrot.slane %v1294, %v1390
        %v1392 = vlaneseq
        %v1393 = vshrl.u32 %v1392, 7
        %v1394 = vsub.s32 0, %v1393
        %v1395 = vrot.slane %v1295, %v1394
        %v1396 = vlaneseq
        %v1397 = vshrl.u32 %v1396, 7
        %v1398 = vsub.s32 0, %v1397
        %v1399 = vrot.slane %v1296, %v1398
        %v1400 = vlaneseq
        %v1401 = vshrl.u32 %v1400, 7
        %v1402 = vsub.s32 0, %v1401
        %v1403 = vrot.slane %v1297, %v1402
        %v1404 = vlaneseq
        %v1405 = vshrl.u32 %v1404, 7
        %v1406 = vsub.s32 0, %v1405
        %v1407 = vrot.slane %v1298, %v1406
        %v1408 = vlaneseq
        %v1409 = vshrl.u32 %v1408, 7
        %v1410 = vsub.s32 0, %v1409
        %v1411 = vrot.slane %v1299, %v1410
        %v1412 = vlaneseq
        %v1413 = vshrl.u32 %v1412, 7
        %v1414 = vsub.s32 0, %v1413
        %v1415 = vrot.slane %v1300, %v1414
        %v1416 = vlaneseq
        %v1417 = vshrl.u32 %v1416, 7
        %v1418 = vsub.s32 0, %v1417
        %v1419 = vrot.slane %v1301, %v1418
        %v1420 = vlaneseq
        %v1421 = vshrl.u32 %v1420, 7
        %v1422 = vsub.s32 0, %v1421
        %v1423 = vrot.slane %v1302, %v1422
        %v1424 = vlaneseq
        %v1425 = vshrl.u32 %v1424, 7
        %v1426 = vsub.s32 0, %v1425
        %v1427 = vrot.slane %v1303, %v1426
        %v1428 = vlaneseq
        %v1429 = vshrl.u32 %v1428, 7
        %v1430 = vsub.s32 0, %v1429
        %v1431 = vrot.slane %v1304, %v1430
        %v1432 = vlaneseq
        %v1433 = vshrl.u32 %v1432, 7
        %v1434 = vsub.s32 0, %v1433
        %v1435 = vrot.slane %v1305, %v1434
        %v1436 = vlaneseq
        %v1437 = vshrl.u32 %v1436, 7
        %v1438 = vsub.s32 0, %v1437
        %v1439 = vrot.slane %v1306, %v1438
        %v1440 = vlaneseq
        %v1441 = vshrl.u32 %v1440, 7
        %v1442 = vsub.s32 0, %v1441
        %v1443 = vrot.slane %v1307, %v1442
        %v1444 = vlaneseq
        %v1445 = vshrl.u32 %v1444, 7
        %v1446 = vsub.s32 0, %v1445
        %v1447 = vrot.slane %v1308, %v1446
        %v1448 = vlaneseq
        %v1449 = vshrl.u32 %v1448, 7
        %v1450 = vsub.s32 0, %v1449
        %v1451 = vrot.slane %v1309, %v1450
        %v1452 = vlaneseq
        %v1453 = vshrl.u32 %v1452, 7
        %v1454 = vsub.s32 0, %v1453
        %v1455 = vrot.slane %v1310, %v1454
        %v1456 = vlaneseq
        %v1457 = vshrl.u32 %v1456, 7
        %v1458 = vsub.s32 0, %v1457
        %v1459 = vrot.slane %v1311, %v1458
        %v1460 = vlaneseq
        %v1461 = vshrl.u32 %v1460, 7
        %v1462 = vsub.s32 0, %v1461
        %v1463 = vrot.slane %v1312, %v1462
        %v1464 = vlaneseq
        %v1465 = vshrl.u32 %v1464, 7
        %v1466 = vsub.s32 0, %v1465
        %v1467 = vrot.slane %v1313, %v1466
        %v1468 = vlaneseq
        %v1469 = vshrl.u32 %v1468, 7
        %v1470 = vsub.s32 0, %v1469
        %v1471 = vrot.slane %v1314, %v1470
        %v1472 = vlaneseq
        %v1473 = vshrl.u32 %v1472, 7
        %v1474 = vsub.s32 0, %v1473
        %v1475 = vrot.slane %v1315, %v1474
        %v1476 = vlaneseq
        %v1477 = vshrl.u32 %v1476, 7
        %v1478 = vsub.s32 0, %v1477
        %v1479 = vrot.slane %v1316, %v1478
        %v1480 = vlaneseq
        %v1481 = vshrl.u32 %v1480, 7
        %v1482 = vsub.s32 0, %v1481
        %v1483 = vrot.slane %v1317, %v1482
        %v1484 = vlaneseq
        %v1485 = vshrl.u32 %v1484, 7
        %v1486 = vsub.s32 0, %v1485
        %v1487 = vrot.slane %v1318, %v1486
        %v1488 = vlaneseq
        %v1489 = vshrl.u32 %v1488, 7
        %v1490 = vsub.s32 0, %v1489
        %v1491 = vrot.slane %v1319, %v1490
        %v1492 = vlaneseq
        %v1493 = vshrl.u32 %v1492, 7
        %v1494 = vsub.s32 0, %v1493
        %v1495 = vrot.slane %v1320, %v1494
        %v1496 = vlaneseq
        %v1497 = vshrl.u32 %v1496, 7
        %v1498 = vsub.s32 0, %v1497
        %v1499 = vrot.slane %v1321, %v1498
        %v1500 = vlaneseq
        %v1501 = vshrl.u32 %v1500, 7
        %v1502 = vsub.s32 0, %v1501
        %v1503 = vrot.slane %v1322, %v1502
        %v1504 = vlaneseq
        %v1505 = vshrl.u32 %v1504, 7
        %v1506 = vsub.s32 0, %v1505
        %v1507 = vrot.slane %v1323, %v1506
        %v1508 = vlaneseq
        %v1509 = vshrl.u32 %v1508, 7
        %v1510 = vsub.s32 0, %v1509
        %v1511 = vrot.slane %v1324, %v1510
        %v1512 = vlaneseq
        %v1513 = vshrl.u32 %v1512, 7
        %v1514 = vsub.s32 0, %v1513
        %v1515 = vrot.slane %v1325, %v1514
        %v1516 = vlaneseq
        %v1517 = vshrl.u32 %v1516, 7
        %v1518 = vsub.s32 0, %v1517
        %v1519 = vrot.slane %v1326, %v1518
        %v1520 = vlaneseq
        %v1521 = vshrl.u32 %v1520, 7
        %v1522 = vsub.s32 0, %v1521
        %v1523 = vrot.slane %v1327, %v1522
        %v1524 = vlaneseq
        %v1525 = vshrl.u32 %v1524, 7
        %v1526 = vsub.s32 0, %v1525
        %v1527 = vrot.slane %v1328, %v1526
        %v1528 = vlaneseq
        %v1529 = vshrl.u32 %v1528, 7
        %v1530 = vsub.s32 0, %v1529
        %v1531 = vrot.slane %v1329, %v1530
        %v1532 = vlaneseq
        %v1533 = vshrl.u32 %v1532, 7
        %v1534 = vsub.s32 0, %v1533
        %v1535 = vrot.slane %v1330, %v1534
        %v1536 = vlaneseq
        %v1537 = vshrl.u32 %v1536, 7
        %v1538 = vsub.s32 0, %v1537
        %v1539 = vrot.slane %v1331, %v1538
        %v1540 = vlaneseq
        %v1541 = vshrl.u32 %v1540, 7
        %v1542 = vsub.s32 0, %v1541
        %v1543 = vrot.slane %v1332, %v1542
        %v1544 = vlaneseq
        %v1545 = vshrl.u32 %v1544, 7
        %v1546 = vsub.s32 0, %v1545
        %v1547 = vrot.slane %v1333, %v1546
        %v1548 = vlaneseq
        %v1549 = vshrl.u32 %v1548, 7
        %v1550 = vsub.s32 0, %v1549
        %v1551 = vrot.slane %v1334, %v1550
        %v1552 = vlaneseq
        %v1553 = vshrl.u32 %v1552, 7
        %v1554 = vsub.s32 0, %v1553
        %v1555 = vrot.slane %v1335, %v1554
        %v1556 = vlaneseq
        %v1557 = vshrl.u32 %v1556, 7
        %v1558 = vsub.s32 0, %v1557
        %v1559 = vrot.slane %v1336, %v1558
        %v1560 = vlaneseq
        %v1561 = vshrl.u32 %v1560, 7
        %v1562 = vsub.s32 0, %v1561
        %v1563 = vrot.slane %v1337, %v1562
        %v1564 = vlaneseq
        %v1565 = vshrl.u32 %v1564, 7
        %v1566 = vsub.s32 0, %v1565
        %v1567 = vrot.slane %v1338, %v1566
        %v1568 = vlaneseq
        %v1569 = vshrl.u32 %v1568, 7
        %v1570 = vsub.s32 0, %v1569
        %v1571 = vrot.slane %v1339, %v1570
        %v1572 = vlaneseq
        %v1573 = vshrl.u32 %v1572, 7
        %v1574 = vsub.s32 0, %v1573
        %v1575 = vrot.slane %v1340, %v1574
        %v1576 = vlaneseq
        %v1577 = vshrl.u32 %v1576, 7
        %v1578 = vsub.s32 0, %v1577
        %v1579 = vrot.slane %v1341, %v1578
        %v1580 = vlaneseq
        %v1581 = vshrl.u32 %v1580, 7
        %v1582 = vsub.s32 0, %v1581
        %v1583 = vrot.slane %v1342, %v1582
        %v1584 = vlaneseq
        %v1585 = vshrl.u32 %v1584, 7
        %v1586 = vsub.s32 0, %v1585
        %v1587 = vrot.slane %v1343, %v1586
        %v1588 = vlaneseq
        %v1589 = vshrl.u32 %v1588, 7
        %v1590 = vsub.s32 0, %v1589
        %v1591 = vrot.slane %v1344, %v1590
        %v1592 = vlaneseq
        %v1593 = vshrl.u32 %v1592, 7
        %v1594 = vsub.s32 0, %v1593
        %v1595 = vrot.slane %v1345, %v1594
        %v1596 = vlaneseq
        %v1597 = vshrl.u32 %v1596, 7
        %v1598 = vsub.s32 0, %v1597
        %v1599 = vrot.slane %v1346, %v1598
        %v1600 = vlaneseq
        %v1601 = vshrl.u32 %v1600, 7
        %v1602 = vsub.s32 0, %v1601
        %v1603 = vrot.slane %v1347, %v1602
        %v1668 = vpack.i.b16 %v1220, %v1220
        %v1669 = vpack.i.b16 %v1221, %v1221
        %v1670 = vpack.i.b16 %v1222, %v1222
        %v1671 = vpack.i.b16 %v1223, %v1223
        %v1672 = vpack.i.b16 %v1224, %v1224
        %v1673 = vpack.i.b16 %v1225, %v1225
        %v1674 = vpack.i.b16 %v1226, %v1226
        %v1675 = vpack.i.b16 %v1227, %v1227
        %v1676 = vpack.i.b16 %v1228, %v1228
        %v1677 = vpack.i.b16 %v1229, %v1229
        %v1678 = vpack.i.b16 %v1230, %v1230
        %v1679 = vpack.i.b16 %v1231, %v1231
        %v1680 = vpack.i.b16 %v1232, %v1232
        %v1681 = vpack.i.b16 %v1233, %v1233
        %v1682 = vpack.i.b16 %v1234, %v1234
        %v1683 = vpack.i.b16 %v1235, %v1235
        %v1684 = vpack.i.b16 %v1236, %v1236
        %v1685 = vpack.i.b16 %v1237, %v1237
        %v1686 = vpack.i.b16 %v1238, %v1238
        %v1687 = vpack.i.b16 %v1239, %v1239
        %v1688 = vpack.i.b16 %v1240, %v1240
        %v1689 = vpack.i.b16 %v1241, %v1241
        %v1690 = vpack.i.b16 %v1242, %v1242
        %v1691 = vpack.i.b16 %v1243, %v1243
        %v1692 = vpack.i.b16 %v1244, %v1244
        %v1693 = vpack.i.b16 %v1245, %v1245
        %v1694 = vpack.i.b16 %v1246, %v1246
        %v1695 = vpack.i.b16 %v1247, %v1247
        %v1696 = vpack.i.b16 %v1248, %v1248
        %v1697 = vpack.i.b16 %v1249, %v1249
        %v1698 = vpack.i.b16 %v1250, %v1250
        %v1699 = vpack.i.b16 %v1251, %v1251
        %v1700 = vpack.i.b16 %v1252, %v1252
        %v1701 = vpack.i.b16 %v1253, %v1253
        %v1702 = vpack.i.b16 %v1254, %v1254
        %v1703 = vpack.i.b16 %v1255, %v1255
        %v1704 = vpack.i.b16 %v1256, %v1256
        %v1705 = vpack.i.b16 %v1257, %v1257
        %v1706 = vpack.i.b16 %v1258, %v1258
        %v1707 = vpack.i.b16 %v1259, %v1259
        %v1708 = vpack.i.b16 %v1260, %v1260
        %v1709 = vpack.i.b16 %v1261, %v1261
        %v1710 = vpack.i.b16 %v1262, %v1262
        %v1711 = vpack.i.b16 %v1263, %v1263
        %v1712 = vpack.i.b16 %v1264, %v1264
        %v1713 = vpack.i.b16 %v1265, %v1265
        %v1714 = vpack.i.b16 %v1266, %v1266
        %v1715 = vpack.i.b16 %v1267, %v1267
        %v1716 = vpack.i.b16 %v1268, %v1268
        %v1717 = vpack.i.b16 %v1269, %v1269
        %v1718 = vpack.i.b16 %v1270, %v1270
        %v1719 = vpack.i.b16 %v1271, %v1271
        %v1720 = vpack.i.b16 %v1272, %v1272
        %v1721 = vpack.i.b16 %v1273, %v1273
        %v1722 = vpack.i.b16 %v1274, %v1274
        %v1723 = vpack.i.b16 %v1275, %v1275
        %v1724 = vpack.i.b16 %v1276, %v1276
        %v1725 = vpack.i.b16 %v1277, %v1277
        %v1726 = vpack.i.b16 %v1278, %v1278
        %v1727 = vpack.i.b16 %v1279, %v1279
        %v1728 = vpack.i.b16 %v1280, %v1280
        %v1729 = vpack.i.b16 %v1281, %v1281
        %v1730 = vpack.i.b16 %v1282, %v1282
        %v1731 = vpack.i.b16 %v1283, %v1283
        %v1732 = vlaneseq
        %v1733 = vshrl.u32 %v1732, 7
        %v1734 = vsub.s32 0, %v1733
        %v1735 = vrot.slane %v1668, %v1734
        %v1736 = vlaneseq
        %v1737 = vshrl.u32 %v1736, 7
        %v1738 = vsub.s32 0, %v1737
        %v1739 = vrot.slane %v1669, %v1738
        %v1740 = vlaneseq
        %v1741 = vshrl.u32 %v1740, 7
        %v1742 = vsub.s32 0, %v1741
        %v1743 = vrot.slane %v1670, %v1742
        %v1744 = vlaneseq
        %v1745 = vshrl.u32 %v1744, 7
        %v1746 = vsub.s32 0, %v1745
        %v1747 = vrot.slane %v1671, %v1746
        %v1748 = vlaneseq
        %v1749 = vshrl.u32 %v1748, 7
        %v1750 = vsub.s32 0, %v1749
        %v1751 = vrot.slane %v1672, %v1750
        %v1752 = vlaneseq
        %v1753 = vshrl.u32 %v1752, 7
        %v1754 = vsub.s32 0, %v1753
        %v1755 = vrot.slane %v1673, %v1754
        %v1756 = vlaneseq
        %v1757 = vshrl.u32 %v1756, 7
        %v1758 = vsub.s32 0, %v1757
        %v1759 = vrot.slane %v1674, %v1758
        %v1760 = vlaneseq
        %v1761 = vshrl.u32 %v1760, 7
        %v1762 = vsub.s32 0, %v1761
        %v1763 = vrot.slane %v1675, %v1762
        %v1764 = vlaneseq
        %v1765 = vshrl.u32 %v1764, 7
        %v1766 = vsub.s32 0, %v1765
        %v1767 = vrot.slane %v1676, %v1766
        %v1768 = vlaneseq
        %v1769 = vshrl.u32 %v1768, 7
        %v1770 = vsub.s32 0, %v1769
        %v1771 = vrot.slane %v1677, %v1770
        %v1772 = vlaneseq
        %v1773 = vshrl.u32 %v1772, 7
        %v1774 = vsub.s32 0, %v1773
        %v1775 = vrot.slane %v1678, %v1774
        %v1776 = vlaneseq
        %v1777 = vshrl.u32 %v1776, 7
        %v1778 = vsub.s32 0, %v1777
        %v1779 = vrot.slane %v1679, %v1778
        %v1780 = vlaneseq
        %v1781 = vshrl.u32 %v1780, 7
        %v1782 = vsub.s32 0, %v1781
        %v1783 = vrot.slane %v1680, %v1782
        %v1784 = vlaneseq
        %v1785 = vshrl.u32 %v1784, 7
        %v1786 = vsub.s32 0, %v1785
        %v1787 = vrot.slane %v1681, %v1786
        %v1788 = vlaneseq
        %v1789 = vshrl.u32 %v1788, 7
        %v1790 = vsub.s32 0, %v1789
        %v1791 = vrot.slane %v1682, %v1790
        %v1792 = vlaneseq
        %v1793 = vshrl.u32 %v1792, 7
        %v1794 = vsub.s32 0, %v1793
        %v1795 = vrot.slane %v1683, %v1794
        %v1796 = vlaneseq
        %v1797 = vshrl.u32 %v1796, 7
        %v1798 = vsub.s32 0, %v1797
        %v1799 = vrot.slane %v1684, %v1798
        %v1800 = vlaneseq
        %v1801 = vshrl.u32 %v1800, 7
        %v1802 = vsub.s32 0, %v1801
        %v1803 = vrot.slane %v1685, %v1802
        %v1804 = vlaneseq
        %v1805 = vshrl.u32 %v1804, 7
        %v1806 = vsub.s32 0, %v1805
        %v1807 = vrot.slane %v1686, %v1806
        %v1808 = vlaneseq
        %v1809 = vshrl.u32 %v1808, 7
        %v1810 = vsub.s32 0, %v1809
        %v1811 = vrot.slane %v1687, %v1810
        %v1812 = vlaneseq
        %v1813 = vshrl.u32 %v1812, 7
        %v1814 = vsub.s32 0, %v1813
        %v1815 = vrot.slane %v1688, %v1814
        %v1816 = vlaneseq
        %v1817 = vshrl.u32 %v1816, 7
        %v1818 = vsub.s32 0, %v1817
        %v1819 = vrot.slane %v1689, %v1818
        %v1820 = vlaneseq
        %v1821 = vshrl.u32 %v1820, 7
        %v1822 = vsub.s32 0, %v1821
        %v1823 = vrot.slane %v1690, %v1822
        %v1824 = vlaneseq
        %v1825 = vshrl.u32 %v1824, 7
        %v1826 = vsub.s32 0, %v1825
        %v1827 = vrot.slane %v1691, %v1826
        %v1828 = vlaneseq
        %v1829 = vshrl.u32 %v1828, 7
        %v1830 = vsub.s32 0, %v1829
        %v1831 = vrot.slane %v1692, %v1830
        %v1832 = vlaneseq
        %v1833 = vshrl.u32 %v1832, 7
        %v1834 = vsub.s32 0, %v1833
        %v1835 = vrot.slane %v1693, %v1834
        %v1836 = vlaneseq
        %v1837 = vshrl.u32 %v1836, 7
        %v1838 = vsub.s32 0, %v1837
        %v1839 = vrot.slane %v1694, %v1838
        %v1840 = vlaneseq
        %v1841 = vshrl.u32 %v1840, 7
        %v1842 = vsub.s32 0, %v1841
        %v1843 = vrot.slane %v1695, %v1842
        %v1844 = vlaneseq
        %v1845 = vshrl.u32 %v1844, 7
        %v1846 = vsub.s32 0, %v1845
        %v1847 = vrot.slane %v1696, %v1846
        %v1848 = vlaneseq
        %v1849 = vshrl.u32 %v1848, 7
        %v1850 = vsub.s32 0, %v1849
        %v1851 = vrot.slane %v1697, %v1850
        %v1852 = vlaneseq
        %v1853 = vshrl.u32 %v1852, 7
        %v1854 = vsub.s32 0, %v1853
        %v1855 = vrot.slane %v1698, %v1854
        %v1856 = vlaneseq
        %v1857 = vshrl.u32 %v1856, 7
        %v1858 = vsub.s32 0, %v1857
        %v1859 = vrot.slane %v1699, %v1858
        %v1860 = vlaneseq
        %v1861 = vshrl.u32 %v1860, 7
        %v1862 = vsub.s32 0, %v1861
        %v1863 = vrot.slane %v1700, %v1862
        %v1864 = vlaneseq
        %v1865 = vshrl.u32 %v1864, 7
        %v1866 = vsub.s32 0, %v1865
        %v1867 = vrot.slane %v1701, %v1866
        %v1868 = vlaneseq
        %v1869 = vshrl.u32 %v1868, 7
        %v1870 = vsub.s32 0, %v1869
        %v1871 = vrot.slane %v1702, %v1870
        %v1872 = vlaneseq
        %v1873 = vshrl.u32 %v1872, 7
        %v1874 = vsub.s32 0, %v1873
        %v1875 = vrot.slane %v1703, %v1874
        %v1876 = vlaneseq
        %v1877 = vshrl.u32 %v1876, 7
        %v1878 = vsub.s32 0, %v1877
        %v1879 = vrot.slane %v1704, %v1878
        %v1880 = vlaneseq
        %v1881 = vshrl.u32 %v1880, 7
        %v1882 = vsub.s32 0, %v1881
        %v1883 = vrot.slane %v1705, %v1882
        %v1884 = vlaneseq
        %v1885 = vshrl.u32 %v1884, 7
        %v1886 = vsub.s32 0, %v1885
        %v1887 = vrot.slane %v1706, %v1886
        %v1888 = vlaneseq
        %v1889 = vshrl.u32 %v1888, 7
        %v1890 = vsub.s32 0, %v1889
        %v1891 = vrot.slane %v1707, %v1890
        %v1892 = vlaneseq
        %v1893 = vshrl.u32 %v1892, 7
        %v1894 = vsub.s32 0, %v1893
        %v1895 = vrot.slane %v1708, %v1894
        %v1896 = vlaneseq
        %v1897 = vshrl.u32 %v1896, 7
        %v1898 = vsub.s32 0, %v1897
        %v1899 = vrot.slane %v1709, %v1898
        %v1900 = vlaneseq
        %v1901 = vshrl.u32 %v1900, 7
        %v1902 = vsub.s32 0, %v1901
        %v1903 = vrot.slane %v1710, %v1902
        %v1904 = vlaneseq
        %v1905 = vshrl.u32 %v1904, 7
        %v1906 = vsub.s32 0, %v1905
        %v1907 = vrot.slane %v1711, %v1906
        %v1908 = vlaneseq
        %v1909 = vshrl.u32 %v1908, 7
        %v1910 = vsub.s32 0, %v1909
        %v1911 = vrot.slane %v1712, %v1910
        %v1912 = vlaneseq
        %v1913 = vshrl.u32 %v1912, 7
        %v1914 = vsub.s32 0, %v1913
        %v1915 = vrot.slane %v1713, %v1914
        %v1916 = vlaneseq
        %v1917 = vshrl.u32 %v1916, 7
        %v1918 = vsub.s32 0, %v1917
        %v1919 = vrot.slane %v1714, %v1918
        %v1920 = vlaneseq
        %v1921 = vshrl.u32 %v1920, 7
        %v1922 = vsub.s32 0, %v1921
        %v1923 = vrot.slane %v1715, %v1922
        %v1924 = vlaneseq
        %v1925 = vshrl.u32 %v1924, 7
        %v1926 = vsub.s32 0, %v1925
        %v1927 = vrot.slane %v1716, %v1926
        %v1928 = vlaneseq
        %v1929 = vshrl.u32 %v1928, 7
        %v1930 = vsub.s32 0, %v1929
        %v1931 = vrot.slane %v1717, %v1930
        %v1932 = vlaneseq
        %v1933 = vshrl.u32 %v1932, 7
        %v1934 = vsub.s32 0, %v1933
        %v1935 = vrot.slane %v1718, %v1934
        %v1936 = vlaneseq
        %v1937 = vshrl.u32 %v1936, 7
        %v1938 = vsub.s32 0, %v1937
        %v1939 = vrot.slane %v1719, %v1938
        %v1940 = vlaneseq
        %v1941 = vshrl.u32 %v1940, 7
        %v1942 = vsub.s32 0, %v1941
        %v1943 = vrot.slane %v1720, %v1942
        %v1944 = vlaneseq
        %v1945 = vshrl.u32 %v1944, 7
        %v1946 = vsub.s32 0, %v1945
        %v1947 = vrot.slane %v1721, %v1946
        %v1948 = vlaneseq
        %v1949 = vshrl.u32 %v1948, 7
        %v1950 = vsub.s32 0, %v1949
        %v1951 = vrot.slane %v1722, %v1950
        %v1952 = vlaneseq
        %v1953 = vshrl.u32 %v1952, 7
        %v1954 = vsub.s32 0, %v1953
        %v1955 = vrot.slane %v1723, %v1954
        %v1956 = vlaneseq
        %v1957 = vshrl.u32 %v1956, 7
        %v1958 = vsub.s32 0, %v1957
        %v1959 = vrot.slane %v1724, %v1958
        %v1960 = vlaneseq
        %v1961 = vshrl.u32 %v1960, 7
        %v1962 = vsub.s32 0, %v1961
        %v1963 = vrot.slane %v1725, %v1962
        %v1964 = vlaneseq
        %v1965 = vshrl.u32 %v1964, 7
        %v1966 = vsub.s32 0, %v1965
        %v1967 = vrot.slane %v1726, %v1966
        %v1968 = vlaneseq
        %v1969 = vshrl.u32 %v1968, 7
        %v1970 = vsub.s32 0, %v1969
        %v1971 = vrot.slane %v1727, %v1970
        %v1972 = vlaneseq
        %v1973 = vshrl.u32 %v1972, 7
        %v1974 = vsub.s32 0, %v1973
        %v1975 = vrot.slane %v1728, %v1974
        %v1976 = vlaneseq
        %v1977 = vshrl.u32 %v1976, 7
        %v1978 = vsub.s32 0, %v1977
        %v1979 = vrot.slane %v1729, %v1978
        %v1980 = vlaneseq
        %v1981 = vshrl.u32 %v1980, 7
        %v1982 = vsub.s32 0, %v1981
        %v1983 = vrot.slane %v1730, %v1982
        %v1984 = vlaneseq
        %v1985 = vshrl.u32 %v1984, 7
        %v1986 = vsub.s32 0, %v1985
        %v1987 = vrot.slane %v1731, %v1986
        %vm2052 = vcmask 1040384
        %vm2053 = vsmask.f32 256
        %vm2054 = vmand %vm2052, %vm2053
        %v2055 = vsel %vm2054, %v1351, %v1735
        %v2056 = vsel %vm2054, %v1355, %v1739
        %v2057 = vsel %vm2054, %v1359, %v1743
        %v2058 = vsel %vm2054, %v1363, %v1747
        %v2059 = vsel %vm2054, %v1367, %v1751
        %v2060 = vsel %vm2054, %v1371, %v1755
        %v2061 = vsel %vm2054, %v1375, %v1759
        %v2062 = vsel %vm2054, %v1379, %v1763
        %v2063 = vsel %vm2054, %v1383, %v1767
        %v2064 = vsel %vm2054, %v1387, %v1771
        %v2065 = vsel %vm2054, %v1391, %v1775
        %v2066 = vsel %vm2054, %v1395, %v1779
        %v2067 = vsel %vm2054, %v1399, %v1783
        %v2068 = vsel %vm2054, %v1403, %v1787
        %v2069 = vsel %vm2054, %v1407, %v1791
        %v2070 = vsel %vm2054, %v1411, %v1795
        %v2071 = vsel %vm2054, %v1415, %v1799
        %v2072 = vsel %vm2054, %v1419, %v1803
        %v2073 = vsel %vm2054, %v1423, %v1807
        %v2074 = vsel %vm2054, %v1427, %v1811
        %v2075 = vsel %vm2054, %v1431, %v1815
        %v2076 = vsel %vm2054, %v1435, %v1819
        %v2077 = vsel %vm2054, %v1439, %v1823
        %v2078 = vsel %vm2054, %v1443, %v1827
        %v2079 = vsel %vm2054, %v1447, %v1831
        %v2080 = vsel %vm2054, %v1451, %v1835
        %v2081 = vsel %vm2054, %v1455, %v1839
        %v2082 = vsel %vm2054, %v1459, %v1843
        %v2083 = vsel %vm2054, %v1463, %v1847
        %v2084 = vsel %vm2054, %v1467, %v1851
        %v2085 = vsel %vm2054, %v1471, %v1855
        %v2086 = vsel %vm2054, %v1475, %v1859
        %v2087 = vsel %vm2054, %v1479, %v1863
        %v2088 = vsel %vm2054, %v1483, %v1867
        %v2089 = vsel %vm2054, %v1487, %v1871
        %v2090 = vsel %vm2054, %v1491, %v1875
        %v2091 = vsel %vm2054, %v1495, %v1879
        %v2092 = vsel %vm2054, %v1499, %v1883
        %v2093 = vsel %vm2054, %v1503, %v1887
        %v2094 = vsel %vm2054, %v1507, %v1891
        %v2095 = vsel %vm2054, %v1511, %v1895
        %v2096 = vsel %vm2054, %v1515, %v1899
        %v2097 = vsel %vm2054, %v1519, %v1903
        %v2098 = vsel %vm2054, %v1523, %v1907
        %v2099 = vsel %vm2054, %v1527, %v1911
        %v2100 = vsel %vm2054, %v1531, %v1915
        %v2101 = vsel %vm2054, %v1535, %v1919
        %v2102 = vsel %vm2054, %v1539, %v1923
        %v2103 = vsel %vm2054, %v1543, %v1927
        %v2104 = vsel %vm2054, %v1547, %v1931
        %v2105 = vsel %vm2054, %v1551, %v1935
        %v2106 = vsel %vm2054, %v1555, %v1939
        %v2107 = vsel %vm2054, %v1559, %v1943
        %v2108 = vsel %vm2054, %v1563, %v1947
        %v2109 = vsel %vm2054, %v1567, %v1951
        %v2110 = vsel %vm2054, %v1571, %v1955
        %v2111 = vsel %vm2054, %v1575, %v1959
        %v2112 = vsel %vm2054, %v1579, %v1963
        %v2113 = vsel %vm2054, %v1583, %v1967
        %v2114 = vsel %vm2054, %v1587, %v1971
        %v2115 = vsel %vm2054, %v1591, %v1975
        %v2116 = vsel %vm2054, %v1595, %v1979
        %v2117 = vsel %vm2054, %v1599, %v1983
        %v2118 = vsel %vm2054, %v1603, %v1987
        %s2119 = scalar_lea.vmem [#allocation8], 8
        %v2120 = vld [vmem:[%s2119] sm:$0xf]
        %v2122 = vsel %vm609, %v2120, 0
        %2124 = vmatprep.subr.bf16.mxu0 0
        %2125 = vmatpush1.bf16.msra.mxu0 %v2122
        %2126 = vmatprep.subr.bf16.mxu0 0
        %2127 = vmatpush1.bf16.msra.mxu0 0
        %2128 = vmatprep.subr.bf16.mxu0 0
        %2129 = vmatpush1.bf16.msra.mxu0 0
        %2130 = vmatprep.subr.bf16.mxu0 0
        %2131 = vmatpush1.bf16.msra.mxu0 0
        %2132 = vmatprep.subr.bf16.mxu0 0
        %2133 = vmatpush1.bf16.msra.mxu0 0
        %2134 = vmatprep.subr.bf16.mxu0 0
        %2135 = vmatpush1.bf16.msra.mxu0 0
        %2136 = vmatprep.subr.bf16.mxu0 0
        %2137 = vmatpush1.bf16.msra.mxu0 0
        %2138 = vmatprep.subr.bf16.mxu0 0
        %2139 = vmatpush1.bf16.msra.mxu0 0
        %2140 = vmatprep.subr.bf16.mxu0 0
        %2141 = vmatpush1.bf16.msra.mxu0 0
        %2142 = vmatprep.subr.bf16.mxu0 0
        %2143 = vmatpush1.bf16.msra.mxu0 0
        %2144 = vmatprep.subr.bf16.mxu0 0
        %2145 = vmatpush1.bf16.msra.mxu0 0
        %2146 = vmatprep.subr.bf16.mxu0 0
        %2147 = vmatpush1.bf16.msra.mxu0 0
        %2148 = vmatprep.subr.bf16.mxu0 0
        %2149 = vmatpush1.bf16.msra.mxu0 0
        %2150 = vmatprep.subr.bf16.mxu0 0
        %2151 = vmatpush1.bf16.msra.mxu0 0
        %2152 = vmatprep.subr.bf16.mxu0 0
        %2153 = vmatpush1.bf16.msra.mxu0 0
        %2154 = vmatprep.subr.bf16.mxu0 0
        %2155 = vmatpush1.bf16.msra.mxu0 0
        %2156 = vmatprep.mubr.bf16.mxu0 0
        %2157 = vmatmul.mubr.bf16.gmra.mrb[0].mxu0 %v598
        %v2158 = vpop.f32.mrb[0].mxu0
        %v2159 = vadd.f32 0.0, %v2158
        %v2160 = vpop.f32.mrb[0].mxu0
        %v2161 = vpop.f32.mrb[0].mxu0
        %v2162 = vadd.f32 0.0, %v2161
        %v2163 = vpop.f32.mrb[0].mxu0
        %2164 = vmatprep.mubr.bf16.mxu0 0
        %2165 = vmatmul.mubr.bf16.gmra.mrb[0].mxu0 %v601
        %v2166 = vpop.f32.mrb[0].mxu0
        %v2167 = vadd.f32 0.0, %v2166
        %v2168 = vpop.f32.mrb[0].mxu0
        %v2169 = vpop.f32.mrb[0].mxu0
        %v2170 = vadd.f32 0.0, %v2169
        %v2171 = vpop.f32.mrb[0].mxu0
        %2172 = vmatprep.mubr.bf16.mxu0 0
        %2173 = vmatmul.mubr.bf16.gmra.mrb[0].mxu0 %v604
        %v2174 = vpop.f32.mrb[0].mxu0
        %v2175 = vadd.f32 0.0, %v2174
        %v2176 = vpop.f32.mrb[0].mxu0
        %v2177 = vpop.f32.mrb[0].mxu0
        %v2178 = vadd.f32 0.0, %v2177
        %v2179 = vpop.f32.mrb[0].mxu0
        %2180 = vmatprep.mubr.bf16.mxu0 0
        %2181 = vmatmul.mubr.bf16.gmra.mrb[0].mxu0 %v607
        %v2182 = vpop.f32.mrb[0].mxu0
        %v2183 = vadd.f32 0.0, %v2182
        %v2184 = vpop.f32.mrb[0].mxu0
        %v2185 = vpop.f32.mrb[0].mxu0
        %v2186 = vadd.f32 0.0, %v2185
        %v2187 = vpop.f32.mrb[0].mxu0
        %2188 = vdwg.mxu0
        %v2189 = vpack.c.bf16 %v2162, %v2159
        %v2190 = vpack.c.bf16 %v2170, %v2167
        %v2191 = vpack.c.bf16 %v2178, %v2175
        %v2192 = vpack.c.bf16 %v2186, %v2183
        %s2193 = scalar_lea.vmem [#allocation8], 12
        %v2194 = vld [vmem:[%s2193] sm:$0xf]
        %v2196 = vsel %vm609, %v2194, 0
        %2198 = vmatprep.subr.bf16.mxu0 0
        %2199 = vmatpush1.bf16.msra.mxu0 %v2196
        %2200 = vmatprep.subr.bf16.mxu0 0
        %2201 = vmatpush1.bf16.msra.mxu0 0
        %2202 = vmatprep.subr.bf16.mxu0 0
        %2203 = vmatpush1.bf16.msra.mxu0 0
        %2204 = vmatprep.subr.bf16.mxu0 0
        %2205 = vmatpush1.bf16.msra.mxu0 0
        %2206 = vmatprep.subr.bf16.mxu0 0
        %2207 = vmatpush1.bf16.msra.mxu0 0
        %2208 = vmatprep.subr.bf16.mxu0 0
        %2209 = vmatpush1.bf16.msra.mxu0 0
        %2210 = vmatprep.subr.bf16.mxu0 0
        %2211 = vmatpush1.bf16.msra.mxu0 0
        %2212 = vmatprep.subr.bf16.mxu0 0
        %2213 = vmatpush1.bf16.msra.mxu0 0
        %2214 = vmatprep.subr.bf16.mxu0 0
        %2215 = vmatpush1.bf16.msra.mxu0 0
        %2216 = vmatprep.subr.bf16.mxu0 0
        %2217 = vmatpush1.bf16.msra.mxu0 0
        %2218 = vmatprep.subr.bf16.mxu0 0
        %2219 = vmatpush1.bf16.msra.mxu0 0
        %2220 = vmatprep.subr.bf16.mxu0 0
        %2221 = vmatpush1.bf16.msra.mxu0 0
        %2222 = vmatprep.subr.bf16.mxu0 0
        %2223 = vmatpush1.bf16.msra.mxu0 0
        %2224 = vmatprep.subr.bf16.mxu0 0
        %2225 = vmatpush1.bf16.msra.mxu0 0
        %2226 = vmatprep.subr.bf16.mxu0 0
        %2227 = vmatpush1.bf16.msra.mxu0 0
        %2228 = vmatprep.subr.bf16.mxu0 0
        %2229 = vmatpush1.bf16.msra.mxu0 0
        %2230 = vmatprep.mubr.bf16.mxu0 0
        %2231 = vmatmul.mubr.bf16.gmra.mrb[0].mxu0 %v598
        %v2232 = vpop.f32.mrb[0].mxu0
        %v2233 = vadd.f32 0.0, %v2232
        %v2234 = vpop.f32.mrb[0].mxu0
        %v2235 = vpop.f32.mrb[0].mxu0
        %v2236 = vadd.f32 0.0, %v2235
        %v2237 = vpop.f32.mrb[0].mxu0
        %2238 = vmatprep.mubr.bf16.mxu0 0
        %2239 = vmatmul.mubr.bf16.gmra.mrb[0].mxu0 %v601
        %v2240 = vpop.f32.mrb[0].mxu0
        %v2241 = vadd.f32 0.0, %v2240
        %v2242 = vpop.f32.mrb[0].mxu0
        %v2243 = vpop.f32.mrb[0].mxu0
        %v2244 = vadd.f32 0.0, %v2243
        %v2245 = vpop.f32.mrb[0].mxu0
        %2246 = vmatprep.mubr.bf16.mxu0 0
        %2247 = vmatmul.mubr.bf16.gmra.mrb[0].mxu0 %v604
        %v2248 = vpop.f32.mrb[0].mxu0
        %v2249 = vadd.f32 0.0, %v2248
        %v2250 = vpop.f32.mrb[0].mxu0
        %v2251 = vpop.f32.mrb[0].mxu0
        %v2252 = vadd.f32 0.0, %v2251
        %v2253 = vpop.f32.mrb[0].mxu0
        %2254 = vmatprep.mubr.bf16.mxu0 0
        %2255 = vmatmul.mubr.bf16.gmra.mrb[0].mxu0 %v607
        %v2256 = vpop.f32.mrb[0].mxu0
        %v2257 = vadd.f32 0.0, %v2256
        %v2258 = vpop.f32.mrb[0].mxu0
        %v2259 = vpop.f32.mrb[0].mxu0
        %v2260 = vadd.f32 0.0, %v2259
        %v2261 = vpop.f32.mrb[0].mxu0
        %2262 = vdwg.mxu0
        %v2263 = vpack.c.bf16 %v2236, %v2233
        %v2264 = vpack.c.bf16 %v2244, %v2241
        %v2265 = vpack.c.bf16 %v2252, %v2249
        %v2266 = vpack.c.bf16 %v2260, %v2257
        %v2271 = vcombine.high %v2189, %v2189
        %v2273 = vunpack.c.l.s4 1966171168
        %v2274 = vunpack.c.0.s8 %v2273
        %v2275 = vlaneseq
        %v2276 = vshrl.u32 %v2275, 7
        %v2277 = vsub.s32 %v2274, %v2276
        %v2278 = vrot.slane %v2189, %v2277
        %v2280 = vunpack.c.l.s4 1966171168
        %v2281 = vunpack.c.0.s8 %v2280
        %v2282 = vlaneseq
        %v2283 = vshrl.u32 %v2282, 7
        %v2284 = vsub.s32 %v2281, %v2283
        %v2285 = vrot.slane %v2271, %v2284
        %v2286 = vcombine.high %v2278, %v2278
        %v2287 = vcombine.high %v2285, %v2285
        %v2289 = vunpack.c.l.s4 1966171168
        %v2290 = vunpack.c.0.s8 %v2289
        %v2291 = vlaneseq
        %v2292 = vshrl.u32 %v2291, 7
        %v2293 = vsub.s32 %v2290, %v2292
        %v2294 = vrot.slane %v2278, %v2293
        %v2296 = vunpack.c.l.s4 1966171168
        %v2297 = vunpack.c.0.s8 %v2296
        %v2298 = vlaneseq
        %v2299 = vshrl.u32 %v2298, 7
        %v2300 = vsub.s32 %v2297, %v2299
        %v2301 = vrot.slane %v2285, %v2300
        %v2303 = vunpack.c.l.s4 1966171168
        %v2304 = vunpack.c.0.s8 %v2303
        %v2305 = vlaneseq
        %v2306 = vshrl.u32 %v2305, 7
        %v2307 = vsub.s32 %v2304, %v2306
        %v2308 = vrot.slane %v2286, %v2307
        %v2310 = vunpack.c.l.s4 1966171168
        %v2311 = vunpack.c.0.s8 %v2310
        %v2312 = vlaneseq
        %v2313 = vshrl.u32 %v2312, 7
        %v2314 = vsub.s32 %v2311, %v2313
        %v2315 = vrot.slane %v2287, %v2314
        %v2316 = vcombine.high %v2294, %v2294
        %v2317 = vcombine.high %v2301, %v2301
        %v2318 = vcombine.high %v2308, %v2308
        %v2319 = vcombine.high %v2315, %v2315
        %v2320 = vcombine.high %v2190, %v2190
        %v2322 = vunpack.c.l.s4 1966171168
        %v2323 = vunpack.c.0.s8 %v2322
        %v2324 = vlaneseq
        %v2325 = vshrl.u32 %v2324, 7
        %v2326 = vsub.s32 %v2323, %v2325
        %v2327 = vrot.slane %v2190, %v2326
        %v2329 = vunpack.c.l.s4 1966171168
        %v2330 = vunpack.c.0.s8 %v2329
        %v2331 = vlaneseq
        %v2332 = vshrl.u32 %v2331, 7
        %v2333 = vsub.s32 %v2330, %v2332
        %v2334 = vrot.slane %v2320, %v2333
        %v2335 = vcombine.high %v2327, %v2327
        %v2336 = vcombine.high %v2334, %v2334
        %v2338 = vunpack.c.l.s4 1966171168
        %v2339 = vunpack.c.0.s8 %v2338
        %v2340 = vlaneseq
        %v2341 = vshrl.u32 %v2340, 7
        %v2342 = vsub.s32 %v2339, %v2341
        %v2343 = vrot.slane %v2327, %v2342
        %v2345 = vunpack.c.l.s4 1966171168
        %v2346 = vunpack.c.0.s8 %v2345
        %v2347 = vlaneseq
        %v2348 = vshrl.u32 %v2347, 7
        %v2349 = vsub.s32 %v2346, %v2348
        %v2350 = vrot.slane %v2334, %v2349
        %v2352 = vunpack.c.l.s4 1966171168
        %v2353 = vunpack.c.0.s8 %v2352
        %v2354 = vlaneseq
        %v2355 = vshrl.u32 %v2354, 7
        %v2356 = vsub.s32 %v2353, %v2355
        %v2357 = vrot.slane %v2335, %v2356
        %v2359 = vunpack.c.l.s4 1966171168
        %v2360 = vunpack.c.0.s8 %v2359
        %v2361 = vlaneseq
        %v2362 = vshrl.u32 %v2361, 7
        %v2363 = vsub.s32 %v2360, %v2362
        %v2364 = vrot.slane %v2336, %v2363
        %v2365 = vcombine.high %v2343, %v2343
        %v2366 = vcombine.high %v2350, %v2350
        %v2367 = vcombine.high %v2357, %v2357
        %v2368 = vcombine.high %v2364, %v2364
        %v2369 = vcombine.high %v2191, %v2191
        %v2371 = vunpack.c.l.s4 1966171168
        %v2372 = vunpack.c.0.s8 %v2371
        %v2373 = vlaneseq
        %v2374 = vshrl.u32 %v2373, 7
        %v2375 = vsub.s32 %v2372, %v2374
        %v2376 = vrot.slane %v2191, %v2375
        %v2378 = vunpack.c.l.s4 1966171168
        %v2379 = vunpack.c.0.s8 %v2378
        %v2380 = vlaneseq
        %v2381 = vshrl.u32 %v2380, 7
        %v2382 = vsub.s32 %v2379, %v2381
        %v2383 = vrot.slane %v2369, %v2382
        %v2384 = vcombine.high %v2376, %v2376
        %v2385 = vcombine.high %v2383, %v2383
        %v2387 = vunpack.c.l.s4 1966171168
        %v2388 = vunpack.c.0.s8 %v2387
        %v2389 = vlaneseq
        %v2390 = vshrl.u32 %v2389, 7
        %v2391 = vsub.s32 %v2388, %v2390
        %v2392 = vrot.slane %v2376, %v2391
        %v2394 = vunpack.c.l.s4 1966171168
        %v2395 = vunpack.c.0.s8 %v2394
        %v2396 = vlaneseq
        %v2397 = vshrl.u32 %v2396, 7
        %v2398 = vsub.s32 %v2395, %v2397
        %v2399 = vrot.slane %v2383, %v2398
        %v2401 = vunpack.c.l.s4 1966171168
        %v2402 = vunpack.c.0.s8 %v2401
        %v2403 = vlaneseq
        %v2404 = vshrl.u32 %v2403, 7
        %v2405 = vsub.s32 %v2402, %v2404
        %v2406 = vrot.slane %v2384, %v2405
        %v2408 = vunpack.c.l.s4 1966171168
        %v2409 = vunpack.c.0.s8 %v2408
        %v2410 = vlaneseq
        %v2411 = vshrl.u32 %v2410, 7
        %v2412 = vsub.s32 %v2409, %v2411
        %v2413 = vrot.slane %v2385, %v2412
        %v2414 = vcombine.high %v2392, %v2392
        %v2415 = vcombine.high %v2399, %v2399
        %v2416 = vcombine.high %v2406, %v2406
        %v2417 = vcombine.high %v2413, %v2413
        %v2418 = vcombine.high %v2192, %v2192
        %v2420 = vunpack.c.l.s4 1966171168
        %v2421 = vunpack.c.0.s8 %v2420
        %v2422 = vlaneseq
        %v2423 = vshrl.u32 %v2422, 7
        %v2424 = vsub.s32 %v2421, %v2423
        %v2425 = vrot.slane %v2192, %v2424
        %v2427 = vunpack.c.l.s4 1966171168
        %v2428 = vunpack.c.0.s8 %v2427
        %v2429 = vlaneseq
        %v2430 = vshrl.u32 %v2429, 7
        %v2431 = vsub.s32 %v2428, %v2430
        %v2432 = vrot.slane %v2418, %v2431
        %v2433 = vcombine.high %v2425, %v2425
        %v2434 = vcombine.high %v2432, %v2432
        %v2436 = vunpack.c.l.s4 1966171168
        %v2437 = vunpack.c.0.s8 %v2436
        %v2438 = vlaneseq
        %v2439 = vshrl.u32 %v2438, 7
        %v2440 = vsub.s32 %v2437, %v2439
        %v2441 = vrot.slane %v2425, %v2440
        %v2443 = vunpack.c.l.s4 1966171168
        %v2444 = vunpack.c.0.s8 %v2443
        %v2445 = vlaneseq
        %v2446 = vshrl.u32 %v2445, 7
        %v2447 = vsub.s32 %v2444, %v2446
        %v2448 = vrot.slane %v2432, %v2447
        %v2450 = vunpack.c.l.s4 1966171168
        %v2451 = vunpack.c.0.s8 %v2450
        %v2452 = vlaneseq
        %v2453 = vshrl.u32 %v2452, 7
        %v2454 = vsub.s32 %v2451, %v2453
        %v2455 = vrot.slane %v2433, %v2454
        %v2457 = vunpack.c.l.s4 1966171168
        %v2458 = vunpack.c.0.s8 %v2457
        %v2459 = vlaneseq
        %v2460 = vshrl.u32 %v2459, 7
        %v2461 = vsub.s32 %v2458, %v2460
        %v2462 = vrot.slane %v2434, %v2461
        %v2463 = vcombine.high %v2441, %v2441
        %v2464 = vcombine.high %v2448, %v2448
        %v2465 = vcombine.high %v2455, %v2455
        %v2466 = vcombine.high %v2462, %v2462
        %v2467 = vunpack.i.l.s16 %v2294
        %v2468 = vunpack.i.h.s16 %v2294
        %v2469 = vunpack.i.l.s16 %v2308
        %v2470 = vunpack.i.h.s16 %v2308
        %v2471 = vunpack.i.l.s16 %v2316
        %v2472 = vunpack.i.h.s16 %v2316
        %v2473 = vunpack.i.l.s16 %v2318
        %v2474 = vunpack.i.h.s16 %v2318
        %v2475 = vunpack.i.l.s16 %v2301
        %v2476 = vunpack.i.h.s16 %v2301
        %v2477 = vunpack.i.l.s16 %v2315
        %v2478 = vunpack.i.h.s16 %v2315
        %v2479 = vunpack.i.l.s16 %v2317
        %v2480 = vunpack.i.h.s16 %v2317
        %v2481 = vunpack.i.l.s16 %v2319
        %v2482 = vunpack.i.h.s16 %v2319
        %v2483 = vunpack.i.l.s16 %v2343
        %v2484 = vunpack.i.h.s16 %v2343
        %v2485 = vunpack.i.l.s16 %v2357
        %v2486 = vunpack.i.h.s16 %v2357
        %v2487 = vunpack.i.l.s16 %v2365
        %v2488 = vunpack.i.h.s16 %v2365
        %v2489 = vunpack.i.l.s16 %v2367
        %v2490 = vunpack.i.h.s16 %v2367
        %v2491 = vunpack.i.l.s16 %v2350
        %v2492 = vunpack.i.h.s16 %v2350
        %v2493 = vunpack.i.l.s16 %v2364
        %v2494 = vunpack.i.h.s16 %v2364
        %v2495 = vunpack.i.l.s16 %v2366
        %v2496 = vunpack.i.h.s16 %v2366
        %v2497 = vunpack.i.l.s16 %v2368
        %v2498 = vunpack.i.h.s16 %v2368
        %v2499 = vunpack.i.l.s16 %v2392
        %v2500 = vunpack.i.h.s16 %v2392
        %v2501 = vunpack.i.l.s16 %v2406
        %v2502 = vunpack.i.h.s16 %v2406
        %v2503 = vunpack.i.l.s16 %v2414
        %v2504 = vunpack.i.h.s16 %v2414
        %v2505 = vunpack.i.l.s16 %v2416
        %v2506 = vunpack.i.h.s16 %v2416
        %v2507 = vunpack.i.l.s16 %v2399
        %v2508 = vunpack.i.h.s16 %v2399
        %v2509 = vunpack.i.l.s16 %v2413
        %v2510 = vunpack.i.h.s16 %v2413
        %v2511 = vunpack.i.l.s16 %v2415
        %v2512 = vunpack.i.h.s16 %v2415
        %v2513 = vunpack.i.l.s16 %v2417
        %v2514 = vunpack.i.h.s16 %v2417
        %v2515 = vunpack.i.l.s16 %v2441
        %v2516 = vunpack.i.h.s16 %v2441
        %v2517 = vunpack.i.l.s16 %v2455
        %v2518 = vunpack.i.h.s16 %v2455
        %v2519 = vunpack.i.l.s16 %v2463
        %v2520 = vunpack.i.h.s16 %v2463
        %v2521 = vunpack.i.l.s16 %v2465
        %v2522 = vunpack.i.h.s16 %v2465
        %v2523 = vunpack.i.l.s16 %v2448
        %v2524 = vunpack.i.h.s16 %v2448
        %v2525 = vunpack.i.l.s16 %v2462
        %v2526 = vunpack.i.h.s16 %v2462
        %v2527 = vunpack.i.l.s16 %v2464
        %v2528 = vunpack.i.h.s16 %v2464
        %v2529 = vunpack.i.l.s16 %v2466
        %v2530 = vunpack.i.h.s16 %v2466
        %v2535 = vcombine.high %v2263, %v2263
        %v2537 = vunpack.c.l.s4 1966171168
        %v2538 = vunpack.c.0.s8 %v2537
        %v2539 = vlaneseq
        %v2540 = vshrl.u32 %v2539, 7
        %v2541 = vsub.s32 %v2538, %v2540
        %v2542 = vrot.slane %v2263, %v2541
        %v2544 = vunpack.c.l.s4 1966171168
        %v2545 = vunpack.c.0.s8 %v2544
        %v2546 = vlaneseq
        %v2547 = vshrl.u32 %v2546, 7
        %v2548 = vsub.s32 %v2545, %v2547
        %v2549 = vrot.slane %v2535, %v2548
        %v2550 = vcombine.high %v2542, %v2542
        %v2551 = vcombine.high %v2549, %v2549
        %v2553 = vunpack.c.l.s4 1966171168
        %v2554 = vunpack.c.0.s8 %v2553
        %v2555 = vlaneseq
        %v2556 = vshrl.u32 %v2555, 7
        %v2557 = vsub.s32 %v2554, %v2556
        %v2558 = vrot.slane %v2542, %v2557
        %v2560 = vunpack.c.l.s4 1966171168
        %v2561 = vunpack.c.0.s8 %v2560
        %v2562 = vlaneseq
        %v2563 = vshrl.u32 %v2562, 7
        %v2564 = vsub.s32 %v2561, %v2563
        %v2565 = vrot.slane %v2549, %v2564
        %v2567 = vunpack.c.l.s4 1966171168
        %v2568 = vunpack.c.0.s8 %v2567
        %v2569 = vlaneseq
        %v2570 = vshrl.u32 %v2569, 7
        %v2571 = vsub.s32 %v2568, %v2570
        %v2572 = vrot.slane %v2550, %v2571
        %v2574 = vunpack.c.l.s4 1966171168
        %v2575 = vunpack.c.0.s8 %v2574
        %v2576 = vlaneseq
        %v2577 = vshrl.u32 %v2576, 7
        %v2578 = vsub.s32 %v2575, %v2577
        %v2579 = vrot.slane %v2551, %v2578
        %v2580 = vcombine.high %v2558, %v2558
        %v2581 = vcombine.high %v2565, %v2565
        %v2582 = vcombine.high %v2572, %v2572
        %v2583 = vcombine.high %v2579, %v2579
        %v2584 = vcombine.high %v2264, %v2264
        %v2586 = vunpack.c.l.s4 1966171168
        %v2587 = vunpack.c.0.s8 %v2586
        %v2588 = vlaneseq
        %v2589 = vshrl.u32 %v2588, 7
        %v2590 = vsub.s32 %v2587, %v2589
        %v2591 = vrot.slane %v2264, %v2590
        %v2593 = vunpack.c.l.s4 1966171168
        %v2594 = vunpack.c.0.s8 %v2593
        %v2595 = vlaneseq
        %v2596 = vshrl.u32 %v2595, 7
        %v2597 = vsub.s32 %v2594, %v2596
        %v2598 = vrot.slane %v2584, %v2597
        %v2599 = vcombine.high %v2591, %v2591
        %v2600 = vcombine.high %v2598, %v2598
        %v2602 = vunpack.c.l.s4 1966171168
        %v2603 = vunpack.c.0.s8 %v2602
        %v2604 = vlaneseq
        %v2605 = vshrl.u32 %v2604, 7
        %v2606 = vsub.s32 %v2603, %v2605
        %v2607 = vrot.slane %v2591, %v2606
        %v2609 = vunpack.c.l.s4 1966171168
        %v2610 = vunpack.c.0.s8 %v2609
        %v2611 = vlaneseq
        %v2612 = vshrl.u32 %v2611, 7
        %v2613 = vsub.s32 %v2610, %v2612
        %v2614 = vrot.slane %v2598, %v2613
        %v2616 = vunpack.c.l.s4 1966171168
        %v2617 = vunpack.c.0.s8 %v2616
        %v2618 = vlaneseq
        %v2619 = vshrl.u32 %v2618, 7
        %v2620 = vsub.s32 %v2617, %v2619
        %v2621 = vrot.slane %v2599, %v2620
        %v2623 = vunpack.c.l.s4 1966171168
        %v2624 = vunpack.c.0.s8 %v2623
        %v2625 = vlaneseq
        %v2626 = vshrl.u32 %v2625, 7
        %v2627 = vsub.s32 %v2624, %v2626
        %v2628 = vrot.slane %v2600, %v2627
        %v2629 = vcombine.high %v2607, %v2607
        %v2630 = vcombine.high %v2614, %v2614
        %v2631 = vcombine.high %v2621, %v2621
        %v2632 = vcombine.high %v2628, %v2628
        %v2633 = vcombine.high %v2265, %v2265
        %v2635 = vunpack.c.l.s4 1966171168
        %v2636 = vunpack.c.0.s8 %v2635
        %v2637 = vlaneseq
        %v2638 = vshrl.u32 %v2637, 7
        %v2639 = vsub.s32 %v2636, %v2638
        %v2640 = vrot.slane %v2265, %v2639
        %v2642 = vunpack.c.l.s4 1966171168
        %v2643 = vunpack.c.0.s8 %v2642
        %v2644 = vlaneseq
        %v2645 = vshrl.u32 %v2644, 7
        %v2646 = vsub.s32 %v2643, %v2645
        %v2647 = vrot.slane %v2633, %v2646
        %v2648 = vcombine.high %v2640, %v2640
        %v2649 = vcombine.high %v2647, %v2647
        %v2651 = vunpack.c.l.s4 1966171168
        %v2652 = vunpack.c.0.s8 %v2651
        %v2653 = vlaneseq
        %v2654 = vshrl.u32 %v2653, 7
        %v2655 = vsub.s32 %v2652, %v2654
        %v2656 = vrot.slane %v2640, %v2655
        %v2658 = vunpack.c.l.s4 1966171168
        %v2659 = vunpack.c.0.s8 %v2658
        %v2660 = vlaneseq
        %v2661 = vshrl.u32 %v2660, 7
        %v2662 = vsub.s32 %v2659, %v2661
        %v2663 = vrot.slane %v2647, %v2662
        %v2665 = vunpack.c.l.s4 1966171168
        %v2666 = vunpack.c.0.s8 %v2665
        %v2667 = vlaneseq
        %v2668 = vshrl.u32 %v2667, 7
        %v2669 = vsub.s32 %v2666, %v2668
        %v2670 = vrot.slane %v2648, %v2669
        %v2672 = vunpack.c.l.s4 1966171168
        %v2673 = vunpack.c.0.s8 %v2672
        %v2674 = vlaneseq
        %v2675 = vshrl.u32 %v2674, 7
        %v2676 = vsub.s32 %v2673, %v2675
        %v2677 = vrot.slane %v2649, %v2676
        %v2678 = vcombine.high %v2656, %v2656
        %v2679 = vcombine.high %v2663, %v2663
        %v2680 = vcombine.high %v2670, %v2670
        %v2681 = vcombine.high %v2677, %v2677
        %v2682 = vcombine.high %v2266, %v2266
        %v2684 = vunpack.c.l.s4 1966171168
        %v2685 = vunpack.c.0.s8 %v2684
        %v2686 = vlaneseq
        %v2687 = vshrl.u32 %v2686, 7
        %v2688 = vsub.s32 %v2685, %v2687
        %v2689 = vrot.slane %v2266, %v2688
        %v2691 = vunpack.c.l.s4 1966171168
        %v2692 = vunpack.c.0.s8 %v2691
        %v2693 = vlaneseq
        %v2694 = vshrl.u32 %v2693, 7
        %v2695 = vsub.s32 %v2692, %v2694
        %v2696 = vrot.slane %v2682, %v2695
        %v2697 = vcombine.high %v2689, %v2689
        %v2698 = vcombine.high %v2696, %v2696
        %v2700 = vunpack.c.l.s4 1966171168
        %v2701 = vunpack.c.0.s8 %v2700
        %v2702 = vlaneseq
        %v2703 = vshrl.u32 %v2702, 7
        %v2704 = vsub.s32 %v2701, %v2703
        %v2705 = vrot.slane %v2689, %v2704
        %v2707 = vunpack.c.l.s4 1966171168
        %v2708 = vunpack.c.0.s8 %v2707
        %v2709 = vlaneseq
        %v2710 = vshrl.u32 %v2709, 7
        %v2711 = vsub.s32 %v2708, %v2710
        %v2712 = vrot.slane %v2696, %v2711
        %v2714 = vunpack.c.l.s4 1966171168
        %v2715 = vunpack.c.0.s8 %v2714
        %v2716 = vlaneseq
        %v2717 = vshrl.u32 %v2716, 7
        %v2718 = vsub.s32 %v2715, %v2717
        %v2719 = vrot.slane %v2697, %v2718
        %v2721 = vunpack.c.l.s4 1966171168
        %v2722 = vunpack.c.0.s8 %v2721
        %v2723 = vlaneseq
        %v2724 = vshrl.u32 %v2723, 7
        %v2725 = vsub.s32 %v2722, %v2724
        %v2726 = vrot.slane %v2698, %v2725
        %v2727 = vcombine.high %v2705, %v2705
        %v2728 = vcombine.high %v2712, %v2712
        %v2729 = vcombine.high %v2719, %v2719
        %v2730 = vcombine.high %v2726, %v2726
        %v2731 = vunpack.i.l.s16 %v2558
        %v2732 = vunpack.i.h.s16 %v2558
        %v2733 = vunpack.i.l.s16 %v2572
        %v2734 = vunpack.i.h.s16 %v2572
        %v2735 = vunpack.i.l.s16 %v2580
        %v2736 = vunpack.i.h.s16 %v2580
        %v2737 = vunpack.i.l.s16 %v2582
        %v2738 = vunpack.i.h.s16 %v2582
        %v2739 = vunpack.i.l.s16 %v2565
        %v2740 = vunpack.i.h.s16 %v2565
        %v2741 = vunpack.i.l.s16 %v2579
        %v2742 = vunpack.i.h.s16 %v2579
        %v2743 = vunpack.i.l.s16 %v2581
        %v2744 = vunpack.i.h.s16 %v2581
        %v2745 = vunpack.i.l.s16 %v2583
        %v2746 = vunpack.i.h.s16 %v2583
        %v2747 = vunpack.i.l.s16 %v2607
        %v2748 = vunpack.i.h.s16 %v2607
        %v2749 = vunpack.i.l.s16 %v2621
        %v2750 = vunpack.i.h.s16 %v2621
        %v2751 = vunpack.i.l.s16 %v2629
        %v2752 = vunpack.i.h.s16 %v2629
        %v2753 = vunpack.i.l.s16 %v2631
        %v2754 = vunpack.i.h.s16 %v2631
        %v2755 = vunpack.i.l.s16 %v2614
        %v2756 = vunpack.i.h.s16 %v2614
        %v2757 = vunpack.i.l.s16 %v2628
        %v2758 = vunpack.i.h.s16 %v2628
        %v2759 = vunpack.i.l.s16 %v2630
        %v2760 = vunpack.i.h.s16 %v2630
        %v2761 = vunpack.i.l.s16 %v2632
        %v2762 = vunpack.i.h.s16 %v2632
        %v2763 = vunpack.i.l.s16 %v2656
        %v2764 = vunpack.i.h.s16 %v2656
        %v2765 = vunpack.i.l.s16 %v2670
        %v2766 = vunpack.i.h.s16 %v2670
        %v2767 = vunpack.i.l.s16 %v2678
        %v2768 = vunpack.i.h.s16 %v2678
        %v2769 = vunpack.i.l.s16 %v2680
        %v2770 = vunpack.i.h.s16 %v2680
        %v2771 = vunpack.i.l.s16 %v2663
        %v2772 = vunpack.i.h.s16 %v2663
        %v2773 = vunpack.i.l.s16 %v2677
        %v2774 = vunpack.i.h.s16 %v2677
        %v2775 = vunpack.i.l.s16 %v2679
        %v2776 = vunpack.i.h.s16 %v2679
        %v2777 = vunpack.i.l.s16 %v2681
        %v2778 = vunpack.i.h.s16 %v2681
        %v2779 = vunpack.i.l.s16 %v2705
        %v2780 = vunpack.i.h.s16 %v2705
        %v2781 = vunpack.i.l.s16 %v2719
        %v2782 = vunpack.i.h.s16 %v2719
        %v2783 = vunpack.i.l.s16 %v2727
        %v2784 = vunpack.i.h.s16 %v2727
        %v2785 = vunpack.i.l.s16 %v2729
        %v2786 = vunpack.i.h.s16 %v2729
        %v2787 = vunpack.i.l.s16 %v2712
        %v2788 = vunpack.i.h.s16 %v2712
        %v2789 = vunpack.i.l.s16 %v2726
        %v2790 = vunpack.i.h.s16 %v2726
        %v2791 = vunpack.i.l.s16 %v2728
        %v2792 = vunpack.i.h.s16 %v2728
        %v2793 = vunpack.i.l.s16 %v2730
        %v2794 = vunpack.i.h.s16 %v2730
        %v2795 = vpack.i.b16 %v2467, %v2467
        %v2796 = vpack.i.b16 %v2468, %v2468
        %v2797 = vpack.i.b16 %v2469, %v2469
        %v2798 = vpack.i.b16 %v2470, %v2470
        %v2799 = vpack.i.b16 %v2471, %v2471
        %v2800 = vpack.i.b16 %v2472, %v2472
        %v2801 = vpack.i.b16 %v2473, %v2473
        %v2802 = vpack.i.b16 %v2474, %v2474
        %v2803 = vpack.i.b16 %v2475, %v2475
        %v2804 = vpack.i.b16 %v2476, %v2476
        %v2805 = vpack.i.b16 %v2477, %v2477
        %v2806 = vpack.i.b16 %v2478, %v2478
        %v2807 = vpack.i.b16 %v2479, %v2479
        %v2808 = vpack.i.b16 %v2480, %v2480
        %v2809 = vpack.i.b16 %v2481, %v2481
        %v2810 = vpack.i.b16 %v2482, %v2482
        %v2811 = vpack.i.b16 %v2483, %v2483
        %v2812 = vpack.i.b16 %v2484, %v2484
        %v2813 = vpack.i.b16 %v2485, %v2485
        %v2814 = vpack.i.b16 %v2486, %v2486
        %v2815 = vpack.i.b16 %v2487, %v2487
        %v2816 = vpack.i.b16 %v2488, %v2488
        %v2817 = vpack.i.b16 %v2489, %v2489
        %v2818 = vpack.i.b16 %v2490, %v2490
        %v2819 = vpack.i.b16 %v2491, %v2491
        %v2820 = vpack.i.b16 %v2492, %v2492
        %v2821 = vpack.i.b16 %v2493, %v2493
        %v2822 = vpack.i.b16 %v2494, %v2494
        %v2823 = vpack.i.b16 %v2495, %v2495
        %v2824 = vpack.i.b16 %v2496, %v2496
        %v2825 = vpack.i.b16 %v2497, %v2497
        %v2826 = vpack.i.b16 %v2498, %v2498
        %v2827 = vpack.i.b16 %v2499, %v2499
        %v2828 = vpack.i.b16 %v2500, %v2500
        %v2829 = vpack.i.b16 %v2501, %v2501
        %v2830 = vpack.i.b16 %v2502, %v2502
        %v2831 = vpack.i.b16 %v2503, %v2503
        %v2832 = vpack.i.b16 %v2504, %v2504
        %v2833 = vpack.i.b16 %v2505, %v2505
        %v2834 = vpack.i.b16 %v2506, %v2506
        %v2835 = vpack.i.b16 %v2507, %v2507
        %v2836 = vpack.i.b16 %v2508, %v2508
        %v2837 = vpack.i.b16 %v2509, %v2509
        %v2838 = vpack.i.b16 %v2510, %v2510
        %v2839 = vpack.i.b16 %v2511, %v2511
        %v2840 = vpack.i.b16 %v2512, %v2512
        %v2841 = vpack.i.b16 %v2513, %v2513
        %v2842 = vpack.i.b16 %v2514, %v2514
        %v2843 = vpack.i.b16 %v2515, %v2515
        %v2844 = vpack.i.b16 %v2516, %v2516
        %v2845 = vpack.i.b16 %v2517, %v2517
        %v2846 = vpack.i.b16 %v2518, %v2518
        %v2847 = vpack.i.b16 %v2519, %v2519
        %v2848 = vpack.i.b16 %v2520, %v2520
        %v2849 = vpack.i.b16 %v2521, %v2521
        %v2850 = vpack.i.b16 %v2522, %v2522
        %v2851 = vpack.i.b16 %v2523, %v2523
        %v2852 = vpack.i.b16 %v2524, %v2524
        %v2853 = vpack.i.b16 %v2525, %v2525
        %v2854 = vpack.i.b16 %v2526, %v2526
        %v2855 = vpack.i.b16 %v2527, %v2527
        %v2856 = vpack.i.b16 %v2528, %v2528
        %v2857 = vpack.i.b16 %v2529, %v2529
        %v2858 = vpack.i.b16 %v2530, %v2530
        %v2859 = vlaneseq
        %v2860 = vshrl.u32 %v2859, 7
        %v2861 = vsub.s32 0, %v2860
        %v2862 = vrot.slane %v2795, %v2861
        %v2863 = vlaneseq
        %v2864 = vshrl.u32 %v2863, 7
        %v2865 = vsub.s32 0, %v2864
        %v2866 = vrot.slane %v2796, %v2865
        %v2867 = vlaneseq
        %v2868 = vshrl.u32 %v2867, 7
        %v2869 = vsub.s32 0, %v2868
        %v2870 = vrot.slane %v2797, %v2869
        %v2871 = vlaneseq
        %v2872 = vshrl.u32 %v2871, 7
        %v2873 = vsub.s32 0, %v2872
        %v2874 = vrot.slane %v2798, %v2873
        %v2875 = vlaneseq
        %v2876 = vshrl.u32 %v2875, 7
        %v2877 = vsub.s32 0, %v2876
        %v2878 = vrot.slane %v2799, %v2877
        %v2879 = vlaneseq
        %v2880 = vshrl.u32 %v2879, 7
        %v2881 = vsub.s32 0, %v2880
        %v2882 = vrot.slane %v2800, %v2881
        %v2883 = vlaneseq
        %v2884 = vshrl.u32 %v2883, 7
        %v2885 = vsub.s32 0, %v2884
        %v2886 = vrot.slane %v2801, %v2885
        %v2887 = vlaneseq
        %v2888 = vshrl.u32 %v2887, 7
        %v2889 = vsub.s32 0, %v2888
        %v2890 = vrot.slane %v2802, %v2889
        %v2891 = vlaneseq
        %v2892 = vshrl.u32 %v2891, 7
        %v2893 = vsub.s32 0, %v2892
        %v2894 = vrot.slane %v2803, %v2893
        %v2895 = vlaneseq
        %v2896 = vshrl.u32 %v2895, 7
        %v2897 = vsub.s32 0, %v2896
        %v2898 = vrot.slane %v2804, %v2897
        %v2899 = vlaneseq
        %v2900 = vshrl.u32 %v2899, 7
        %v2901 = vsub.s32 0, %v2900
        %v2902 = vrot.slane %v2805, %v2901
        %v2903 = vlaneseq
        %v2904 = vshrl.u32 %v2903, 7
        %v2905 = vsub.s32 0, %v2904
        %v2906 = vrot.slane %v2806, %v2905
        %v2907 = vlaneseq
        %v2908 = vshrl.u32 %v2907, 7
        %v2909 = vsub.s32 0, %v2908
        %v2910 = vrot.slane %v2807, %v2909
        %v2911 = vlaneseq
        %v2912 = vshrl.u32 %v2911, 7
        %v2913 = vsub.s32 0, %v2912
        %v2914 = vrot.slane %v2808, %v2913
        %v2915 = vlaneseq
        %v2916 = vshrl.u32 %v2915, 7
        %v2917 = vsub.s32 0, %v2916
        %v2918 = vrot.slane %v2809, %v2917
        %v2919 = vlaneseq
        %v2920 = vshrl.u32 %v2919, 7
        %v2921 = vsub.s32 0, %v2920
        %v2922 = vrot.slane %v2810, %v2921
        %v2923 = vlaneseq
        %v2924 = vshrl.u32 %v2923, 7
        %v2925 = vsub.s32 0, %v2924
        %v2926 = vrot.slane %v2811, %v2925
        %v2927 = vlaneseq
        %v2928 = vshrl.u32 %v2927, 7
        %v2929 = vsub.s32 0, %v2928
        %v2930 = vrot.slane %v2812, %v2929
        %v2931 = vlaneseq
        %v2932 = vshrl.u32 %v2931, 7
        %v2933 = vsub.s32 0, %v2932
        %v2934 = vrot.slane %v2813, %v2933
        %v2935 = vlaneseq
        %v2936 = vshrl.u32 %v2935, 7
        %v2937 = vsub.s32 0, %v2936
        %v2938 = vrot.slane %v2814, %v2937
        %v2939 = vlaneseq
        %v2940 = vshrl.u32 %v2939, 7
        %v2941 = vsub.s32 0, %v2940
        %v2942 = vrot.slane %v2815, %v2941
        %v2943 = vlaneseq
        %v2944 = vshrl.u32 %v2943, 7
        %v2945 = vsub.s32 0, %v2944
        %v2946 = vrot.slane %v2816, %v2945
        %v2947 = vlaneseq
        %v2948 = vshrl.u32 %v2947, 7
        %v2949 = vsub.s32 0, %v2948
        %v2950 = vrot.slane %v2817, %v2949
        %v2951 = vlaneseq
        %v2952 = vshrl.u32 %v2951, 7
        %v2953 = vsub.s32 0, %v2952
        %v2954 = vrot.slane %v2818, %v2953
        %v2955 = vlaneseq
        %v2956 = vshrl.u32 %v2955, 7
        %v2957 = vsub.s32 0, %v2956
        %v2958 = vrot.slane %v2819, %v2957
        %v2959 = vlaneseq
        %v2960 = vshrl.u32 %v2959, 7
        %v2961 = vsub.s32 0, %v2960
        %v2962 = vrot.slane %v2820, %v2961
        %v2963 = vlaneseq
        %v2964 = vshrl.u32 %v2963, 7
        %v2965 = vsub.s32 0, %v2964
        %v2966 = vrot.slane %v2821, %v2965
        %v2967 = vlaneseq
        %v2968 = vshrl.u32 %v2967, 7
        %v2969 = vsub.s32 0, %v2968
        %v2970 = vrot.slane %v2822, %v2969
        %v2971 = vlaneseq
        %v2972 = vshrl.u32 %v2971, 7
        %v2973 = vsub.s32 0, %v2972
        %v2974 = vrot.slane %v2823, %v2973
        %v2975 = vlaneseq
        %v2976 = vshrl.u32 %v2975, 7
        %v2977 = vsub.s32 0, %v2976
        %v2978 = vrot.slane %v2824, %v2977
        %v2979 = vlaneseq
        %v2980 = vshrl.u32 %v2979, 7
        %v2981 = vsub.s32 0, %v2980
        %v2982 = vrot.slane %v2825, %v2981
        %v2983 = vlaneseq
        %v2984 = vshrl.u32 %v2983, 7
        %v2985 = vsub.s32 0, %v2984
        %v2986 = vrot.slane %v2826, %v2985
        %v2987 = vlaneseq
        %v2988 = vshrl.u32 %v2987, 7
        %v2989 = vsub.s32 0, %v2988
        %v2990 = vrot.slane %v2827, %v2989
        %v2991 = vlaneseq
        %v2992 = vshrl.u32 %v2991, 7
        %v2993 = vsub.s32 0, %v2992
        %v2994 = vrot.slane %v2828, %v2993
        %v2995 = vlaneseq
        %v2996 = vshrl.u32 %v2995, 7
        %v2997 = vsub.s32 0, %v2996
        %v2998 = vrot.slane %v2829, %v2997
        %v2999 = vlaneseq
        %v3000 = vshrl.u32 %v2999, 7
        %v3001 = vsub.s32 0, %v3000
        %v3002 = vrot.slane %v2830, %v3001
        %v3003 = vlaneseq
        %v3004 = vshrl.u32 %v3003, 7
        %v3005 = vsub.s32 0, %v3004
        %v3006 = vrot.slane %v2831, %v3005
        %v3007 = vlaneseq
        %v3008 = vshrl.u32 %v3007, 7
        %v3009 = vsub.s32 0, %v3008
        %v3010 = vrot.slane %v2832, %v3009
        %v3011 = vlaneseq
        %v3012 = vshrl.u32 %v3011, 7
        %v3013 = vsub.s32 0, %v3012
        %v3014 = vrot.slane %v2833, %v3013
        %v3015 = vlaneseq
        %v3016 = vshrl.u32 %v3015, 7
        %v3017 = vsub.s32 0, %v3016
        %v3018 = vrot.slane %v2834, %v3017
        %v3019 = vlaneseq
        %v3020 = vshrl.u32 %v3019, 7
        %v3021 = vsub.s32 0, %v3020
        %v3022 = vrot.slane %v2835, %v3021
        %v3023 = vlaneseq
        %v3024 = vshrl.u32 %v3023, 7
        %v3025 = vsub.s32 0, %v3024
        %v3026 = vrot.slane %v2836, %v3025
        %v3027 = vlaneseq
        %v3028 = vshrl.u32 %v3027, 7
        %v3029 = vsub.s32 0, %v3028
        %v3030 = vrot.slane %v2837, %v3029
        %v3031 = vlaneseq
        %v3032 = vshrl.u32 %v3031, 7
        %v3033 = vsub.s32 0, %v3032
        %v3034 = vrot.slane %v2838, %v3033
        %v3035 = vlaneseq
        %v3036 = vshrl.u32 %v3035, 7
        %v3037 = vsub.s32 0, %v3036
        %v3038 = vrot.slane %v2839, %v3037
        %v3039 = vlaneseq
        %v3040 = vshrl.u32 %v3039, 7
        %v3041 = vsub.s32 0, %v3040
        %v3042 = vrot.slane %v2840, %v3041
        %v3043 = vlaneseq
        %v3044 = vshrl.u32 %v3043, 7
        %v3045 = vsub.s32 0, %v3044
        %v3046 = vrot.slane %v2841, %v3045
        %v3047 = vlaneseq
        %v3048 = vshrl.u32 %v3047, 7
        %v3049 = vsub.s32 0, %v3048
        %v3050 = vrot.slane %v2842, %v3049
        %v3051 = vlaneseq
        %v3052 = vshrl.u32 %v3051, 7
        %v3053 = vsub.s32 0, %v3052
        %v3054 = vrot.slane %v2843, %v3053
        %v3055 = vlaneseq
        %v3056 = vshrl.u32 %v3055, 7
        %v3057 = vsub.s32 0, %v3056
        %v3058 = vrot.slane %v2844, %v3057
        %v3059 = vlaneseq
        %v3060 = vshrl.u32 %v3059, 7
        %v3061 = vsub.s32 0, %v3060
        %v3062 = vrot.slane %v2845, %v3061
        %v3063 = vlaneseq
        %v3064 = vshrl.u32 %v3063, 7
        %v3065 = vsub.s32 0, %v3064
        %v3066 = vrot.slane %v2846, %v3065
        %v3067 = vlaneseq
        %v3068 = vshrl.u32 %v3067, 7
        %v3069 = vsub.s32 0, %v3068
        %v3070 = vrot.slane %v2847, %v3069
        %v3071 = vlaneseq
        %v3072 = vshrl.u32 %v3071, 7
        %v3073 = vsub.s32 0, %v3072
        %v3074 = vrot.slane %v2848, %v3073
        %v3075 = vlaneseq
        %v3076 = vshrl.u32 %v3075, 7
        %v3077 = vsub.s32 0, %v3076
        %v3078 = vrot.slane %v2849, %v3077
        %v3079 = vlaneseq
        %v3080 = vshrl.u32 %v3079, 7
        %v3081 = vsub.s32 0, %v3080
        %v3082 = vrot.slane %v2850, %v3081
        %v3083 = vlaneseq
        %v3084 = vshrl.u32 %v3083, 7
        %v3085 = vsub.s32 0, %v3084
        %v3086 = vrot.slane %v2851, %v3085
        %v3087 = vlaneseq
        %v3088 = vshrl.u32 %v3087, 7
        %v3089 = vsub.s32 0, %v3088
        %v3090 = vrot.slane %v2852, %v3089
        %v3091 = vlaneseq
        %v3092 = vshrl.u32 %v3091, 7
        %v3093 = vsub.s32 0, %v3092
        %v3094 = vrot.slane %v2853, %v3093
        %v3095 = vlaneseq
        %v3096 = vshrl.u32 %v3095, 7
        %v3097 = vsub.s32 0, %v3096
        %v3098 = vrot.slane %v2854, %v3097
        %v3099 = vlaneseq
        %v3100 = vshrl.u32 %v3099, 7
        %v3101 = vsub.s32 0, %v3100
        %v3102 = vrot.slane %v2855, %v3101
        %v3103 = vlaneseq
        %v3104 = vshrl.u32 %v3103, 7
        %v3105 = vsub.s32 0, %v3104
        %v3106 = vrot.slane %v2856, %v3105
        %v3107 = vlaneseq
        %v3108 = vshrl.u32 %v3107, 7
        %v3109 = vsub.s32 0, %v3108
        %v3110 = vrot.slane %v2857, %v3109
        %v3111 = vlaneseq
        %v3112 = vshrl.u32 %v3111, 7
        %v3113 = vsub.s32 0, %v3112
        %v3114 = vrot.slane %v2858, %v3113
        %v3179 = vpack.i.b16 %v2731, %v2731
        %v3180 = vpack.i.b16 %v2732, %v2732
        %v3181 = vpack.i.b16 %v2733, %v2733
        %v3182 = vpack.i.b16 %v2734, %v2734
        %v3183 = vpack.i.b16 %v2735, %v2735
        %v3184 = vpack.i.b16 %v2736, %v2736
        %v3185 = vpack.i.b16 %v2737, %v2737
        %v3186 = vpack.i.b16 %v2738, %v2738
        %v3187 = vpack.i.b16 %v2739, %v2739
        %v3188 = vpack.i.b16 %v2740, %v2740
        %v3189 = vpack.i.b16 %v2741, %v2741
        %v3190 = vpack.i.b16 %v2742, %v2742
        %v3191 = vpack.i.b16 %v2743, %v2743
        %v3192 = vpack.i.b16 %v2744, %v2744
        %v3193 = vpack.i.b16 %v2745, %v2745
        %v3194 = vpack.i.b16 %v2746, %v2746
        %v3195 = vpack.i.b16 %v2747, %v2747
        %v3196 = vpack.i.b16 %v2748, %v2748
        %v3197 = vpack.i.b16 %v2749, %v2749
        %v3198 = vpack.i.b16 %v2750, %v2750
        %v3199 = vpack.i.b16 %v2751, %v2751
        %v3200 = vpack.i.b16 %v2752, %v2752
        %v3201 = vpack.i.b16 %v2753, %v2753
        %v3202 = vpack.i.b16 %v2754, %v2754
        %v3203 = vpack.i.b16 %v2755, %v2755
        %v3204 = vpack.i.b16 %v2756, %v2756
        %v3205 = vpack.i.b16 %v2757, %v2757
        %v3206 = vpack.i.b16 %v2758, %v2758
        %v3207 = vpack.i.b16 %v2759, %v2759
        %v3208 = vpack.i.b16 %v2760, %v2760
        %v3209 = vpack.i.b16 %v2761, %v2761
        %v3210 = vpack.i.b16 %v2762, %v2762
        %v3211 = vpack.i.b16 %v2763, %v2763
        %v3212 = vpack.i.b16 %v2764, %v2764
        %v3213 = vpack.i.b16 %v2765, %v2765
        %v3214 = vpack.i.b16 %v2766, %v2766
        %v3215 = vpack.i.b16 %v2767, %v2767
        %v3216 = vpack.i.b16 %v2768, %v2768
        %v3217 = vpack.i.b16 %v2769, %v2769
        %v3218 = vpack.i.b16 %v2770, %v2770
        %v3219 = vpack.i.b16 %v2771, %v2771
        %v3220 = vpack.i.b16 %v2772, %v2772
        %v3221 = vpack.i.b16 %v2773, %v2773
        %v3222 = vpack.i.b16 %v2774, %v2774
        %v3223 = vpack.i.b16 %v2775, %v2775
        %v3224 = vpack.i.b16 %v2776, %v2776
        %v3225 = vpack.i.b16 %v2777, %v2777
        %v3226 = vpack.i.b16 %v2778, %v2778
        %v3227 = vpack.i.b16 %v2779, %v2779
        %v3228 = vpack.i.b16 %v2780, %v2780
        %v3229 = vpack.i.b16 %v2781, %v2781
        %v3230 = vpack.i.b16 %v2782, %v2782
        %v3231 = vpack.i.b16 %v2783, %v2783
        %v3232 = vpack.i.b16 %v2784, %v2784
        %v3233 = vpack.i.b16 %v2785, %v2785
        %v3234 = vpack.i.b16 %v2786, %v2786
        %v3235 = vpack.i.b16 %v2787, %v2787
        %v3236 = vpack.i.b16 %v2788, %v2788
        %v3237 = vpack.i.b16 %v2789, %v2789
        %v3238 = vpack.i.b16 %v2790, %v2790
        %v3239 = vpack.i.b16 %v2791, %v2791
        %v3240 = vpack.i.b16 %v2792, %v2792
        %v3241 = vpack.i.b16 %v2793, %v2793
        %v3242 = vpack.i.b16 %v2794, %v2794
        %v3243 = vlaneseq
        %v3244 = vshrl.u32 %v3243, 7
        %v3245 = vsub.s32 0, %v3244
        %v3246 = vrot.slane %v3179, %v3245
        %v3247 = vlaneseq
        %v3248 = vshrl.u32 %v3247, 7
        %v3249 = vsub.s32 0, %v3248
        %v3250 = vrot.slane %v3180, %v3249
        %v3251 = vlaneseq
        %v3252 = vshrl.u32 %v3251, 7
        %v3253 = vsub.s32 0, %v3252
        %v3254 = vrot.slane %v3181, %v3253
        %v3255 = vlaneseq
        %v3256 = vshrl.u32 %v3255, 7
        %v3257 = vsub.s32 0, %v3256
        %v3258 = vrot.slane %v3182, %v3257
        %v3259 = vlaneseq
        %v3260 = vshrl.u32 %v3259, 7
        %v3261 = vsub.s32 0, %v3260
        %v3262 = vrot.slane %v3183, %v3261
        %v3263 = vlaneseq
        %v3264 = vshrl.u32 %v3263, 7
        %v3265 = vsub.s32 0, %v3264
        %v3266 = vrot.slane %v3184, %v3265
        %v3267 = vlaneseq
        %v3268 = vshrl.u32 %v3267, 7
        %v3269 = vsub.s32 0, %v3268
        %v3270 = vrot.slane %v3185, %v3269
        %v3271 = vlaneseq
        %v3272 = vshrl.u32 %v3271, 7
        %v3273 = vsub.s32 0, %v3272
        %v3274 = vrot.slane %v3186, %v3273
        %v3275 = vlaneseq
        %v3276 = vshrl.u32 %v3275, 7
        %v3277 = vsub.s32 0, %v3276
        %v3278 = vrot.slane %v3187, %v3277
        %v3279 = vlaneseq
        %v3280 = vshrl.u32 %v3279, 7
        %v3281 = vsub.s32 0, %v3280
        %v3282 = vrot.slane %v3188, %v3281
        %v3283 = vlaneseq
        %v3284 = vshrl.u32 %v3283, 7
        %v3285 = vsub.s32 0, %v3284
        %v3286 = vrot.slane %v3189, %v3285
        %v3287 = vlaneseq
        %v3288 = vshrl.u32 %v3287, 7
        %v3289 = vsub.s32 0, %v3288
        %v3290 = vrot.slane %v3190, %v3289
        %v3291 = vlaneseq
        %v3292 = vshrl.u32 %v3291, 7
        %v3293 = vsub.s32 0, %v3292
        %v3294 = vrot.slane %v3191, %v3293
        %v3295 = vlaneseq
        %v3296 = vshrl.u32 %v3295, 7
        %v3297 = vsub.s32 0, %v3296
        %v3298 = vrot.slane %v3192, %v3297
        %v3299 = vlaneseq
        %v3300 = vshrl.u32 %v3299, 7
        %v3301 = vsub.s32 0, %v3300
        %v3302 = vrot.slane %v3193, %v3301
        %v3303 = vlaneseq
        %v3304 = vshrl.u32 %v3303, 7
        %v3305 = vsub.s32 0, %v3304
        %v3306 = vrot.slane %v3194, %v3305
        %v3307 = vlaneseq
        %v3308 = vshrl.u32 %v3307, 7
        %v3309 = vsub.s32 0, %v3308
        %v3310 = vrot.slane %v3195, %v3309
        %v3311 = vlaneseq
        %v3312 = vshrl.u32 %v3311, 7
        %v3313 = vsub.s32 0, %v3312
        %v3314 = vrot.slane %v3196, %v3313
        %v3315 = vlaneseq
        %v3316 = vshrl.u32 %v3315, 7
        %v3317 = vsub.s32 0, %v3316
        %v3318 = vrot.slane %v3197, %v3317
        %v3319 = vlaneseq
        %v3320 = vshrl.u32 %v3319, 7
        %v3321 = vsub.s32 0, %v3320
        %v3322 = vrot.slane %v3198, %v3321
        %v3323 = vlaneseq
        %v3324 = vshrl.u32 %v3323, 7
        %v3325 = vsub.s32 0, %v3324
        %v3326 = vrot.slane %v3199, %v3325
        %v3327 = vlaneseq
        %v3328 = vshrl.u32 %v3327, 7
        %v3329 = vsub.s32 0, %v3328
        %v3330 = vrot.slane %v3200, %v3329
        %v3331 = vlaneseq
        %v3332 = vshrl.u32 %v3331, 7
        %v3333 = vsub.s32 0, %v3332
        %v3334 = vrot.slane %v3201, %v3333
        %v3335 = vlaneseq
        %v3336 = vshrl.u32 %v3335, 7
        %v3337 = vsub.s32 0, %v3336
        %v3338 = vrot.slane %v3202, %v3337
        %v3339 = vlaneseq
        %v3340 = vshrl.u32 %v3339, 7
        %v3341 = vsub.s32 0, %v3340
        %v3342 = vrot.slane %v3203, %v3341
        %v3343 = vlaneseq
        %v3344 = vshrl.u32 %v3343, 7
        %v3345 = vsub.s32 0, %v3344
        %v3346 = vrot.slane %v3204, %v3345
        %v3347 = vlaneseq
        %v3348 = vshrl.u32 %v3347, 7
        %v3349 = vsub.s32 0, %v3348
        %v3350 = vrot.slane %v3205, %v3349
        %v3351 = vlaneseq
        %v3352 = vshrl.u32 %v3351, 7
        %v3353 = vsub.s32 0, %v3352
        %v3354 = vrot.slane %v3206, %v3353
        %v3355 = vlaneseq
        %v3356 = vshrl.u32 %v3355, 7
        %v3357 = vsub.s32 0, %v3356
        %v3358 = vrot.slane %v3207, %v3357
        %v3359 = vlaneseq
        %v3360 = vshrl.u32 %v3359, 7
        %v3361 = vsub.s32 0, %v3360
        %v3362 = vrot.slane %v3208, %v3361
        %v3363 = vlaneseq
        %v3364 = vshrl.u32 %v3363, 7
        %v3365 = vsub.s32 0, %v3364
        %v3366 = vrot.slane %v3209, %v3365
        %v3367 = vlaneseq
        %v3368 = vshrl.u32 %v3367, 7
        %v3369 = vsub.s32 0, %v3368
        %v3370 = vrot.slane %v3210, %v3369
        %v3371 = vlaneseq
        %v3372 = vshrl.u32 %v3371, 7
        %v3373 = vsub.s32 0, %v3372
        %v3374 = vrot.slane %v3211, %v3373
        %v3375 = vlaneseq
        %v3376 = vshrl.u32 %v3375, 7
        %v3377 = vsub.s32 0, %v3376
        %v3378 = vrot.slane %v3212, %v3377
        %v3379 = vlaneseq
        %v3380 = vshrl.u32 %v3379, 7
        %v3381 = vsub.s32 0, %v3380
        %v3382 = vrot.slane %v3213, %v3381
        %v3383 = vlaneseq
        %v3384 = vshrl.u32 %v3383, 7
        %v3385 = vsub.s32 0, %v3384
        %v3386 = vrot.slane %v3214, %v3385
        %v3387 = vlaneseq
        %v3388 = vshrl.u32 %v3387, 7
        %v3389 = vsub.s32 0, %v3388
        %v3390 = vrot.slane %v3215, %v3389
        %v3391 = vlaneseq
        %v3392 = vshrl.u32 %v3391, 7
        %v3393 = vsub.s32 0, %v3392
        %v3394 = vrot.slane %v3216, %v3393
        %v3395 = vlaneseq
        %v3396 = vshrl.u32 %v3395, 7
        %v3397 = vsub.s32 0, %v3396
        %v3398 = vrot.slane %v3217, %v3397
        %v3399 = vlaneseq
        %v3400 = vshrl.u32 %v3399, 7
        %v3401 = vsub.s32 0, %v3400
        %v3402 = vrot.slane %v3218, %v3401
        %v3403 = vlaneseq
        %v3404 = vshrl.u32 %v3403, 7
        %v3405 = vsub.s32 0, %v3404
        %v3406 = vrot.slane %v3219, %v3405
        %v3407 = vlaneseq
        %v3408 = vshrl.u32 %v3407, 7
        %v3409 = vsub.s32 0, %v3408
        %v3410 = vrot.slane %v3220, %v3409
        %v3411 = vlaneseq
        %v3412 = vshrl.u32 %v3411, 7
        %v3413 = vsub.s32 0, %v3412
        %v3414 = vrot.slane %v3221, %v3413
        %v3415 = vlaneseq
        %v3416 = vshrl.u32 %v3415, 7
        %v3417 = vsub.s32 0, %v3416
        %v3418 = vrot.slane %v3222, %v3417
        %v3419 = vlaneseq
        %v3420 = vshrl.u32 %v3419, 7
        %v3421 = vsub.s32 0, %v3420
        %v3422 = vrot.slane %v3223, %v3421
        %v3423 = vlaneseq
        %v3424 = vshrl.u32 %v3423, 7
        %v3425 = vsub.s32 0, %v3424
        %v3426 = vrot.slane %v3224, %v3425
        %v3427 = vlaneseq
        %v3428 = vshrl.u32 %v3427, 7
        %v3429 = vsub.s32 0, %v3428
        %v3430 = vrot.slane %v3225, %v3429
        %v3431 = vlaneseq
        %v3432 = vshrl.u32 %v3431, 7
        %v3433 = vsub.s32 0, %v3432
        %v3434 = vrot.slane %v3226, %v3433
        %v3435 = vlaneseq
        %v3436 = vshrl.u32 %v3435, 7
        %v3437 = vsub.s32 0, %v3436
        %v3438 = vrot.slane %v3227, %v3437
        %v3439 = vlaneseq
        %v3440 = vshrl.u32 %v3439, 7
        %v3441 = vsub.s32 0, %v3440
        %v3442 = vrot.slane %v3228, %v3441
        %v3443 = vlaneseq
        %v3444 = vshrl.u32 %v3443, 7
        %v3445 = vsub.s32 0, %v3444
        %v3446 = vrot.slane %v3229, %v3445
        %v3447 = vlaneseq
        %v3448 = vshrl.u32 %v3447, 7
        %v3449 = vsub.s32 0, %v3448
        %v3450 = vrot.slane %v3230, %v3449
        %v3451 = vlaneseq
        %v3452 = vshrl.u32 %v3451, 7
        %v3453 = vsub.s32 0, %v3452
        %v3454 = vrot.slane %v3231, %v3453
        %v3455 = vlaneseq
        %v3456 = vshrl.u32 %v3455, 7
        %v3457 = vsub.s32 0, %v3456
        %v3458 = vrot.slane %v3232, %v3457
        %v3459 = vlaneseq
        %v3460 = vshrl.u32 %v3459, 7
        %v3461 = vsub.s32 0, %v3460
        %v3462 = vrot.slane %v3233, %v3461
        %v3463 = vlaneseq
        %v3464 = vshrl.u32 %v3463, 7
        %v3465 = vsub.s32 0, %v3464
        %v3466 = vrot.slane %v3234, %v3465
        %v3467 = vlaneseq
        %v3468 = vshrl.u32 %v3467, 7
        %v3469 = vsub.s32 0, %v3468
        %v3470 = vrot.slane %v3235, %v3469
        %v3471 = vlaneseq
        %v3472 = vshrl.u32 %v3471, 7
        %v3473 = vsub.s32 0, %v3472
        %v3474 = vrot.slane %v3236, %v3473
        %v3475 = vlaneseq
        %v3476 = vshrl.u32 %v3475, 7
        %v3477 = vsub.s32 0, %v3476
        %v3478 = vrot.slane %v3237, %v3477
        %v3479 = vlaneseq
        %v3480 = vshrl.u32 %v3479, 7
        %v3481 = vsub.s32 0, %v3480
        %v3482 = vrot.slane %v3238, %v3481
        %v3483 = vlaneseq
        %v3484 = vshrl.u32 %v3483, 7
        %v3485 = vsub.s32 0, %v3484
        %v3486 = vrot.slane %v3239, %v3485
        %v3487 = vlaneseq
        %v3488 = vshrl.u32 %v3487, 7
        %v3489 = vsub.s32 0, %v3488
        %v3490 = vrot.slane %v3240, %v3489
        %v3491 = vlaneseq
        %v3492 = vshrl.u32 %v3491, 7
        %v3493 = vsub.s32 0, %v3492
        %v3494 = vrot.slane %v3241, %v3493
        %v3495 = vlaneseq
        %v3496 = vshrl.u32 %v3495, 7
        %v3497 = vsub.s32 0, %v3496
        %v3498 = vrot.slane %v3242, %v3497
        %v3563 = vsel %vm2054, %v2862, %v3246
        %v3564 = vsel %vm2054, %v2866, %v3250
        %v3565 = vsel %vm2054, %v2870, %v3254
        %v3566 = vsel %vm2054, %v2874, %v3258
        %v3567 = vsel %vm2054, %v2878, %v3262
        %v3568 = vsel %vm2054, %v2882, %v3266
        %v3569 = vsel %vm2054, %v2886, %v3270
        %v3570 = vsel %vm2054, %v2890, %v3274
        %v3571 = vsel %vm2054, %v2894, %v3278
        %v3572 = vsel %vm2054, %v2898, %v3282
        %v3573 = vsel %vm2054, %v2902, %v3286
        %v3574 = vsel %vm2054, %v2906, %v3290
        %v3575 = vsel %vm2054, %v2910, %v3294
        %v3576 = vsel %vm2054, %v2914, %v3298
        %v3577 = vsel %vm2054, %v2918, %v3302
        %v3578 = vsel %vm2054, %v2922, %v3306
        %v3579 = vsel %vm2054, %v2926, %v3310
        %v3580 = vsel %vm2054, %v2930, %v3314
        %v3581 = vsel %vm2054, %v2934, %v3318
        %v3582 = vsel %vm2054, %v2938, %v3322
        %v3583 = vsel %vm2054, %v2942, %v3326
        %v3584 = vsel %vm2054, %v2946, %v3330
        %v3585 = vsel %vm2054, %v2950, %v3334
        %v3586 = vsel %vm2054, %v2954, %v3338
        %v3587 = vsel %vm2054, %v2958, %v3342
        %v3588 = vsel %vm2054, %v2962, %v3346
        %v3589 = vsel %vm2054, %v2966, %v3350
        %v3590 = vsel %vm2054, %v2970, %v3354
        %v3591 = vsel %vm2054, %v2974, %v3358
        %v3592 = vsel %vm2054, %v2978, %v3362
        %v3593 = vsel %vm2054, %v2982, %v3366
        %v3594 = vsel %vm2054, %v2986, %v3370
        %v3595 = vsel %vm2054, %v2990, %v3374
        %v3596 = vsel %vm2054, %v2994, %v3378
        %v3597 = vsel %vm2054, %v2998, %v3382
        %v3598 = vsel %vm2054, %v3002, %v3386
        %v3599 = vsel %vm2054, %v3006, %v3390
        %v3600 = vsel %vm2054, %v3010, %v3394
        %v3601 = vsel %vm2054, %v3014, %v3398
        %v3602 = vsel %vm2054, %v3018, %v3402
        %v3603 = vsel %vm2054, %v3022, %v3406
        %v3604 = vsel %vm2054, %v3026, %v3410
        %v3605 = vsel %vm2054, %v3030, %v3414
        %v3606 = vsel %vm2054, %v3034, %v3418
        %v3607 = vsel %vm2054, %v3038, %v3422
        %v3608 = vsel %vm2054, %v3042, %v3426
        %v3609 = vsel %vm2054, %v3046, %v3430
        %v3610 = vsel %vm2054, %v3050, %v3434
        %v3611 = vsel %vm2054, %v3054, %v3438
        %v3612 = vsel %vm2054, %v3058, %v3442
        %v3613 = vsel %vm2054, %v3062, %v3446
        %v3614 = vsel %vm2054, %v3066, %v3450
        %v3615 = vsel %vm2054, %v3070, %v3454
        %v3616 = vsel %vm2054, %v3074, %v3458
        %v3617 = vsel %vm2054, %v3078, %v3462
        %v3618 = vsel %vm2054, %v3082, %v3466
        %v3619 = vsel %vm2054, %v3086, %v3470
        %v3620 = vsel %vm2054, %v3090, %v3474
        %v3621 = vsel %vm2054, %v3094, %v3478
        %v3622 = vsel %vm2054, %v3098, %v3482
        %v3623 = vsel %vm2054, %v3102, %v3486
        %v3624 = vsel %vm2054, %v3106, %v3490
        %v3625 = vsel %vm2054, %v3110, %v3494
        %v3626 = vsel %vm2054, %v3114, %v3498
        %v3755 = vcombine.low %v2055, %v2056
        %v3756 = vcombine.low %v2057, %v2058
        %v3757 = vcombine.low %v2059, %v2060
        %v3758 = vcombine.low %v2061, %v2062
        %v3760 = vunpack.c.l.s4 1966171168
        %v3761 = vunpack.c.0.s8 %v3760
        %v3762 = vlaneseq
        %v3763 = vshrl.u32 %v3762, 7
        %v3764 = vsub.s32 %v3761, %v3763
        %v3765 = vrot.slane %v3755, %v3764
        %v3767 = vunpack.c.l.s4 1966171168
        %v3768 = vunpack.c.0.s8 %v3767
        %v3769 = vlaneseq
        %v3770 = vshrl.u32 %v3769, 7
        %v3771 = vsub.s32 %v3768, %v3770
        %v3772 = vrot.slane %v3756, %v3771
        %v3774 = vunpack.c.l.s4 1966171168
        %v3775 = vunpack.c.0.s8 %v3774
        %v3776 = vlaneseq
        %v3777 = vshrl.u32 %v3776, 7
        %v3778 = vsub.s32 %v3775, %v3777
        %v3779 = vrot.slane %v3757, %v3778
        %v3781 = vunpack.c.l.s4 1966171168
        %v3782 = vunpack.c.0.s8 %v3781
        %v3783 = vlaneseq
        %v3784 = vshrl.u32 %v3783, 7
        %v3785 = vsub.s32 %v3782, %v3784
        %v3786 = vrot.slane %v3758, %v3785
        %v3787 = vcombine.low %v3765, %v3772
        %v3788 = vcombine.low %v3779, %v3786
        %v3790 = vunpack.c.l.s4 1966171168
        %v3791 = vunpack.c.0.s8 %v3790
        %v3792 = vlaneseq
        %v3793 = vshrl.u32 %v3792, 7
        %v3794 = vsub.s32 %v3791, %v3793
        %v3795 = vrot.slane %v3787, %v3794
        %v3797 = vunpack.c.l.s4 1966171168
        %v3798 = vunpack.c.0.s8 %v3797
        %v3799 = vlaneseq
        %v3800 = vshrl.u32 %v3799, 7
        %v3801 = vsub.s32 %v3798, %v3800
        %v3802 = vrot.slane %v3788, %v3801
        %v3803 = vcombine.low %v3795, %v3802
        %v3804 = vcombine.low %v3563, %v3564
        %v3805 = vcombine.low %v3565, %v3566
        %v3806 = vcombine.low %v3567, %v3568
        %v3807 = vcombine.low %v3569, %v3570
        %v3809 = vunpack.c.l.s4 1966171168
        %v3810 = vunpack.c.0.s8 %v3809
        %v3811 = vlaneseq
        %v3812 = vshrl.u32 %v3811, 7
        %v3813 = vsub.s32 %v3810, %v3812
        %v3814 = vrot.slane %v3804, %v3813
        %v3816 = vunpack.c.l.s4 1966171168
        %v3817 = vunpack.c.0.s8 %v3816
        %v3818 = vlaneseq
        %v3819 = vshrl.u32 %v3818, 7
        %v3820 = vsub.s32 %v3817, %v3819
        %v3821 = vrot.slane %v3805, %v3820
        %v3823 = vunpack.c.l.s4 1966171168
        %v3824 = vunpack.c.0.s8 %v3823
        %v3825 = vlaneseq
        %v3826 = vshrl.u32 %v3825, 7
        %v3827 = vsub.s32 %v3824, %v3826
        %v3828 = vrot.slane %v3806, %v3827
        %v3830 = vunpack.c.l.s4 1966171168
        %v3831 = vunpack.c.0.s8 %v3830
        %v3832 = vlaneseq
        %v3833 = vshrl.u32 %v3832, 7
        %v3834 = vsub.s32 %v3831, %v3833
        %v3835 = vrot.slane %v3807, %v3834
        %v3836 = vcombine.low %v3814, %v3821
        %v3837 = vcombine.low %v3828, %v3835
        %v3839 = vunpack.c.l.s4 1966171168
        %v3840 = vunpack.c.0.s8 %v3839
        %v3841 = vlaneseq
        %v3842 = vshrl.u32 %v3841, 7
        %v3843 = vsub.s32 %v3840, %v3842
        %v3844 = vrot.slane %v3836, %v3843
        %v3846 = vunpack.c.l.s4 1966171168
        %v3847 = vunpack.c.0.s8 %v3846
        %v3848 = vlaneseq
        %v3849 = vshrl.u32 %v3848, 7
        %v3850 = vsub.s32 %v3847, %v3849
        %v3851 = vrot.slane %v3837, %v3850
        %v3852 = vcombine.low %v3844, %v3851
        %v3853 = vcombine.low %v2063, %v2064
        %v3854 = vcombine.low %v2065, %v2066
        %v3855 = vcombine.low %v2067, %v2068
        %v3856 = vcombine.low %v2069, %v2070
        %v3858 = vunpack.c.l.s4 1966171168
        %v3859 = vunpack.c.0.s8 %v3858
        %v3860 = vlaneseq
        %v3861 = vshrl.u32 %v3860, 7
        %v3862 = vsub.s32 %v3859, %v3861
        %v3863 = vrot.slane %v3853, %v3862
        %v3865 = vunpack.c.l.s4 1966171168
        %v3866 = vunpack.c.0.s8 %v3865
        %v3867 = vlaneseq
        %v3868 = vshrl.u32 %v3867, 7
        %v3869 = vsub.s32 %v3866, %v3868
        %v3870 = vrot.slane %v3854, %v3869
        %v3872 = vunpack.c.l.s4 1966171168
        %v3873 = vunpack.c.0.s8 %v3872
        %v3874 = vlaneseq
        %v3875 = vshrl.u32 %v3874, 7
        %v3876 = vsub.s32 %v3873, %v3875
        %v3877 = vrot.slane %v3855, %v3876
        %v3879 = vunpack.c.l.s4 1966171168
        %v3880 = vunpack.c.0.s8 %v3879
        %v3881 = vlaneseq
        %v3882 = vshrl.u32 %v3881, 7
        %v3883 = vsub.s32 %v3880, %v3882
        %v3884 = vrot.slane %v3856, %v3883
        %v3885 = vcombine.low %v3863, %v3870
        %v3886 = vcombine.low %v3877, %v3884
        %v3888 = vunpack.c.l.s4 1966171168
        %v3889 = vunpack.c.0.s8 %v3888
        %v3890 = vlaneseq
        %v3891 = vshrl.u32 %v3890, 7
        %v3892 = vsub.s32 %v3889, %v3891
        %v3893 = vrot.slane %v3885, %v3892
        %v3895 = vunpack.c.l.s4 1966171168
        %v3896 = vunpack.c.0.s8 %v3895
        %v3897 = vlaneseq
        %v3898 = vshrl.u32 %v3897, 7
        %v3899 = vsub.s32 %v3896, %v3898
        %v3900 = vrot.slane %v3886, %v3899
        %v3901 = vcombine.low %v3893, %v3900
        %v3902 = vcombine.low %v3571, %v3572
        %v3903 = vcombine.low %v3573, %v3574
        %v3904 = vcombine.low %v3575, %v3576
        %v3905 = vcombine.low %v3577, %v3578
        %v3907 = vunpack.c.l.s4 1966171168
        %v3908 = vunpack.c.0.s8 %v3907
        %v3909 = vlaneseq
        %v3910 = vshrl.u32 %v3909, 7
        %v3911 = vsub.s32 %v3908, %v3910
        %v3912 = vrot.slane %v3902, %v3911
        %v3914 = vunpack.c.l.s4 1966171168
        %v3915 = vunpack.c.0.s8 %v3914
        %v3916 = vlaneseq
        %v3917 = vshrl.u32 %v3916, 7
        %v3918 = vsub.s32 %v3915, %v3917
        %v3919 = vrot.slane %v3903, %v3918
        %v3921 = vunpack.c.l.s4 1966171168
        %v3922 = vunpack.c.0.s8 %v3921
        %v3923 = vlaneseq
        %v3924 = vshrl.u32 %v3923, 7
        %v3925 = vsub.s32 %v3922, %v3924
        %v3926 = vrot.slane %v3904, %v3925
        %v3928 = vunpack.c.l.s4 1966171168
        %v3929 = vunpack.c.0.s8 %v3928
        %v3930 = vlaneseq
        %v3931 = vshrl.u32 %v3930, 7
        %v3932 = vsub.s32 %v3929, %v3931
        %v3933 = vrot.slane %v3905, %v3932
        %v3934 = vcombine.low %v3912, %v3919
        %v3935 = vcombine.low %v3926, %v3933
        %v3937 = vunpack.c.l.s4 1966171168
        %v3938 = vunpack.c.0.s8 %v3937
        %v3939 = vlaneseq
        %v3940 = vshrl.u32 %v3939, 7
        %v3941 = vsub.s32 %v3938, %v3940
        %v3942 = vrot.slane %v3934, %v3941
        %v3944 = vunpack.c.l.s4 1966171168
        %v3945 = vunpack.c.0.s8 %v3944
        %v3946 = vlaneseq
        %v3947 = vshrl.u32 %v3946, 7
        %v3948 = vsub.s32 %v3945, %v3947
        %v3949 = vrot.slane %v3935, %v3948
        %v3950 = vcombine.low %v3942, %v3949
        %v3951 = vcombine.low %v2071, %v2072
        %v3952 = vcombine.low %v2073, %v2074
        %v3953 = vcombine.low %v2075, %v2076
        %v3954 = vcombine.low %v2077, %v2078
        %v3956 = vunpack.c.l.s4 1966171168
        %v3957 = vunpack.c.0.s8 %v3956
        %v3958 = vlaneseq
        %v3959 = vshrl.u32 %v3958, 7
        %v3960 = vsub.s32 %v3957, %v3959
        %v3961 = vrot.slane %v3951, %v3960
        %v3963 = vunpack.c.l.s4 1966171168
        %v3964 = vunpack.c.0.s8 %v3963
        %v3965 = vlaneseq
        %v3966 = vshrl.u32 %v3965, 7
        %v3967 = vsub.s32 %v3964, %v3966
        %v3968 = vrot.slane %v3952, %v3967
        %v3970 = vunpack.c.l.s4 1966171168
        %v3971 = vunpack.c.0.s8 %v3970
        %v3972 = vlaneseq
        %v3973 = vshrl.u32 %v3972, 7
        %v3974 = vsub.s32 %v3971, %v3973
        %v3975 = vrot.slane %v3953, %v3974
        %v3977 = vunpack.c.l.s4 1966171168
        %v3978 = vunpack.c.0.s8 %v3977
        %v3979 = vlaneseq
        %v3980 = vshrl.u32 %v3979, 7
        %v3981 = vsub.s32 %v3978, %v3980
        %v3982 = vrot.slane %v3954, %v3981
        %v3983 = vcombine.low %v3961, %v3968
        %v3984 = vcombine.low %v3975, %v3982
        %v3986 = vunpack.c.l.s4 1966171168
        %v3987 = vunpack.c.0.s8 %v3986
        %v3988 = vlaneseq
        %v3989 = vshrl.u32 %v3988, 7
        %v3990 = vsub.s32 %v3987, %v3989
        %v3991 = vrot.slane %v3983, %v3990
        %v3993 = vunpack.c.l.s4 1966171168
        %v3994 = vunpack.c.0.s8 %v3993
        %v3995 = vlaneseq
        %v3996 = vshrl.u32 %v3995, 7
        %v3997 = vsub.s32 %v3994, %v3996
        %v3998 = vrot.slane %v3984, %v3997
        %v3999 = vcombine.low %v3991, %v3998
        %v4000 = vcombine.low %v3579, %v3580
        %v4001 = vcombine.low %v3581, %v3582
        %v4002 = vcombine.low %v3583, %v3584
        %v4003 = vcombine.low %v3585, %v3586
        %v4005 = vunpack.c.l.s4 1966171168
        %v4006 = vunpack.c.0.s8 %v4005
        %v4007 = vlaneseq
        %v4008 = vshrl.u32 %v4007, 7
        %v4009 = vsub.s32 %v4006, %v4008
        %v4010 = vrot.slane %v4000, %v4009
        %v4012 = vunpack.c.l.s4 1966171168
        %v4013 = vunpack.c.0.s8 %v4012
        %v4014 = vlaneseq
        %v4015 = vshrl.u32 %v4014, 7
        %v4016 = vsub.s32 %v4013, %v4015
        %v4017 = vrot.slane %v4001, %v4016
        %v4019 = vunpack.c.l.s4 1966171168
        %v4020 = vunpack.c.0.s8 %v4019
        %v4021 = vlaneseq
        %v4022 = vshrl.u32 %v4021, 7
        %v4023 = vsub.s32 %v4020, %v4022
        %v4024 = vrot.slane %v4002, %v4023
        %v4026 = vunpack.c.l.s4 1966171168
        %v4027 = vunpack.c.0.s8 %v4026
        %v4028 = vlaneseq
        %v4029 = vshrl.u32 %v4028, 7
        %v4030 = vsub.s32 %v4027, %v4029
        %v4031 = vrot.slane %v4003, %v4030
        %v4032 = vcombine.low %v4010, %v4017
        %v4033 = vcombine.low %v4024, %v4031
        %v4035 = vunpack.c.l.s4 1966171168
        %v4036 = vunpack.c.0.s8 %v4035
        %v4037 = vlaneseq
        %v4038 = vshrl.u32 %v4037, 7
        %v4039 = vsub.s32 %v4036, %v4038
        %v4040 = vrot.slane %v4032, %v4039
        %v4042 = vunpack.c.l.s4 1966171168
        %v4043 = vunpack.c.0.s8 %v4042
        %v4044 = vlaneseq
        %v4045 = vshrl.u32 %v4044, 7
        %v4046 = vsub.s32 %v4043, %v4045
        %v4047 = vrot.slane %v4033, %v4046
        %v4048 = vcombine.low %v4040, %v4047
        %v4049 = vcombine.low %v2079, %v2080
        %v4050 = vcombine.low %v2081, %v2082
        %v4051 = vcombine.low %v2083, %v2084
        %v4052 = vcombine.low %v2085, %v2086
        %v4054 = vunpack.c.l.s4 1966171168
        %v4055 = vunpack.c.0.s8 %v4054
        %v4056 = vlaneseq
        %v4057 = vshrl.u32 %v4056, 7
        %v4058 = vsub.s32 %v4055, %v4057
        %v4059 = vrot.slane %v4049, %v4058
        %v4061 = vunpack.c.l.s4 1966171168
        %v4062 = vunpack.c.0.s8 %v4061
        %v4063 = vlaneseq
        %v4064 = vshrl.u32 %v4063, 7
        %v4065 = vsub.s32 %v4062, %v4064
        %v4066 = vrot.slane %v4050, %v4065
        %v4068 = vunpack.c.l.s4 1966171168
        %v4069 = vunpack.c.0.s8 %v4068
        %v4070 = vlaneseq
        %v4071 = vshrl.u32 %v4070, 7
        %v4072 = vsub.s32 %v4069, %v4071
        %v4073 = vrot.slane %v4051, %v4072
        %v4075 = vunpack.c.l.s4 1966171168
        %v4076 = vunpack.c.0.s8 %v4075
        %v4077 = vlaneseq
        %v4078 = vshrl.u32 %v4077, 7
        %v4079 = vsub.s32 %v4076, %v4078
        %v4080 = vrot.slane %v4052, %v4079
        %v4081 = vcombine.low %v4059, %v4066
        %v4082 = vcombine.low %v4073, %v4080
        %v4084 = vunpack.c.l.s4 1966171168
        %v4085 = vunpack.c.0.s8 %v4084
        %v4086 = vlaneseq
        %v4087 = vshrl.u32 %v4086, 7
        %v4088 = vsub.s32 %v4085, %v4087
        %v4089 = vrot.slane %v4081, %v4088
        %v4091 = vunpack.c.l.s4 1966171168
        %v4092 = vunpack.c.0.s8 %v4091
        %v4093 = vlaneseq
        %v4094 = vshrl.u32 %v4093, 7
        %v4095 = vsub.s32 %v4092, %v4094
        %v4096 = vrot.slane %v4082, %v4095
        %v4097 = vcombine.low %v4089, %v4096
        %v4098 = vcombine.low %v3587, %v3588
        %v4099 = vcombine.low %v3589, %v3590
        %v4100 = vcombine.low %v3591, %v3592
        %v4101 = vcombine.low %v3593, %v3594
        %v4103 = vunpack.c.l.s4 1966171168
        %v4104 = vunpack.c.0.s8 %v4103
        %v4105 = vlaneseq
        %v4106 = vshrl.u32 %v4105, 7
        %v4107 = vsub.s32 %v4104, %v4106
        %v4108 = vrot.slane %v4098, %v4107
        %v4110 = vunpack.c.l.s4 1966171168
        %v4111 = vunpack.c.0.s8 %v4110
        %v4112 = vlaneseq
        %v4113 = vshrl.u32 %v4112, 7
        %v4114 = vsub.s32 %v4111, %v4113
        %v4115 = vrot.slane %v4099, %v4114
        %v4117 = vunpack.c.l.s4 1966171168
        %v4118 = vunpack.c.0.s8 %v4117
        %v4119 = vlaneseq
        %v4120 = vshrl.u32 %v4119, 7
        %v4121 = vsub.s32 %v4118, %v4120
        %v4122 = vrot.slane %v4100, %v4121
        %v4124 = vunpack.c.l.s4 1966171168
        %v4125 = vunpack.c.0.s8 %v4124
        %v4126 = vlaneseq
        %v4127 = vshrl.u32 %v4126, 7
        %v4128 = vsub.s32 %v4125, %v4127
        %v4129 = vrot.slane %v4101, %v4128
        %v4130 = vcombine.low %v4108, %v4115
        %v4131 = vcombine.low %v4122, %v4129
        %v4133 = vunpack.c.l.s4 1966171168
        %v4134 = vunpack.c.0.s8 %v4133
        %v4135 = vlaneseq
        %v4136 = vshrl.u32 %v4135, 7
        %v4137 = vsub.s32 %v4134, %v4136
        %v4138 = vrot.slane %v4130, %v4137
        %v4140 = vunpack.c.l.s4 1966171168
        %v4141 = vunpack.c.0.s8 %v4140
        %v4142 = vlaneseq
        %v4143 = vshrl.u32 %v4142, 7
        %v4144 = vsub.s32 %v4141, %v4143
        %v4145 = vrot.slane %v4131, %v4144
        %v4146 = vcombine.low %v4138, %v4145
        %v4147 = vcombine.low %v2087, %v2088
        %v4148 = vcombine.low %v2089, %v2090
        %v4149 = vcombine.low %v2091, %v2092
        %v4150 = vcombine.low %v2093, %v2094
        %v4152 = vunpack.c.l.s4 1966171168
        %v4153 = vunpack.c.0.s8 %v4152
        %v4154 = vlaneseq
        %v4155 = vshrl.u32 %v4154, 7
        %v4156 = vsub.s32 %v4153, %v4155
        %v4157 = vrot.slane %v4147, %v4156
        %v4159 = vunpack.c.l.s4 1966171168
        %v4160 = vunpack.c.0.s8 %v4159
        %v4161 = vlaneseq
        %v4162 = vshrl.u32 %v4161, 7
        %v4163 = vsub.s32 %v4160, %v4162
        %v4164 = vrot.slane %v4148, %v4163
        %v4166 = vunpack.c.l.s4 1966171168
        %v4167 = vunpack.c.0.s8 %v4166
        %v4168 = vlaneseq
        %v4169 = vshrl.u32 %v4168, 7
        %v4170 = vsub.s32 %v4167, %v4169
        %v4171 = vrot.slane %v4149, %v4170
        %v4173 = vunpack.c.l.s4 1966171168
        %v4174 = vunpack.c.0.s8 %v4173
        %v4175 = vlaneseq
        %v4176 = vshrl.u32 %v4175, 7
        %v4177 = vsub.s32 %v4174, %v4176
        %v4178 = vrot.slane %v4150, %v4177
        %v4179 = vcombine.low %v4157, %v4164
        %v4180 = vcombine.low %v4171, %v4178
        %v4182 = vunpack.c.l.s4 1966171168
        %v4183 = vunpack.c.0.s8 %v4182
        %v4184 = vlaneseq
        %v4185 = vshrl.u32 %v4184, 7
        %v4186 = vsub.s32 %v4183, %v4185
        %v4187 = vrot.slane %v4179, %v4186
        %v4189 = vunpack.c.l.s4 1966171168
        %v4190 = vunpack.c.0.s8 %v4189
        %v4191 = vlaneseq
        %v4192 = vshrl.u32 %v4191, 7
        %v4193 = vsub.s32 %v4190, %v4192
        %v4194 = vrot.slane %v4180, %v4193
        %v4195 = vcombine.low %v4187, %v4194
        %v4196 = vcombine.low %v3595, %v3596
        %v4197 = vcombine.low %v3597, %v3598
        %v4198 = vcombine.low %v3599, %v3600
        %v4199 = vcombine.low %v3601, %v3602
        %v4201 = vunpack.c.l.s4 1966171168
        %v4202 = vunpack.c.0.s8 %v4201
        %v4203 = vlaneseq
        %v4204 = vshrl.u32 %v4203, 7
        %v4205 = vsub.s32 %v4202, %v4204
        %v4206 = vrot.slane %v4196, %v4205
        %v4208 = vunpack.c.l.s4 1966171168
        %v4209 = vunpack.c.0.s8 %v4208
        %v4210 = vlaneseq
        %v4211 = vshrl.u32 %v4210, 7
        %v4212 = vsub.s32 %v4209, %v4211
        %v4213 = vrot.slane %v4197, %v4212
        %v4215 = vunpack.c.l.s4 1966171168
        %v4216 = vunpack.c.0.s8 %v4215
        %v4217 = vlaneseq
        %v4218 = vshrl.u32 %v4217, 7
        %v4219 = vsub.s32 %v4216, %v4218
        %v4220 = vrot.slane %v4198, %v4219
        %v4222 = vunpack.c.l.s4 1966171168
        %v4223 = vunpack.c.0.s8 %v4222
        %v4224 = vlaneseq
        %v4225 = vshrl.u32 %v4224, 7
        %v4226 = vsub.s32 %v4223, %v4225
        %v4227 = vrot.slane %v4199, %v4226
        %v4228 = vcombine.low %v4206, %v4213
        %v4229 = vcombine.low %v4220, %v4227
        %v4231 = vunpack.c.l.s4 1966171168
        %v4232 = vunpack.c.0.s8 %v4231
        %v4233 = vlaneseq
        %v4234 = vshrl.u32 %v4233, 7
        %v4235 = vsub.s32 %v4232, %v4234
        %v4236 = vrot.slane %v4228, %v4235
        %v4238 = vunpack.c.l.s4 1966171168
        %v4239 = vunpack.c.0.s8 %v4238
        %v4240 = vlaneseq
        %v4241 = vshrl.u32 %v4240, 7
        %v4242 = vsub.s32 %v4239, %v4241
        %v4243 = vrot.slane %v4229, %v4242
        %v4244 = vcombine.low %v4236, %v4243
        %v4245 = vcombine.low %v2095, %v2096
        %v4246 = vcombine.low %v2097, %v2098
        %v4247 = vcombine.low %v2099, %v2100
        %v4248 = vcombine.low %v2101, %v2102
        %v4250 = vunpack.c.l.s4 1966171168
        %v4251 = vunpack.c.0.s8 %v4250
        %v4252 = vlaneseq
        %v4253 = vshrl.u32 %v4252, 7
        %v4254 = vsub.s32 %v4251, %v4253
        %v4255 = vrot.slane %v4245, %v4254
        %v4257 = vunpack.c.l.s4 1966171168
        %v4258 = vunpack.c.0.s8 %v4257
        %v4259 = vlaneseq
        %v4260 = vshrl.u32 %v4259, 7
        %v4261 = vsub.s32 %v4258, %v4260
        %v4262 = vrot.slane %v4246, %v4261
        %v4264 = vunpack.c.l.s4 1966171168
        %v4265 = vunpack.c.0.s8 %v4264
        %v4266 = vlaneseq
        %v4267 = vshrl.u32 %v4266, 7
        %v4268 = vsub.s32 %v4265, %v4267
        %v4269 = vrot.slane %v4247, %v4268
        %v4271 = vunpack.c.l.s4 1966171168
        %v4272 = vunpack.c.0.s8 %v4271
        %v4273 = vlaneseq
        %v4274 = vshrl.u32 %v4273, 7
        %v4275 = vsub.s32 %v4272, %v4274
        %v4276 = vrot.slane %v4248, %v4275
        %v4277 = vcombine.low %v4255, %v4262
        %v4278 = vcombine.low %v4269, %v4276
        %v4280 = vunpack.c.l.s4 1966171168
        %v4281 = vunpack.c.0.s8 %v4280
        %v4282 = vlaneseq
        %v4283 = vshrl.u32 %v4282, 7
        %v4284 = vsub.s32 %v4281, %v4283
        %v4285 = vrot.slane %v4277, %v4284
        %v4287 = vunpack.c.l.s4 1966171168
        %v4288 = vunpack.c.0.s8 %v4287
        %v4289 = vlaneseq
        %v4290 = vshrl.u32 %v4289, 7
        %v4291 = vsub.s32 %v4288, %v4290
        %v4292 = vrot.slane %v4278, %v4291
        %v4293 = vcombine.low %v4285, %v4292
        %v4294 = vcombine.low %v3603, %v3604
        %v4295 = vcombine.low %v3605, %v3606
        %v4296 = vcombine.low %v3607, %v3608
        %v4297 = vcombine.low %v3609, %v3610
        %v4299 = vunpack.c.l.s4 1966171168
        %v4300 = vunpack.c.0.s8 %v4299
        %v4301 = vlaneseq
        %v4302 = vshrl.u32 %v4301, 7
        %v4303 = vsub.s32 %v4300, %v4302
        %v4304 = vrot.slane %v4294, %v4303
        %v4306 = vunpack.c.l.s4 1966171168
        %v4307 = vunpack.c.0.s8 %v4306
        %v4308 = vlaneseq
        %v4309 = vshrl.u32 %v4308, 7
        %v4310 = vsub.s32 %v4307, %v4309
        %v4311 = vrot.slane %v4295, %v4310
        %v4313 = vunpack.c.l.s4 1966171168
        %v4314 = vunpack.c.0.s8 %v4313
        %v4315 = vlaneseq
        %v4316 = vshrl.u32 %v4315, 7
        %v4317 = vsub.s32 %v4314, %v4316
        %v4318 = vrot.slane %v4296, %v4317
        %v4320 = vunpack.c.l.s4 1966171168
        %v4321 = vunpack.c.0.s8 %v4320
        %v4322 = vlaneseq
        %v4323 = vshrl.u32 %v4322, 7
        %v4324 = vsub.s32 %v4321, %v4323
        %v4325 = vrot.slane %v4297, %v4324
        %v4326 = vcombine.low %v4304, %v4311
        %v4327 = vcombine.low %v4318, %v4325
        %v4329 = vunpack.c.l.s4 1966171168
        %v4330 = vunpack.c.0.s8 %v4329
        %v4331 = vlaneseq
        %v4332 = vshrl.u32 %v4331, 7
        %v4333 = vsub.s32 %v4330, %v4332
        %v4334 = vrot.slane %v4326, %v4333
        %v4336 = vunpack.c.l.s4 1966171168
        %v4337 = vunpack.c.0.s8 %v4336
        %v4338 = vlaneseq
        %v4339 = vshrl.u32 %v4338, 7
        %v4340 = vsub.s32 %v4337, %v4339
        %v4341 = vrot.slane %v4327, %v4340
        %v4342 = vcombine.low %v4334, %v4341
        %v4343 = vcombine.low %v2103, %v2104
        %v4344 = vcombine.low %v2105, %v2106
        %v4345 = vcombine.low %v2107, %v2108
        %v4346 = vcombine.low %v2109, %v2110
        %v4348 = vunpack.c.l.s4 1966171168
        %v4349 = vunpack.c.0.s8 %v4348
        %v4350 = vlaneseq
        %v4351 = vshrl.u32 %v4350, 7
        %v4352 = vsub.s32 %v4349, %v4351
        %v4353 = vrot.slane %v4343, %v4352
        %v4355 = vunpack.c.l.s4 1966171168
        %v4356 = vunpack.c.0.s8 %v4355
        %v4357 = vlaneseq
        %v4358 = vshrl.u32 %v4357, 7
        %v4359 = vsub.s32 %v4356, %v4358
        %v4360 = vrot.slane %v4344, %v4359
        %v4362 = vunpack.c.l.s4 1966171168
        %v4363 = vunpack.c.0.s8 %v4362
        %v4364 = vlaneseq
        %v4365 = vshrl.u32 %v4364, 7
        %v4366 = vsub.s32 %v4363, %v4365
        %v4367 = vrot.slane %v4345, %v4366
        %v4369 = vunpack.c.l.s4 1966171168
        %v4370 = vunpack.c.0.s8 %v4369
        %v4371 = vlaneseq
        %v4372 = vshrl.u32 %v4371, 7
        %v4373 = vsub.s32 %v4370, %v4372
        %v4374 = vrot.slane %v4346, %v4373
        %v4375 = vcombine.low %v4353, %v4360
        %v4376 = vcombine.low %v4367, %v4374
        %v4378 = vunpack.c.l.s4 1966171168
        %v4379 = vunpack.c.0.s8 %v4378
        %v4380 = vlaneseq
        %v4381 = vshrl.u32 %v4380, 7
        %v4382 = vsub.s32 %v4379, %v4381
        %v4383 = vrot.slane %v4375, %v4382
        %v4385 = vunpack.c.l.s4 1966171168
        %v4386 = vunpack.c.0.s8 %v4385
        %v4387 = vlaneseq
        %v4388 = vshrl.u32 %v4387, 7
        %v4389 = vsub.s32 %v4386, %v4388
        %v4390 = vrot.slane %v4376, %v4389
        %v4391 = vcombine.low %v4383, %v4390
        %v4392 = vcombine.low %v3611, %v3612
        %v4393 = vcombine.low %v3613, %v3614
        %v4394 = vcombine.low %v3615, %v3616
        %v4395 = vcombine.low %v3617, %v3618
        %v4397 = vunpack.c.l.s4 1966171168
        %v4398 = vunpack.c.0.s8 %v4397
        %v4399 = vlaneseq
        %v4400 = vshrl.u32 %v4399, 7
        %v4401 = vsub.s32 %v4398, %v4400
        %v4402 = vrot.slane %v4392, %v4401
        %v4404 = vunpack.c.l.s4 1966171168
        %v4405 = vunpack.c.0.s8 %v4404
        %v4406 = vlaneseq
        %v4407 = vshrl.u32 %v4406, 7
        %v4408 = vsub.s32 %v4405, %v4407
        %v4409 = vrot.slane %v4393, %v4408
        %v4411 = vunpack.c.l.s4 1966171168
        %v4412 = vunpack.c.0.s8 %v4411
        %v4413 = vlaneseq
        %v4414 = vshrl.u32 %v4413, 7
        %v4415 = vsub.s32 %v4412, %v4414
        %v4416 = vrot.slane %v4394, %v4415
        %v4418 = vunpack.c.l.s4 1966171168
        %v4419 = vunpack.c.0.s8 %v4418
        %v4420 = vlaneseq
        %v4421 = vshrl.u32 %v4420, 7
        %v4422 = vsub.s32 %v4419, %v4421
        %v4423 = vrot.slane %v4395, %v4422
        %v4424 = vcombine.low %v4402, %v4409
        %v4425 = vcombine.low %v4416, %v4423
        %v4427 = vunpack.c.l.s4 1966171168
        %v4428 = vunpack.c.0.s8 %v4427
        %v4429 = vlaneseq
        %v4430 = vshrl.u32 %v4429, 7
        %v4431 = vsub.s32 %v4428, %v4430
        %v4432 = vrot.slane %v4424, %v4431
        %v4434 = vunpack.c.l.s4 1966171168
        %v4435 = vunpack.c.0.s8 %v4434
        %v4436 = vlaneseq
        %v4437 = vshrl.u32 %v4436, 7
        %v4438 = vsub.s32 %v4435, %v4437
        %v4439 = vrot.slane %v4425, %v4438
        %v4440 = vcombine.low %v4432, %v4439
        %v4441 = vcombine.low %v2111, %v2112
        %v4442 = vcombine.low %v2113, %v2114
        %v4443 = vcombine.low %v2115, %v2116
        %v4444 = vcombine.low %v2117, %v2118
        %v4446 = vunpack.c.l.s4 1966171168
        %v4447 = vunpack.c.0.s8 %v4446
        %v4448 = vlaneseq
        %v4449 = vshrl.u32 %v4448, 7
        %v4450 = vsub.s32 %v4447, %v4449
        %v4451 = vrot.slane %v4441, %v4450
        %v4453 = vunpack.c.l.s4 1966171168
        %v4454 = vunpack.c.0.s8 %v4453
        %v4455 = vlaneseq
        %v4456 = vshrl.u32 %v4455, 7
        %v4457 = vsub.s32 %v4454, %v4456
        %v4458 = vrot.slane %v4442, %v4457
        %v4460 = vunpack.c.l.s4 1966171168
        %v4461 = vunpack.c.0.s8 %v4460
        %v4462 = vlaneseq
        %v4463 = vshrl.u32 %v4462, 7
        %v4464 = vsub.s32 %v4461, %v4463
        %v4465 = vrot.slane %v4443, %v4464
        %v4467 = vunpack.c.l.s4 1966171168
        %v4468 = vunpack.c.0.s8 %v4467
        %v4469 = vlaneseq
        %v4470 = vshrl.u32 %v4469, 7
        %v4471 = vsub.s32 %v4468, %v4470
        %v4472 = vrot.slane %v4444, %v4471
        %v4473 = vcombine.low %v4451, %v4458
        %v4474 = vcombine.low %v4465, %v4472
        %v4476 = vunpack.c.l.s4 1966171168
        %v4477 = vunpack.c.0.s8 %v4476
        %v4478 = vlaneseq
        %v4479 = vshrl.u32 %v4478, 7
        %v4480 = vsub.s32 %v4477, %v4479
        %v4481 = vrot.slane %v4473, %v4480
        %v4483 = vunpack.c.l.s4 1966171168
        %v4484 = vunpack.c.0.s8 %v4483
        %v4485 = vlaneseq
        %v4486 = vshrl.u32 %v4485, 7
        %v4487 = vsub.s32 %v4484, %v4486
        %v4488 = vrot.slane %v4474, %v4487
        %v4489 = vcombine.low %v4481, %v4488
        %v4490 = vcombine.low %v3619, %v3620
        %v4491 = vcombine.low %v3621, %v3622
        %v4492 = vcombine.low %v3623, %v3624
        %v4493 = vcombine.low %v3625, %v3626
        %v4495 = vunpack.c.l.s4 1966171168
        %v4496 = vunpack.c.0.s8 %v4495
        %v4497 = vlaneseq
        %v4498 = vshrl.u32 %v4497, 7
        %v4499 = vsub.s32 %v4496, %v4498
        %v4500 = vrot.slane %v4490, %v4499
        %v4502 = vunpack.c.l.s4 1966171168
        %v4503 = vunpack.c.0.s8 %v4502
        %v4504 = vlaneseq
        %v4505 = vshrl.u32 %v4504, 7
        %v4506 = vsub.s32 %v4503, %v4505
        %v4507 = vrot.slane %v4491, %v4506
        %v4509 = vunpack.c.l.s4 1966171168
        %v4510 = vunpack.c.0.s8 %v4509
        %v4511 = vlaneseq
        %v4512 = vshrl.u32 %v4511, 7
        %v4513 = vsub.s32 %v4510, %v4512
        %v4514 = vrot.slane %v4492, %v4513
        %v4516 = vunpack.c.l.s4 1966171168
        %v4517 = vunpack.c.0.s8 %v4516
        %v4518 = vlaneseq
        %v4519 = vshrl.u32 %v4518, 7
        %v4520 = vsub.s32 %v4517, %v4519
        %v4521 = vrot.slane %v4493, %v4520
        %v4522 = vcombine.low %v4500, %v4507
        %v4523 = vcombine.low %v4514, %v4521
        %v4525 = vunpack.c.l.s4 1966171168
        %v4526 = vunpack.c.0.s8 %v4525
        %v4527 = vlaneseq
        %v4528 = vshrl.u32 %v4527, 7
        %v4529 = vsub.s32 %v4526, %v4528
        %v4530 = vrot.slane %v4522, %v4529
        %v4532 = vunpack.c.l.s4 1966171168
        %v4533 = vunpack.c.0.s8 %v4532
        %v4534 = vlaneseq
        %v4535 = vshrl.u32 %v4534, 7
        %v4536 = vsub.s32 %v4533, %v4535
        %v4537 = vrot.slane %v4523, %v4536
        %v4538 = vcombine.low %v4530, %v4537
        %4539 = vrot.lane.b32.xlu0 %v3803, 4
        %v4540 = vpop.permute.xlu0 %4539
        %4541 = vrot.lane.b32.xlu0 %v3852, 4
        %v4542 = vpop.permute.xlu0 %4541
        %4543 = vrot.lane.b32.xlu0 %v3901, 4
        %v4544 = vpop.permute.xlu0 %4543
        %4545 = vrot.lane.b32.xlu0 %v3950, 4
        %v4546 = vpop.permute.xlu0 %4545
        %4547 = vrot.lane.b32.xlu0 %v3999, 4
        %v4548 = vpop.permute.xlu0 %4547
        %4549 = vrot.lane.b32.xlu0 %v4048, 4
        %v4550 = vpop.permute.xlu0 %4549
        %4551 = vrot.lane.b32.xlu0 %v4097, 4
        %v4552 = vpop.permute.xlu0 %4551
        %4553 = vrot.lane.b32.xlu0 %v4146, 4
        %v4554 = vpop.permute.xlu0 %4553
        %4555 = vrot.lane.b32.xlu0 %v4195, 4
        %v4556 = vpop.permute.xlu0 %4555
        %4557 = vrot.lane.b32.xlu0 %v4244, 4
        %v4558 = vpop.permute.xlu0 %4557
        %4559 = vrot.lane.b32.xlu0 %v4293, 4
        %v4560 = vpop.permute.xlu0 %4559
        %4561 = vrot.lane.b32.xlu0 %v4342, 4
        %v4562 = vpop.permute.xlu0 %4561
        %4563 = vrot.lane.b32.xlu0 %v4391, 4
        %v4564 = vpop.permute.xlu0 %4563
        %4565 = vrot.lane.b32.xlu0 %v4440, 4
        %v4566 = vpop.permute.xlu0 %4565
        %4567 = vrot.lane.b32.xlu0 %v4489, 4
        %v4568 = vpop.permute.xlu0 %4567
        %4569 = vrot.lane.b32.xlu0 %v4538, 4
        %v4570 = vpop.permute.xlu0 %4569
        %vm4587 = vcmask 64544
        %4588 = vst.msk [vmem:[#allocation2] sm:$0xff] %vm4587, %v4540
        %4589 = vst.msk [vmem:[#allocation2 + $0x8] sm:$0xff] %vm4587, %v4542
        %4590 = vst.msk [vmem:[#allocation2 + $0x10] sm:$0xff] %vm4587, %v4544
        %4591 = vst.msk [vmem:[#allocation2 + $0x18] sm:$0xff] %vm4587, %v4546
        %4592 = vst.msk [vmem:[#allocation2 + $0x20] sm:$0xff] %vm4587, %v4548
        %4593 = vst.msk [vmem:[#allocation2 + $0x28] sm:$0xff] %vm4587, %v4550
        %4594 = vst.msk [vmem:[#allocation2 + $0x30] sm:$0xff] %vm4587, %v4552
        %4595 = vst.msk [vmem:[#allocation2 + $0x38] sm:$0xff] %vm4587, %v4554
        %4596 = vst.msk [vmem:[#allocation2 + $0x40] sm:$0xff] %vm4587, %v4556
        %4597 = vst.msk [vmem:[#allocation2 + $0x48] sm:$0xff] %vm4587, %v4558
        %4598 = vst.msk [vmem:[#allocation2 + $0x50] sm:$0xff] %vm4587, %v4560
        %4599 = vst.msk [vmem:[#allocation2 + $0x58] sm:$0xff] %vm4587, %v4562
        %4600 = vst.msk [vmem:[#allocation2 + $0x60] sm:$0xff] %vm4587, %v4564
        %4601 = vst.msk [vmem:[#allocation2 + $0x68] sm:$0xff] %vm4587, %v4566
        %4602 = vst.msk [vmem:[#allocation2 + $0x70] sm:$0xff] %vm4587, %v4568
        %4603 = vst.msk [vmem:[#allocation2 + $0x78] sm:$0xff] %vm4587, %v4570
        %v4604 = vld [vmem:[#allocation2] sm:$0xff]
        %v4605 = vld [vmem:[#allocation2 + $0x8] sm:$0xff]
        %v4606 = vld [vmem:[#allocation2 + $0x10] sm:$0xff]
        %v4607 = vld [vmem:[#allocation2 + $0x18] sm:$0xff]
        %v4608 = vld [vmem:[#allocation2 + $0x20] sm:$0xff]
        %v4609 = vld [vmem:[#allocation2 + $0x28] sm:$0xff]
        %v4610 = vld [vmem:[#allocation2 + $0x30] sm:$0xff]
        %v4611 = vld [vmem:[#allocation2 + $0x38] sm:$0xff]
        %v4612 = vld [vmem:[#allocation2 + $0x40] sm:$0xff]
        %v4613 = vld [vmem:[#allocation2 + $0x48] sm:$0xff]
        %v4614 = vld [vmem:[#allocation2 + $0x50] sm:$0xff]
        %v4615 = vld [vmem:[#allocation2 + $0x58] sm:$0xff]
        %v4616 = vld [vmem:[#allocation2 + $0x60] sm:$0xff]
        %v4617 = vld [vmem:[#allocation2 + $0x68] sm:$0xff]
        %v4618 = vld [vmem:[#allocation9] sm:$0xf]
        %s4619 = scalar_lea.vmem [#allocation9], 4
        %v4620 = vld [vmem:[%s4619] sm:$0xf]
        %v4622 = vsel %vm406, %v4604, 0
        %v4625 = vsel %vm406, %v4605, 0
        %v4628 = vsel %vm406, %v4606, 0
        %v4631 = vsel %vm406, %v4607, 0
        %v4634 = vsel %vm406, %v4608, 0
        %v4637 = vsel %vm406, %v4609, 0
        %v4640 = vsel %vm406, %v4610, 0
        %v4643 = vsel %vm406, %v4611, 0
        %v4646 = vsel %vm406, %v4612, 0
        %v4649 = vsel %vm406, %v4613, 0
        %v4652 = vsel %vm406, %v4614, 0
        %v4655 = vsel %vm406, %v4615, 0
        %v4658 = vsel %vm406, %v4616, 0
        %v4661 = vsel %vm406, %v4617, 0
        %v4664 = vsel %vm609, %v4620, 0
        %4666 = vmatprep.subr.bf16.mxu0 0
        %4667 = vmatpush1.bf16.msra.mxu0 %v4664
        %4668 = vmatprep.subr.bf16.mxu0 0
        %4669 = vmatpush1.bf16.msra.mxu0 0
        %4670 = vmatprep.subr.bf16.mxu0 0
        %4671 = vmatpush1.bf16.msra.mxu0 0
        %4672 = vmatprep.subr.bf16.mxu0 0
        %4673 = vmatpush1.bf16.msra.mxu0 0
        %4674 = vmatprep.subr.bf16.mxu0 0
        %4675 = vmatpush1.bf16.msra.mxu0 0
        %4676 = vmatprep.subr.bf16.mxu0 0
        %4677 = vmatpush1.bf16.msra.mxu0 0
        %4678 = vmatprep.subr.bf16.mxu0 0
        %4679 = vmatpush1.bf16.msra.mxu0 0
        %4680 = vmatprep.subr.bf16.mxu0 0
        %4681 = vmatpush1.bf16.msra.mxu0 0
        %4682 = vmatprep.subr.bf16.mxu0 0
        %4683 = vmatpush1.bf16.msra.mxu0 0
        %4684 = vmatprep.subr.bf16.mxu0 0
        %4685 = vmatpush1.bf16.msra.mxu0 0
        %4686 = vmatprep.subr.bf16.mxu0 0
        %4687 = vmatpush1.bf16.msra.mxu0 0
        %4688 = vmatprep.subr.bf16.mxu0 0
        %4689 = vmatpush1.bf16.msra.mxu0 0
        %4690 = vmatprep.subr.bf16.mxu0 0
        %4691 = vmatpush1.bf16.msra.mxu0 0
        %4692 = vmatprep.subr.bf16.mxu0 0
        %4693 = vmatpush1.bf16.msra.mxu0 0
        %4694 = vmatprep.subr.bf16.mxu0 0
        %4695 = vmatpush1.bf16.msra.mxu0 0
        %4696 = vmatprep.subr.bf16.mxu0 0
        %4697 = vmatpush1.bf16.msra.mxu0 0
        %4698 = vmatprep.mubr.bf16.mxu0 0
        %4699 = vmatmul.mubr.bf16.gmra.mrb[0].mxu0 %v4622
        %v4700 = vpop.f32.mrb[0].mxu0
        %v4701 = vadd.f32 0.0, %v4700
        %v4702 = vpop.f32.mrb[0].mxu0
        %v4703 = vpop.f32.mrb[0].mxu0
        %v4704 = vadd.f32 0.0, %v4703
        %v4705 = vpop.f32.mrb[0].mxu0
        %4706 = vmatprep.mubr.bf16.mxu0 0
        %4707 = vmatmul.mubr.bf16.gmra.mrb[0].mxu0 %v4625
        %v4708 = vpop.f32.mrb[0].mxu0
        %v4709 = vadd.f32 0.0, %v4708
        %v4710 = vpop.f32.mrb[0].mxu0
        %v4711 = vpop.f32.mrb[0].mxu0
        %v4712 = vadd.f32 0.0, %v4711
        %v4713 = vpop.f32.mrb[0].mxu0
        %4714 = vmatprep.mubr.bf16.mxu0 0
        %4715 = vmatmul.mubr.bf16.gmra.mrb[0].mxu0 %v4628
        %v4716 = vpop.f32.mrb[0].mxu0
        %v4717 = vadd.f32 0.0, %v4716
        %v4718 = vpop.f32.mrb[0].mxu0
        %v4719 = vpop.f32.mrb[0].mxu0
        %v4720 = vadd.f32 0.0, %v4719
        %v4721 = vpop.f32.mrb[0].mxu0
        %4722 = vmatprep.mubr.bf16.mxu0 0
        %4723 = vmatmul.mubr.bf16.gmra.mrb[0].mxu0 %v4631
        %v4724 = vpop.f32.mrb[0].mxu0
        %v4725 = vadd.f32 0.0, %v4724
        %v4726 = vpop.f32.mrb[0].mxu0
        %v4727 = vpop.f32.mrb[0].mxu0
        %v4728 = vadd.f32 0.0, %v4727
        %v4729 = vpop.f32.mrb[0].mxu0
        %4730 = vmatprep.mubr.bf16.mxu0 0
        %4731 = vmatmul.mubr.bf16.gmra.mrb[0].mxu0 %v4634
        %v4732 = vpop.f32.mrb[0].mxu0
        %v4733 = vadd.f32 0.0, %v4732
        %v4734 = vpop.f32.mrb[0].mxu0
        %v4735 = vpop.f32.mrb[0].mxu0
        %v4736 = vadd.f32 0.0, %v4735
        %v4737 = vpop.f32.mrb[0].mxu0
        %4738 = vmatprep.mubr.bf16.mxu0 0
        %4739 = vmatmul.mubr.bf16.gmra.mrb[0].mxu0 %v4637
        %v4740 = vpop.f32.mrb[0].mxu0
        %v4741 = vadd.f32 0.0, %v4740
        %v4742 = vpop.f32.mrb[0].mxu0
        %v4743 = vpop.f32.mrb[0].mxu0
        %v4744 = vadd.f32 0.0, %v4743
        %v4745 = vpop.f32.mrb[0].mxu0
        %4746 = vmatprep.mubr.bf16.mxu0 0
        %4747 = vmatmul.mubr.bf16.gmra.mrb[0].mxu0 %v4640
        %v4748 = vpop.f32.mrb[0].mxu0
        %v4749 = vadd.f32 0.0, %v4748
        %v4750 = vpop.f32.mrb[0].mxu0
        %v4751 = vpop.f32.mrb[0].mxu0
        %v4752 = vadd.f32 0.0, %v4751
        %v4753 = vpop.f32.mrb[0].mxu0
        %4754 = vmatprep.mubr.bf16.mxu0 0
        %4755 = vmatmul.mubr.bf16.gmra.mrb[0].mxu0 %v4643
        %v4756 = vpop.f32.mrb[0].mxu0
        %v4757 = vadd.f32 0.0, %v4756
        %v4758 = vpop.f32.mrb[0].mxu0
        %v4759 = vpop.f32.mrb[0].mxu0
        %v4760 = vadd.f32 0.0, %v4759
        %v4761 = vpop.f32.mrb[0].mxu0
        %4762 = vmatprep.mubr.bf16.mxu0 0
        %4763 = vmatmul.mubr.bf16.gmra.mrb[0].mxu0 %v4646
        %v4764 = vpop.f32.mrb[0].mxu0
        %v4765 = vadd.f32 0.0, %v4764
        %v4766 = vpop.f32.mrb[0].mxu0
        %v4767 = vpop.f32.mrb[0].mxu0
        %v4768 = vadd.f32 0.0, %v4767
        %v4769 = vpop.f32.mrb[0].mxu0
        %4770 = vmatprep.mubr.bf16.mxu0 0
        %4771 = vmatmul.mubr.bf16.gmra.mrb[0].mxu0 %v4649
        %v4772 = vpop.f32.mrb[0].mxu0
        %v4773 = vadd.f32 0.0, %v4772
        %v4774 = vpop.f32.mrb[0].mxu0
        %v4775 = vpop.f32.mrb[0].mxu0
        %v4776 = vadd.f32 0.0, %v4775
        %v4777 = vpop.f32.mrb[0].mxu0
        %4778 = vmatprep.mubr.bf16.mxu0 0
        %4779 = vmatmul.mubr.bf16.gmra.mrb[0].mxu0 %v4652
        %v4780 = vpop.f32.mrb[0].mxu0
        %v4781 = vadd.f32 0.0, %v4780
        %v4782 = vpop.f32.mrb[0].mxu0
        %v4783 = vpop.f32.mrb[0].mxu0
        %v4784 = vadd.f32 0.0, %v4783
        %v4785 = vpop.f32.mrb[0].mxu0
        %4786 = vmatprep.mubr.bf16.mxu0 0
        %4787 = vmatmul.mubr.bf16.gmra.mrb[0].mxu0 %v4655
        %v4788 = vpop.f32.mrb[0].mxu0
        %v4789 = vadd.f32 0.0, %v4788
        %v4790 = vpop.f32.mrb[0].mxu0
        %v4791 = vpop.f32.mrb[0].mxu0
        %v4792 = vadd.f32 0.0, %v4791
        %v4793 = vpop.f32.mrb[0].mxu0
        %4794 = vmatprep.mubr.bf16.mxu0 0
        %4795 = vmatmul.mubr.bf16.gmra.mrb[0].mxu0 %v4658
        %v4796 = vpop.f32.mrb[0].mxu0
        %v4797 = vadd.f32 0.0, %v4796
        %v4798 = vpop.f32.mrb[0].mxu0
        %v4799 = vpop.f32.mrb[0].mxu0
        %v4800 = vadd.f32 0.0, %v4799
        %v4801 = vpop.f32.mrb[0].mxu0
        %4802 = vmatprep.mubr.bf16.mxu0 0
        %4803 = vmatmul.mubr.bf16.gmra.mrb[0].mxu0 %v4661
        %v4804 = vpop.f32.mrb[0].mxu0
        %v4805 = vadd.f32 0.0, %v4804
        %v4806 = vpop.f32.mrb[0].mxu0
        %v4807 = vpop.f32.mrb[0].mxu0
        %v4808 = vadd.f32 0.0, %v4807
        %v4809 = vpop.f32.mrb[0].mxu0
        %4810 = vdwg.mxu0
        %v4811 = vrot.slane %v4701, 1
        %v4812 = vrot.slane %v4704, 1
        %v4813 = vrot.slane %v4709, 1
        %v4814 = vrot.slane %v4712, 1
        %v4815 = vrot.slane %v4717, 1
        %v4816 = vrot.slane %v4720, 1
        %v4817 = vrot.slane %v4725, 1
        %v4818 = vrot.slane %v4728, 1
        %v4819 = vrot.slane %v4733, 1
        %v4820 = vrot.slane %v4736, 1
        %v4821 = vrot.slane %v4741, 1
        %v4822 = vrot.slane %v4744, 1
        %v4823 = vrot.slane %v4749, 1
        %v4824 = vrot.slane %v4752, 1
        %v4825 = vrot.slane %v4757, 1
        %v4826 = vrot.slane %v4760, 1
        %v4827 = vrot.slane %v4765, 1
        %v4828 = vrot.slane %v4768, 1
        %v4829 = vrot.slane %v4773, 1
        %v4830 = vrot.slane %v4776, 1
        %v4831 = vrot.slane %v4781, 1
        %v4832 = vrot.slane %v4784, 1
        %v4833 = vrot.slane %v4789, 1
        %v4834 = vrot.slane %v4792, 1
        %v4835 = vrot.slane %v4797, 1
        %v4836 = vrot.slane %v4800, 1
        %v4837 = vrot.slane %v4805, 1
        %v4838 = vrot.slane %v4808, 1
        %v4839 = vlaneseq
        %v4840 = vshrl.u32 %v4839, 7
        %vm4841 = vcmp.lt.s32.totalorder %v4840, 7
        %v4842 = vsel %vm4841, %v4837, %v4838
        %v4843 = vsel %vm4841, %v4836, %v4837
        %v4844 = vsel %vm4841, %v4835, %v4836
        %v4845 = vsel %vm4841, %v4834, %v4835
        %v4846 = vsel %vm4841, %v4833, %v4834
        %v4847 = vsel %vm4841, %v4832, %v4833
        %v4848 = vsel %vm4841, %v4831, %v4832
        %v4849 = vsel %vm4841, %v4830, %v4831
        %v4850 = vsel %vm4841, %v4829, %v4830
        %v4851 = vsel %vm4841, %v4828, %v4829
        %v4852 = vsel %vm4841, %v4827, %v4828
        %v4853 = vsel %vm4841, %v4826, %v4827
        %v4854 = vsel %vm4841, %v4825, %v4826
        %v4855 = vsel %vm4841, %v4824, %v4825
        %v4856 = vsel %vm4841, %v4823, %v4824
        %v4857 = vsel %vm4841, %v4822, %v4823
        %v4858 = vsel %vm4841, %v4821, %v4822
        %v4859 = vsel %vm4841, %v4820, %v4821
        %v4860 = vsel %vm4841, %v4819, %v4820
        %v4861 = vsel %vm4841, %v4818, %v4819
        %v4862 = vsel %vm4841, %v4817, %v4818
        %v4863 = vsel %vm4841, %v4816, %v4817
        %v4864 = vsel %vm4841, %v4815, %v4816
        %v4865 = vsel %vm4841, %v4814, %v4815
        %v4866 = vsel %vm4841, %v4813, %v4814
        %v4867 = vsel %vm4841, %v4812, %v4813
        %v4868 = vsel %vm4841, %v4811, %v4812
        %v4869 = vsel %vm4841, %v4838, %v4811
        %v4871 = vsel %vm609, %v4618, 0
        %4873 = vmatprep.subr.bf16.mxu0 0
        %4874 = vmatpush1.bf16.msra.mxu0 %v4871
        %4875 = vmatprep.subr.bf16.mxu0 0
        %4876 = vmatpush1.bf16.msra.mxu0 0
        %4877 = vmatprep.subr.bf16.mxu0 0
        %4878 = vmatpush1.bf16.msra.mxu0 0
        %4879 = vmatprep.subr.bf16.mxu0 0
        %4880 = vmatpush1.bf16.msra.mxu0 0
        %4881 = vmatprep.subr.bf16.mxu0 0
        %4882 = vmatpush1.bf16.msra.mxu0 0
        %4883 = vmatprep.subr.bf16.mxu0 0
        %4884 = vmatpush1.bf16.msra.mxu0 0
        %4885 = vmatprep.subr.bf16.mxu0 0
        %4886 = vmatpush1.bf16.msra.mxu0 0
        %4887 = vmatprep.subr.bf16.mxu0 0
        %4888 = vmatpush1.bf16.msra.mxu0 0
        %4889 = vmatprep.subr.bf16.mxu0 0
        %4890 = vmatpush1.bf16.msra.mxu0 0
        %4891 = vmatprep.subr.bf16.mxu0 0
        %4892 = vmatpush1.bf16.msra.mxu0 0
        %4893 = vmatprep.subr.bf16.mxu0 0
        %4894 = vmatpush1.bf16.msra.mxu0 0
        %4895 = vmatprep.subr.bf16.mxu0 0
        %4896 = vmatpush1.bf16.msra.mxu0 0
        %4897 = vmatprep.subr.bf16.mxu0 0
        %4898 = vmatpush1.bf16.msra.mxu0 0
        %4899 = vmatprep.subr.bf16.mxu0 0
        %4900 = vmatpush1.bf16.msra.mxu0 0
        %4901 = vmatprep.subr.bf16.mxu0 0
        %4902 = vmatpush1.bf16.msra.mxu0 0
        %4903 = vmatprep.subr.bf16.mxu0 0
        %4904 = vmatpush1.bf16.msra.mxu0 0
        %4905 = vmatprep.mubr.bf16.mxu0 0
        %4906 = vmatmul.mubr.bf16.gmra.mrb[0].mxu0 %v4622
        %v4907 = vpop.f32.mrb[0].mxu0
        %v4908 = vadd.f32 %v4868, %v4907
        %v4909 = vpop.f32.mrb[0].mxu0
        %v4910 = vpop.f32.mrb[0].mxu0
        %v4911 = vadd.f32 %v4867, %v4910
        %v4912 = vpop.f32.mrb[0].mxu0
        %4913 = vmatprep.mubr.bf16.mxu0 0
        %4914 = vmatmul.mubr.bf16.gmra.mrb[0].mxu0 %v4625
        %v4915 = vpop.f32.mrb[0].mxu0
        %v4916 = vadd.f32 %v4866, %v4915
        %v4917 = vpop.f32.mrb[0].mxu0
        %v4918 = vpop.f32.mrb[0].mxu0
        %v4919 = vadd.f32 %v4865, %v4918
        %v4920 = vpop.f32.mrb[0].mxu0
        %4921 = vmatprep.mubr.bf16.mxu0 0
        %4922 = vmatmul.mubr.bf16.gmra.mrb[0].mxu0 %v4628
        %v4923 = vpop.f32.mrb[0].mxu0
        %v4924 = vadd.f32 %v4864, %v4923
        %v4925 = vpop.f32.mrb[0].mxu0
        %v4926 = vpop.f32.mrb[0].mxu0
        %v4927 = vadd.f32 %v4863, %v4926
        %v4928 = vpop.f32.mrb[0].mxu0
        %4929 = vmatprep.mubr.bf16.mxu0 0
        %4930 = vmatmul.mubr.bf16.gmra.mrb[0].mxu0 %v4631
        %v4931 = vpop.f32.mrb[0].mxu0
        %v4932 = vadd.f32 %v4862, %v4931
        %v4933 = vpop.f32.mrb[0].mxu0
        %v4934 = vpop.f32.mrb[0].mxu0
        %v4935 = vadd.f32 %v4861, %v4934
        %v4936 = vpop.f32.mrb[0].mxu0
        %4937 = vmatprep.mubr.bf16.mxu0 0
        %4938 = vmatmul.mubr.bf16.gmra.mrb[0].mxu0 %v4634
        %v4939 = vpop.f32.mrb[0].mxu0
        %v4940 = vadd.f32 %v4860, %v4939
        %v4941 = vpop.f32.mrb[0].mxu0
        %v4942 = vpop.f32.mrb[0].mxu0
        %v4943 = vadd.f32 %v4859, %v4942
        %v4944 = vpop.f32.mrb[0].mxu0
        %4945 = vmatprep.mubr.bf16.mxu0 0
        %4946 = vmatmul.mubr.bf16.gmra.mrb[0].mxu0 %v4637
        %v4947 = vpop.f32.mrb[0].mxu0
        %v4948 = vadd.f32 %v4858, %v4947
        %v4949 = vpop.f32.mrb[0].mxu0
        %v4950 = vpop.f32.mrb[0].mxu0
        %v4951 = vadd.f32 %v4857, %v4950
        %v4952 = vpop.f32.mrb[0].mxu0
        %4953 = vmatprep.mubr.bf16.mxu0 0
        %4954 = vmatmul.mubr.bf16.gmra.mrb[0].mxu0 %v4640
        %v4955 = vpop.f32.mrb[0].mxu0
        %v4956 = vadd.f32 %v4856, %v4955
        %v4957 = vpop.f32.mrb[0].mxu0
        %v4958 = vpop.f32.mrb[0].mxu0
        %v4959 = vadd.f32 %v4855, %v4958
        %v4960 = vpop.f32.mrb[0].mxu0
        %4961 = vmatprep.mubr.bf16.mxu0 0
        %4962 = vmatmul.mubr.bf16.gmra.mrb[0].mxu0 %v4643
        %v4963 = vpop.f32.mrb[0].mxu0
        %v4964 = vadd.f32 %v4854, %v4963
        %v4965 = vpop.f32.mrb[0].mxu0
        %v4966 = vpop.f32.mrb[0].mxu0
        %v4967 = vadd.f32 %v4853, %v4966
        %v4968 = vpop.f32.mrb[0].mxu0
        %4969 = vmatprep.mubr.bf16.mxu0 0
        %4970 = vmatmul.mubr.bf16.gmra.mrb[0].mxu0 %v4646
        %v4971 = vpop.f32.mrb[0].mxu0
        %v4972 = vadd.f32 %v4852, %v4971
        %v4973 = vpop.f32.mrb[0].mxu0
        %v4974 = vpop.f32.mrb[0].mxu0
        %v4975 = vadd.f32 %v4851, %v4974
        %v4976 = vpop.f32.mrb[0].mxu0
        %4977 = vmatprep.mubr.bf16.mxu0 0
        %4978 = vmatmul.mubr.bf16.gmra.mrb[0].mxu0 %v4649
        %v4979 = vpop.f32.mrb[0].mxu0
        %v4980 = vadd.f32 %v4850, %v4979
        %v4981 = vpop.f32.mrb[0].mxu0
        %v4982 = vpop.f32.mrb[0].mxu0
        %v4983 = vadd.f32 %v4849, %v4982
        %v4984 = vpop.f32.mrb[0].mxu0
        %4985 = vmatprep.mubr.bf16.mxu0 0
        %4986 = vmatmul.mubr.bf16.gmra.mrb[0].mxu0 %v4652
        %v4987 = vpop.f32.mrb[0].mxu0
        %v4988 = vadd.f32 %v4848, %v4987
        %v4989 = vpop.f32.mrb[0].mxu0
        %v4990 = vpop.f32.mrb[0].mxu0
        %v4991 = vadd.f32 %v4847, %v4990
        %v4992 = vpop.f32.mrb[0].mxu0
        %4993 = vmatprep.mubr.bf16.mxu0 0
        %4994 = vmatmul.mubr.bf16.gmra.mrb[0].mxu0 %v4655
        %v4995 = vpop.f32.mrb[0].mxu0
        %v4996 = vadd.f32 %v4846, %v4995
        %v4997 = vpop.f32.mrb[0].mxu0
        %v4998 = vpop.f32.mrb[0].mxu0
        %v4999 = vadd.f32 %v4845, %v4998
        %v5000 = vpop.f32.mrb[0].mxu0
        %5001 = vmatprep.mubr.bf16.mxu0 0
        %5002 = vmatmul.mubr.bf16.gmra.mrb[0].mxu0 %v4658
        %v5003 = vpop.f32.mrb[0].mxu0
        %v5004 = vadd.f32 %v4844, %v5003
        %v5005 = vpop.f32.mrb[0].mxu0
        %v5006 = vpop.f32.mrb[0].mxu0
        %v5007 = vadd.f32 %v4843, %v5006
        %v5008 = vpop.f32.mrb[0].mxu0
        %5009 = vmatprep.mubr.bf16.mxu0 0
        %5010 = vmatmul.mubr.bf16.gmra.mrb[0].mxu0 %v4661
        %v5011 = vpop.f32.mrb[0].mxu0
        %v5012 = vadd.f32 %v4842, %v5011
        %v5013 = vpop.f32.mrb[0].mxu0
        %v5014 = vpop.f32.mrb[0].mxu0
        %v5015 = vadd.f32 %v4869, %v5014
        %v5016 = vpop.f32.mrb[0].mxu0
        %5017 = vdwg.mxu0
        %s5018 = scalar_lea.vmem [#allocation9], 8
        %v5019 = vld [vmem:[%s5018] sm:$0xf]
        %v5021 = vsel %vm609, %v5019, 0
        %5023 = vmatprep.subr.bf16.mxu0 0
        %5024 = vmatpush1.bf16.msra.mxu0 %v5021
        %5025 = vmatprep.subr.bf16.mxu0 0
        %5026 = vmatpush1.bf16.msra.mxu0 0
        %5027 = vmatprep.subr.bf16.mxu0 0
        %5028 = vmatpush1.bf16.msra.mxu0 0
        %5029 = vmatprep.subr.bf16.mxu0 0
        %5030 = vmatpush1.bf16.msra.mxu0 0
        %5031 = vmatprep.subr.bf16.mxu0 0
        %5032 = vmatpush1.bf16.msra.mxu0 0
        %5033 = vmatprep.subr.bf16.mxu0 0
        %5034 = vmatpush1.bf16.msra.mxu0 0
        %5035 = vmatprep.subr.bf16.mxu0 0
        %5036 = vmatpush1.bf16.msra.mxu0 0
        %5037 = vmatprep.subr.bf16.mxu0 0
        %5038 = vmatpush1.bf16.msra.mxu0 0
        %5039 = vmatprep.subr.bf16.mxu0 0
        %5040 = vmatpush1.bf16.msra.mxu0 0
        %5041 = vmatprep.subr.bf16.mxu0 0
        %5042 = vmatpush1.bf16.msra.mxu0 0
        %5043 = vmatprep.subr.bf16.mxu0 0
        %5044 = vmatpush1.bf16.msra.mxu0 0
        %5045 = vmatprep.subr.bf16.mxu0 0
        %5046 = vmatpush1.bf16.msra.mxu0 0
        %5047 = vmatprep.subr.bf16.mxu0 0
        %5048 = vmatpush1.bf16.msra.mxu0 0
        %5049 = vmatprep.subr.bf16.mxu0 0
        %5050 = vmatpush1.bf16.msra.mxu0 0
        %5051 = vmatprep.subr.bf16.mxu0 0
        %5052 = vmatpush1.bf16.msra.mxu0 0
        %5053 = vmatprep.subr.bf16.mxu0 0
        %5054 = vmatpush1.bf16.msra.mxu0 0
        %5055 = vmatprep.mubr.bf16.mxu0 0
        %5056 = vmatmul.mubr.bf16.gmra.mrb[0].mxu0 %v4622
        %v5057 = vpop.f32.mrb[0].mxu0
        %v5058 = vadd.f32 0.0, %v5057
        %v5059 = vpop.f32.mrb[0].mxu0
        %v5060 = vpop.f32.mrb[0].mxu0
        %v5061 = vadd.f32 0.0, %v5060
        %v5062 = vpop.f32.mrb[0].mxu0
        %5063 = vmatprep.mubr.bf16.mxu0 0
        %5064 = vmatmul.mubr.bf16.gmra.mrb[0].mxu0 %v4625
        %v5065 = vpop.f32.mrb[0].mxu0
        %v5066 = vadd.f32 0.0, %v5065
        %v5067 = vpop.f32.mrb[0].mxu0
        %v5068 = vpop.f32.mrb[0].mxu0
        %v5069 = vadd.f32 0.0, %v5068
        %v5070 = vpop.f32.mrb[0].mxu0
        %5071 = vmatprep.mubr.bf16.mxu0 0
        %5072 = vmatmul.mubr.bf16.gmra.mrb[0].mxu0 %v4628
        %v5073 = vpop.f32.mrb[0].mxu0
        %v5074 = vadd.f32 0.0, %v5073
        %v5075 = vpop.f32.mrb[0].mxu0
        %v5076 = vpop.f32.mrb[0].mxu0
        %v5077 = vadd.f32 0.0, %v5076
        %v5078 = vpop.f32.mrb[0].mxu0
        %5079 = vmatprep.mubr.bf16.mxu0 0
        %5080 = vmatmul.mubr.bf16.gmra.mrb[0].mxu0 %v4631
        %v5081 = vpop.f32.mrb[0].mxu0
        %v5082 = vadd.f32 0.0, %v5081
        %v5083 = vpop.f32.mrb[0].mxu0
        %v5084 = vpop.f32.mrb[0].mxu0
        %v5085 = vadd.f32 0.0, %v5084
        %v5086 = vpop.f32.mrb[0].mxu0
        %5087 = vmatprep.mubr.bf16.mxu0 0
        %5088 = vmatmul.mubr.bf16.gmra.mrb[0].mxu0 %v4634
        %v5089 = vpop.f32.mrb[0].mxu0
        %v5090 = vadd.f32 0.0, %v5089
        %v5091 = vpop.f32.mrb[0].mxu0
        %v5092 = vpop.f32.mrb[0].mxu0
        %v5093 = vadd.f32 0.0, %v5092
        %v5094 = vpop.f32.mrb[0].mxu0
        %5095 = vmatprep.mubr.bf16.mxu0 0
        %5096 = vmatmul.mubr.bf16.gmra.mrb[0].mxu0 %v4637
        %v5097 = vpop.f32.mrb[0].mxu0
        %v5098 = vadd.f32 0.0, %v5097
        %v5099 = vpop.f32.mrb[0].mxu0
        %v5100 = vpop.f32.mrb[0].mxu0
        %v5101 = vadd.f32 0.0, %v5100
        %v5102 = vpop.f32.mrb[0].mxu0
        %5103 = vmatprep.mubr.bf16.mxu0 0
        %5104 = vmatmul.mubr.bf16.gmra.mrb[0].mxu0 %v4640
        %v5105 = vpop.f32.mrb[0].mxu0
        %v5106 = vadd.f32 0.0, %v5105
        %v5107 = vpop.f32.mrb[0].mxu0
        %v5108 = vpop.f32.mrb[0].mxu0
        %v5109 = vadd.f32 0.0, %v5108
        %v5110 = vpop.f32.mrb[0].mxu0
        %5111 = vmatprep.mubr.bf16.mxu0 0
        %5112 = vmatmul.mubr.bf16.gmra.mrb[0].mxu0 %v4643
        %v5113 = vpop.f32.mrb[0].mxu0
        %v5114 = vadd.f32 0.0, %v5113
        %v5115 = vpop.f32.mrb[0].mxu0
        %v5116 = vpop.f32.mrb[0].mxu0
        %v5117 = vadd.f32 0.0, %v5116
        %v5118 = vpop.f32.mrb[0].mxu0
        %5119 = vmatprep.mubr.bf16.mxu0 0
        %5120 = vmatmul.mubr.bf16.gmra.mrb[0].mxu0 %v4646
        %v5121 = vpop.f32.mrb[0].mxu0
        %v5122 = vadd.f32 0.0, %v5121
        %v5123 = vpop.f32.mrb[0].mxu0
        %v5124 = vpop.f32.mrb[0].mxu0
        %v5125 = vadd.f32 0.0, %v5124
        %v5126 = vpop.f32.mrb[0].mxu0
        %5127 = vmatprep.mubr.bf16.mxu0 0
        %5128 = vmatmul.mubr.bf16.gmra.mrb[0].mxu0 %v4649
        %v5129 = vpop.f32.mrb[0].mxu0
        %v5130 = vadd.f32 0.0, %v5129
        %v5131 = vpop.f32.mrb[0].mxu0
        %v5132 = vpop.f32.mrb[0].mxu0
        %v5133 = vadd.f32 0.0, %v5132
        %v5134 = vpop.f32.mrb[0].mxu0
        %5135 = vmatprep.mubr.bf16.mxu0 0
        %5136 = vmatmul.mubr.bf16.gmra.mrb[0].mxu0 %v4652
        %v5137 = vpop.f32.mrb[0].mxu0
        %v5138 = vadd.f32 0.0, %v5137
        %v5139 = vpop.f32.mrb[0].mxu0
        %v5140 = vpop.f32.mrb[0].mxu0
        %v5141 = vadd.f32 0.0, %v5140
        %v5142 = vpop.f32.mrb[0].mxu0
        %5143 = vmatprep.mubr.bf16.mxu0 0
        %5144 = vmatmul.mubr.bf16.gmra.mrb[0].mxu0 %v4655
        %v5145 = vpop.f32.mrb[0].mxu0
        %v5146 = vadd.f32 0.0, %v5145
        %v5147 = vpop.f32.mrb[0].mxu0
        %v5148 = vpop.f32.mrb[0].mxu0
        %v5149 = vadd.f32 0.0, %v5148
        %v5150 = vpop.f32.mrb[0].mxu0
        %5151 = vmatprep.mubr.bf16.mxu0 0
        %5152 = vmatmul.mubr.bf16.gmra.mrb[0].mxu0 %v4658
        %v5153 = vpop.f32.mrb[0].mxu0
        %v5154 = vadd.f32 0.0, %v5153
        %v5155 = vpop.f32.mrb[0].mxu0
        %v5156 = vpop.f32.mrb[0].mxu0
        %v5157 = vadd.f32 0.0, %v5156
        %v5158 = vpop.f32.mrb[0].mxu0
        %5159 = vmatprep.mubr.bf16.mxu0 0
        %5160 = vmatmul.mubr.bf16.gmra.mrb[0].mxu0 %v4661
        %v5161 = vpop.f32.mrb[0].mxu0
        %v5162 = vadd.f32 0.0, %v5161
        %v5163 = vpop.f32.mrb[0].mxu0
        %v5164 = vpop.f32.mrb[0].mxu0
        %v5165 = vadd.f32 0.0, %v5164
        %v5166 = vpop.f32.mrb[0].mxu0
        %5167 = vdwg.mxu0
        %v5168 = vrot.slane %v5058, 2
        %v5169 = vrot.slane %v5061, 2
        %v5170 = vrot.slane %v5066, 2
        %v5171 = vrot.slane %v5069, 2
        %v5172 = vrot.slane %v5074, 2
        %v5173 = vrot.slane %v5077, 2
        %v5174 = vrot.slane %v5082, 2
        %v5175 = vrot.slane %v5085, 2
        %v5176 = vrot.slane %v5090, 2
        %v5177 = vrot.slane %v5093, 2
        %v5178 = vrot.slane %v5098, 2
        %v5179 = vrot.slane %v5101, 2
        %v5180 = vrot.slane %v5106, 2
        %v5181 = vrot.slane %v5109, 2
        %v5182 = vrot.slane %v5114, 2
        %v5183 = vrot.slane %v5117, 2
        %v5184 = vrot.slane %v5122, 2
        %v5185 = vrot.slane %v5125, 2
        %v5186 = vrot.slane %v5130, 2
        %v5187 = vrot.slane %v5133, 2
        %v5188 = vrot.slane %v5138, 2
        %v5189 = vrot.slane %v5141, 2
        %v5190 = vrot.slane %v5146, 2
        %v5191 = vrot.slane %v5149, 2
        %v5192 = vrot.slane %v5154, 2
        %v5193 = vrot.slane %v5157, 2
        %v5194 = vrot.slane %v5162, 2
        %v5195 = vrot.slane %v5165, 2
        %vm5196 = vcmp.lt.s32.totalorder %v4840, 6
        %v5197 = vsel %vm5196, %v5194, %v5195
        %v5198 = vsel %vm5196, %v5193, %v5194
        %v5199 = vsel %vm5196, %v5192, %v5193
        %v5200 = vsel %vm5196, %v5191, %v5192
        %v5201 = vsel %vm5196, %v5190, %v5191
        %v5202 = vsel %vm5196, %v5189, %v5190
        %v5203 = vsel %vm5196, %v5188, %v5189
        %v5204 = vsel %vm5196, %v5187, %v5188
        %v5205 = vsel %vm5196, %v5186, %v5187
        %v5206 = vsel %vm5196, %v5185, %v5186
        %v5207 = vsel %vm5196, %v5184, %v5185
        %v5208 = vsel %vm5196, %v5183, %v5184
        %v5209 = vsel %vm5196, %v5182, %v5183
        %v5210 = vsel %vm5196, %v5181, %v5182
        %v5211 = vsel %vm5196, %v5180, %v5181
        %v5212 = vsel %vm5196, %v5179, %v5180
        %v5213 = vsel %vm5196, %v5178, %v5179
        %v5214 = vsel %vm5196, %v5177, %v5178
        %v5215 = vsel %vm5196, %v5176, %v5177
        %v5216 = vsel %vm5196, %v5175, %v5176
        %v5217 = vsel %vm5196, %v5174, %v5175
        %v5218 = vsel %vm5196, %v5173, %v5174
        %v5219 = vsel %vm5196, %v5172, %v5173
        %v5220 = vsel %vm5196, %v5171, %v5172
        %v5221 = vsel %vm5196, %v5170, %v5171
        %v5222 = vsel %vm5196, %v5169, %v5170
        %v5223 = vsel %vm5196, %v5168, %v5169
        %v5224 = vsel %vm5196, %v5195, %v5168
        %v5225 = vadd.f32 %v4908, %v5223
        %v5226 = vadd.f32 %v4911, %v5222
        %v5227 = vadd.f32 %v4916, %v5221
        %v5228 = vadd.f32 %v4919, %v5220
        %v5229 = vadd.f32 %v4924, %v5219
        %v5230 = vadd.f32 %v4927, %v5218
        %v5231 = vadd.f32 %v4932, %v5217
        %v5232 = vadd.f32 %v4935, %v5216
        %v5233 = vadd.f32 %v4940, %v5215
        %v5234 = vadd.f32 %v4943, %v5214
        %v5235 = vadd.f32 %v4948, %v5213
        %v5236 = vadd.f32 %v4951, %v5212
        %v5237 = vadd.f32 %v4956, %v5211
        %v5238 = vadd.f32 %v4959, %v5210
        %v5239 = vadd.f32 %v4964, %v5209
        %v5240 = vadd.f32 %v4967, %v5208
        %v5241 = vadd.f32 %v4972, %v5207
        %v5242 = vadd.f32 %v4975, %v5206
        %v5243 = vadd.f32 %v4980, %v5205
        %v5244 = vadd.f32 %v4983, %v5204
        %v5245 = vadd.f32 %v4988, %v5203
        %v5246 = vadd.f32 %v4991, %v5202
        %v5247 = vadd.f32 %v4996, %v5201
        %v5248 = vadd.f32 %v4999, %v5200
        %v5249 = vadd.f32 %v5004, %v5199
        %v5250 = vadd.f32 %v5007, %v5198
        %v5251 = vadd.f32 %v5012, %v5197
        %v5252 = vadd.f32 %v5015, %v5224
        %s5253 = scalar_lea.vmem [#allocation2], 8
        %v5254 = vld [vmem:[%s5253] sm:$0xff]
        %v5255 = vld [vmem:[%s5253 + $0x8] sm:$0xff]
        %v5256 = vld [vmem:[%s5253 + $0x10] sm:$0xff]
        %v5257 = vld [vmem:[%s5253 + $0x18] sm:$0xff]
        %v5258 = vld [vmem:[%s5253 + $0x20] sm:$0xff]
        %v5259 = vld [vmem:[%s5253 + $0x28] sm:$0xff]
        %v5260 = vld [vmem:[%s5253 + $0x30] sm:$0xff]
        %v5261 = vld [vmem:[%s5253 + $0x38] sm:$0xff]
        %v5262 = vld [vmem:[%s5253 + $0x40] sm:$0xff]
        %v5263 = vld [vmem:[%s5253 + $0x48] sm:$0xff]
        %v5264 = vld [vmem:[%s5253 + $0x50] sm:$0xff]
        %v5265 = vld [vmem:[%s5253 + $0x58] sm:$0xff]
        %v5266 = vld [vmem:[%s5253 + $0x60] sm:$0xff]
        %v5267 = vld [vmem:[%s5253 + $0x68] sm:$0xff]
        %s5268 = scalar_lea.vmem [#allocation9], 12
        %v5269 = vld [vmem:[%s5268] sm:$0xf]
        %v5271 = vsel %vm406, %v5254, 0
        %v5274 = vsel %vm406, %v5255, 0
        %v5277 = vsel %vm406, %v5256, 0
        %v5280 = vsel %vm406, %v5257, 0
        %v5283 = vsel %vm406, %v5258, 0
        %v5286 = vsel %vm406, %v5259, 0
        %v5289 = vsel %vm406, %v5260, 0
        %v5292 = vsel %vm406, %v5261, 0
        %v5295 = vsel %vm406, %v5262, 0
        %v5298 = vsel %vm406, %v5263, 0
        %v5301 = vsel %vm406, %v5264, 0
        %v5304 = vsel %vm406, %v5265, 0
        %v5307 = vsel %vm406, %v5266, 0
        %v5310 = vsel %vm406, %v5267, 0
        %v5313 = vsel %vm609, %v5269, 0
        %5315 = vmatprep.subr.bf16.mxu0 0
        %5316 = vmatpush1.bf16.msra.mxu0 %v5313
        %5317 = vmatprep.subr.bf16.mxu0 0
        %5318 = vmatpush1.bf16.msra.mxu0 0
        %5319 = vmatprep.subr.bf16.mxu0 0
        %5320 = vmatpush1.bf16.msra.mxu0 0
        %5321 = vmatprep.subr.bf16.mxu0 0
        %5322 = vmatpush1.bf16.msra.mxu0 0
        %5323 = vmatprep.subr.bf16.mxu0 0
        %5324 = vmatpush1.bf16.msra.mxu0 0
        %5325 = vmatprep.subr.bf16.mxu0 0
        %5326 = vmatpush1.bf16.msra.mxu0 0
        %5327 = vmatprep.subr.bf16.mxu0 0
        %5328 = vmatpush1.bf16.msra.mxu0 0
        %5329 = vmatprep.subr.bf16.mxu0 0
        %5330 = vmatpush1.bf16.msra.mxu0 0
        %5331 = vmatprep.subr.bf16.mxu0 0
        %5332 = vmatpush1.bf16.msra.mxu0 0
        %5333 = vmatprep.subr.bf16.mxu0 0
        %5334 = vmatpush1.bf16.msra.mxu0 0
        %5335 = vmatprep.subr.bf16.mxu0 0
        %5336 = vmatpush1.bf16.msra.mxu0 0
        %5337 = vmatprep.subr.bf16.mxu0 0
        %5338 = vmatpush1.bf16.msra.mxu0 0
        %5339 = vmatprep.subr.bf16.mxu0 0
        %5340 = vmatpush1.bf16.msra.mxu0 0
        %5341 = vmatprep.subr.bf16.mxu0 0
        %5342 = vmatpush1.bf16.msra.mxu0 0
        %5343 = vmatprep.subr.bf16.mxu0 0
        %5344 = vmatpush1.bf16.msra.mxu0 0
        %5345 = vmatprep.subr.bf16.mxu0 0
        %5346 = vmatpush1.bf16.msra.mxu0 0
        %5347 = vmatprep.mubr.bf16.mxu0 0
        %5348 = vmatmul.mubr.bf16.gmra.mrb[0].mxu0 %v5271
        %v5349 = vpop.f32.mrb[0].mxu0
        %v5350 = vadd.f32 0.0, %v5349
        %v5351 = vpop.f32.mrb[0].mxu0
        %v5352 = vpop.f32.mrb[0].mxu0
        %v5353 = vadd.f32 0.0, %v5352
        %v5354 = vpop.f32.mrb[0].mxu0
        %5355 = vmatprep.mubr.bf16.mxu0 0
        %5356 = vmatmul.mubr.bf16.gmra.mrb[0].mxu0 %v5274
        %v5357 = vpop.f32.mrb[0].mxu0
        %v5358 = vadd.f32 0.0, %v5357
        %v5359 = vpop.f32.mrb[0].mxu0
        %v5360 = vpop.f32.mrb[0].mxu0
        %v5361 = vadd.f32 0.0, %v5360
        %v5362 = vpop.f32.mrb[0].mxu0
        %5363 = vmatprep.mubr.bf16.mxu0 0
        %5364 = vmatmul.mubr.bf16.gmra.mrb[0].mxu0 %v5277
        %v5365 = vpop.f32.mrb[0].mxu0
        %v5366 = vadd.f32 0.0, %v5365
        %v5367 = vpop.f32.mrb[0].mxu0
        %v5368 = vpop.f32.mrb[0].mxu0
        %v5369 = vadd.f32 0.0, %v5368
        %v5370 = vpop.f32.mrb[0].mxu0
        %5371 = vmatprep.mubr.bf16.mxu0 0
        %5372 = vmatmul.mubr.bf16.gmra.mrb[0].mxu0 %v5280
        %v5373 = vpop.f32.mrb[0].mxu0
        %v5374 = vadd.f32 0.0, %v5373
        %v5375 = vpop.f32.mrb[0].mxu0
        %v5376 = vpop.f32.mrb[0].mxu0
        %v5377 = vadd.f32 0.0, %v5376
        %v5378 = vpop.f32.mrb[0].mxu0
        %5379 = vmatprep.mubr.bf16.mxu0 0
        %5380 = vmatmul.mubr.bf16.gmra.mrb[0].mxu0 %v5283
        %v5381 = vpop.f32.mrb[0].mxu0
        %v5382 = vadd.f32 0.0, %v5381
        %v5383 = vpop.f32.mrb[0].mxu0
        %v5384 = vpop.f32.mrb[0].mxu0
        %v5385 = vadd.f32 0.0, %v5384
        %v5386 = vpop.f32.mrb[0].mxu0
        %5387 = vmatprep.mubr.bf16.mxu0 0
        %5388 = vmatmul.mubr.bf16.gmra.mrb[0].mxu0 %v5286
        %v5389 = vpop.f32.mrb[0].mxu0
        %v5390 = vadd.f32 0.0, %v5389
        %v5391 = vpop.f32.mrb[0].mxu0
        %v5392 = vpop.f32.mrb[0].mxu0
        %v5393 = vadd.f32 0.0, %v5392
        %v5394 = vpop.f32.mrb[0].mxu0
        %5395 = vmatprep.mubr.bf16.mxu0 0
        %5396 = vmatmul.mubr.bf16.gmra.mrb[0].mxu0 %v5289
        %v5397 = vpop.f32.mrb[0].mxu0
        %v5398 = vadd.f32 0.0, %v5397
        %v5399 = vpop.f32.mrb[0].mxu0
        %v5400 = vpop.f32.mrb[0].mxu0
        %v5401 = vadd.f32 0.0, %v5400
        %v5402 = vpop.f32.mrb[0].mxu0
        %5403 = vmatprep.mubr.bf16.mxu0 0
        %5404 = vmatmul.mubr.bf16.gmra.mrb[0].mxu0 %v5292
        %v5405 = vpop.f32.mrb[0].mxu0
        %v5406 = vadd.f32 0.0, %v5405
        %v5407 = vpop.f32.mrb[0].mxu0
        %v5408 = vpop.f32.mrb[0].mxu0
        %v5409 = vadd.f32 0.0, %v5408
        %v5410 = vpop.f32.mrb[0].mxu0
        %5411 = vmatprep.mubr.bf16.mxu0 0
        %5412 = vmatmul.mubr.bf16.gmra.mrb[0].mxu0 %v5295
        %v5413 = vpop.f32.mrb[0].mxu0
        %v5414 = vadd.f32 0.0, %v5413
        %v5415 = vpop.f32.mrb[0].mxu0
        %v5416 = vpop.f32.mrb[0].mxu0
        %v5417 = vadd.f32 0.0, %v5416
        %v5418 = vpop.f32.mrb[0].mxu0
        %5419 = vmatprep.mubr.bf16.mxu0 0
        %5420 = vmatmul.mubr.bf16.gmra.mrb[0].mxu0 %v5298
        %v5421 = vpop.f32.mrb[0].mxu0
        %v5422 = vadd.f32 0.0, %v5421
        %v5423 = vpop.f32.mrb[0].mxu0
        %v5424 = vpop.f32.mrb[0].mxu0
        %v5425 = vadd.f32 0.0, %v5424
        %v5426 = vpop.f32.mrb[0].mxu0
        %5427 = vmatprep.mubr.bf16.mxu0 0
        %5428 = vmatmul.mubr.bf16.gmra.mrb[0].mxu0 %v5301
        %v5429 = vpop.f32.mrb[0].mxu0
        %v5430 = vadd.f32 0.0, %v5429
        %v5431 = vpop.f32.mrb[0].mxu0
        %v5432 = vpop.f32.mrb[0].mxu0
        %v5433 = vadd.f32 0.0, %v5432
        %v5434 = vpop.f32.mrb[0].mxu0
        %5435 = vmatprep.mubr.bf16.mxu0 0
        %5436 = vmatmul.mubr.bf16.gmra.mrb[0].mxu0 %v5304
        %v5437 = vpop.f32.mrb[0].mxu0
        %v5438 = vadd.f32 0.0, %v5437
        %v5439 = vpop.f32.mrb[0].mxu0
        %v5440 = vpop.f32.mrb[0].mxu0
        %v5441 = vadd.f32 0.0, %v5440
        %v5442 = vpop.f32.mrb[0].mxu0
        %5443 = vmatprep.mubr.bf16.mxu0 0
        %5444 = vmatmul.mubr.bf16.gmra.mrb[0].mxu0 %v5307
        %v5445 = vpop.f32.mrb[0].mxu0
        %v5446 = vadd.f32 0.0, %v5445
        %v5447 = vpop.f32.mrb[0].mxu0
        %v5448 = vpop.f32.mrb[0].mxu0
        %v5449 = vadd.f32 0.0, %v5448
        %v5450 = vpop.f32.mrb[0].mxu0
        %5451 = vmatprep.mubr.bf16.mxu0 0
        %5452 = vmatmul.mubr.bf16.gmra.mrb[0].mxu0 %v5310
        %v5453 = vpop.f32.mrb[0].mxu0
        %v5454 = vadd.f32 0.0, %v5453
        %v5455 = vpop.f32.mrb[0].mxu0
        %v5456 = vpop.f32.mrb[0].mxu0
        %v5457 = vadd.f32 0.0, %v5456
        %v5458 = vpop.f32.mrb[0].mxu0
        %5459 = vdwg.mxu0
        %v5460 = vadd.f32 %v5225, %v5350
        %v5461 = vadd.f32 %v5226, %v5353
        %v5462 = vadd.f32 %v5227, %v5358
        %v5463 = vadd.f32 %v5228, %v5361
        %v5464 = vadd.f32 %v5229, %v5366
        %v5465 = vadd.f32 %v5230, %v5369
        %v5466 = vadd.f32 %v5231, %v5374
        %v5467 = vadd.f32 %v5232, %v5377
        %v5468 = vadd.f32 %v5233, %v5382
        %v5469 = vadd.f32 %v5234, %v5385
        %v5470 = vadd.f32 %v5235, %v5390
        %v5471 = vadd.f32 %v5236, %v5393
        %v5472 = vadd.f32 %v5237, %v5398
        %v5473 = vadd.f32 %v5238, %v5401
        %v5474 = vadd.f32 %v5239, %v5406
        %v5475 = vadd.f32 %v5240, %v5409
        %v5476 = vadd.f32 %v5241, %v5414
        %v5477 = vadd.f32 %v5242, %v5417
        %v5478 = vadd.f32 %v5243, %v5422
        %v5479 = vadd.f32 %v5244, %v5425
        %v5480 = vadd.f32 %v5245, %v5430
        %v5481 = vadd.f32 %v5246, %v5433
        %v5482 = vadd.f32 %v5247, %v5438
        %v5483 = vadd.f32 %v5248, %v5441
        %v5484 = vadd.f32 %v5249, %v5446
        %v5485 = vadd.f32 %v5250, %v5449
        %v5486 = vadd.f32 %v5251, %v5454
        %v5487 = vadd.f32 %v5252, %v5457
        %s5488 = scalar_lea.vmem [#allocation9], 16
        %v5489 = vld [vmem:[%s5488] sm:$0xf]
        %v5491 = vsel %vm609, %v5489, 0
        %5493 = vmatprep.subr.bf16.mxu0 0
        %5494 = vmatpush1.bf16.msra.mxu0 %v5491
        %5495 = vmatprep.subr.bf16.mxu0 0
        %5496 = vmatpush1.bf16.msra.mxu0 0
        %5497 = vmatprep.subr.bf16.mxu0 0
        %5498 = vmatpush1.bf16.msra.mxu0 0
        %5499 = vmatprep.subr.bf16.mxu0 0
        %5500 = vmatpush1.bf16.msra.mxu0 0
        %5501 = vmatprep.subr.bf16.mxu0 0
        %5502 = vmatpush1.bf16.msra.mxu0 0
        %5503 = vmatprep.subr.bf16.mxu0 0
        %5504 = vmatpush1.bf16.msra.mxu0 0
        %5505 = vmatprep.subr.bf16.mxu0 0
        %5506 = vmatpush1.bf16.msra.mxu0 0
        %5507 = vmatprep.subr.bf16.mxu0 0
        %5508 = vmatpush1.bf16.msra.mxu0 0
        %5509 = vmatprep.subr.bf16.mxu0 0
        %5510 = vmatpush1.bf16.msra.mxu0 0
        %5511 = vmatprep.subr.bf16.mxu0 0
        %5512 = vmatpush1.bf16.msra.mxu0 0
        %5513 = vmatprep.subr.bf16.mxu0 0
        %5514 = vmatpush1.bf16.msra.mxu0 0
        %5515 = vmatprep.subr.bf16.mxu0 0
        %5516 = vmatpush1.bf16.msra.mxu0 0
        %5517 = vmatprep.subr.bf16.mxu0 0
        %5518 = vmatpush1.bf16.msra.mxu0 0
        %5519 = vmatprep.subr.bf16.mxu0 0
        %5520 = vmatpush1.bf16.msra.mxu0 0
        %5521 = vmatprep.subr.bf16.mxu0 0
        %5522 = vmatpush1.bf16.msra.mxu0 0
        %5523 = vmatprep.subr.bf16.mxu0 0
        %5524 = vmatpush1.bf16.msra.mxu0 0
        %5525 = vmatprep.mubr.bf16.mxu0 0
        %5526 = vmatmul.mubr.bf16.gmra.mrb[0].mxu0 %v5271
        %v5527 = vpop.f32.mrb[0].mxu0
        %v5528 = vadd.f32 0.0, %v5527
        %v5529 = vpop.f32.mrb[0].mxu0
        %v5530 = vpop.f32.mrb[0].mxu0
        %v5531 = vadd.f32 0.0, %v5530
        %v5532 = vpop.f32.mrb[0].mxu0
        %5533 = vmatprep.mubr.bf16.mxu0 0
        %5534 = vmatmul.mubr.bf16.gmra.mrb[0].mxu0 %v5274
        %v5535 = vpop.f32.mrb[0].mxu0
        %v5536 = vadd.f32 0.0, %v5535
        %v5537 = vpop.f32.mrb[0].mxu0
        %v5538 = vpop.f32.mrb[0].mxu0
        %v5539 = vadd.f32 0.0, %v5538
        %v5540 = vpop.f32.mrb[0].mxu0
        %5541 = vmatprep.mubr.bf16.mxu0 0
        %5542 = vmatmul.mubr.bf16.gmra.mrb[0].mxu0 %v5277
        %v5543 = vpop.f32.mrb[0].mxu0
        %v5544 = vadd.f32 0.0, %v5543
        %v5545 = vpop.f32.mrb[0].mxu0
        %v5546 = vpop.f32.mrb[0].mxu0
        %v5547 = vadd.f32 0.0, %v5546
        %v5548 = vpop.f32.mrb[0].mxu0
        %5549 = vmatprep.mubr.bf16.mxu0 0
        %5550 = vmatmul.mubr.bf16.gmra.mrb[0].mxu0 %v5280
        %v5551 = vpop.f32.mrb[0].mxu0
        %v5552 = vadd.f32 0.0, %v5551
        %v5553 = vpop.f32.mrb[0].mxu0
        %v5554 = vpop.f32.mrb[0].mxu0
        %v5555 = vadd.f32 0.0, %v5554
        %v5556 = vpop.f32.mrb[0].mxu0
        %5557 = vmatprep.mubr.bf16.mxu0 0
        %5558 = vmatmul.mubr.bf16.gmra.mrb[0].mxu0 %v5283
        %v5559 = vpop.f32.mrb[0].mxu0
        %v5560 = vadd.f32 0.0, %v5559
        %v5561 = vpop.f32.mrb[0].mxu0
        %v5562 = vpop.f32.mrb[0].mxu0
        %v5563 = vadd.f32 0.0, %v5562
        %v5564 = vpop.f32.mrb[0].mxu0
        %5565 = vmatprep.mubr.bf16.mxu0 0
        %5566 = vmatmul.mubr.bf16.gmra.mrb[0].mxu0 %v5286
        %v5567 = vpop.f32.mrb[0].mxu0
        %v5568 = vadd.f32 0.0, %v5567
        %v5569 = vpop.f32.mrb[0].mxu0
        %v5570 = vpop.f32.mrb[0].mxu0
        %v5571 = vadd.f32 0.0, %v5570
        %v5572 = vpop.f32.mrb[0].mxu0
        %5573 = vmatprep.mubr.bf16.mxu0 0
        %5574 = vmatmul.mubr.bf16.gmra.mrb[0].mxu0 %v5289
        %v5575 = vpop.f32.mrb[0].mxu0
        %v5576 = vadd.f32 0.0, %v5575
        %v5577 = vpop.f32.mrb[0].mxu0
        %v5578 = vpop.f32.mrb[0].mxu0
        %v5579 = vadd.f32 0.0, %v5578
        %v5580 = vpop.f32.mrb[0].mxu0
        %5581 = vmatprep.mubr.bf16.mxu0 0
        %5582 = vmatmul.mubr.bf16.gmra.mrb[0].mxu0 %v5292
        %v5583 = vpop.f32.mrb[0].mxu0
        %v5584 = vadd.f32 0.0, %v5583
        %v5585 = vpop.f32.mrb[0].mxu0
        %v5586 = vpop.f32.mrb[0].mxu0
        %v5587 = vadd.f32 0.0, %v5586
        %v5588 = vpop.f32.mrb[0].mxu0
        %5589 = vmatprep.mubr.bf16.mxu0 0
        %5590 = vmatmul.mubr.bf16.gmra.mrb[0].mxu0 %v5295
        %v5591 = vpop.f32.mrb[0].mxu0
        %v5592 = vadd.f32 0.0, %v5591
        %v5593 = vpop.f32.mrb[0].mxu0
        %v5594 = vpop.f32.mrb[0].mxu0
        %v5595 = vadd.f32 0.0, %v5594
        %v5596 = vpop.f32.mrb[0].mxu0
        %5597 = vmatprep.mubr.bf16.mxu0 0
        %5598 = vmatmul.mubr.bf16.gmra.mrb[0].mxu0 %v5298
        %v5599 = vpop.f32.mrb[0].mxu0
        %v5600 = vadd.f32 0.0, %v5599
        %v5601 = vpop.f32.mrb[0].mxu0
        %v5602 = vpop.f32.mrb[0].mxu0
        %v5603 = vadd.f32 0.0, %v5602
        %v5604 = vpop.f32.mrb[0].mxu0
        %5605 = vmatprep.mubr.bf16.mxu0 0
        %5606 = vmatmul.mubr.bf16.gmra.mrb[0].mxu0 %v5301
        %v5607 = vpop.f32.mrb[0].mxu0
        %v5608 = vadd.f32 0.0, %v5607
        %v5609 = vpop.f32.mrb[0].mxu0
        %v5610 = vpop.f32.mrb[0].mxu0
        %v5611 = vadd.f32 0.0, %v5610
        %v5612 = vpop.f32.mrb[0].mxu0
        %5613 = vmatprep.mubr.bf16.mxu0 0
        %5614 = vmatmul.mubr.bf16.gmra.mrb[0].mxu0 %v5304
        %v5615 = vpop.f32.mrb[0].mxu0
        %v5616 = vadd.f32 0.0, %v5615
        %v5617 = vpop.f32.mrb[0].mxu0
        %v5618 = vpop.f32.mrb[0].mxu0
        %v5619 = vadd.f32 0.0, %v5618
        %v5620 = vpop.f32.mrb[0].mxu0
        %5621 = vmatprep.mubr.bf16.mxu0 0
        %5622 = vmatmul.mubr.bf16.gmra.mrb[0].mxu0 %v5307
        %v5623 = vpop.f32.mrb[0].mxu0
        %v5624 = vadd.f32 0.0, %v5623
        %v5625 = vpop.f32.mrb[0].mxu0
        %v5626 = vpop.f32.mrb[0].mxu0
        %v5627 = vadd.f32 0.0, %v5626
        %v5628 = vpop.f32.mrb[0].mxu0
        %5629 = vmatprep.mubr.bf16.mxu0 0
        %5630 = vmatmul.mubr.bf16.gmra.mrb[0].mxu0 %v5310
        %v5631 = vpop.f32.mrb[0].mxu0
        %v5632 = vadd.f32 0.0, %v5631
        %v5633 = vpop.f32.mrb[0].mxu0
        %v5634 = vpop.f32.mrb[0].mxu0
        %v5635 = vadd.f32 0.0, %v5634
        %v5636 = vpop.f32.mrb[0].mxu0
        %5637 = vdwg.mxu0
        %v5638 = vrot.slane %v5528, 1
        %v5639 = vrot.slane %v5531, 1
        %v5640 = vrot.slane %v5536, 1
        %v5641 = vrot.slane %v5539, 1
        %v5642 = vrot.slane %v5544, 1
        %v5643 = vrot.slane %v5547, 1
        %v5644 = vrot.slane %v5552, 1
        %v5645 = vrot.slane %v5555, 1
        %v5646 = vrot.slane %v5560, 1
        %v5647 = vrot.slane %v5563, 1
        %v5648 = vrot.slane %v5568, 1
        %v5649 = vrot.slane %v5571, 1
        %v5650 = vrot.slane %v5576, 1
        %v5651 = vrot.slane %v5579, 1
        %v5652 = vrot.slane %v5584, 1
        %v5653 = vrot.slane %v5587, 1
        %v5654 = vrot.slane %v5592, 1
        %v5655 = vrot.slane %v5595, 1
        %v5656 = vrot.slane %v5600, 1
        %v5657 = vrot.slane %v5603, 1
        %v5658 = vrot.slane %v5608, 1
        %v5659 = vrot.slane %v5611, 1
        %v5660 = vrot.slane %v5616, 1
        %v5661 = vrot.slane %v5619, 1
        %v5662 = vrot.slane %v5624, 1
        %v5663 = vrot.slane %v5627, 1
        %v5664 = vrot.slane %v5632, 1
        %v5665 = vrot.slane %v5635, 1
        %v5666 = vsel %vm4841, %v5664, %v5665
        %v5667 = vsel %vm4841, %v5663, %v5664
        %v5668 = vsel %vm4841, %v5662, %v5663
        %v5669 = vsel %vm4841, %v5661, %v5662
        %v5670 = vsel %vm4841, %v5660, %v5661
        %v5671 = vsel %vm4841, %v5659, %v5660
        %v5672 = vsel %vm4841, %v5658, %v5659
        %v5673 = vsel %vm4841, %v5657, %v5658
        %v5674 = vsel %vm4841, %v5656, %v5657
        %v5675 = vsel %vm4841, %v5655, %v5656
        %v5676 = vsel %vm4841, %v5654, %v5655
        %v5677 = vsel %vm4841, %v5653, %v5654
        %v5678 = vsel %vm4841, %v5652, %v5653
        %v5679 = vsel %vm4841, %v5651, %v5652
        %v5680 = vsel %vm4841, %v5650, %v5651
        %v5681 = vsel %vm4841, %v5649, %v5650
        %v5682 = vsel %vm4841, %v5648, %v5649
        %v5683 = vsel %vm4841, %v5647, %v5648
        %v5684 = vsel %vm4841, %v5646, %v5647
        %v5685 = vsel %vm4841, %v5645, %v5646
        %v5686 = vsel %vm4841, %v5644, %v5645
        %v5687 = vsel %vm4841, %v5643, %v5644
        %v5688 = vsel %vm4841, %v5642, %v5643
        %v5689 = vsel %vm4841, %v5641, %v5642
        %v5690 = vsel %vm4841, %v5640, %v5641
        %v5691 = vsel %vm4841, %v5639, %v5640
        %v5692 = vsel %vm4841, %v5638, %v5639
        %v5693 = vsel %vm4841, %v5665, %v5638
        %v5694 = vadd.f32 %v5460, %v5692
        %v5695 = vadd.f32 %v5461, %v5691
        %v5696 = vadd.f32 %v5462, %v5690
        %v5697 = vadd.f32 %v5463, %v5689
        %v5698 = vadd.f32 %v5464, %v5688
        %v5699 = vadd.f32 %v5465, %v5687
        %v5700 = vadd.f32 %v5466, %v5686
        %v5701 = vadd.f32 %v5467, %v5685
        %v5702 = vadd.f32 %v5468, %v5684
        %v5703 = vadd.f32 %v5469, %v5683
        %v5704 = vadd.f32 %v5470, %v5682
        %v5705 = vadd.f32 %v5471, %v5681
        %v5706 = vadd.f32 %v5472, %v5680
        %v5707 = vadd.f32 %v5473, %v5679
        %v5708 = vadd.f32 %v5474, %v5678
        %v5709 = vadd.f32 %v5475, %v5677
        %v5710 = vadd.f32 %v5476, %v5676
        %v5711 = vadd.f32 %v5477, %v5675
        %v5712 = vadd.f32 %v5478, %v5674
        %v5713 = vadd.f32 %v5479, %v5673
        %v5714 = vadd.f32 %v5480, %v5672
        %v5715 = vadd.f32 %v5481, %v5671
        %v5716 = vadd.f32 %v5482, %v5670
        %v5717 = vadd.f32 %v5483, %v5669
        %v5718 = vadd.f32 %v5484, %v5668
        %v5719 = vadd.f32 %v5485, %v5667
        %v5720 = vadd.f32 %v5486, %v5666
        %v5721 = vadd.f32 %v5487, %v5693
        %s5722 = scalar_lea.vmem [#allocation9], 20
        %v5723 = vld [vmem:[%s5722] sm:$0xf]
        %v5725 = vsel %vm609, %v5723, 0
        %5727 = vmatprep.subr.bf16.mxu0 0
        %5728 = vmatpush1.bf16.msra.mxu0 %v5725
        %5729 = vmatprep.subr.bf16.mxu0 0
        %5730 = vmatpush1.bf16.msra.mxu0 0
        %5731 = vmatprep.subr.bf16.mxu0 0
        %5732 = vmatpush1.bf16.msra.mxu0 0
        %5733 = vmatprep.subr.bf16.mxu0 0
        %5734 = vmatpush1.bf16.msra.mxu0 0
        %5735 = vmatprep.subr.bf16.mxu0 0
        %5736 = vmatpush1.bf16.msra.mxu0 0
        %5737 = vmatprep.subr.bf16.mxu0 0
        %5738 = vmatpush1.bf16.msra.mxu0 0
        %5739 = vmatprep.subr.bf16.mxu0 0
        %5740 = vmatpush1.bf16.msra.mxu0 0
        %5741 = vmatprep.subr.bf16.mxu0 0
        %5742 = vmatpush1.bf16.msra.mxu0 0
        %5743 = vmatprep.subr.bf16.mxu0 0
        %5744 = vmatpush1.bf16.msra.mxu0 0
        %5745 = vmatprep.subr.bf16.mxu0 0
        %5746 = vmatpush1.bf16.msra.mxu0 0
        %5747 = vmatprep.subr.bf16.mxu0 0
        %5748 = vmatpush1.bf16.msra.mxu0 0
        %5749 = vmatprep.subr.bf16.mxu0 0
        %5750 = vmatpush1.bf16.msra.mxu0 0
        %5751 = vmatprep.subr.bf16.mxu0 0
        %5752 = vmatpush1.bf16.msra.mxu0 0
        %5753 = vmatprep.subr.bf16.mxu0 0
        %5754 = vmatpush1.bf16.msra.mxu0 0
        %5755 = vmatprep.subr.bf16.mxu0 0
        %5756 = vmatpush1.bf16.msra.mxu0 0
        %5757 = vmatprep.subr.bf16.mxu0 0
        %5758 = vmatpush1.bf16.msra.mxu0 0
        %5759 = vmatprep.mubr.bf16.mxu0 0
        %5760 = vmatmul.mubr.bf16.gmra.mrb[0].mxu0 %v5271
        %v5761 = vpop.f32.mrb[0].mxu0
        %v5762 = vadd.f32 0.0, %v5761
        %v5763 = vpop.f32.mrb[0].mxu0
        %v5764 = vpop.f32.mrb[0].mxu0
        %v5765 = vadd.f32 0.0, %v5764
        %v5766 = vpop.f32.mrb[0].mxu0
        %5767 = vmatprep.mubr.bf16.mxu0 0
        %5768 = vmatmul.mubr.bf16.gmra.mrb[0].mxu0 %v5274
        %v5769 = vpop.f32.mrb[0].mxu0
        %v5770 = vadd.f32 0.0, %v5769
        %v5771 = vpop.f32.mrb[0].mxu0
        %v5772 = vpop.f32.mrb[0].mxu0
        %v5773 = vadd.f32 0.0, %v5772
        %v5774 = vpop.f32.mrb[0].mxu0
        %5775 = vmatprep.mubr.bf16.mxu0 0
        %5776 = vmatmul.mubr.bf16.gmra.mrb[0].mxu0 %v5277
        %v5777 = vpop.f32.mrb[0].mxu0
        %v5778 = vadd.f32 0.0, %v5777
        %v5779 = vpop.f32.mrb[0].mxu0
        %v5780 = vpop.f32.mrb[0].mxu0
        %v5781 = vadd.f32 0.0, %v5780
        %v5782 = vpop.f32.mrb[0].mxu0
        %5783 = vmatprep.mubr.bf16.mxu0 0
        %5784 = vmatmul.mubr.bf16.gmra.mrb[0].mxu0 %v5280
        %v5785 = vpop.f32.mrb[0].mxu0
        %v5786 = vadd.f32 0.0, %v5785
        %v5787 = vpop.f32.mrb[0].mxu0
        %v5788 = vpop.f32.mrb[0].mxu0
        %v5789 = vadd.f32 0.0, %v5788
        %v5790 = vpop.f32.mrb[0].mxu0
        %5791 = vmatprep.mubr.bf16.mxu0 0
        %5792 = vmatmul.mubr.bf16.gmra.mrb[0].mxu0 %v5283
        %v5793 = vpop.f32.mrb[0].mxu0
        %v5794 = vadd.f32 0.0, %v5793
        %v5795 = vpop.f32.mrb[0].mxu0
        %v5796 = vpop.f32.mrb[0].mxu0
        %v5797 = vadd.f32 0.0, %v5796
        %v5798 = vpop.f32.mrb[0].mxu0
        %5799 = vmatprep.mubr.bf16.mxu0 0
        %5800 = vmatmul.mubr.bf16.gmra.mrb[0].mxu0 %v5286
        %v5801 = vpop.f32.mrb[0].mxu0
        %v5802 = vadd.f32 0.0, %v5801
        %v5803 = vpop.f32.mrb[0].mxu0
        %v5804 = vpop.f32.mrb[0].mxu0
        %v5805 = vadd.f32 0.0, %v5804
        %v5806 = vpop.f32.mrb[0].mxu0
        %5807 = vmatprep.mubr.bf16.mxu0 0
        %5808 = vmatmul.mubr.bf16.gmra.mrb[0].mxu0 %v5289
        %v5809 = vpop.f32.mrb[0].mxu0
        %v5810 = vadd.f32 0.0, %v5809
        %v5811 = vpop.f32.mrb[0].mxu0
        %v5812 = vpop.f32.mrb[0].mxu0
        %v5813 = vadd.f32 0.0, %v5812
        %v5814 = vpop.f32.mrb[0].mxu0
        %5815 = vmatprep.mubr.bf16.mxu0 0
        %5816 = vmatmul.mubr.bf16.gmra.mrb[0].mxu0 %v5292
        %v5817 = vpop.f32.mrb[0].mxu0
        %v5818 = vadd.f32 0.0, %v5817
        %v5819 = vpop.f32.mrb[0].mxu0
        %v5820 = vpop.f32.mrb[0].mxu0
        %v5821 = vadd.f32 0.0, %v5820
        %v5822 = vpop.f32.mrb[0].mxu0
        %5823 = vmatprep.mubr.bf16.mxu0 0
        %5824 = vmatmul.mubr.bf16.gmra.mrb[0].mxu0 %v5295
        %v5825 = vpop.f32.mrb[0].mxu0
        %v5826 = vadd.f32 0.0, %v5825
        %v5827 = vpop.f32.mrb[0].mxu0
        %v5828 = vpop.f32.mrb[0].mxu0
        %v5829 = vadd.f32 0.0, %v5828
        %v5830 = vpop.f32.mrb[0].mxu0
        %5831 = vmatprep.mubr.bf16.mxu0 0
        %5832 = vmatmul.mubr.bf16.gmra.mrb[0].mxu0 %v5298
        %v5833 = vpop.f32.mrb[0].mxu0
        %v5834 = vadd.f32 0.0, %v5833
        %v5835 = vpop.f32.mrb[0].mxu0
        %v5836 = vpop.f32.mrb[0].mxu0
        %v5837 = vadd.f32 0.0, %v5836
        %v5838 = vpop.f32.mrb[0].mxu0
        %5839 = vmatprep.mubr.bf16.mxu0 0
        %5840 = vmatmul.mubr.bf16.gmra.mrb[0].mxu0 %v5301
        %v5841 = vpop.f32.mrb[0].mxu0
        %v5842 = vadd.f32 0.0, %v5841
        %v5843 = vpop.f32.mrb[0].mxu0
        %v5844 = vpop.f32.mrb[0].mxu0
        %v5845 = vadd.f32 0.0, %v5844
        %v5846 = vpop.f32.mrb[0].mxu0
        %5847 = vmatprep.mubr.bf16.mxu0 0
        %5848 = vmatmul.mubr.bf16.gmra.mrb[0].mxu0 %v5304
        %v5849 = vpop.f32.mrb[0].mxu0
        %v5850 = vadd.f32 0.0, %v5849
        %v5851 = vpop.f32.mrb[0].mxu0
        %v5852 = vpop.f32.mrb[0].mxu0
        %v5853 = vadd.f32 0.0, %v5852
        %v5854 = vpop.f32.mrb[0].mxu0
        %5855 = vmatprep.mubr.bf16.mxu0 0
        %5856 = vmatmul.mubr.bf16.gmra.mrb[0].mxu0 %v5307
        %v5857 = vpop.f32.mrb[0].mxu0
        %v5858 = vadd.f32 0.0, %v5857
        %v5859 = vpop.f32.mrb[0].mxu0
        %v5860 = vpop.f32.mrb[0].mxu0
        %v5861 = vadd.f32 0.0, %v5860
        %v5862 = vpop.f32.mrb[0].mxu0
        %5863 = vmatprep.mubr.bf16.mxu0 0
        %5864 = vmatmul.mubr.bf16.gmra.mrb[0].mxu0 %v5310
        %v5865 = vpop.f32.mrb[0].mxu0
        %v5866 = vadd.f32 0.0, %v5865
        %v5867 = vpop.f32.mrb[0].mxu0
        %v5868 = vpop.f32.mrb[0].mxu0
        %v5869 = vadd.f32 0.0, %v5868
        %v5870 = vpop.f32.mrb[0].mxu0
        %5871 = vdwg.mxu0
        %v5872 = vrot.slane %v5762, 2
        %v5873 = vrot.slane %v5765, 2
        %v5874 = vrot.slane %v5770, 2
        %v5875 = vrot.slane %v5773, 2
        %v5876 = vrot.slane %v5778, 2
        %v5877 = vrot.slane %v5781, 2
        %v5878 = vrot.slane %v5786, 2
        %v5879 = vrot.slane %v5789, 2
        %v5880 = vrot.slane %v5794, 2
        %v5881 = vrot.slane %v5797, 2
        %v5882 = vrot.slane %v5802, 2
        %v5883 = vrot.slane %v5805, 2
        %v5884 = vrot.slane %v5810, 2
        %v5885 = vrot.slane %v5813, 2
        %v5886 = vrot.slane %v5818, 2
        %v5887 = vrot.slane %v5821, 2
        %v5888 = vrot.slane %v5826, 2
        %v5889 = vrot.slane %v5829, 2
        %v5890 = vrot.slane %v5834, 2
        %v5891 = vrot.slane %v5837, 2
        %v5892 = vrot.slane %v5842, 2
        %v5893 = vrot.slane %v5845, 2
        %v5894 = vrot.slane %v5850, 2
        %v5895 = vrot.slane %v5853, 2
        %v5896 = vrot.slane %v5858, 2
        %v5897 = vrot.slane %v5861, 2
        %v5898 = vrot.slane %v5866, 2
        %v5899 = vrot.slane %v5869, 2
        %v5900 = vsel %vm5196, %v5898, %v5899
        %v5901 = vsel %vm5196, %v5897, %v5898
        %v5902 = vsel %vm5196, %v5896, %v5897
        %v5903 = vsel %vm5196, %v5895, %v5896
        %v5904 = vsel %vm5196, %v5894, %v5895
        %v5905 = vsel %vm5196, %v5893, %v5894
        %v5906 = vsel %vm5196, %v5892, %v5893
        %v5907 = vsel %vm5196, %v5891, %v5892
        %v5908 = vsel %vm5196, %v5890, %v5891
        %v5909 = vsel %vm5196, %v5889, %v5890
        %v5910 = vsel %vm5196, %v5888, %v5889
        %v5911 = vsel %vm5196, %v5887, %v5888
        %v5912 = vsel %vm5196, %v5886, %v5887
        %v5913 = vsel %vm5196, %v5885, %v5886
        %v5914 = vsel %vm5196, %v5884, %v5885
        %v5915 = vsel %vm5196, %v5883, %v5884
        %v5916 = vsel %vm5196, %v5882, %v5883
        %v5917 = vsel %vm5196, %v5881, %v5882
        %v5918 = vsel %vm5196, %v5880, %v5881
        %v5919 = vsel %vm5196, %v5879, %v5880
        %v5920 = vsel %vm5196, %v5878, %v5879
        %v5921 = vsel %vm5196, %v5877, %v5878
        %v5922 = vsel %vm5196, %v5876, %v5877
        %v5923 = vsel %vm5196, %v5875, %v5876
        %v5924 = vsel %vm5196, %v5874, %v5875
        %v5925 = vsel %vm5196, %v5873, %v5874
        %v5926 = vsel %vm5196, %v5872, %v5873
        %v5927 = vsel %vm5196, %v5899, %v5872
        %v5928 = vadd.f32 %v5694, %v5926
        %v5929 = vadd.f32 %v5695, %v5925
        %v5930 = vadd.f32 %v5696, %v5924
        %v5931 = vadd.f32 %v5697, %v5923
        %v5932 = vadd.f32 %v5698, %v5922
        %v5933 = vadd.f32 %v5699, %v5921
        %v5934 = vadd.f32 %v5700, %v5920
        %v5935 = vadd.f32 %v5701, %v5919
        %v5936 = vadd.f32 %v5702, %v5918
        %v5937 = vadd.f32 %v5703, %v5917
        %v5938 = vadd.f32 %v5704, %v5916
        %v5939 = vadd.f32 %v5705, %v5915
        %v5940 = vadd.f32 %v5706, %v5914
        %v5941 = vadd.f32 %v5707, %v5913
        %v5942 = vadd.f32 %v5708, %v5912
        %v5943 = vadd.f32 %v5709, %v5911
        %v5944 = vadd.f32 %v5710, %v5910
        %v5945 = vadd.f32 %v5711, %v5909
        %v5946 = vadd.f32 %v5712, %v5908
        %v5947 = vadd.f32 %v5713, %v5907
        %v5948 = vadd.f32 %v5714, %v5906
        %v5949 = vadd.f32 %v5715, %v5905
        %v5950 = vadd.f32 %v5716, %v5904
        %v5951 = vadd.f32 %v5717, %v5903
        %v5952 = vadd.f32 %v5718, %v5902
        %v5953 = vadd.f32 %v5719, %v5901
        %v5954 = vadd.f32 %v5720, %v5900
        %v5955 = vadd.f32 %v5721, %v5927
        %v5956 = vld [vmem:[%s554] sm:$0xff]
        %v5957 = vld [vmem:[%s554 + $0x8] sm:$0xff]
        %v5958 = vld [vmem:[%s554 + $0x10] sm:$0xff]
        %v5959 = vld [vmem:[%s554 + $0x18] sm:$0xff]
        %v5960 = vld [vmem:[%s554 + $0x20] sm:$0xff]
        %v5961 = vld [vmem:[%s554 + $0x28] sm:$0xff]
        %v5962 = vld [vmem:[%s554 + $0x30] sm:$0xff]
        %v5963 = vld [vmem:[%s554 + $0x38] sm:$0xff]
        %v5964 = vld [vmem:[%s554 + $0x40] sm:$0xff]
        %v5965 = vld [vmem:[%s554 + $0x48] sm:$0xff]
        %v5966 = vld [vmem:[%s554 + $0x50] sm:$0xff]
        %v5967 = vld [vmem:[%s554 + $0x58] sm:$0xff]
        %v5968 = vld [vmem:[%s554 + $0x60] sm:$0xff]
        %v5969 = vld [vmem:[%s554 + $0x68] sm:$0xff]
        %s5970 = scalar_lea.vmem [#allocation9], 24
        %v5971 = vld [vmem:[%s5970] sm:$0xf]
        %v5973 = vsel %vm406, %v5956, 0
        %v5976 = vsel %vm406, %v5957, 0
        %v5979 = vsel %vm406, %v5958, 0
        %v5982 = vsel %vm406, %v5959, 0
        %v5985 = vsel %vm406, %v5960, 0
        %v5988 = vsel %vm406, %v5961, 0
        %v5991 = vsel %vm406, %v5962, 0
        %v5994 = vsel %vm406, %v5963, 0
        %v5997 = vsel %vm406, %v5964, 0
        %v6000 = vsel %vm406, %v5965, 0
        %v6003 = vsel %vm406, %v5966, 0
        %v6006 = vsel %vm406, %v5967, 0
        %v6009 = vsel %vm406, %v5968, 0
        %v6012 = vsel %vm406, %v5969, 0
        %v6015 = vsel %vm609, %v5971, 0
        %6017 = vmatprep.subr.bf16.mxu0 0
        %6018 = vmatpush1.bf16.msra.mxu0 %v6015
        %6019 = vmatprep.subr.bf16.mxu0 0
        %6020 = vmatpush1.bf16.msra.mxu0 0
        %6021 = vmatprep.subr.bf16.mxu0 0
        %6022 = vmatpush1.bf16.msra.mxu0 0
        %6023 = vmatprep.subr.bf16.mxu0 0
        %6024 = vmatpush1.bf16.msra.mxu0 0
        %6025 = vmatprep.subr.bf16.mxu0 0
        %6026 = vmatpush1.bf16.msra.mxu0 0
        %6027 = vmatprep.subr.bf16.mxu0 0
        %6028 = vmatpush1.bf16.msra.mxu0 0
        %6029 = vmatprep.subr.bf16.mxu0 0
        %6030 = vmatpush1.bf16.msra.mxu0 0
        %6031 = vmatprep.subr.bf16.mxu0 0
        %6032 = vmatpush1.bf16.msra.mxu0 0
        %6033 = vmatprep.subr.bf16.mxu0 0
        %6034 = vmatpush1.bf16.msra.mxu0 0
        %6035 = vmatprep.subr.bf16.mxu0 0
        %6036 = vmatpush1.bf16.msra.mxu0 0
        %6037 = vmatprep.subr.bf16.mxu0 0
        %6038 = vmatpush1.bf16.msra.mxu0 0
        %6039 = vmatprep.subr.bf16.mxu0 0
        %6040 = vmatpush1.bf16.msra.mxu0 0
        %6041 = vmatprep.subr.bf16.mxu0 0
        %6042 = vmatpush1.bf16.msra.mxu0 0
        %6043 = vmatprep.subr.bf16.mxu0 0
        %6044 = vmatpush1.bf16.msra.mxu0 0
        %6045 = vmatprep.subr.bf16.mxu0 0
        %6046 = vmatpush1.bf16.msra.mxu0 0
        %6047 = vmatprep.subr.bf16.mxu0 0
        %6048 = vmatpush1.bf16.msra.mxu0 0
        %6049 = vmatprep.mubr.bf16.mxu0 0
        %6050 = vmatmul.mubr.bf16.gmra.mrb[0].mxu0 %v5973
        %v6051 = vpop.f32.mrb[0].mxu0
        %v6052 = vadd.f32 0.0, %v6051
        %v6053 = vpop.f32.mrb[0].mxu0
        %v6054 = vpop.f32.mrb[0].mxu0
        %v6055 = vadd.f32 0.0, %v6054
        %v6056 = vpop.f32.mrb[0].mxu0
        %6057 = vmatprep.mubr.bf16.mxu0 0
        %6058 = vmatmul.mubr.bf16.gmra.mrb[0].mxu0 %v5976
        %v6059 = vpop.f32.mrb[0].mxu0
        %v6060 = vadd.f32 0.0, %v6059
        %v6061 = vpop.f32.mrb[0].mxu0
        %v6062 = vpop.f32.mrb[0].mxu0
        %v6063 = vadd.f32 0.0, %v6062
        %v6064 = vpop.f32.mrb[0].mxu0
        %6065 = vmatprep.mubr.bf16.mxu0 0
        %6066 = vmatmul.mubr.bf16.gmra.mrb[0].mxu0 %v5979
        %v6067 = vpop.f32.mrb[0].mxu0
        %v6068 = vadd.f32 0.0, %v6067
        %v6069 = vpop.f32.mrb[0].mxu0
        %v6070 = vpop.f32.mrb[0].mxu0
        %v6071 = vadd.f32 0.0, %v6070
        %v6072 = vpop.f32.mrb[0].mxu0
        %6073 = vmatprep.mubr.bf16.mxu0 0
        %6074 = vmatmul.mubr.bf16.gmra.mrb[0].mxu0 %v5982
        %v6075 = vpop.f32.mrb[0].mxu0
        %v6076 = vadd.f32 0.0, %v6075
        %v6077 = vpop.f32.mrb[0].mxu0
        %v6078 = vpop.f32.mrb[0].mxu0
        %v6079 = vadd.f32 0.0, %v6078
        %v6080 = vpop.f32.mrb[0].mxu0
        %6081 = vmatprep.mubr.bf16.mxu0 0
        %6082 = vmatmul.mubr.bf16.gmra.mrb[0].mxu0 %v5985
        %v6083 = vpop.f32.mrb[0].mxu0
        %v6084 = vadd.f32 0.0, %v6083
        %v6085 = vpop.f32.mrb[0].mxu0
        %v6086 = vpop.f32.mrb[0].mxu0
        %v6087 = vadd.f32 0.0, %v6086
        %v6088 = vpop.f32.mrb[0].mxu0
        %6089 = vmatprep.mubr.bf16.mxu0 0
        %6090 = vmatmul.mubr.bf16.gmra.mrb[0].mxu0 %v5988
        %v6091 = vpop.f32.mrb[0].mxu0
        %v6092 = vadd.f32 0.0, %v6091
        %v6093 = vpop.f32.mrb[0].mxu0
        %v6094 = vpop.f32.mrb[0].mxu0
        %v6095 = vadd.f32 0.0, %v6094
        %v6096 = vpop.f32.mrb[0].mxu0
        %6097 = vmatprep.mubr.bf16.mxu0 0
        %6098 = vmatmul.mubr.bf16.gmra.mrb[0].mxu0 %v5991
        %v6099 = vpop.f32.mrb[0].mxu0
        %v6100 = vadd.f32 0.0, %v6099
        %v6101 = vpop.f32.mrb[0].mxu0
        %v6102 = vpop.f32.mrb[0].mxu0
        %v6103 = vadd.f32 0.0, %v6102
        %v6104 = vpop.f32.mrb[0].mxu0
        %6105 = vmatprep.mubr.bf16.mxu0 0
        %6106 = vmatmul.mubr.bf16.gmra.mrb[0].mxu0 %v5994
        %v6107 = vpop.f32.mrb[0].mxu0
        %v6108 = vadd.f32 0.0, %v6107
        %v6109 = vpop.f32.mrb[0].mxu0
        %v6110 = vpop.f32.mrb[0].mxu0
        %v6111 = vadd.f32 0.0, %v6110
        %v6112 = vpop.f32.mrb[0].mxu0
        %6113 = vmatprep.mubr.bf16.mxu0 0
        %6114 = vmatmul.mubr.bf16.gmra.mrb[0].mxu0 %v5997
        %v6115 = vpop.f32.mrb[0].mxu0
        %v6116 = vadd.f32 0.0, %v6115
        %v6117 = vpop.f32.mrb[0].mxu0
        %v6118 = vpop.f32.mrb[0].mxu0
        %v6119 = vadd.f32 0.0, %v6118
        %v6120 = vpop.f32.mrb[0].mxu0
        %6121 = vmatprep.mubr.bf16.mxu0 0
        %6122 = vmatmul.mubr.bf16.gmra.mrb[0].mxu0 %v6000
        %v6123 = vpop.f32.mrb[0].mxu0
        %v6124 = vadd.f32 0.0, %v6123
        %v6125 = vpop.f32.mrb[0].mxu0
        %v6126 = vpop.f32.mrb[0].mxu0
        %v6127 = vadd.f32 0.0, %v6126
        %v6128 = vpop.f32.mrb[0].mxu0
        %6129 = vmatprep.mubr.bf16.mxu0 0
        %6130 = vmatmul.mubr.bf16.gmra.mrb[0].mxu0 %v6003
        %v6131 = vpop.f32.mrb[0].mxu0
        %v6132 = vadd.f32 0.0, %v6131
        %v6133 = vpop.f32.mrb[0].mxu0
        %v6134 = vpop.f32.mrb[0].mxu0
        %v6135 = vadd.f32 0.0, %v6134
        %v6136 = vpop.f32.mrb[0].mxu0
        %6137 = vmatprep.mubr.bf16.mxu0 0
        %6138 = vmatmul.mubr.bf16.gmra.mrb[0].mxu0 %v6006
        %v6139 = vpop.f32.mrb[0].mxu0
        %v6140 = vadd.f32 0.0, %v6139
        %v6141 = vpop.f32.mrb[0].mxu0
        %v6142 = vpop.f32.mrb[0].mxu0
        %v6143 = vadd.f32 0.0, %v6142
        %v6144 = vpop.f32.mrb[0].mxu0
        %6145 = vmatprep.mubr.bf16.mxu0 0
        %6146 = vmatmul.mubr.bf16.gmra.mrb[0].mxu0 %v6009
        %v6147 = vpop.f32.mrb[0].mxu0
        %v6148 = vadd.f32 0.0, %v6147
        %v6149 = vpop.f32.mrb[0].mxu0
        %v6150 = vpop.f32.mrb[0].mxu0
        %v6151 = vadd.f32 0.0, %v6150
        %v6152 = vpop.f32.mrb[0].mxu0
        %6153 = vmatprep.mubr.bf16.mxu0 0
        %6154 = vmatmul.mubr.bf16.gmra.mrb[0].mxu0 %v6012
        %v6155 = vpop.f32.mrb[0].mxu0
        %v6156 = vadd.f32 0.0, %v6155
        %v6157 = vpop.f32.mrb[0].mxu0
        %v6158 = vpop.f32.mrb[0].mxu0
        %v6159 = vadd.f32 0.0, %v6158
        %v6160 = vpop.f32.mrb[0].mxu0
        %6161 = vdwg.mxu0
        %v6162 = vadd.f32 %v5928, %v6052
        %v6163 = vadd.f32 %v5929, %v6055
        %v6164 = vadd.f32 %v5930, %v6060
        %v6165 = vadd.f32 %v5931, %v6063
        %v6166 = vadd.f32 %v5932, %v6068
        %v6167 = vadd.f32 %v5933, %v6071
        %v6168 = vadd.f32 %v5934, %v6076
        %v6169 = vadd.f32 %v5935, %v6079
        %v6170 = vadd.f32 %v5936, %v6084
        %v6171 = vadd.f32 %v5937, %v6087
        %v6172 = vadd.f32 %v5938, %v6092
        %v6173 = vadd.f32 %v5939, %v6095
        %v6174 = vadd.f32 %v5940, %v6100
        %v6175 = vadd.f32 %v5941, %v6103
        %v6176 = vadd.f32 %v5942, %v6108
        %v6177 = vadd.f32 %v5943, %v6111
        %v6178 = vadd.f32 %v5944, %v6116
        %v6179 = vadd.f32 %v5945, %v6119
        %v6180 = vadd.f32 %v5946, %v6124
        %v6181 = vadd.f32 %v5947, %v6127
        %v6182 = vadd.f32 %v5948, %v6132
        %v6183 = vadd.f32 %v5949, %v6135
        %v6184 = vadd.f32 %v5950, %v6140
        %v6185 = vadd.f32 %v5951, %v6143
        %v6186 = vadd.f32 %v5952, %v6148
        %v6187 = vadd.f32 %v5953, %v6151
        %v6188 = vadd.f32 %v5954, %v6156
        %v6189 = vadd.f32 %v5955, %v6159
        %s6190 = scalar_lea.vmem [#allocation9], 28
        %v6191 = vld [vmem:[%s6190] sm:$0xf]
        %v6193 = vsel %vm609, %v6191, 0
        %6195 = vmatprep.subr.bf16.mxu0 0
        %6196 = vmatpush1.bf16.msra.mxu0 %v6193
        %6197 = vmatprep.subr.bf16.mxu0 0
        %6198 = vmatpush1.bf16.msra.mxu0 0
        %6199 = vmatprep.subr.bf16.mxu0 0
        %6200 = vmatpush1.bf16.msra.mxu0 0
        %6201 = vmatprep.subr.bf16.mxu0 0
        %6202 = vmatpush1.bf16.msra.mxu0 0
        %6203 = vmatprep.subr.bf16.mxu0 0
        %6204 = vmatpush1.bf16.msra.mxu0 0
        %6205 = vmatprep.subr.bf16.mxu0 0
        %6206 = vmatpush1.bf16.msra.mxu0 0
        %6207 = vmatprep.subr.bf16.mxu0 0
        %6208 = vmatpush1.bf16.msra.mxu0 0
        %6209 = vmatprep.subr.bf16.mxu0 0
        %6210 = vmatpush1.bf16.msra.mxu0 0
        %6211 = vmatprep.subr.bf16.mxu0 0
        %6212 = vmatpush1.bf16.msra.mxu0 0
        %6213 = vmatprep.subr.bf16.mxu0 0
        %6214 = vmatpush1.bf16.msra.mxu0 0
        %6215 = vmatprep.subr.bf16.mxu0 0
        %6216 = vmatpush1.bf16.msra.mxu0 0
        %6217 = vmatprep.subr.bf16.mxu0 0
        %6218 = vmatpush1.bf16.msra.mxu0 0
        %6219 = vmatprep.subr.bf16.mxu0 0
        %6220 = vmatpush1.bf16.msra.mxu0 0
        %6221 = vmatprep.subr.bf16.mxu0 0
        %6222 = vmatpush1.bf16.msra.mxu0 0
        %6223 = vmatprep.subr.bf16.mxu0 0
        %6224 = vmatpush1.bf16.msra.mxu0 0
        %6225 = vmatprep.subr.bf16.mxu0 0
        %6226 = vmatpush1.bf16.msra.mxu0 0
        %6227 = vmatprep.mubr.bf16.mxu0 0
        %6228 = vmatmul.mubr.bf16.gmra.mrb[0].mxu0 %v5973
        %v6229 = vpop.f32.mrb[0].mxu0
        %v6230 = vadd.f32 0.0, %v6229
        %v6231 = vpop.f32.mrb[0].mxu0
        %v6232 = vpop.f32.mrb[0].mxu0
        %v6233 = vadd.f32 0.0, %v6232
        %v6234 = vpop.f32.mrb[0].mxu0
        %6235 = vmatprep.mubr.bf16.mxu0 0
        %6236 = vmatmul.mubr.bf16.gmra.mrb[0].mxu0 %v5976
        %v6237 = vpop.f32.mrb[0].mxu0
        %v6238 = vadd.f32 0.0, %v6237
        %v6239 = vpop.f32.mrb[0].mxu0
        %v6240 = vpop.f32.mrb[0].mxu0
        %v6241 = vadd.f32 0.0, %v6240
        %v6242 = vpop.f32.mrb[0].mxu0
        %6243 = vmatprep.mubr.bf16.mxu0 0
        %6244 = vmatmul.mubr.bf16.gmra.mrb[0].mxu0 %v5979
        %v6245 = vpop.f32.mrb[0].mxu0
        %v6246 = vadd.f32 0.0, %v6245
        %v6247 = vpop.f32.mrb[0].mxu0
        %v6248 = vpop.f32.mrb[0].mxu0
        %v6249 = vadd.f32 0.0, %v6248
        %v6250 = vpop.f32.mrb[0].mxu0
        %6251 = vmatprep.mubr.bf16.mxu0 0
        %6252 = vmatmul.mubr.bf16.gmra.mrb[0].mxu0 %v5982
        %v6253 = vpop.f32.mrb[0].mxu0
        %v6254 = vadd.f32 0.0, %v6253
        %v6255 = vpop.f32.mrb[0].mxu0
        %v6256 = vpop.f32.mrb[0].mxu0
        %v6257 = vadd.f32 0.0, %v6256
        %v6258 = vpop.f32.mrb[0].mxu0
        %6259 = vmatprep.mubr.bf16.mxu0 0
        %6260 = vmatmul.mubr.bf16.gmra.mrb[0].mxu0 %v5985
        %v6261 = vpop.f32.mrb[0].mxu0
        %v6262 = vadd.f32 0.0, %v6261
        %v6263 = vpop.f32.mrb[0].mxu0
        %v6264 = vpop.f32.mrb[0].mxu0
        %v6265 = vadd.f32 0.0, %v6264
        %v6266 = vpop.f32.mrb[0].mxu0
        %6267 = vmatprep.mubr.bf16.mxu0 0
        %6268 = vmatmul.mubr.bf16.gmra.mrb[0].mxu0 %v5988
        %v6269 = vpop.f32.mrb[0].mxu0
        %v6270 = vadd.f32 0.0, %v6269
        %v6271 = vpop.f32.mrb[0].mxu0
        %v6272 = vpop.f32.mrb[0].mxu0
        %v6273 = vadd.f32 0.0, %v6272
        %v6274 = vpop.f32.mrb[0].mxu0
        %6275 = vmatprep.mubr.bf16.mxu0 0
        %6276 = vmatmul.mubr.bf16.gmra.mrb[0].mxu0 %v5991
        %v6277 = vpop.f32.mrb[0].mxu0
        %v6278 = vadd.f32 0.0, %v6277
        %v6279 = vpop.f32.mrb[0].mxu0
        %v6280 = vpop.f32.mrb[0].mxu0
        %v6281 = vadd.f32 0.0, %v6280
        %v6282 = vpop.f32.mrb[0].mxu0
        %6283 = vmatprep.mubr.bf16.mxu0 0
        %6284 = vmatmul.mubr.bf16.gmra.mrb[0].mxu0 %v5994
        %v6285 = vpop.f32.mrb[0].mxu0
        %v6286 = vadd.f32 0.0, %v6285
        %v6287 = vpop.f32.mrb[0].mxu0
        %v6288 = vpop.f32.mrb[0].mxu0
        %v6289 = vadd.f32 0.0, %v6288
        %v6290 = vpop.f32.mrb[0].mxu0
        %6291 = vmatprep.mubr.bf16.mxu0 0
        %6292 = vmatmul.mubr.bf16.gmra.mrb[0].mxu0 %v5997
        %v6293 = vpop.f32.mrb[0].mxu0
        %v6294 = vadd.f32 0.0, %v6293
        %v6295 = vpop.f32.mrb[0].mxu0
        %v6296 = vpop.f32.mrb[0].mxu0
        %v6297 = vadd.f32 0.0, %v6296
        %v6298 = vpop.f32.mrb[0].mxu0
        %6299 = vmatprep.mubr.bf16.mxu0 0
        %6300 = vmatmul.mubr.bf16.gmra.mrb[0].mxu0 %v6000
        %v6301 = vpop.f32.mrb[0].mxu0
        %v6302 = vadd.f32 0.0, %v6301
        %v6303 = vpop.f32.mrb[0].mxu0
        %v6304 = vpop.f32.mrb[0].mxu0
        %v6305 = vadd.f32 0.0, %v6304
        %v6306 = vpop.f32.mrb[0].mxu0
        %6307 = vmatprep.mubr.bf16.mxu0 0
        %6308 = vmatmul.mubr.bf16.gmra.mrb[0].mxu0 %v6003
        %v6309 = vpop.f32.mrb[0].mxu0
        %v6310 = vadd.f32 0.0, %v6309
        %v6311 = vpop.f32.mrb[0].mxu0
        %v6312 = vpop.f32.mrb[0].mxu0
        %v6313 = vadd.f32 0.0, %v6312
        %v6314 = vpop.f32.mrb[0].mxu0
        %6315 = vmatprep.mubr.bf16.mxu0 0
        %6316 = vmatmul.mubr.bf16.gmra.mrb[0].mxu0 %v6006
        %v6317 = vpop.f32.mrb[0].mxu0
        %v6318 = vadd.f32 0.0, %v6317
        %v6319 = vpop.f32.mrb[0].mxu0
        %v6320 = vpop.f32.mrb[0].mxu0
        %v6321 = vadd.f32 0.0, %v6320
        %v6322 = vpop.f32.mrb[0].mxu0
        %6323 = vmatprep.mubr.bf16.mxu0 0
        %6324 = vmatmul.mubr.bf16.gmra.mrb[0].mxu0 %v6009
        %v6325 = vpop.f32.mrb[0].mxu0
        %v6326 = vadd.f32 0.0, %v6325
        %v6327 = vpop.f32.mrb[0].mxu0
        %v6328 = vpop.f32.mrb[0].mxu0
        %v6329 = vadd.f32 0.0, %v6328
        %v6330 = vpop.f32.mrb[0].mxu0
        %6331 = vmatprep.mubr.bf16.mxu0 0
        %6332 = vmatmul.mubr.bf16.gmra.mrb[0].mxu0 %v6012
        %v6333 = vpop.f32.mrb[0].mxu0
        %v6334 = vadd.f32 0.0, %v6333
        %v6335 = vpop.f32.mrb[0].mxu0
        %v6336 = vpop.f32.mrb[0].mxu0
        %v6337 = vadd.f32 0.0, %v6336
        %v6338 = vpop.f32.mrb[0].mxu0
        %6339 = vdwg.mxu0
        %v6340 = vrot.slane %v6230, 1
        %v6341 = vrot.slane %v6233, 1
        %v6342 = vrot.slane %v6238, 1
        %v6343 = vrot.slane %v6241, 1
        %v6344 = vrot.slane %v6246, 1
        %v6345 = vrot.slane %v6249, 1
        %v6346 = vrot.slane %v6254, 1
        %v6347 = vrot.slane %v6257, 1
        %v6348 = vrot.slane %v6262, 1
        %v6349 = vrot.slane %v6265, 1
        %v6350 = vrot.slane %v6270, 1
        %v6351 = vrot.slane %v6273, 1
        %v6352 = vrot.slane %v6278, 1
        %v6353 = vrot.slane %v6281, 1
        %v6354 = vrot.slane %v6286, 1
        %v6355 = vrot.slane %v6289, 1
        %v6356 = vrot.slane %v6294, 1
        %v6357 = vrot.slane %v6297, 1
        %v6358 = vrot.slane %v6302, 1
        %v6359 = vrot.slane %v6305, 1
        %v6360 = vrot.slane %v6310, 1
        %v6361 = vrot.slane %v6313, 1
        %v6362 = vrot.slane %v6318, 1
        %v6363 = vrot.slane %v6321, 1
        %v6364 = vrot.slane %v6326, 1
        %v6365 = vrot.slane %v6329, 1
        %v6366 = vrot.slane %v6334, 1
        %v6367 = vrot.slane %v6337, 1
        %v6368 = vsel %vm4841, %v6366, %v6367
        %v6369 = vsel %vm4841, %v6365, %v6366
        %v6370 = vsel %vm4841, %v6364, %v6365
        %v6371 = vsel %vm4841, %v6363, %v6364
        %v6372 = vsel %vm4841, %v6362, %v6363
        %v6373 = vsel %vm4841, %v6361, %v6362
        %v6374 = vsel %vm4841, %v6360, %v6361
        %v6375 = vsel %vm4841, %v6359, %v6360
        %v6376 = vsel %vm4841, %v6358, %v6359
        %v6377 = vsel %vm4841, %v6357, %v6358
        %v6378 = vsel %vm4841, %v6356, %v6357
        %v6379 = vsel %vm4841, %v6355, %v6356
        %v6380 = vsel %vm4841, %v6354, %v6355
        %v6381 = vsel %vm4841, %v6353, %v6354
        %v6382 = vsel %vm4841, %v6352, %v6353
        %v6383 = vsel %vm4841, %v6351, %v6352
        %v6384 = vsel %vm4841, %v6350, %v6351
        %v6385 = vsel %vm4841, %v6349, %v6350
        %v6386 = vsel %vm4841, %v6348, %v6349
        %v6387 = vsel %vm4841, %v6347, %v6348
        %v6388 = vsel %vm4841, %v6346, %v6347
        %v6389 = vsel %vm4841, %v6345, %v6346
        %v6390 = vsel %vm4841, %v6344, %v6345
        %v6391 = vsel %vm4841, %v6343, %v6344
        %v6392 = vsel %vm4841, %v6342, %v6343
        %v6393 = vsel %vm4841, %v6341, %v6342
        %v6394 = vsel %vm4841, %v6340, %v6341
        %v6395 = vsel %vm4841, %v6367, %v6340
        %v6396 = vadd.f32 %v6162, %v6394
        %v6397 = vadd.f32 %v6163, %v6393
        %v6398 = vadd.f32 %v6164, %v6392
        %v6399 = vadd.f32 %v6165, %v6391
        %v6400 = vadd.f32 %v6166, %v6390
        %v6401 = vadd.f32 %v6167, %v6389
        %v6402 = vadd.f32 %v6168, %v6388
        %v6403 = vadd.f32 %v6169, %v6387
        %v6404 = vadd.f32 %v6170, %v6386
        %v6405 = vadd.f32 %v6171, %v6385
        %v6406 = vadd.f32 %v6172, %v6384
        %v6407 = vadd.f32 %v6173, %v6383
        %v6408 = vadd.f32 %v6174, %v6382
        %v6409 = vadd.f32 %v6175, %v6381
        %v6410 = vadd.f32 %v6176, %v6380
        %v6411 = vadd.f32 %v6177, %v6379
        %v6412 = vadd.f32 %v6178, %v6378
        %v6413 = vadd.f32 %v6179, %v6377
        %v6414 = vadd.f32 %v6180, %v6376
        %v6415 = vadd.f32 %v6181, %v6375
        %v6416 = vadd.f32 %v6182, %v6374
        %v6417 = vadd.f32 %v6183, %v6373
        %v6418 = vadd.f32 %v6184, %v6372
        %v6419 = vadd.f32 %v6185, %v6371
        %v6420 = vadd.f32 %v6186, %v6370
        %v6421 = vadd.f32 %v6187, %v6369
        %v6422 = vadd.f32 %v6188, %v6368
        %v6423 = vadd.f32 %v6189, %v6395
        %s6424 = scalar_lea.vmem [#allocation9], 32
        %v6425 = vld [vmem:[%s6424] sm:$0xf]
        %v6427 = vsel %vm609, %v6425, 0
        %6429 = vmatprep.subr.bf16.mxu0 0
        %6430 = vmatpush1.bf16.msra.mxu0 %v6427
        %6431 = vmatprep.subr.bf16.mxu0 0
        %6432 = vmatpush1.bf16.msra.mxu0 0
        %6433 = vmatprep.subr.bf16.mxu0 0
        %6434 = vmatpush1.bf16.msra.mxu0 0
        %6435 = vmatprep.subr.bf16.mxu0 0
        %6436 = vmatpush1.bf16.msra.mxu0 0
        %6437 = vmatprep.subr.bf16.mxu0 0
        %6438 = vmatpush1.bf16.msra.mxu0 0
        %6439 = vmatprep.subr.bf16.mxu0 0
        %6440 = vmatpush1.bf16.msra.mxu0 0
        %6441 = vmatprep.subr.bf16.mxu0 0
        %6442 = vmatpush1.bf16.msra.mxu0 0
        %6443 = vmatprep.subr.bf16.mxu0 0
        %6444 = vmatpush1.bf16.msra.mxu0 0
        %6445 = vmatprep.subr.bf16.mxu0 0
        %6446 = vmatpush1.bf16.msra.mxu0 0
        %6447 = vmatprep.subr.bf16.mxu0 0
        %6448 = vmatpush1.bf16.msra.mxu0 0
        %6449 = vmatprep.subr.bf16.mxu0 0
        %6450 = vmatpush1.bf16.msra.mxu0 0
        %6451 = vmatprep.subr.bf16.mxu0 0
        %6452 = vmatpush1.bf16.msra.mxu0 0
        %6453 = vmatprep.subr.bf16.mxu0 0
        %6454 = vmatpush1.bf16.msra.mxu0 0
        %6455 = vmatprep.subr.bf16.mxu0 0
        %6456 = vmatpush1.bf16.msra.mxu0 0
        %6457 = vmatprep.subr.bf16.mxu0 0
        %6458 = vmatpush1.bf16.msra.mxu0 0
        %6459 = vmatprep.subr.bf16.mxu0 0
        %6460 = vmatpush1.bf16.msra.mxu0 0
        %6461 = vmatprep.mubr.bf16.mxu0 0
        %6462 = vmatmul.mubr.bf16.gmra.mrb[0].mxu0 %v5973
        %v6463 = vpop.f32.mrb[0].mxu0
        %v6464 = vadd.f32 0.0, %v6463
        %v6465 = vpop.f32.mrb[0].mxu0
        %v6466 = vpop.f32.mrb[0].mxu0
        %v6467 = vadd.f32 0.0, %v6466
        %v6468 = vpop.f32.mrb[0].mxu0
        %6469 = vmatprep.mubr.bf16.mxu0 0
        %6470 = vmatmul.mubr.bf16.gmra.mrb[0].mxu0 %v5976
        %v6471 = vpop.f32.mrb[0].mxu0
        %v6472 = vadd.f32 0.0, %v6471
        %v6473 = vpop.f32.mrb[0].mxu0
        %v6474 = vpop.f32.mrb[0].mxu0
        %v6475 = vadd.f32 0.0, %v6474
        %v6476 = vpop.f32.mrb[0].mxu0
        %6477 = vmatprep.mubr.bf16.mxu0 0
        %6478 = vmatmul.mubr.bf16.gmra.mrb[0].mxu0 %v5979
        %v6479 = vpop.f32.mrb[0].mxu0
        %v6480 = vadd.f32 0.0, %v6479
        %v6481 = vpop.f32.mrb[0].mxu0
        %v6482 = vpop.f32.mrb[0].mxu0
        %v6483 = vadd.f32 0.0, %v6482
        %v6484 = vpop.f32.mrb[0].mxu0
        %6485 = vmatprep.mubr.bf16.mxu0 0
        %6486 = vmatmul.mubr.bf16.gmra.mrb[0].mxu0 %v5982
        %v6487 = vpop.f32.mrb[0].mxu0
        %v6488 = vadd.f32 0.0, %v6487
        %v6489 = vpop.f32.mrb[0].mxu0
        %v6490 = vpop.f32.mrb[0].mxu0
        %v6491 = vadd.f32 0.0, %v6490
        %v6492 = vpop.f32.mrb[0].mxu0
        %6493 = vmatprep.mubr.bf16.mxu0 0
        %6494 = vmatmul.mubr.bf16.gmra.mrb[0].mxu0 %v5985
        %v6495 = vpop.f32.mrb[0].mxu0
        %v6496 = vadd.f32 0.0, %v6495
        %v6497 = vpop.f32.mrb[0].mxu0
        %v6498 = vpop.f32.mrb[0].mxu0
        %v6499 = vadd.f32 0.0, %v6498
        %v6500 = vpop.f32.mrb[0].mxu0
        %6501 = vmatprep.mubr.bf16.mxu0 0
        %6502 = vmatmul.mubr.bf16.gmra.mrb[0].mxu0 %v5988
        %v6503 = vpop.f32.mrb[0].mxu0
        %v6504 = vadd.f32 0.0, %v6503
        %v6505 = vpop.f32.mrb[0].mxu0
        %v6506 = vpop.f32.mrb[0].mxu0
        %v6507 = vadd.f32 0.0, %v6506
        %v6508 = vpop.f32.mrb[0].mxu0
        %6509 = vmatprep.mubr.bf16.mxu0 0
        %6510 = vmatmul.mubr.bf16.gmra.mrb[0].mxu0 %v5991
        %v6511 = vpop.f32.mrb[0].mxu0
        %v6512 = vadd.f32 0.0, %v6511
        %v6513 = vpop.f32.mrb[0].mxu0
        %v6514 = vpop.f32.mrb[0].mxu0
        %v6515 = vadd.f32 0.0, %v6514
        %v6516 = vpop.f32.mrb[0].mxu0
        %6517 = vmatprep.mubr.bf16.mxu0 0
        %6518 = vmatmul.mubr.bf16.gmra.mrb[0].mxu0 %v5994
        %v6519 = vpop.f32.mrb[0].mxu0
        %v6520 = vadd.f32 0.0, %v6519
        %v6521 = vpop.f32.mrb[0].mxu0
        %v6522 = vpop.f32.mrb[0].mxu0
        %v6523 = vadd.f32 0.0, %v6522
        %v6524 = vpop.f32.mrb[0].mxu0
        %6525 = vmatprep.mubr.bf16.mxu0 0
        %6526 = vmatmul.mubr.bf16.gmra.mrb[0].mxu0 %v5997
        %v6527 = vpop.f32.mrb[0].mxu0
        %v6528 = vadd.f32 0.0, %v6527
        %v6529 = vpop.f32.mrb[0].mxu0
        %v6530 = vpop.f32.mrb[0].mxu0
        %v6531 = vadd.f32 0.0, %v6530
        %v6532 = vpop.f32.mrb[0].mxu0
        %6533 = vmatprep.mubr.bf16.mxu0 0
        %6534 = vmatmul.mubr.bf16.gmra.mrb[0].mxu0 %v6000
        %v6535 = vpop.f32.mrb[0].mxu0
        %v6536 = vadd.f32 0.0, %v6535
        %v6537 = vpop.f32.mrb[0].mxu0
        %v6538 = vpop.f32.mrb[0].mxu0
        %v6539 = vadd.f32 0.0, %v6538
        %v6540 = vpop.f32.mrb[0].mxu0
        %6541 = vmatprep.mubr.bf16.mxu0 0
        %6542 = vmatmul.mubr.bf16.gmra.mrb[0].mxu0 %v6003
        %v6543 = vpop.f32.mrb[0].mxu0
        %v6544 = vadd.f32 0.0, %v6543
        %v6545 = vpop.f32.mrb[0].mxu0
        %v6546 = vpop.f32.mrb[0].mxu0
        %v6547 = vadd.f32 0.0, %v6546
        %v6548 = vpop.f32.mrb[0].mxu0
        %6549 = vmatprep.mubr.bf16.mxu0 0
        %6550 = vmatmul.mubr.bf16.gmra.mrb[0].mxu0 %v6006
        %v6551 = vpop.f32.mrb[0].mxu0
        %v6552 = vadd.f32 0.0, %v6551
        %v6553 = vpop.f32.mrb[0].mxu0
        %v6554 = vpop.f32.mrb[0].mxu0
        %v6555 = vadd.f32 0.0, %v6554
        %v6556 = vpop.f32.mrb[0].mxu0
        %6557 = vmatprep.mubr.bf16.mxu0 0
        %6558 = vmatmul.mubr.bf16.gmra.mrb[0].mxu0 %v6009
        %v6559 = vpop.f32.mrb[0].mxu0
        %v6560 = vadd.f32 0.0, %v6559
        %v6561 = vpop.f32.mrb[0].mxu0
        %v6562 = vpop.f32.mrb[0].mxu0
        %v6563 = vadd.f32 0.0, %v6562
        %v6564 = vpop.f32.mrb[0].mxu0
        %6565 = vmatprep.mubr.bf16.mxu0 0
        %6566 = vmatmul.mubr.bf16.gmra.mrb[0].mxu0 %v6012
        %v6567 = vpop.f32.mrb[0].mxu0
        %v6568 = vadd.f32 0.0, %v6567
        %v6569 = vpop.f32.mrb[0].mxu0
        %v6570 = vpop.f32.mrb[0].mxu0
        %v6571 = vadd.f32 0.0, %v6570
        %v6572 = vpop.f32.mrb[0].mxu0
        %6573 = vdwg.mxu0
        %v6574 = vrot.slane %v6464, 2
        %v6575 = vrot.slane %v6467, 2
        %v6576 = vrot.slane %v6472, 2
        %v6577 = vrot.slane %v6475, 2
        %v6578 = vrot.slane %v6480, 2
        %v6579 = vrot.slane %v6483, 2
        %v6580 = vrot.slane %v6488, 2
        %v6581 = vrot.slane %v6491, 2
        %v6582 = vrot.slane %v6496, 2
        %v6583 = vrot.slane %v6499, 2
        %v6584 = vrot.slane %v6504, 2
        %v6585 = vrot.slane %v6507, 2
        %v6586 = vrot.slane %v6512, 2
        %v6587 = vrot.slane %v6515, 2
        %v6588 = vrot.slane %v6520, 2
        %v6589 = vrot.slane %v6523, 2
        %v6590 = vrot.slane %v6528, 2
        %v6591 = vrot.slane %v6531, 2
        %v6592 = vrot.slane %v6536, 2
        %v6593 = vrot.slane %v6539, 2
        %v6594 = vrot.slane %v6544, 2
        %v6595 = vrot.slane %v6547, 2
        %v6596 = vrot.slane %v6552, 2
        %v6597 = vrot.slane %v6555, 2
        %v6598 = vrot.slane %v6560, 2
        %v6599 = vrot.slane %v6563, 2
        %v6600 = vrot.slane %v6568, 2
        %v6601 = vrot.slane %v6571, 2
        %v6602 = vsel %vm5196, %v6600, %v6601
        %v6603 = vsel %vm5196, %v6599, %v6600
        %v6604 = vsel %vm5196, %v6598, %v6599
        %v6605 = vsel %vm5196, %v6597, %v6598
        %v6606 = vsel %vm5196, %v6596, %v6597
        %v6607 = vsel %vm5196, %v6595, %v6596
        %v6608 = vsel %vm5196, %v6594, %v6595
        %v6609 = vsel %vm5196, %v6593, %v6594
        %v6610 = vsel %vm5196, %v6592, %v6593
        %v6611 = vsel %vm5196, %v6591, %v6592
        %v6612 = vsel %vm5196, %v6590, %v6591
        %v6613 = vsel %vm5196, %v6589, %v6590
        %v6614 = vsel %vm5196, %v6588, %v6589
        %v6615 = vsel %vm5196, %v6587, %v6588
        %v6616 = vsel %vm5196, %v6586, %v6587
        %v6617 = vsel %vm5196, %v6585, %v6586
        %v6618 = vsel %vm5196, %v6584, %v6585
        %v6619 = vsel %vm5196, %v6583, %v6584
        %v6620 = vsel %vm5196, %v6582, %v6583
        %v6621 = vsel %vm5196, %v6581, %v6582
        %v6622 = vsel %vm5196, %v6580, %v6581
        %v6623 = vsel %vm5196, %v6579, %v6580
        %v6624 = vsel %vm5196, %v6578, %v6579
        %v6625 = vsel %vm5196, %v6577, %v6578
        %v6626 = vsel %vm5196, %v6576, %v6577
        %v6627 = vsel %vm5196, %v6575, %v6576
        %v6628 = vsel %vm5196, %v6574, %v6575
        %v6629 = vsel %vm5196, %v6601, %v6574
        %v6630 = vadd.f32 %v6396, %v6628
        %v6631 = vadd.f32 %v6397, %v6627
        %v6632 = vadd.f32 %v6398, %v6626
        %v6633 = vadd.f32 %v6399, %v6625
        %v6634 = vadd.f32 %v6400, %v6624
        %v6635 = vadd.f32 %v6401, %v6623
        %v6636 = vadd.f32 %v6402, %v6622
        %v6637 = vadd.f32 %v6403, %v6621
        %v6638 = vadd.f32 %v6404, %v6620
        %v6639 = vadd.f32 %v6405, %v6619
        %v6640 = vadd.f32 %v6406, %v6618
        %v6641 = vadd.f32 %v6407, %v6617
        %v6642 = vadd.f32 %v6408, %v6616
        %v6643 = vadd.f32 %v6409, %v6615
        %v6644 = vadd.f32 %v6410, %v6614
        %v6645 = vadd.f32 %v6411, %v6613
        %v6646 = vadd.f32 %v6412, %v6612
        %v6647 = vadd.f32 %v6413, %v6611
        %v6648 = vadd.f32 %v6414, %v6610
        %v6649 = vadd.f32 %v6415, %v6609
        %v6650 = vadd.f32 %v6416, %v6608
        %v6651 = vadd.f32 %v6417, %v6607
        %v6652 = vadd.f32 %v6418, %v6606
        %v6653 = vadd.f32 %v6419, %v6605
        %v6654 = vadd.f32 %v6420, %v6604
        %v6655 = vadd.f32 %v6421, %v6603
        %v6656 = vadd.f32 %v6422, %v6602
        %v6657 = vadd.f32 %v6423, %v6629
        %v6658 = vld [vmem:[#allocation11] sm:$0x1]
        %v6660 = vlaneseq
        %v6661 = vshrl.u32 %v6660, 7
        %v6662 = vsub.s32 0, %v6661
        %v6663 = vrot.slane %v6658, %v6662
        %v6665 = vadd.f32 %v6630, %v6663
        %v6666 = vadd.f32 %v6631, %v6663
        %v6667 = vadd.f32 %v6632, %v6663
        %v6668 = vadd.f32 %v6633, %v6663
        %v6669 = vadd.f32 %v6634, %v6663
        %v6670 = vadd.f32 %v6635, %v6663
        %v6671 = vadd.f32 %v6636, %v6663
        %v6672 = vadd.f32 %v6637, %v6663
        %v6673 = vadd.f32 %v6638, %v6663
        %v6674 = vadd.f32 %v6639, %v6663
        %v6675 = vadd.f32 %v6640, %v6663
        %v6676 = vadd.f32 %v6641, %v6663
        %v6677 = vadd.f32 %v6642, %v6663
        %v6678 = vadd.f32 %v6643, %v6663
        %v6679 = vadd.f32 %v6644, %v6663
        %v6680 = vadd.f32 %v6645, %v6663
        %v6681 = vadd.f32 %v6646, %v6663
        %v6682 = vadd.f32 %v6647, %v6663
        %v6683 = vadd.f32 %v6648, %v6663
        %v6684 = vadd.f32 %v6649, %v6663
        %v6685 = vadd.f32 %v6650, %v6663
        %v6686 = vadd.f32 %v6651, %v6663
        %v6687 = vadd.f32 %v6652, %v6663
        %v6688 = vadd.f32 %v6653, %v6663
        %v6689 = vadd.f32 %v6654, %v6663
        %v6690 = vadd.f32 %v6655, %v6663
        %v6691 = vadd.f32 %v6656, %v6663
        %v6692 = vadd.f32 %v6657, %v6663
        %v6693 = vmax.f32 %v6665, 0.0
        %v6694 = vmax.f32 %v6666, 0.0
        %v6695 = vmax.f32 %v6667, 0.0
        %v6696 = vmax.f32 %v6668, 0.0
        %v6697 = vmax.f32 %v6669, 0.0
        %v6698 = vmax.f32 %v6670, 0.0
        %v6699 = vmax.f32 %v6671, 0.0
        %v6700 = vmax.f32 %v6672, 0.0
        %v6701 = vmax.f32 %v6673, 0.0
        %v6702 = vmax.f32 %v6674, 0.0
        %v6703 = vmax.f32 %v6675, 0.0
        %v6704 = vmax.f32 %v6676, 0.0
        %v6705 = vmax.f32 %v6677, 0.0
        %v6706 = vmax.f32 %v6678, 0.0
        %v6707 = vmax.f32 %v6679, 0.0
        %v6708 = vmax.f32 %v6680, 0.0
        %v6709 = vmax.f32 %v6681, 0.0
        %v6710 = vmax.f32 %v6682, 0.0
        %v6711 = vmax.f32 %v6683, 0.0
        %v6712 = vmax.f32 %v6684, 0.0
        %v6713 = vmax.f32 %v6685, 0.0
        %v6714 = vmax.f32 %v6686, 0.0
        %v6715 = vmax.f32 %v6687, 0.0
        %v6716 = vmax.f32 %v6688, 0.0
        %v6717 = vmax.f32 %v6689, 0.0
        %v6718 = vmax.f32 %v6690, 0.0
        %v6719 = vmax.f32 %v6691, 0.0
        %v6720 = vmax.f32 %v6692, 0.0
        %v6721 = vpack.c.bf16 %v6694, %v6693
        %v6722 = vpack.c.bf16 %v6696, %v6695
        %v6723 = vpack.c.bf16 %v6698, %v6697
        %v6724 = vpack.c.bf16 %v6700, %v6699
        %v6725 = vpack.c.bf16 %v6702, %v6701
        %v6726 = vpack.c.bf16 %v6704, %v6703
        %v6727 = vpack.c.bf16 %v6706, %v6705
        %v6728 = vpack.c.bf16 %v6708, %v6707
        %v6729 = vpack.c.bf16 %v6710, %v6709
        %v6730 = vpack.c.bf16 %v6712, %v6711
        %v6731 = vpack.c.bf16 %v6714, %v6713
        %v6732 = vpack.c.bf16 %v6716, %v6715
        %v6733 = vpack.c.bf16 %v6718, %v6717
        %v6734 = vpack.c.bf16 %v6720, %v6719
        %v6735 = vld [vmem:[#allocation12] sm:$0x3]
        %s6736 = scalar_lea.vmem [#allocation12], 2
        %v6737 = vld [vmem:[%s6736] sm:$0x3]
        %vm6738 = vcmask 31744
        %v6740 = vsel %vm6738, %v6721, 0
        %v6743 = vsel %vm6738, %v6722, 0
        %v6746 = vsel %vm6738, %v6723, 0
        %v6749 = vsel %vm6738, %v6724, 0
        %v6752 = vsel %vm6738, %v6725, 0
        %v6755 = vsel %vm6738, %v6726, 0
        %v6758 = vsel %vm6738, %v6727, 0
        %v6761 = vsel %vm6738, %v6728, 0
        %v6764 = vsel %vm6738, %v6729, 0
        %v6767 = vsel %vm6738, %v6730, 0
        %v6770 = vsel %vm6738, %v6731, 0
        %v6773 = vsel %vm6738, %v6732, 0
        %vm6775 = vcmask 1041408
        %v6777 = vsel %vm6775, %v6737, 0
        %6779 = vmatprep.subr.bf16.mxu0 0
        %6780 = vmatpush1.bf16.msra.mxu0 %v6777
        %6781 = vmatprep.subr.bf16.mxu0 0
        %6782 = vmatpush1.bf16.msra.mxu0 0
        %6783 = vmatprep.subr.bf16.mxu0 0
        %6784 = vmatpush1.bf16.msra.mxu0 0
        %6785 = vmatprep.subr.bf16.mxu0 0
        %6786 = vmatpush1.bf16.msra.mxu0 0
        %6787 = vmatprep.subr.bf16.mxu0 0
        %6788 = vmatpush1.bf16.msra.mxu0 0
        %6789 = vmatprep.subr.bf16.mxu0 0
        %6790 = vmatpush1.bf16.msra.mxu0 0
        %6791 = vmatprep.subr.bf16.mxu0 0
        %6792 = vmatpush1.bf16.msra.mxu0 0
        %6793 = vmatprep.subr.bf16.mxu0 0
        %6794 = vmatpush1.bf16.msra.mxu0 0
        %6795 = vmatprep.subr.bf16.mxu0 0
        %6796 = vmatpush1.bf16.msra.mxu0 0
        %6797 = vmatprep.subr.bf16.mxu0 0
        %6798 = vmatpush1.bf16.msra.mxu0 0
        %6799 = vmatprep.subr.bf16.mxu0 0
        %6800 = vmatpush1.bf16.msra.mxu0 0
        %6801 = vmatprep.subr.bf16.mxu0 0
        %6802 = vmatpush1.bf16.msra.mxu0 0
        %6803 = vmatprep.subr.bf16.mxu0 0
        %6804 = vmatpush1.bf16.msra.mxu0 0
        %6805 = vmatprep.subr.bf16.mxu0 0
        %6806 = vmatpush1.bf16.msra.mxu0 0
        %6807 = vmatprep.subr.bf16.mxu0 0
        %6808 = vmatpush1.bf16.msra.mxu0 0
        %6809 = vmatprep.subr.bf16.mxu0 0
        %6810 = vmatpush1.bf16.msra.mxu0 0
        %6811 = vmatprep.mubr.bf16.mxu0 0
        %6812 = vmatmul.mubr.bf16.gmra.mrb[0].mxu0 %v6740
        %v6813 = vpop.f32.mrb[0].mxu0
        %v6814 = vadd.f32 0.0, %v6813
        %v6815 = vpop.f32.mrb[0].mxu0
        %v6816 = vpop.f32.mrb[0].mxu0
        %v6817 = vadd.f32 0.0, %v6816
        %v6818 = vpop.f32.mrb[0].mxu0
        %6819 = vmatprep.mubr.bf16.mxu0 0
        %6820 = vmatmul.mubr.bf16.gmra.mrb[0].mxu0 %v6743
        %v6821 = vpop.f32.mrb[0].mxu0
        %v6822 = vadd.f32 0.0, %v6821
        %v6823 = vpop.f32.mrb[0].mxu0
        %v6824 = vpop.f32.mrb[0].mxu0
        %v6825 = vadd.f32 0.0, %v6824
        %v6826 = vpop.f32.mrb[0].mxu0
        %6827 = vmatprep.mubr.bf16.mxu0 0
        %6828 = vmatmul.mubr.bf16.gmra.mrb[0].mxu0 %v6746
        %v6829 = vpop.f32.mrb[0].mxu0
        %v6830 = vadd.f32 0.0, %v6829
        %v6831 = vpop.f32.mrb[0].mxu0
        %v6832 = vpop.f32.mrb[0].mxu0
        %v6833 = vadd.f32 0.0, %v6832
        %v6834 = vpop.f32.mrb[0].mxu0
        %6835 = vmatprep.mubr.bf16.mxu0 0
        %6836 = vmatmul.mubr.bf16.gmra.mrb[0].mxu0 %v6749
        %v6837 = vpop.f32.mrb[0].mxu0
        %v6838 = vadd.f32 0.0, %v6837
        %v6839 = vpop.f32.mrb[0].mxu0
        %v6840 = vpop.f32.mrb[0].mxu0
        %v6841 = vadd.f32 0.0, %v6840
        %v6842 = vpop.f32.mrb[0].mxu0
        %6843 = vmatprep.mubr.bf16.mxu0 0
        %6844 = vmatmul.mubr.bf16.gmra.mrb[0].mxu0 %v6752
        %v6845 = vpop.f32.mrb[0].mxu0
        %v6846 = vadd.f32 0.0, %v6845
        %v6847 = vpop.f32.mrb[0].mxu0
        %v6848 = vpop.f32.mrb[0].mxu0
        %v6849 = vadd.f32 0.0, %v6848
        %v6850 = vpop.f32.mrb[0].mxu0
        %6851 = vmatprep.mubr.bf16.mxu0 0
        %6852 = vmatmul.mubr.bf16.gmra.mrb[0].mxu0 %v6755
        %v6853 = vpop.f32.mrb[0].mxu0
        %v6854 = vadd.f32 0.0, %v6853
        %v6855 = vpop.f32.mrb[0].mxu0
        %v6856 = vpop.f32.mrb[0].mxu0
        %v6857 = vadd.f32 0.0, %v6856
        %v6858 = vpop.f32.mrb[0].mxu0
        %6859 = vmatprep.mubr.bf16.mxu0 0
        %6860 = vmatmul.mubr.bf16.gmra.mrb[0].mxu0 %v6758
        %v6861 = vpop.f32.mrb[0].mxu0
        %v6862 = vadd.f32 0.0, %v6861
        %v6863 = vpop.f32.mrb[0].mxu0
        %v6864 = vpop.f32.mrb[0].mxu0
        %v6865 = vadd.f32 0.0, %v6864
        %v6866 = vpop.f32.mrb[0].mxu0
        %6867 = vmatprep.mubr.bf16.mxu0 0
        %6868 = vmatmul.mubr.bf16.gmra.mrb[0].mxu0 %v6761
        %v6869 = vpop.f32.mrb[0].mxu0
        %v6870 = vadd.f32 0.0, %v6869
        %v6871 = vpop.f32.mrb[0].mxu0
        %v6872 = vpop.f32.mrb[0].mxu0
        %v6873 = vadd.f32 0.0, %v6872
        %v6874 = vpop.f32.mrb[0].mxu0
        %6875 = vmatprep.mubr.bf16.mxu0 0
        %6876 = vmatmul.mubr.bf16.gmra.mrb[0].mxu0 %v6764
        %v6877 = vpop.f32.mrb[0].mxu0
        %v6878 = vadd.f32 0.0, %v6877
        %v6879 = vpop.f32.mrb[0].mxu0
        %v6880 = vpop.f32.mrb[0].mxu0
        %v6881 = vadd.f32 0.0, %v6880
        %v6882 = vpop.f32.mrb[0].mxu0
        %6883 = vmatprep.mubr.bf16.mxu0 0
        %6884 = vmatmul.mubr.bf16.gmra.mrb[0].mxu0 %v6767
        %v6885 = vpop.f32.mrb[0].mxu0
        %v6886 = vadd.f32 0.0, %v6885
        %v6887 = vpop.f32.mrb[0].mxu0
        %v6888 = vpop.f32.mrb[0].mxu0
        %v6889 = vadd.f32 0.0, %v6888
        %v6890 = vpop.f32.mrb[0].mxu0
        %6891 = vmatprep.mubr.bf16.mxu0 0
        %6892 = vmatmul.mubr.bf16.gmra.mrb[0].mxu0 %v6770
        %v6893 = vpop.f32.mrb[0].mxu0
        %v6894 = vadd.f32 0.0, %v6893
        %v6895 = vpop.f32.mrb[0].mxu0
        %v6896 = vpop.f32.mrb[0].mxu0
        %v6897 = vadd.f32 0.0, %v6896
        %v6898 = vpop.f32.mrb[0].mxu0
        %6899 = vmatprep.mubr.bf16.mxu0 0
        %6900 = vmatmul.mubr.bf16.gmra.mrb[0].mxu0 %v6773
        %v6901 = vpop.f32.mrb[0].mxu0
        %v6902 = vadd.f32 0.0, %v6901
        %v6903 = vpop.f32.mrb[0].mxu0
        %v6904 = vpop.f32.mrb[0].mxu0
        %v6905 = vadd.f32 0.0, %v6904
        %v6906 = vpop.f32.mrb[0].mxu0
        %6907 = vdwg.mxu0
        %v6908 = vrot.slane %v6814, 1
        %v6909 = vrot.slane %v6817, 1
        %v6910 = vrot.slane %v6822, 1
        %v6911 = vrot.slane %v6825, 1
        %v6912 = vrot.slane %v6830, 1
        %v6913 = vrot.slane %v6833, 1
        %v6914 = vrot.slane %v6838, 1
        %v6915 = vrot.slane %v6841, 1
        %v6916 = vrot.slane %v6846, 1
        %v6917 = vrot.slane %v6849, 1
        %v6918 = vrot.slane %v6854, 1
        %v6919 = vrot.slane %v6857, 1
        %v6920 = vrot.slane %v6862, 1
        %v6921 = vrot.slane %v6865, 1
        %v6922 = vrot.slane %v6870, 1
        %v6923 = vrot.slane %v6873, 1
        %v6924 = vrot.slane %v6878, 1
        %v6925 = vrot.slane %v6881, 1
        %v6926 = vrot.slane %v6886, 1
        %v6927 = vrot.slane %v6889, 1
        %v6928 = vrot.slane %v6894, 1
        %v6929 = vrot.slane %v6897, 1
        %v6930 = vrot.slane %v6902, 1
        %v6931 = vrot.slane %v6905, 1
        %v6932 = vsel %vm4841, %v6930, %v6931
        %v6933 = vsel %vm4841, %v6929, %v6930
        %v6934 = vsel %vm4841, %v6928, %v6929
        %v6935 = vsel %vm4841, %v6927, %v6928
        %v6936 = vsel %vm4841, %v6926, %v6927
        %v6937 = vsel %vm4841, %v6925, %v6926
        %v6938 = vsel %vm4841, %v6924, %v6925
        %v6939 = vsel %vm4841, %v6923, %v6924
        %v6940 = vsel %vm4841, %v6922, %v6923
        %v6941 = vsel %vm4841, %v6921, %v6922
        %v6942 = vsel %vm4841, %v6920, %v6921
        %v6943 = vsel %vm4841, %v6919, %v6920
        %v6944 = vsel %vm4841, %v6918, %v6919
        %v6945 = vsel %vm4841, %v6917, %v6918
        %v6946 = vsel %vm4841, %v6916, %v6917
        %v6947 = vsel %vm4841, %v6915, %v6916
        %v6948 = vsel %vm4841, %v6914, %v6915
        %v6949 = vsel %vm4841, %v6913, %v6914
        %v6950 = vsel %vm4841, %v6912, %v6913
        %v6951 = vsel %vm4841, %v6911, %v6912
        %v6952 = vsel %vm4841, %v6910, %v6911
        %v6953 = vsel %vm4841, %v6909, %v6910
        %v6954 = vsel %vm4841, %v6908, %v6909
        %v6955 = vsel %vm4841, %v6931, %v6908
        %v6957 = vsel %vm6775, %v6735, 0
        %6959 = vmatprep.subr.bf16.mxu0 0
        %6960 = vmatpush1.bf16.msra.mxu0 %v6957
        %6961 = vmatprep.subr.bf16.mxu0 0
        %6962 = vmatpush1.bf16.msra.mxu0 0
        %6963 = vmatprep.subr.bf16.mxu0 0
        %6964 = vmatpush1.bf16.msra.mxu0 0
        %6965 = vmatprep.subr.bf16.mxu0 0
        %6966 = vmatpush1.bf16.msra.mxu0 0
        %6967 = vmatprep.subr.bf16.mxu0 0
        %6968 = vmatpush1.bf16.msra.mxu0 0
        %6969 = vmatprep.subr.bf16.mxu0 0
        %6970 = vmatpush1.bf16.msra.mxu0 0
        %6971 = vmatprep.subr.bf16.mxu0 0
        %6972 = vmatpush1.bf16.msra.mxu0 0
        %6973 = vmatprep.subr.bf16.mxu0 0
        %6974 = vmatpush1.bf16.msra.mxu0 0
        %6975 = vmatprep.subr.bf16.mxu0 0
        %6976 = vmatpush1.bf16.msra.mxu0 0
        %6977 = vmatprep.subr.bf16.mxu0 0
        %6978 = vmatpush1.bf16.msra.mxu0 0
        %6979 = vmatprep.subr.bf16.mxu0 0
        %6980 = vmatpush1.bf16.msra.mxu0 0
        %6981 = vmatprep.subr.bf16.mxu0 0
        %6982 = vmatpush1.bf16.msra.mxu0 0
        %6983 = vmatprep.subr.bf16.mxu0 0
        %6984 = vmatpush1.bf16.msra.mxu0 0
        %6985 = vmatprep.subr.bf16.mxu0 0
        %6986 = vmatpush1.bf16.msra.mxu0 0
        %6987 = vmatprep.subr.bf16.mxu0 0
        %6988 = vmatpush1.bf16.msra.mxu0 0
        %6989 = vmatprep.subr.bf16.mxu0 0
        %6990 = vmatpush1.bf16.msra.mxu0 0
        %6991 = vmatprep.mubr.bf16.mxu0 0
        %6992 = vmatmul.mubr.bf16.gmra.mrb[0].mxu0 %v6740
        %v6993 = vpop.f32.mrb[0].mxu0
        %v6994 = vadd.f32 %v6954, %v6993
        %v6995 = vpop.f32.mrb[0].mxu0
        %v6996 = vpop.f32.mrb[0].mxu0
        %v6997 = vadd.f32 %v6953, %v6996
        %v6998 = vpop.f32.mrb[0].mxu0
        %6999 = vmatprep.mubr.bf16.mxu0 0
        %7000 = vmatmul.mubr.bf16.gmra.mrb[0].mxu0 %v6743
        %v7001 = vpop.f32.mrb[0].mxu0
        %v7002 = vadd.f32 %v6952, %v7001
        %v7003 = vpop.f32.mrb[0].mxu0
        %v7004 = vpop.f32.mrb[0].mxu0
        %v7005 = vadd.f32 %v6951, %v7004
        %v7006 = vpop.f32.mrb[0].mxu0
        %7007 = vmatprep.mubr.bf16.mxu0 0
        %7008 = vmatmul.mubr.bf16.gmra.mrb[0].mxu0 %v6746
        %v7009 = vpop.f32.mrb[0].mxu0
        %v7010 = vadd.f32 %v6950, %v7009
        %v7011 = vpop.f32.mrb[0].mxu0
        %v7012 = vpop.f32.mrb[0].mxu0
        %v7013 = vadd.f32 %v6949, %v7012
        %v7014 = vpop.f32.mrb[0].mxu0
        %7015 = vmatprep.mubr.bf16.mxu0 0
        %7016 = vmatmul.mubr.bf16.gmra.mrb[0].mxu0 %v6749
        %v7017 = vpop.f32.mrb[0].mxu0
        %v7018 = vadd.f32 %v6948, %v7017
        %v7019 = vpop.f32.mrb[0].mxu0
        %v7020 = vpop.f32.mrb[0].mxu0
        %v7021 = vadd.f32 %v6947, %v7020
        %v7022 = vpop.f32.mrb[0].mxu0
        %7023 = vmatprep.mubr.bf16.mxu0 0
        %7024 = vmatmul.mubr.bf16.gmra.mrb[0].mxu0 %v6752
        %v7025 = vpop.f32.mrb[0].mxu0
        %v7026 = vadd.f32 %v6946, %v7025
        %v7027 = vpop.f32.mrb[0].mxu0
        %v7028 = vpop.f32.mrb[0].mxu0
        %v7029 = vadd.f32 %v6945, %v7028
        %v7030 = vpop.f32.mrb[0].mxu0
        %7031 = vmatprep.mubr.bf16.mxu0 0
        %7032 = vmatmul.mubr.bf16.gmra.mrb[0].mxu0 %v6755
        %v7033 = vpop.f32.mrb[0].mxu0
        %v7034 = vadd.f32 %v6944, %v7033
        %v7035 = vpop.f32.mrb[0].mxu0
        %v7036 = vpop.f32.mrb[0].mxu0
        %v7037 = vadd.f32 %v6943, %v7036
        %v7038 = vpop.f32.mrb[0].mxu0
        %7039 = vmatprep.mubr.bf16.mxu0 0
        %7040 = vmatmul.mubr.bf16.gmra.mrb[0].mxu0 %v6758
        %v7041 = vpop.f32.mrb[0].mxu0
        %v7042 = vadd.f32 %v6942, %v7041
        %v7043 = vpop.f32.mrb[0].mxu0
        %v7044 = vpop.f32.mrb[0].mxu0
        %v7045 = vadd.f32 %v6941, %v7044
        %v7046 = vpop.f32.mrb[0].mxu0
        %7047 = vmatprep.mubr.bf16.mxu0 0
        %7048 = vmatmul.mubr.bf16.gmra.mrb[0].mxu0 %v6761
        %v7049 = vpop.f32.mrb[0].mxu0
        %v7050 = vadd.f32 %v6940, %v7049
        %v7051 = vpop.f32.mrb[0].mxu0
        %v7052 = vpop.f32.mrb[0].mxu0
        %v7053 = vadd.f32 %v6939, %v7052
        %v7054 = vpop.f32.mrb[0].mxu0
        %7055 = vmatprep.mubr.bf16.mxu0 0
        %7056 = vmatmul.mubr.bf16.gmra.mrb[0].mxu0 %v6764
        %v7057 = vpop.f32.mrb[0].mxu0
        %v7058 = vadd.f32 %v6938, %v7057
        %v7059 = vpop.f32.mrb[0].mxu0
        %v7060 = vpop.f32.mrb[0].mxu0
        %v7061 = vadd.f32 %v6937, %v7060
        %v7062 = vpop.f32.mrb[0].mxu0
        %7063 = vmatprep.mubr.bf16.mxu0 0
        %7064 = vmatmul.mubr.bf16.gmra.mrb[0].mxu0 %v6767
        %v7065 = vpop.f32.mrb[0].mxu0
        %v7066 = vadd.f32 %v6936, %v7065
        %v7067 = vpop.f32.mrb[0].mxu0
        %v7068 = vpop.f32.mrb[0].mxu0
        %v7069 = vadd.f32 %v6935, %v7068
        %v7070 = vpop.f32.mrb[0].mxu0
        %7071 = vmatprep.mubr.bf16.mxu0 0
        %7072 = vmatmul.mubr.bf16.gmra.mrb[0].mxu0 %v6770
        %v7073 = vpop.f32.mrb[0].mxu0
        %v7074 = vadd.f32 %v6934, %v7073
        %v7075 = vpop.f32.mrb[0].mxu0
        %v7076 = vpop.f32.mrb[0].mxu0
        %v7077 = vadd.f32 %v6933, %v7076
        %v7078 = vpop.f32.mrb[0].mxu0
        %7079 = vmatprep.mubr.bf16.mxu0 0
        %7080 = vmatmul.mubr.bf16.gmra.mrb[0].mxu0 %v6773
        %v7081 = vpop.f32.mrb[0].mxu0
        %v7082 = vadd.f32 %v6932, %v7081
        %v7083 = vpop.f32.mrb[0].mxu0
        %v7084 = vpop.f32.mrb[0].mxu0
        %v7085 = vadd.f32 %v6955, %v7084
        %v7086 = vpop.f32.mrb[0].mxu0
        %7087 = vdwg.mxu0
        %s7088 = scalar_lea.vmem [#allocation12], 4
        %v7089 = vld [vmem:[%s7088] sm:$0x3]
        %v7091 = vsel %vm6775, %v7089, 0
        %7093 = vmatprep.subr.bf16.mxu0 0
        %7094 = vmatpush1.bf16.msra.mxu0 %v7091
        %7095 = vmatprep.subr.bf16.mxu0 0
        %7096 = vmatpush1.bf16.msra.mxu0 0
        %7097 = vmatprep.subr.bf16.mxu0 0
        %7098 = vmatpush1.bf16.msra.mxu0 0
        %7099 = vmatprep.subr.bf16.mxu0 0
        %7100 = vmatpush1.bf16.msra.mxu0 0
        %7101 = vmatprep.subr.bf16.mxu0 0
        %7102 = vmatpush1.bf16.msra.mxu0 0
        %7103 = vmatprep.subr.bf16.mxu0 0
        %7104 = vmatpush1.bf16.msra.mxu0 0
        %7105 = vmatprep.subr.bf16.mxu0 0
        %7106 = vmatpush1.bf16.msra.mxu0 0
        %7107 = vmatprep.subr.bf16.mxu0 0
        %7108 = vmatpush1.bf16.msra.mxu0 0
        %7109 = vmatprep.subr.bf16.mxu0 0
        %7110 = vmatpush1.bf16.msra.mxu0 0
        %7111 = vmatprep.subr.bf16.mxu0 0
        %7112 = vmatpush1.bf16.msra.mxu0 0
        %7113 = vmatprep.subr.bf16.mxu0 0
        %7114 = vmatpush1.bf16.msra.mxu0 0
        %7115 = vmatprep.subr.bf16.mxu0 0
        %7116 = vmatpush1.bf16.msra.mxu0 0
        %7117 = vmatprep.subr.bf16.mxu0 0
        %7118 = vmatpush1.bf16.msra.mxu0 0
        %7119 = vmatprep.subr.bf16.mxu0 0
        %7120 = vmatpush1.bf16.msra.mxu0 0
        %7121 = vmatprep.subr.bf16.mxu0 0
        %7122 = vmatpush1.bf16.msra.mxu0 0
        %7123 = vmatprep.subr.bf16.mxu0 0
        %7124 = vmatpush1.bf16.msra.mxu0 0
        %7125 = vmatprep.mubr.bf16.mxu0 0
        %7126 = vmatmul.mubr.bf16.gmra.mrb[0].mxu0 %v6740
        %v7127 = vpop.f32.mrb[0].mxu0
        %v7128 = vadd.f32 0.0, %v7127
        %v7129 = vpop.f32.mrb[0].mxu0
        %v7130 = vpop.f32.mrb[0].mxu0
        %v7131 = vadd.f32 0.0, %v7130
        %v7132 = vpop.f32.mrb[0].mxu0
        %7133 = vmatprep.mubr.bf16.mxu0 0
        %7134 = vmatmul.mubr.bf16.gmra.mrb[0].mxu0 %v6743
        %v7135 = vpop.f32.mrb[0].mxu0
        %v7136 = vadd.f32 0.0, %v7135
        %v7137 = vpop.f32.mrb[0].mxu0
        %v7138 = vpop.f32.mrb[0].mxu0
        %v7139 = vadd.f32 0.0, %v7138
        %v7140 = vpop.f32.mrb[0].mxu0
        %7141 = vmatprep.mubr.bf16.mxu0 0
        %7142 = vmatmul.mubr.bf16.gmra.mrb[0].mxu0 %v6746
        %v7143 = vpop.f32.mrb[0].mxu0
        %v7144 = vadd.f32 0.0, %v7143
        %v7145 = vpop.f32.mrb[0].mxu0
        %v7146 = vpop.f32.mrb[0].mxu0
        %v7147 = vadd.f32 0.0, %v7146
        %v7148 = vpop.f32.mrb[0].mxu0
        %7149 = vmatprep.mubr.bf16.mxu0 0
        %7150 = vmatmul.mubr.bf16.gmra.mrb[0].mxu0 %v6749
        %v7151 = vpop.f32.mrb[0].mxu0
        %v7152 = vadd.f32 0.0, %v7151
        %v7153 = vpop.f32.mrb[0].mxu0
        %v7154 = vpop.f32.mrb[0].mxu0
        %v7155 = vadd.f32 0.0, %v7154
        %v7156 = vpop.f32.mrb[0].mxu0
        %7157 = vmatprep.mubr.bf16.mxu0 0
        %7158 = vmatmul.mubr.bf16.gmra.mrb[0].mxu0 %v6752
        %v7159 = vpop.f32.mrb[0].mxu0
        %v7160 = vadd.f32 0.0, %v7159
        %v7161 = vpop.f32.mrb[0].mxu0
        %v7162 = vpop.f32.mrb[0].mxu0
        %v7163 = vadd.f32 0.0, %v7162
        %v7164 = vpop.f32.mrb[0].mxu0
        %7165 = vmatprep.mubr.bf16.mxu0 0
        %7166 = vmatmul.mubr.bf16.gmra.mrb[0].mxu0 %v6755
        %v7167 = vpop.f32.mrb[0].mxu0
        %v7168 = vadd.f32 0.0, %v7167
        %v7169 = vpop.f32.mrb[0].mxu0
        %v7170 = vpop.f32.mrb[0].mxu0
        %v7171 = vadd.f32 0.0, %v7170
        %v7172 = vpop.f32.mrb[0].mxu0
        %7173 = vmatprep.mubr.bf16.mxu0 0
        %7174 = vmatmul.mubr.bf16.gmra.mrb[0].mxu0 %v6758
        %v7175 = vpop.f32.mrb[0].mxu0
        %v7176 = vadd.f32 0.0, %v7175
        %v7177 = vpop.f32.mrb[0].mxu0
        %v7178 = vpop.f32.mrb[0].mxu0
        %v7179 = vadd.f32 0.0, %v7178
        %v7180 = vpop.f32.mrb[0].mxu0
        %7181 = vmatprep.mubr.bf16.mxu0 0
        %7182 = vmatmul.mubr.bf16.gmra.mrb[0].mxu0 %v6761
        %v7183 = vpop.f32.mrb[0].mxu0
        %v7184 = vadd.f32 0.0, %v7183
        %v7185 = vpop.f32.mrb[0].mxu0
        %v7186 = vpop.f32.mrb[0].mxu0
        %v7187 = vadd.f32 0.0, %v7186
        %v7188 = vpop.f32.mrb[0].mxu0
        %7189 = vmatprep.mubr.bf16.mxu0 0
        %7190 = vmatmul.mubr.bf16.gmra.mrb[0].mxu0 %v6764
        %v7191 = vpop.f32.mrb[0].mxu0
        %v7192 = vadd.f32 0.0, %v7191
        %v7193 = vpop.f32.mrb[0].mxu0
        %v7194 = vpop.f32.mrb[0].mxu0
        %v7195 = vadd.f32 0.0, %v7194
        %v7196 = vpop.f32.mrb[0].mxu0
        %7197 = vmatprep.mubr.bf16.mxu0 0
        %7198 = vmatmul.mubr.bf16.gmra.mrb[0].mxu0 %v6767
        %v7199 = vpop.f32.mrb[0].mxu0
        %v7200 = vadd.f32 0.0, %v7199
        %v7201 = vpop.f32.mrb[0].mxu0
        %v7202 = vpop.f32.mrb[0].mxu0
        %v7203 = vadd.f32 0.0, %v7202
        %v7204 = vpop.f32.mrb[0].mxu0
        %7205 = vmatprep.mubr.bf16.mxu0 0
        %7206 = vmatmul.mubr.bf16.gmra.mrb[0].mxu0 %v6770
        %v7207 = vpop.f32.mrb[0].mxu0
        %v7208 = vadd.f32 0.0, %v7207
        %v7209 = vpop.f32.mrb[0].mxu0
        %v7210 = vpop.f32.mrb[0].mxu0
        %v7211 = vadd.f32 0.0, %v7210
        %v7212 = vpop.f32.mrb[0].mxu0
        %7213 = vmatprep.mubr.bf16.mxu0 0
        %7214 = vmatmul.mubr.bf16.gmra.mrb[0].mxu0 %v6773
        %v7215 = vpop.f32.mrb[0].mxu0
        %v7216 = vadd.f32 0.0, %v7215
        %v7217 = vpop.f32.mrb[0].mxu0
        %v7218 = vpop.f32.mrb[0].mxu0
        %v7219 = vadd.f32 0.0, %v7218
        %v7220 = vpop.f32.mrb[0].mxu0
        %7221 = vdwg.mxu0
        %v7222 = vrot.slane %v7128, 2
        %v7223 = vrot.slane %v7131, 2
        %v7224 = vrot.slane %v7136, 2
        %v7225 = vrot.slane %v7139, 2
        %v7226 = vrot.slane %v7144, 2
        %v7227 = vrot.slane %v7147, 2
        %v7228 = vrot.slane %v7152, 2
        %v7229 = vrot.slane %v7155, 2
        %v7230 = vrot.slane %v7160, 2
        %v7231 = vrot.slane %v7163, 2
        %v7232 = vrot.slane %v7168, 2
        %v7233 = vrot.slane %v7171, 2
        %v7234 = vrot.slane %v7176, 2
        %v7235 = vrot.slane %v7179, 2
        %v7236 = vrot.slane %v7184, 2
        %v7237 = vrot.slane %v7187, 2
        %v7238 = vrot.slane %v7192, 2
        %v7239 = vrot.slane %v7195, 2
        %v7240 = vrot.slane %v7200, 2
        %v7241 = vrot.slane %v7203, 2
        %v7242 = vrot.slane %v7208, 2
        %v7243 = vrot.slane %v7211, 2
        %v7244 = vrot.slane %v7216, 2
        %v7245 = vrot.slane %v7219, 2
        %v7246 = vsel %vm5196, %v7244, %v7245
        %v7247 = vsel %vm5196, %v7243, %v7244
        %v7248 = vsel %vm5196, %v7242, %v7243
        %v7249 = vsel %vm5196, %v7241, %v7242
        %v7250 = vsel %vm5196, %v7240, %v7241
        %v7251 = vsel %vm5196, %v7239, %v7240
        %v7252 = vsel %vm5196, %v7238, %v7239
        %v7253 = vsel %vm5196, %v7237, %v7238
        %v7254 = vsel %vm5196, %v7236, %v7237
        %v7255 = vsel %vm5196, %v7235, %v7236
        %v7256 = vsel %vm5196, %v7234, %v7235
        %v7257 = vsel %vm5196, %v7233, %v7234
        %v7258 = vsel %vm5196, %v7232, %v7233
        %v7259 = vsel %vm5196, %v7231, %v7232
        %v7260 = vsel %vm5196, %v7230, %v7231
        %v7261 = vsel %vm5196, %v7229, %v7230
        %v7262 = vsel %vm5196, %v7228, %v7229
        %v7263 = vsel %vm5196, %v7227, %v7228
        %v7264 = vsel %vm5196, %v7226, %v7227
        %v7265 = vsel %vm5196, %v7225, %v7226
        %v7266 = vsel %vm5196, %v7224, %v7225
        %v7267 = vsel %vm5196, %v7223, %v7224
        %v7268 = vsel %vm5196, %v7222, %v7223
        %v7269 = vsel %vm5196, %v7245, %v7222
        %v7270 = vadd.f32 %v6994, %v7268
        %v7271 = vadd.f32 %v6997, %v7267
        %v7272 = vadd.f32 %v7002, %v7266
        %v7273 = vadd.f32 %v7005, %v7265
        %v7274 = vadd.f32 %v7010, %v7264
        %v7275 = vadd.f32 %v7013, %v7263
        %v7276 = vadd.f32 %v7018, %v7262
        %v7277 = vadd.f32 %v7021, %v7261
        %v7278 = vadd.f32 %v7026, %v7260
        %v7279 = vadd.f32 %v7029, %v7259
        %v7280 = vadd.f32 %v7034, %v7258
        %v7281 = vadd.f32 %v7037, %v7257
        %v7282 = vadd.f32 %v7042, %v7256
        %v7283 = vadd.f32 %v7045, %v7255
        %v7284 = vadd.f32 %v7050, %v7254
        %v7285 = vadd.f32 %v7053, %v7253
        %v7286 = vadd.f32 %v7058, %v7252
        %v7287 = vadd.f32 %v7061, %v7251
        %v7288 = vadd.f32 %v7066, %v7250
        %v7289 = vadd.f32 %v7069, %v7249
        %v7290 = vadd.f32 %v7074, %v7248
        %v7291 = vadd.f32 %v7077, %v7247
        %v7292 = vadd.f32 %v7082, %v7246
        %v7293 = vadd.f32 %v7085, %v7269
        %s7294 = scalar_lea.vmem [#allocation12], 6
        %v7295 = vld [vmem:[%s7294] sm:$0x3]
        %v7297 = vsel %vm6738, %v6733, 0
        %v7300 = vsel %vm6775, %v7295, 0
        %7302 = vmatprep.subr.bf16.mxu0 0
        %7303 = vmatpush1.bf16.msra.mxu0 %v7300
        %7304 = vmatprep.subr.bf16.mxu0 0
        %7305 = vmatpush1.bf16.msra.mxu0 0
        %7306 = vmatprep.subr.bf16.mxu0 0
        %7307 = vmatpush1.bf16.msra.mxu0 0
        %7308 = vmatprep.subr.bf16.mxu0 0
        %7309 = vmatpush1.bf16.msra.mxu0 0
        %7310 = vmatprep.subr.bf16.mxu0 0
        %7311 = vmatpush1.bf16.msra.mxu0 0
        %7312 = vmatprep.subr.bf16.mxu0 0
        %7313 = vmatpush1.bf16.msra.mxu0 0
        %7314 = vmatprep.subr.bf16.mxu0 0
        %7315 = vmatpush1.bf16.msra.mxu0 0
        %7316 = vmatprep.subr.bf16.mxu0 0
        %7317 = vmatpush1.bf16.msra.mxu0 0
        %7318 = vmatprep.subr.bf16.mxu0 0
        %7319 = vmatpush1.bf16.msra.mxu0 0
        %7320 = vmatprep.subr.bf16.mxu0 0
        %7321 = vmatpush1.bf16.msra.mxu0 0
        %7322 = vmatprep.subr.bf16.mxu0 0
        %7323 = vmatpush1.bf16.msra.mxu0 0
        %7324 = vmatprep.subr.bf16.mxu0 0
        %7325 = vmatpush1.bf16.msra.mxu0 0
        %7326 = vmatprep.subr.bf16.mxu0 0
        %7327 = vmatpush1.bf16.msra.mxu0 0
        %7328 = vmatprep.subr.bf16.mxu0 0
        %7329 = vmatpush1.bf16.msra.mxu0 0
        %7330 = vmatprep.subr.bf16.mxu0 0
        %7331 = vmatpush1.bf16.msra.mxu0 0
        %7332 = vmatprep.subr.bf16.mxu0 0
        %7333 = vmatpush1.bf16.msra.mxu0 0
        %7334 = vmatprep.mubr.bf16.mxu0 0
        %7335 = vmatmul.mubr.bf16.gmra.mrb[0].mxu0 %v6743
        %v7336 = vpop.f32.mrb[0].mxu0
        %v7337 = vadd.f32 0.0, %v7336
        %v7338 = vpop.f32.mrb[0].mxu0
        %v7339 = vpop.f32.mrb[0].mxu0
        %v7340 = vadd.f32 0.0, %v7339
        %v7341 = vpop.f32.mrb[0].mxu0
        %7342 = vmatprep.mubr.bf16.mxu0 0
        %7343 = vmatmul.mubr.bf16.gmra.mrb[0].mxu0 %v6746
        %v7344 = vpop.f32.mrb[0].mxu0
        %v7345 = vadd.f32 0.0, %v7344
        %v7346 = vpop.f32.mrb[0].mxu0
        %v7347 = vpop.f32.mrb[0].mxu0
        %v7348 = vadd.f32 0.0, %v7347
        %v7349 = vpop.f32.mrb[0].mxu0
        %7350 = vmatprep.mubr.bf16.mxu0 0
        %7351 = vmatmul.mubr.bf16.gmra.mrb[0].mxu0 %v6749
        %v7352 = vpop.f32.mrb[0].mxu0
        %v7353 = vadd.f32 0.0, %v7352
        %v7354 = vpop.f32.mrb[0].mxu0
        %v7355 = vpop.f32.mrb[0].mxu0
        %v7356 = vadd.f32 0.0, %v7355
        %v7357 = vpop.f32.mrb[0].mxu0
        %7358 = vmatprep.mubr.bf16.mxu0 0
        %7359 = vmatmul.mubr.bf16.gmra.mrb[0].mxu0 %v6752
        %v7360 = vpop.f32.mrb[0].mxu0
        %v7361 = vadd.f32 0.0, %v7360
        %v7362 = vpop.f32.mrb[0].mxu0
        %v7363 = vpop.f32.mrb[0].mxu0
        %v7364 = vadd.f32 0.0, %v7363
        %v7365 = vpop.f32.mrb[0].mxu0
        %7366 = vmatprep.mubr.bf16.mxu0 0
        %7367 = vmatmul.mubr.bf16.gmra.mrb[0].mxu0 %v6755
        %v7368 = vpop.f32.mrb[0].mxu0
        %v7369 = vadd.f32 0.0, %v7368
        %v7370 = vpop.f32.mrb[0].mxu0
        %v7371 = vpop.f32.mrb[0].mxu0
        %v7372 = vadd.f32 0.0, %v7371
        %v7373 = vpop.f32.mrb[0].mxu0
        %7374 = vmatprep.mubr.bf16.mxu0 0
        %7375 = vmatmul.mubr.bf16.gmra.mrb[0].mxu0 %v6758
        %v7376 = vpop.f32.mrb[0].mxu0
        %v7377 = vadd.f32 0.0, %v7376
        %v7378 = vpop.f32.mrb[0].mxu0
        %v7379 = vpop.f32.mrb[0].mxu0
        %v7380 = vadd.f32 0.0, %v7379
        %v7381 = vpop.f32.mrb[0].mxu0
        %7382 = vmatprep.mubr.bf16.mxu0 0
        %7383 = vmatmul.mubr.bf16.gmra.mrb[0].mxu0 %v6761
        %v7384 = vpop.f32.mrb[0].mxu0
        %v7385 = vadd.f32 0.0, %v7384
        %v7386 = vpop.f32.mrb[0].mxu0
        %v7387 = vpop.f32.mrb[0].mxu0
        %v7388 = vadd.f32 0.0, %v7387
        %v7389 = vpop.f32.mrb[0].mxu0
        %7390 = vmatprep.mubr.bf16.mxu0 0
        %7391 = vmatmul.mubr.bf16.gmra.mrb[0].mxu0 %v6764
        %v7392 = vpop.f32.mrb[0].mxu0
        %v7393 = vadd.f32 0.0, %v7392
        %v7394 = vpop.f32.mrb[0].mxu0
        %v7395 = vpop.f32.mrb[0].mxu0
        %v7396 = vadd.f32 0.0, %v7395
        %v7397 = vpop.f32.mrb[0].mxu0
        %7398 = vmatprep.mubr.bf16.mxu0 0
        %7399 = vmatmul.mubr.bf16.gmra.mrb[0].mxu0 %v6767
        %v7400 = vpop.f32.mrb[0].mxu0
        %v7401 = vadd.f32 0.0, %v7400
        %v7402 = vpop.f32.mrb[0].mxu0
        %v7403 = vpop.f32.mrb[0].mxu0
        %v7404 = vadd.f32 0.0, %v7403
        %v7405 = vpop.f32.mrb[0].mxu0
        %7406 = vmatprep.mubr.bf16.mxu0 0
        %7407 = vmatmul.mubr.bf16.gmra.mrb[0].mxu0 %v6770
        %v7408 = vpop.f32.mrb[0].mxu0
        %v7409 = vadd.f32 0.0, %v7408
        %v7410 = vpop.f32.mrb[0].mxu0
        %v7411 = vpop.f32.mrb[0].mxu0
        %v7412 = vadd.f32 0.0, %v7411
        %v7413 = vpop.f32.mrb[0].mxu0
        %7414 = vmatprep.mubr.bf16.mxu0 0
        %7415 = vmatmul.mubr.bf16.gmra.mrb[0].mxu0 %v6773
        %v7416 = vpop.f32.mrb[0].mxu0
        %v7417 = vadd.f32 0.0, %v7416
        %v7418 = vpop.f32.mrb[0].mxu0
        %v7419 = vpop.f32.mrb[0].mxu0
        %v7420 = vadd.f32 0.0, %v7419
        %v7421 = vpop.f32.mrb[0].mxu0
        %7422 = vmatprep.mubr.bf16.mxu0 0
        %7423 = vmatmul.mubr.bf16.gmra.mrb[0].mxu0 %v7297
        %v7424 = vpop.f32.mrb[0].mxu0
        %v7425 = vadd.f32 0.0, %v7424
        %v7426 = vpop.f32.mrb[0].mxu0
        %v7427 = vpop.f32.mrb[0].mxu0
        %v7428 = vadd.f32 0.0, %v7427
        %v7429 = vpop.f32.mrb[0].mxu0
        %7430 = vdwg.mxu0
        %v7431 = vadd.f32 %v7270, %v7337
        %v7432 = vadd.f32 %v7271, %v7340
        %v7433 = vadd.f32 %v7272, %v7345
        %v7434 = vadd.f32 %v7273, %v7348
        %v7435 = vadd.f32 %v7274, %v7353
        %v7436 = vadd.f32 %v7275, %v7356
        %v7437 = vadd.f32 %v7276, %v7361
        %v7438 = vadd.f32 %v7277, %v7364
        %v7439 = vadd.f32 %v7278, %v7369
        %v7440 = vadd.f32 %v7279, %v7372
        %v7441 = vadd.f32 %v7280, %v7377
        %v7442 = vadd.f32 %v7281, %v7380
        %v7443 = vadd.f32 %v7282, %v7385
        %v7444 = vadd.f32 %v7283, %v7388
        %v7445 = vadd.f32 %v7284, %v7393
        %v7446 = vadd.f32 %v7285, %v7396
        %v7447 = vadd.f32 %v7286, %v7401
        %v7448 = vadd.f32 %v7287, %v7404
        %v7449 = vadd.f32 %v7288, %v7409
        %v7450 = vadd.f32 %v7289, %v7412
        %v7451 = vadd.f32 %v7290, %v7417
        %v7452 = vadd.f32 %v7291, %v7420
        %v7453 = vadd.f32 %v7292, %v7425
        %v7454 = vadd.f32 %v7293, %v7428
        %s7455 = scalar_lea.vmem [#allocation12], 8
        %v7456 = vld [vmem:[%s7455] sm:$0x3]
        %v7458 = vsel %vm6775, %v7456, 0
        %7460 = vmatprep.subr.bf16.mxu0 0
        %7461 = vmatpush1.bf16.msra.mxu0 %v7458
        %7462 = vmatprep.subr.bf16.mxu0 0
        %7463 = vmatpush1.bf16.msra.mxu0 0
        %7464 = vmatprep.subr.bf16.mxu0 0
        %7465 = vmatpush1.bf16.msra.mxu0 0
        %7466 = vmatprep.subr.bf16.mxu0 0
        %7467 = vmatpush1.bf16.msra.mxu0 0
        %7468 = vmatprep.subr.bf16.mxu0 0
        %7469 = vmatpush1.bf16.msra.mxu0 0
        %7470 = vmatprep.subr.bf16.mxu0 0
        %7471 = vmatpush1.bf16.msra.mxu0 0
        %7472 = vmatprep.subr.bf16.mxu0 0
        %7473 = vmatpush1.bf16.msra.mxu0 0
        %7474 = vmatprep.subr.bf16.mxu0 0
        %7475 = vmatpush1.bf16.msra.mxu0 0
        %7476 = vmatprep.subr.bf16.mxu0 0
        %7477 = vmatpush1.bf16.msra.mxu0 0
        %7478 = vmatprep.subr.bf16.mxu0 0
        %7479 = vmatpush1.bf16.msra.mxu0 0
        %7480 = vmatprep.subr.bf16.mxu0 0
        %7481 = vmatpush1.bf16.msra.mxu0 0
        %7482 = vmatprep.subr.bf16.mxu0 0
        %7483 = vmatpush1.bf16.msra.mxu0 0
        %7484 = vmatprep.subr.bf16.mxu0 0
        %7485 = vmatpush1.bf16.msra.mxu0 0
        %7486 = vmatprep.subr.bf16.mxu0 0
        %7487 = vmatpush1.bf16.msra.mxu0 0
        %7488 = vmatprep.subr.bf16.mxu0 0
        %7489 = vmatpush1.bf16.msra.mxu0 0
        %7490 = vmatprep.subr.bf16.mxu0 0
        %7491 = vmatpush1.bf16.msra.mxu0 0
        %7492 = vmatprep.mubr.bf16.mxu0 0
        %7493 = vmatmul.mubr.bf16.gmra.mrb[0].mxu0 %v6743
        %v7494 = vpop.f32.mrb[0].mxu0
        %v7495 = vadd.f32 0.0, %v7494
        %v7496 = vpop.f32.mrb[0].mxu0
        %v7497 = vpop.f32.mrb[0].mxu0
        %v7498 = vadd.f32 0.0, %v7497
        %v7499 = vpop.f32.mrb[0].mxu0
        %7500 = vmatprep.mubr.bf16.mxu0 0
        %7501 = vmatmul.mubr.bf16.gmra.mrb[0].mxu0 %v6746
        %v7502 = vpop.f32.mrb[0].mxu0
        %v7503 = vadd.f32 0.0, %v7502
        %v7504 = vpop.f32.mrb[0].mxu0
        %v7505 = vpop.f32.mrb[0].mxu0
        %v7506 = vadd.f32 0.0, %v7505
        %v7507 = vpop.f32.mrb[0].mxu0
        %7508 = vmatprep.mubr.bf16.mxu0 0
        %7509 = vmatmul.mubr.bf16.gmra.mrb[0].mxu0 %v6749
        %v7510 = vpop.f32.mrb[0].mxu0
        %v7511 = vadd.f32 0.0, %v7510
        %v7512 = vpop.f32.mrb[0].mxu0
        %v7513 = vpop.f32.mrb[0].mxu0
        %v7514 = vadd.f32 0.0, %v7513
        %v7515 = vpop.f32.mrb[0].mxu0
        %7516 = vmatprep.mubr.bf16.mxu0 0
        %7517 = vmatmul.mubr.bf16.gmra.mrb[0].mxu0 %v6752
        %v7518 = vpop.f32.mrb[0].mxu0
        %v7519 = vadd.f32 0.0, %v7518
        %v7520 = vpop.f32.mrb[0].mxu0
        %v7521 = vpop.f32.mrb[0].mxu0
        %v7522 = vadd.f32 0.0, %v7521
        %v7523 = vpop.f32.mrb[0].mxu0
        %7524 = vmatprep.mubr.bf16.mxu0 0
        %7525 = vmatmul.mubr.bf16.gmra.mrb[0].mxu0 %v6755
        %v7526 = vpop.f32.mrb[0].mxu0
        %v7527 = vadd.f32 0.0, %v7526
        %v7528 = vpop.f32.mrb[0].mxu0
        %v7529 = vpop.f32.mrb[0].mxu0
        %v7530 = vadd.f32 0.0, %v7529
        %v7531 = vpop.f32.mrb[0].mxu0
        %7532 = vmatprep.mubr.bf16.mxu0 0
        %7533 = vmatmul.mubr.bf16.gmra.mrb[0].mxu0 %v6758
        %v7534 = vpop.f32.mrb[0].mxu0
        %v7535 = vadd.f32 0.0, %v7534
        %v7536 = vpop.f32.mrb[0].mxu0
        %v7537 = vpop.f32.mrb[0].mxu0
        %v7538 = vadd.f32 0.0, %v7537
        %v7539 = vpop.f32.mrb[0].mxu0
        %7540 = vmatprep.mubr.bf16.mxu0 0
        %7541 = vmatmul.mubr.bf16.gmra.mrb[0].mxu0 %v6761
        %v7542 = vpop.f32.mrb[0].mxu0
        %v7543 = vadd.f32 0.0, %v7542
        %v7544 = vpop.f32.mrb[0].mxu0
        %v7545 = vpop.f32.mrb[0].mxu0
        %v7546 = vadd.f32 0.0, %v7545
        %v7547 = vpop.f32.mrb[0].mxu0
        %7548 = vmatprep.mubr.bf16.mxu0 0
        %7549 = vmatmul.mubr.bf16.gmra.mrb[0].mxu0 %v6764
        %v7550 = vpop.f32.mrb[0].mxu0
        %v7551 = vadd.f32 0.0, %v7550
        %v7552 = vpop.f32.mrb[0].mxu0
        %v7553 = vpop.f32.mrb[0].mxu0
        %v7554 = vadd.f32 0.0, %v7553
        %v7555 = vpop.f32.mrb[0].mxu0
        %7556 = vmatprep.mubr.bf16.mxu0 0
        %7557 = vmatmul.mubr.bf16.gmra.mrb[0].mxu0 %v6767
        %v7558 = vpop.f32.mrb[0].mxu0
        %v7559 = vadd.f32 0.0, %v7558
        %v7560 = vpop.f32.mrb[0].mxu0
        %v7561 = vpop.f32.mrb[0].mxu0
        %v7562 = vadd.f32 0.0, %v7561
        %v7563 = vpop.f32.mrb[0].mxu0
        %7564 = vmatprep.mubr.bf16.mxu0 0
        %7565 = vmatmul.mubr.bf16.gmra.mrb[0].mxu0 %v6770
        %v7566 = vpop.f32.mrb[0].mxu0
        %v7567 = vadd.f32 0.0, %v7566
        %v7568 = vpop.f32.mrb[0].mxu0
        %v7569 = vpop.f32.mrb[0].mxu0
        %v7570 = vadd.f32 0.0, %v7569
        %v7571 = vpop.f32.mrb[0].mxu0
        %7572 = vmatprep.mubr.bf16.mxu0 0
        %7573 = vmatmul.mubr.bf16.gmra.mrb[0].mxu0 %v6773
        %v7574 = vpop.f32.mrb[0].mxu0
        %v7575 = vadd.f32 0.0, %v7574
        %v7576 = vpop.f32.mrb[0].mxu0
        %v7577 = vpop.f32.mrb[0].mxu0
        %v7578 = vadd.f32 0.0, %v7577
        %v7579 = vpop.f32.mrb[0].mxu0
        %7580 = vmatprep.mubr.bf16.mxu0 0
        %7581 = vmatmul.mubr.bf16.gmra.mrb[0].mxu0 %v7297
        %v7582 = vpop.f32.mrb[0].mxu0
        %v7583 = vadd.f32 0.0, %v7582
        %v7584 = vpop.f32.mrb[0].mxu0
        %v7585 = vpop.f32.mrb[0].mxu0
        %v7586 = vadd.f32 0.0, %v7585
        %v7587 = vpop.f32.mrb[0].mxu0
        %7588 = vdwg.mxu0
        %v7589 = vrot.slane %v7495, 1
        %v7590 = vrot.slane %v7498, 1
        %v7591 = vrot.slane %v7503, 1
        %v7592 = vrot.slane %v7506, 1
        %v7593 = vrot.slane %v7511, 1
        %v7594 = vrot.slane %v7514, 1
        %v7595 = vrot.slane %v7519, 1
        %v7596 = vrot.slane %v7522, 1
        %v7597 = vrot.slane %v7527, 1
        %v7598 = vrot.slane %v7530, 1
        %v7599 = vrot.slane %v7535, 1
        %v7600 = vrot.slane %v7538, 1
        %v7601 = vrot.slane %v7543, 1
        %v7602 = vrot.slane %v7546, 1
        %v7603 = vrot.slane %v7551, 1
        %v7604 = vrot.slane %v7554, 1
        %v7605 = vrot.slane %v7559, 1
        %v7606 = vrot.slane %v7562, 1
        %v7607 = vrot.slane %v7567, 1
        %v7608 = vrot.slane %v7570, 1
        %v7609 = vrot.slane %v7575, 1
        %v7610 = vrot.slane %v7578, 1
        %v7611 = vrot.slane %v7583, 1
        %v7612 = vrot.slane %v7586, 1
        %v7613 = vsel %vm4841, %v7611, %v7612
        %v7614 = vsel %vm4841, %v7610, %v7611
        %v7615 = vsel %vm4841, %v7609, %v7610
        %v7616 = vsel %vm4841, %v7608, %v7609
        %v7617 = vsel %vm4841, %v7607, %v7608
        %v7618 = vsel %vm4841, %v7606, %v7607
        %v7619 = vsel %vm4841, %v7605, %v7606
        %v7620 = vsel %vm4841, %v7604, %v7605
        %v7621 = vsel %vm4841, %v7603, %v7604
        %v7622 = vsel %vm4841, %v7602, %v7603
        %v7623 = vsel %vm4841, %v7601, %v7602
        %v7624 = vsel %vm4841, %v7600, %v7601
        %v7625 = vsel %vm4841, %v7599, %v7600
        %v7626 = vsel %vm4841, %v7598, %v7599
        %v7627 = vsel %vm4841, %v7597, %v7598
        %v7628 = vsel %vm4841, %v7596, %v7597
        %v7629 = vsel %vm4841, %v7595, %v7596
        %v7630 = vsel %vm4841, %v7594, %v7595
        %v7631 = vsel %vm4841, %v7593, %v7594
        %v7632 = vsel %vm4841, %v7592, %v7593
        %v7633 = vsel %vm4841, %v7591, %v7592
        %v7634 = vsel %vm4841, %v7590, %v7591
        %v7635 = vsel %vm4841, %v7589, %v7590
        %v7636 = vsel %vm4841, %v7612, %v7589
        %v7637 = vadd.f32 %v7431, %v7635
        %v7638 = vadd.f32 %v7432, %v7634
        %v7639 = vadd.f32 %v7433, %v7633
        %v7640 = vadd.f32 %v7434, %v7632
        %v7641 = vadd.f32 %v7435, %v7631
        %v7642 = vadd.f32 %v7436, %v7630
        %v7643 = vadd.f32 %v7437, %v7629
        %v7644 = vadd.f32 %v7438, %v7628
        %v7645 = vadd.f32 %v7439, %v7627
        %v7646 = vadd.f32 %v7440, %v7626
        %v7647 = vadd.f32 %v7441, %v7625
        %v7648 = vadd.f32 %v7442, %v7624
        %v7649 = vadd.f32 %v7443, %v7623
        %v7650 = vadd.f32 %v7444, %v7622
        %v7651 = vadd.f32 %v7445, %v7621
        %v7652 = vadd.f32 %v7446, %v7620
        %v7653 = vadd.f32 %v7447, %v7619
        %v7654 = vadd.f32 %v7448, %v7618
        %v7655 = vadd.f32 %v7449, %v7617
        %v7656 = vadd.f32 %v7450, %v7616
        %v7657 = vadd.f32 %v7451, %v7615
        %v7658 = vadd.f32 %v7452, %v7614
        %v7659 = vadd.f32 %v7453, %v7613
        %v7660 = vadd.f32 %v7454, %v7636
        %s7661 = scalar_lea.vmem [#allocation12], 10
        %v7662 = vld [vmem:[%s7661] sm:$0x3]
        %v7664 = vsel %vm6775, %v7662, 0
        %7666 = vmatprep.subr.bf16.mxu0 0
        %7667 = vmatpush1.bf16.msra.mxu0 %v7664
        %7668 = vmatprep.subr.bf16.mxu0 0
        %7669 = vmatpush1.bf16.msra.mxu0 0
        %7670 = vmatprep.subr.bf16.mxu0 0
        %7671 = vmatpush1.bf16.msra.mxu0 0
        %7672 = vmatprep.subr.bf16.mxu0 0
        %7673 = vmatpush1.bf16.msra.mxu0 0
        %7674 = vmatprep.subr.bf16.mxu0 0
        %7675 = vmatpush1.bf16.msra.mxu0 0
        %7676 = vmatprep.subr.bf16.mxu0 0
        %7677 = vmatpush1.bf16.msra.mxu0 0
        %7678 = vmatprep.subr.bf16.mxu0 0
        %7679 = vmatpush1.bf16.msra.mxu0 0
        %7680 = vmatprep.subr.bf16.mxu0 0
        %7681 = vmatpush1.bf16.msra.mxu0 0
        %7682 = vmatprep.subr.bf16.mxu0 0
        %7683 = vmatpush1.bf16.msra.mxu0 0
        %7684 = vmatprep.subr.bf16.mxu0 0
        %7685 = vmatpush1.bf16.msra.mxu0 0
        %7686 = vmatprep.subr.bf16.mxu0 0
        %7687 = vmatpush1.bf16.msra.mxu0 0
        %7688 = vmatprep.subr.bf16.mxu0 0
        %7689 = vmatpush1.bf16.msra.mxu0 0
        %7690 = vmatprep.subr.bf16.mxu0 0
        %7691 = vmatpush1.bf16.msra.mxu0 0
        %7692 = vmatprep.subr.bf16.mxu0 0
        %7693 = vmatpush1.bf16.msra.mxu0 0
        %7694 = vmatprep.subr.bf16.mxu0 0
        %7695 = vmatpush1.bf16.msra.mxu0 0
        %7696 = vmatprep.subr.bf16.mxu0 0
        %7697 = vmatpush1.bf16.msra.mxu0 0
        %7698 = vmatprep.mubr.bf16.mxu0 0
        %7699 = vmatmul.mubr.bf16.gmra.mrb[0].mxu0 %v6743
        %v7700 = vpop.f32.mrb[0].mxu0
        %v7701 = vadd.f32 0.0, %v7700
        %v7702 = vpop.f32.mrb[0].mxu0
        %v7703 = vpop.f32.mrb[0].mxu0
        %v7704 = vadd.f32 0.0, %v7703
        %v7705 = vpop.f32.mrb[0].mxu0
        %7706 = vmatprep.mubr.bf16.mxu0 0
        %7707 = vmatmul.mubr.bf16.gmra.mrb[0].mxu0 %v6746
        %v7708 = vpop.f32.mrb[0].mxu0
        %v7709 = vadd.f32 0.0, %v7708
        %v7710 = vpop.f32.mrb[0].mxu0
        %v7711 = vpop.f32.mrb[0].mxu0
        %v7712 = vadd.f32 0.0, %v7711
        %v7713 = vpop.f32.mrb[0].mxu0
        %7714 = vmatprep.mubr.bf16.mxu0 0
        %7715 = vmatmul.mubr.bf16.gmra.mrb[0].mxu0 %v6749
        %v7716 = vpop.f32.mrb[0].mxu0
        %v7717 = vadd.f32 0.0, %v7716
        %v7718 = vpop.f32.mrb[0].mxu0
        %v7719 = vpop.f32.mrb[0].mxu0
        %v7720 = vadd.f32 0.0, %v7719
        %v7721 = vpop.f32.mrb[0].mxu0
        %7722 = vmatprep.mubr.bf16.mxu0 0
        %7723 = vmatmul.mubr.bf16.gmra.mrb[0].mxu0 %v6752
        %v7724 = vpop.f32.mrb[0].mxu0
        %v7725 = vadd.f32 0.0, %v7724
        %v7726 = vpop.f32.mrb[0].mxu0
        %v7727 = vpop.f32.mrb[0].mxu0
        %v7728 = vadd.f32 0.0, %v7727
        %v7729 = vpop.f32.mrb[0].mxu0
        %7730 = vmatprep.mubr.bf16.mxu0 0
        %7731 = vmatmul.mubr.bf16.gmra.mrb[0].mxu0 %v6755
        %v7732 = vpop.f32.mrb[0].mxu0
        %v7733 = vadd.f32 0.0, %v7732
        %v7734 = vpop.f32.mrb[0].mxu0
        %v7735 = vpop.f32.mrb[0].mxu0
        %v7736 = vadd.f32 0.0, %v7735
        %v7737 = vpop.f32.mrb[0].mxu0
        %7738 = vmatprep.mubr.bf16.mxu0 0
        %7739 = vmatmul.mubr.bf16.gmra.mrb[0].mxu0 %v6758
        %v7740 = vpop.f32.mrb[0].mxu0
        %v7741 = vadd.f32 0.0, %v7740
        %v7742 = vpop.f32.mrb[0].mxu0
        %v7743 = vpop.f32.mrb[0].mxu0
        %v7744 = vadd.f32 0.0, %v7743
        %v7745 = vpop.f32.mrb[0].mxu0
        %7746 = vmatprep.mubr.bf16.mxu0 0
        %7747 = vmatmul.mubr.bf16.gmra.mrb[0].mxu0 %v6761
        %v7748 = vpop.f32.mrb[0].mxu0
        %v7749 = vadd.f32 0.0, %v7748
        %v7750 = vpop.f32.mrb[0].mxu0
        %v7751 = vpop.f32.mrb[0].mxu0
        %v7752 = vadd.f32 0.0, %v7751
        %v7753 = vpop.f32.mrb[0].mxu0
        %7754 = vmatprep.mubr.bf16.mxu0 0
        %7755 = vmatmul.mubr.bf16.gmra.mrb[0].mxu0 %v6764
        %v7756 = vpop.f32.mrb[0].mxu0
        %v7757 = vadd.f32 0.0, %v7756
        %v7758 = vpop.f32.mrb[0].mxu0
        %v7759 = vpop.f32.mrb[0].mxu0
        %v7760 = vadd.f32 0.0, %v7759
        %v7761 = vpop.f32.mrb[0].mxu0
        %7762 = vmatprep.mubr.bf16.mxu0 0
        %7763 = vmatmul.mubr.bf16.gmra.mrb[0].mxu0 %v6767
        %v7764 = vpop.f32.mrb[0].mxu0
        %v7765 = vadd.f32 0.0, %v7764
        %v7766 = vpop.f32.mrb[0].mxu0
        %v7767 = vpop.f32.mrb[0].mxu0
        %v7768 = vadd.f32 0.0, %v7767
        %v7769 = vpop.f32.mrb[0].mxu0
        %7770 = vmatprep.mubr.bf16.mxu0 0
        %7771 = vmatmul.mubr.bf16.gmra.mrb[0].mxu0 %v6770
        %v7772 = vpop.f32.mrb[0].mxu0
        %v7773 = vadd.f32 0.0, %v7772
        %v7774 = vpop.f32.mrb[0].mxu0
        %v7775 = vpop.f32.mrb[0].mxu0
        %v7776 = vadd.f32 0.0, %v7775
        %v7777 = vpop.f32.mrb[0].mxu0
        %7778 = vmatprep.mubr.bf16.mxu0 0
        %7779 = vmatmul.mubr.bf16.gmra.mrb[0].mxu0 %v6773
        %v7780 = vpop.f32.mrb[0].mxu0
        %v7781 = vadd.f32 0.0, %v7780
        %v7782 = vpop.f32.mrb[0].mxu0
        %v7783 = vpop.f32.mrb[0].mxu0
        %v7784 = vadd.f32 0.0, %v7783
        %v7785 = vpop.f32.mrb[0].mxu0
        %7786 = vmatprep.mubr.bf16.mxu0 0
        %7787 = vmatmul.mubr.bf16.gmra.mrb[0].mxu0 %v7297
        %v7788 = vpop.f32.mrb[0].mxu0
        %v7789 = vadd.f32 0.0, %v7788
        %v7790 = vpop.f32.mrb[0].mxu0
        %v7791 = vpop.f32.mrb[0].mxu0
        %v7792 = vadd.f32 0.0, %v7791
        %v7793 = vpop.f32.mrb[0].mxu0
        %7794 = vdwg.mxu0
        %v7795 = vrot.slane %v7701, 2
        %v7796 = vrot.slane %v7704, 2
        %v7797 = vrot.slane %v7709, 2
        %v7798 = vrot.slane %v7712, 2
        %v7799 = vrot.slane %v7717, 2
        %v7800 = vrot.slane %v7720, 2
        %v7801 = vrot.slane %v7725, 2
        %v7802 = vrot.slane %v7728, 2
        %v7803 = vrot.slane %v7733, 2
        %v7804 = vrot.slane %v7736, 2
        %v7805 = vrot.slane %v7741, 2
        %v7806 = vrot.slane %v7744, 2
        %v7807 = vrot.slane %v7749, 2
        %v7808 = vrot.slane %v7752, 2
        %v7809 = vrot.slane %v7757, 2
        %v7810 = vrot.slane %v7760, 2
        %v7811 = vrot.slane %v7765, 2
        %v7812 = vrot.slane %v7768, 2
        %v7813 = vrot.slane %v7773, 2
        %v7814 = vrot.slane %v7776, 2
        %v7815 = vrot.slane %v7781, 2
        %v7816 = vrot.slane %v7784, 2
        %v7817 = vrot.slane %v7789, 2
        %v7818 = vrot.slane %v7792, 2
        %v7819 = vsel %vm5196, %v7817, %v7818
        %v7820 = vsel %vm5196, %v7816, %v7817
        %v7821 = vsel %vm5196, %v7815, %v7816
        %v7822 = vsel %vm5196, %v7814, %v7815
        %v7823 = vsel %vm5196, %v7813, %v7814
        %v7824 = vsel %vm5196, %v7812, %v7813
        %v7825 = vsel %vm5196, %v7811, %v7812
        %v7826 = vsel %vm5196, %v7810, %v7811
        %v7827 = vsel %vm5196, %v7809, %v7810
        %v7828 = vsel %vm5196, %v7808, %v7809
        %v7829 = vsel %vm5196, %v7807, %v7808
        %v7830 = vsel %vm5196, %v7806, %v7807
        %v7831 = vsel %vm5196, %v7805, %v7806
        %v7832 = vsel %vm5196, %v7804, %v7805
        %v7833 = vsel %vm5196, %v7803, %v7804
        %v7834 = vsel %vm5196, %v7802, %v7803
        %v7835 = vsel %vm5196, %v7801, %v7802
        %v7836 = vsel %vm5196, %v7800, %v7801
        %v7837 = vsel %vm5196, %v7799, %v7800
        %v7838 = vsel %vm5196, %v7798, %v7799
        %v7839 = vsel %vm5196, %v7797, %v7798
        %v7840 = vsel %vm5196, %v7796, %v7797
        %v7841 = vsel %vm5196, %v7795, %v7796
        %v7842 = vsel %vm5196, %v7818, %v7795
        %v7843 = vadd.f32 %v7637, %v7841
        %v7844 = vadd.f32 %v7638, %v7840
        %v7845 = vadd.f32 %v7639, %v7839
        %v7846 = vadd.f32 %v7640, %v7838
        %v7847 = vadd.f32 %v7641, %v7837
        %v7848 = vadd.f32 %v7642, %v7836
        %v7849 = vadd.f32 %v7643, %v7835
        %v7850 = vadd.f32 %v7644, %v7834
        %v7851 = vadd.f32 %v7645, %v7833
        %v7852 = vadd.f32 %v7646, %v7832
        %v7853 = vadd.f32 %v7647, %v7831
        %v7854 = vadd.f32 %v7648, %v7830
        %v7855 = vadd.f32 %v7649, %v7829
        %v7856 = vadd.f32 %v7650, %v7828
        %v7857 = vadd.f32 %v7651, %v7827
        %v7858 = vadd.f32 %v7652, %v7826
        %v7859 = vadd.f32 %v7653, %v7825
        %v7860 = vadd.f32 %v7654, %v7824
        %v7861 = vadd.f32 %v7655, %v7823
        %v7862 = vadd.f32 %v7656, %v7822
        %v7863 = vadd.f32 %v7657, %v7821
        %v7864 = vadd.f32 %v7658, %v7820
        %v7865 = vadd.f32 %v7659, %v7819
        %v7866 = vadd.f32 %v7660, %v7842
        %s7867 = scalar_lea.vmem [#allocation12], 12
        %v7868 = vld [vmem:[%s7867] sm:$0x3]
        %v7870 = vsel %vm6738, %v6734, 0
        %v7873 = vsel %vm6775, %v7868, 0
        %7875 = vmatprep.subr.bf16.mxu0 0
        %7876 = vmatpush1.bf16.msra.mxu0 %v7873
        %7877 = vmatprep.subr.bf16.mxu0 0
        %7878 = vmatpush1.bf16.msra.mxu0 0
        %7879 = vmatprep.subr.bf16.mxu0 0
        %7880 = vmatpush1.bf16.msra.mxu0 0
        %7881 = vmatprep.subr.bf16.mxu0 0
        %7882 = vmatpush1.bf16.msra.mxu0 0
        %7883 = vmatprep.subr.bf16.mxu0 0
        %7884 = vmatpush1.bf16.msra.mxu0 0
        %7885 = vmatprep.subr.bf16.mxu0 0
        %7886 = vmatpush1.bf16.msra.mxu0 0
        %7887 = vmatprep.subr.bf16.mxu0 0
        %7888 = vmatpush1.bf16.msra.mxu0 0
        %7889 = vmatprep.subr.bf16.mxu0 0
        %7890 = vmatpush1.bf16.msra.mxu0 0
        %7891 = vmatprep.subr.bf16.mxu0 0
        %7892 = vmatpush1.bf16.msra.mxu0 0
        %7893 = vmatprep.subr.bf16.mxu0 0
        %7894 = vmatpush1.bf16.msra.mxu0 0
        %7895 = vmatprep.subr.bf16.mxu0 0
        %7896 = vmatpush1.bf16.msra.mxu0 0
        %7897 = vmatprep.subr.bf16.mxu0 0
        %7898 = vmatpush1.bf16.msra.mxu0 0
        %7899 = vmatprep.subr.bf16.mxu0 0
        %7900 = vmatpush1.bf16.msra.mxu0 0
        %7901 = vmatprep.subr.bf16.mxu0 0
        %7902 = vmatpush1.bf16.msra.mxu0 0
        %7903 = vmatprep.subr.bf16.mxu0 0
        %7904 = vmatpush1.bf16.msra.mxu0 0
        %7905 = vmatprep.subr.bf16.mxu0 0
        %7906 = vmatpush1.bf16.msra.mxu0 0
        %7907 = vmatprep.mubr.bf16.mxu0 0
        %7908 = vmatmul.mubr.bf16.gmra.mrb[0].mxu0 %v6746
        %v7909 = vpop.f32.mrb[0].mxu0
        %v7910 = vadd.f32 0.0, %v7909
        %v7911 = vpop.f32.mrb[0].mxu0
        %v7912 = vpop.f32.mrb[0].mxu0
        %v7913 = vadd.f32 0.0, %v7912
        %v7914 = vpop.f32.mrb[0].mxu0
        %7915 = vmatprep.mubr.bf16.mxu0 0
        %7916 = vmatmul.mubr.bf16.gmra.mrb[0].mxu0 %v6749
        %v7917 = vpop.f32.mrb[0].mxu0
        %v7918 = vadd.f32 0.0, %v7917
        %v7919 = vpop.f32.mrb[0].mxu0
        %v7920 = vpop.f32.mrb[0].mxu0
        %v7921 = vadd.f32 0.0, %v7920
        %v7922 = vpop.f32.mrb[0].mxu0
        %7923 = vmatprep.mubr.bf16.mxu0 0
        %7924 = vmatmul.mubr.bf16.gmra.mrb[0].mxu0 %v6752
        %v7925 = vpop.f32.mrb[0].mxu0
        %v7926 = vadd.f32 0.0, %v7925
        %v7927 = vpop.f32.mrb[0].mxu0
        %v7928 = vpop.f32.mrb[0].mxu0
        %v7929 = vadd.f32 0.0, %v7928
        %v7930 = vpop.f32.mrb[0].mxu0
        %7931 = vmatprep.mubr.bf16.mxu0 0
        %7932 = vmatmul.mubr.bf16.gmra.mrb[0].mxu0 %v6755
        %v7933 = vpop.f32.mrb[0].mxu0
        %v7934 = vadd.f32 0.0, %v7933
        %v7935 = vpop.f32.mrb[0].mxu0
        %v7936 = vpop.f32.mrb[0].mxu0
        %v7937 = vadd.f32 0.0, %v7936
        %v7938 = vpop.f32.mrb[0].mxu0
        %7939 = vmatprep.mubr.bf16.mxu0 0
        %7940 = vmatmul.mubr.bf16.gmra.mrb[0].mxu0 %v6758
        %v7941 = vpop.f32.mrb[0].mxu0
        %v7942 = vadd.f32 0.0, %v7941
        %v7943 = vpop.f32.mrb[0].mxu0
        %v7944 = vpop.f32.mrb[0].mxu0
        %v7945 = vadd.f32 0.0, %v7944
        %v7946 = vpop.f32.mrb[0].mxu0
        %7947 = vmatprep.mubr.bf16.mxu0 0
        %7948 = vmatmul.mubr.bf16.gmra.mrb[0].mxu0 %v6761
        %v7949 = vpop.f32.mrb[0].mxu0
        %v7950 = vadd.f32 0.0, %v7949
        %v7951 = vpop.f32.mrb[0].mxu0
        %v7952 = vpop.f32.mrb[0].mxu0
        %v7953 = vadd.f32 0.0, %v7952
        %v7954 = vpop.f32.mrb[0].mxu0
        %7955 = vmatprep.mubr.bf16.mxu0 0
        %7956 = vmatmul.mubr.bf16.gmra.mrb[0].mxu0 %v6764
        %v7957 = vpop.f32.mrb[0].mxu0
        %v7958 = vadd.f32 0.0, %v7957
        %v7959 = vpop.f32.mrb[0].mxu0
        %v7960 = vpop.f32.mrb[0].mxu0
        %v7961 = vadd.f32 0.0, %v7960
        %v7962 = vpop.f32.mrb[0].mxu0
        %7963 = vmatprep.mubr.bf16.mxu0 0
        %7964 = vmatmul.mubr.bf16.gmra.mrb[0].mxu0 %v6767
        %v7965 = vpop.f32.mrb[0].mxu0
        %v7966 = vadd.f32 0.0, %v7965
        %v7967 = vpop.f32.mrb[0].mxu0
        %v7968 = vpop.f32.mrb[0].mxu0
        %v7969 = vadd.f32 0.0, %v7968
        %v7970 = vpop.f32.mrb[0].mxu0
        %7971 = vmatprep.mubr.bf16.mxu0 0
        %7972 = vmatmul.mubr.bf16.gmra.mrb[0].mxu0 %v6770
        %v7973 = vpop.f32.mrb[0].mxu0
        %v7974 = vadd.f32 0.0, %v7973
        %v7975 = vpop.f32.mrb[0].mxu0
        %v7976 = vpop.f32.mrb[0].mxu0
        %v7977 = vadd.f32 0.0, %v7976
        %v7978 = vpop.f32.mrb[0].mxu0
        %7979 = vmatprep.mubr.bf16.mxu0 0
        %7980 = vmatmul.mubr.bf16.gmra.mrb[0].mxu0 %v6773
        %v7981 = vpop.f32.mrb[0].mxu0
        %v7982 = vadd.f32 0.0, %v7981
        %v7983 = vpop.f32.mrb[0].mxu0
        %v7984 = vpop.f32.mrb[0].mxu0
        %v7985 = vadd.f32 0.0, %v7984
        %v7986 = vpop.f32.mrb[0].mxu0
        %7987 = vmatprep.mubr.bf16.mxu0 0
        %7988 = vmatmul.mubr.bf16.gmra.mrb[0].mxu0 %v7297
        %v7989 = vpop.f32.mrb[0].mxu0
        %v7990 = vadd.f32 0.0, %v7989
        %v7991 = vpop.f32.mrb[0].mxu0
        %v7992 = vpop.f32.mrb[0].mxu0
        %v7993 = vadd.f32 0.0, %v7992
        %v7994 = vpop.f32.mrb[0].mxu0
        %7995 = vmatprep.mubr.bf16.mxu0 0
        %7996 = vmatmul.mubr.bf16.gmra.mrb[0].mxu0 %v7870
        %v7997 = vpop.f32.mrb[0].mxu0
        %v7998 = vadd.f32 0.0, %v7997
        %v7999 = vpop.f32.mrb[0].mxu0
        %v8000 = vpop.f32.mrb[0].mxu0
        %v8001 = vadd.f32 0.0, %v8000
        %v8002 = vpop.f32.mrb[0].mxu0
        %8003 = vdwg.mxu0
        %v8004 = vadd.f32 %v7843, %v7910
        %v8005 = vadd.f32 %v7844, %v7913
        %v8006 = vadd.f32 %v7845, %v7918
        %v8007 = vadd.f32 %v7846, %v7921
        %v8008 = vadd.f32 %v7847, %v7926
        %v8009 = vadd.f32 %v7848, %v7929
        %v8010 = vadd.f32 %v7849, %v7934
        %v8011 = vadd.f32 %v7850, %v7937
        %v8012 = vadd.f32 %v7851, %v7942
        %v8013 = vadd.f32 %v7852, %v7945
        %v8014 = vadd.f32 %v7853, %v7950
        %v8015 = vadd.f32 %v7854, %v7953
        %v8016 = vadd.f32 %v7855, %v7958
        %v8017 = vadd.f32 %v7856, %v7961
        %v8018 = vadd.f32 %v7857, %v7966
        %v8019 = vadd.f32 %v7858, %v7969
        %v8020 = vadd.f32 %v7859, %v7974
        %v8021 = vadd.f32 %v7860, %v7977
        %v8022 = vadd.f32 %v7861, %v7982
        %v8023 = vadd.f32 %v7862, %v7985
        %v8024 = vadd.f32 %v7863, %v7990
        %v8025 = vadd.f32 %v7864, %v7993
        %v8026 = vadd.f32 %v7865, %v7998
        %v8027 = vadd.f32 %v7866, %v8001
        %s8028 = scalar_lea.vmem [#allocation12], 14
        %v8029 = vld [vmem:[%s8028] sm:$0x3]
        %v8031 = vsel %vm6775, %v8029, 0
        %8033 = vmatprep.subr.bf16.mxu0 0
        %8034 = vmatpush1.bf16.msra.mxu0 %v8031
        %8035 = vmatprep.subr.bf16.mxu0 0
        %8036 = vmatpush1.bf16.msra.mxu0 0
        %8037 = vmatprep.subr.bf16.mxu0 0
        %8038 = vmatpush1.bf16.msra.mxu0 0
        %8039 = vmatprep.subr.bf16.mxu0 0
        %8040 = vmatpush1.bf16.msra.mxu0 0
        %8041 = vmatprep.subr.bf16.mxu0 0
        %8042 = vmatpush1.bf16.msra.mxu0 0
        %8043 = vmatprep.subr.bf16.mxu0 0
        %8044 = vmatpush1.bf16.msra.mxu0 0
        %8045 = vmatprep.subr.bf16.mxu0 0
        %8046 = vmatpush1.bf16.msra.mxu0 0
        %8047 = vmatprep.subr.bf16.mxu0 0
        %8048 = vmatpush1.bf16.msra.mxu0 0
        %8049 = vmatprep.subr.bf16.mxu0 0
        %8050 = vmatpush1.bf16.msra.mxu0 0
        %8051 = vmatprep.subr.bf16.mxu0 0
        %8052 = vmatpush1.bf16.msra.mxu0 0
        %8053 = vmatprep.subr.bf16.mxu0 0
        %8054 = vmatpush1.bf16.msra.mxu0 0
        %8055 = vmatprep.subr.bf16.mxu0 0
        %8056 = vmatpush1.bf16.msra.mxu0 0
        %8057 = vmatprep.subr.bf16.mxu0 0
        %8058 = vmatpush1.bf16.msra.mxu0 0
        %8059 = vmatprep.subr.bf16.mxu0 0
        %8060 = vmatpush1.bf16.msra.mxu0 0
        %8061 = vmatprep.subr.bf16.mxu0 0
        %8062 = vmatpush1.bf16.msra.mxu0 0
        %8063 = vmatprep.subr.bf16.mxu0 0
        %8064 = vmatpush1.bf16.msra.mxu0 0
        %8065 = vmatprep.mubr.bf16.mxu0 0
        %8066 = vmatmul.mubr.bf16.gmra.mrb[0].mxu0 %v6746
        %v8067 = vpop.f32.mrb[0].mxu0
        %v8068 = vadd.f32 0.0, %v8067
        %v8069 = vpop.f32.mrb[0].mxu0
        %v8070 = vpop.f32.mrb[0].mxu0
        %v8071 = vadd.f32 0.0, %v8070
        %v8072 = vpop.f32.mrb[0].mxu0
        %8073 = vmatprep.mubr.bf16.mxu0 0
        %8074 = vmatmul.mubr.bf16.gmra.mrb[0].mxu0 %v6749
        %v8075 = vpop.f32.mrb[0].mxu0
        %v8076 = vadd.f32 0.0, %v8075
        %v8077 = vpop.f32.mrb[0].mxu0
        %v8078 = vpop.f32.mrb[0].mxu0
        %v8079 = vadd.f32 0.0, %v8078
        %v8080 = vpop.f32.mrb[0].mxu0
        %8081 = vmatprep.mubr.bf16.mxu0 0
        %8082 = vmatmul.mubr.bf16.gmra.mrb[0].mxu0 %v6752
        %v8083 = vpop.f32.mrb[0].mxu0
        %v8084 = vadd.f32 0.0, %v8083
        %v8085 = vpop.f32.mrb[0].mxu0
        %v8086 = vpop.f32.mrb[0].mxu0
        %v8087 = vadd.f32 0.0, %v8086
        %v8088 = vpop.f32.mrb[0].mxu0
        %8089 = vmatprep.mubr.bf16.mxu0 0
        %8090 = vmatmul.mubr.bf16.gmra.mrb[0].mxu0 %v6755
        %v8091 = vpop.f32.mrb[0].mxu0
        %v8092 = vadd.f32 0.0, %v8091
        %v8093 = vpop.f32.mrb[0].mxu0
        %v8094 = vpop.f32.mrb[0].mxu0
        %v8095 = vadd.f32 0.0, %v8094
        %v8096 = vpop.f32.mrb[0].mxu0
        %8097 = vmatprep.mubr.bf16.mxu0 0
        %8098 = vmatmul.mubr.bf16.gmra.mrb[0].mxu0 %v6758
        %v8099 = vpop.f32.mrb[0].mxu0
        %v8100 = vadd.f32 0.0, %v8099
        %v8101 = vpop.f32.mrb[0].mxu0
        %v8102 = vpop.f32.mrb[0].mxu0
        %v8103 = vadd.f32 0.0, %v8102
        %v8104 = vpop.f32.mrb[0].mxu0
        %8105 = vmatprep.mubr.bf16.mxu0 0
        %8106 = vmatmul.mubr.bf16.gmra.mrb[0].mxu0 %v6761
        %v8107 = vpop.f32.mrb[0].mxu0
        %v8108 = vadd.f32 0.0, %v8107
        %v8109 = vpop.f32.mrb[0].mxu0
        %v8110 = vpop.f32.mrb[0].mxu0
        %v8111 = vadd.f32 0.0, %v8110
        %v8112 = vpop.f32.mrb[0].mxu0
        %8113 = vmatprep.mubr.bf16.mxu0 0
        %8114 = vmatmul.mubr.bf16.gmra.mrb[0].mxu0 %v6764
        %v8115 = vpop.f32.mrb[0].mxu0
        %v8116 = vadd.f32 0.0, %v8115
        %v8117 = vpop.f32.mrb[0].mxu0
        %v8118 = vpop.f32.mrb[0].mxu0
        %v8119 = vadd.f32 0.0, %v8118
        %v8120 = vpop.f32.mrb[0].mxu0
        %8121 = vmatprep.mubr.bf16.mxu0 0
        %8122 = vmatmul.mubr.bf16.gmra.mrb[0].mxu0 %v6767
        %v8123 = vpop.f32.mrb[0].mxu0
        %v8124 = vadd.f32 0.0, %v8123
        %v8125 = vpop.f32.mrb[0].mxu0
        %v8126 = vpop.f32.mrb[0].mxu0
        %v8127 = vadd.f32 0.0, %v8126
        %v8128 = vpop.f32.mrb[0].mxu0
        %8129 = vmatprep.mubr.bf16.mxu0 0
        %8130 = vmatmul.mubr.bf16.gmra.mrb[0].mxu0 %v6770
        %v8131 = vpop.f32.mrb[0].mxu0
        %v8132 = vadd.f32 0.0, %v8131
        %v8133 = vpop.f32.mrb[0].mxu0
        %v8134 = vpop.f32.mrb[0].mxu0
        %v8135 = vadd.f32 0.0, %v8134
        %v8136 = vpop.f32.mrb[0].mxu0
        %8137 = vmatprep.mubr.bf16.mxu0 0
        %8138 = vmatmul.mubr.bf16.gmra.mrb[0].mxu0 %v6773
        %v8139 = vpop.f32.mrb[0].mxu0
        %v8140 = vadd.f32 0.0, %v8139
        %v8141 = vpop.f32.mrb[0].mxu0
        %v8142 = vpop.f32.mrb[0].mxu0
        %v8143 = vadd.f32 0.0, %v8142
        %v8144 = vpop.f32.mrb[0].mxu0
        %8145 = vmatprep.mubr.bf16.mxu0 0
        %8146 = vmatmul.mubr.bf16.gmra.mrb[0].mxu0 %v7297
        %v8147 = vpop.f32.mrb[0].mxu0
        %v8148 = vadd.f32 0.0, %v8147
        %v8149 = vpop.f32.mrb[0].mxu0
        %v8150 = vpop.f32.mrb[0].mxu0
        %v8151 = vadd.f32 0.0, %v8150
        %v8152 = vpop.f32.mrb[0].mxu0
        %8153 = vmatprep.mubr.bf16.mxu0 0
        %8154 = vmatmul.mubr.bf16.gmra.mrb[0].mxu0 %v7870
        %v8155 = vpop.f32.mrb[0].mxu0
        %v8156 = vadd.f32 0.0, %v8155
        %v8157 = vpop.f32.mrb[0].mxu0
        %v8158 = vpop.f32.mrb[0].mxu0
        %v8159 = vadd.f32 0.0, %v8158
        %v8160 = vpop.f32.mrb[0].mxu0
        %8161 = vdwg.mxu0
        %v8162 = vrot.slane %v8068, 1
        %v8163 = vrot.slane %v8071, 1
        %v8164 = vrot.slane %v8076, 1
        %v8165 = vrot.slane %v8079, 1
        %v8166 = vrot.slane %v8084, 1
        %v8167 = vrot.slane %v8087, 1
        %v8168 = vrot.slane %v8092, 1
        %v8169 = vrot.slane %v8095, 1
        %v8170 = vrot.slane %v8100, 1
        %v8171 = vrot.slane %v8103, 1
        %v8172 = vrot.slane %v8108, 1
        %v8173 = vrot.slane %v8111, 1
        %v8174 = vrot.slane %v8116, 1
        %v8175 = vrot.slane %v8119, 1
        %v8176 = vrot.slane %v8124, 1
        %v8177 = vrot.slane %v8127, 1
        %v8178 = vrot.slane %v8132, 1
        %v8179 = vrot.slane %v8135, 1
        %v8180 = vrot.slane %v8140, 1
        %v8181 = vrot.slane %v8143, 1
        %v8182 = vrot.slane %v8148, 1
        %v8183 = vrot.slane %v8151, 1
        %v8184 = vrot.slane %v8156, 1
        %v8185 = vrot.slane %v8159, 1
        %v8186 = vsel %vm4841, %v8184, %v8185
        %v8187 = vsel %vm4841, %v8183, %v8184
        %v8188 = vsel %vm4841, %v8182, %v8183
        %v8189 = vsel %vm4841, %v8181, %v8182
        %v8190 = vsel %vm4841, %v8180, %v8181
        %v8191 = vsel %vm4841, %v8179, %v8180
        %v8192 = vsel %vm4841, %v8178, %v8179
        %v8193 = vsel %vm4841, %v8177, %v8178
        %v8194 = vsel %vm4841, %v8176, %v8177
        %v8195 = vsel %vm4841, %v8175, %v8176
        %v8196 = vsel %vm4841, %v8174, %v8175
        %v8197 = vsel %vm4841, %v8173, %v8174
        %v8198 = vsel %vm4841, %v8172, %v8173
        %v8199 = vsel %vm4841, %v8171, %v8172
        %v8200 = vsel %vm4841, %v8170, %v8171
        %v8201 = vsel %vm4841, %v8169, %v8170
        %v8202 = vsel %vm4841, %v8168, %v8169
        %v8203 = vsel %vm4841, %v8167, %v8168
        %v8204 = vsel %vm4841, %v8166, %v8167
        %v8205 = vsel %vm4841, %v8165, %v8166
        %v8206 = vsel %vm4841, %v8164, %v8165
        %v8207 = vsel %vm4841, %v8163, %v8164
        %v8208 = vsel %vm4841, %v8162, %v8163
        %v8209 = vsel %vm4841, %v8185, %v8162
        %v8210 = vadd.f32 %v8004, %v8208
        %v8211 = vadd.f32 %v8005, %v8207
        %v8212 = vadd.f32 %v8006, %v8206
        %v8213 = vadd.f32 %v8007, %v8205
        %v8214 = vadd.f32 %v8008, %v8204
        %v8215 = vadd.f32 %v8009, %v8203
        %v8216 = vadd.f32 %v8010, %v8202
        %v8217 = vadd.f32 %v8011, %v8201
        %v8218 = vadd.f32 %v8012, %v8200
        %v8219 = vadd.f32 %v8013, %v8199
        %v8220 = vadd.f32 %v8014, %v8198
        %v8221 = vadd.f32 %v8015, %v8197
        %v8222 = vadd.f32 %v8016, %v8196
        %v8223 = vadd.f32 %v8017, %v8195
        %v8224 = vadd.f32 %v8018, %v8194
        %v8225 = vadd.f32 %v8019, %v8193
        %v8226 = vadd.f32 %v8020, %v8192
        %v8227 = vadd.f32 %v8021, %v8191
        %v8228 = vadd.f32 %v8022, %v8190
        %v8229 = vadd.f32 %v8023, %v8189
        %v8230 = vadd.f32 %v8024, %v8188
        %v8231 = vadd.f32 %v8025, %v8187
        %v8232 = vadd.f32 %v8026, %v8186
        %v8233 = vadd.f32 %v8027, %v8209
        %s8234 = scalar_lea.vmem [#allocation12], 16
        %v8235 = vld [vmem:[%s8234] sm:$0x3]
        %v8237 = vsel %vm6775, %v8235, 0
        %8239 = vmatprep.subr.bf16.mxu0 0
        %8240 = vmatpush1.bf16.msra.mxu0 %v8237
        %8241 = vmatprep.subr.bf16.mxu0 0
        %8242 = vmatpush1.bf16.msra.mxu0 0
        %8243 = vmatprep.subr.bf16.mxu0 0
        %8244 = vmatpush1.bf16.msra.mxu0 0
        %8245 = vmatprep.subr.bf16.mxu0 0
        %8246 = vmatpush1.bf16.msra.mxu0 0
        %8247 = vmatprep.subr.bf16.mxu0 0
        %8248 = vmatpush1.bf16.msra.mxu0 0
        %8249 = vmatprep.subr.bf16.mxu0 0
        %8250 = vmatpush1.bf16.msra.mxu0 0
        %8251 = vmatprep.subr.bf16.mxu0 0
        %8252 = vmatpush1.bf16.msra.mxu0 0
        %8253 = vmatprep.subr.bf16.mxu0 0
        %8254 = vmatpush1.bf16.msra.mxu0 0
        %8255 = vmatprep.subr.bf16.mxu0 0
        %8256 = vmatpush1.bf16.msra.mxu0 0
        %8257 = vmatprep.subr.bf16.mxu0 0
        %8258 = vmatpush1.bf16.msra.mxu0 0
        %8259 = vmatprep.subr.bf16.mxu0 0
        %8260 = vmatpush1.bf16.msra.mxu0 0
        %8261 = vmatprep.subr.bf16.mxu0 0
        %8262 = vmatpush1.bf16.msra.mxu0 0
        %8263 = vmatprep.subr.bf16.mxu0 0
        %8264 = vmatpush1.bf16.msra.mxu0 0
        %8265 = vmatprep.subr.bf16.mxu0 0
        %8266 = vmatpush1.bf16.msra.mxu0 0
        %8267 = vmatprep.subr.bf16.mxu0 0
        %8268 = vmatpush1.bf16.msra.mxu0 0
        %8269 = vmatprep.subr.bf16.mxu0 0
        %8270 = vmatpush1.bf16.msra.mxu0 0
        %8271 = vmatprep.mubr.bf16.mxu0 0
        %8272 = vmatmul.mubr.bf16.gmra.mrb[0].mxu0 %v6746
        %v8273 = vpop.f32.mrb[0].mxu0
        %v8274 = vadd.f32 0.0, %v8273
        %v8275 = vpop.f32.mrb[0].mxu0
        %v8276 = vpop.f32.mrb[0].mxu0
        %v8277 = vadd.f32 0.0, %v8276
        %v8278 = vpop.f32.mrb[0].mxu0
        %8279 = vmatprep.mubr.bf16.mxu0 0
        %8280 = vmatmul.mubr.bf16.gmra.mrb[0].mxu0 %v6749
        %v8281 = vpop.f32.mrb[0].mxu0
        %v8282 = vadd.f32 0.0, %v8281
        %v8283 = vpop.f32.mrb[0].mxu0
        %v8284 = vpop.f32.mrb[0].mxu0
        %v8285 = vadd.f32 0.0, %v8284
        %v8286 = vpop.f32.mrb[0].mxu0
        %8287 = vmatprep.mubr.bf16.mxu0 0
        %8288 = vmatmul.mubr.bf16.gmra.mrb[0].mxu0 %v6752
        %v8289 = vpop.f32.mrb[0].mxu0
        %v8290 = vadd.f32 0.0, %v8289
        %v8291 = vpop.f32.mrb[0].mxu0
        %v8292 = vpop.f32.mrb[0].mxu0
        %v8293 = vadd.f32 0.0, %v8292
        %v8294 = vpop.f32.mrb[0].mxu0
        %8295 = vmatprep.mubr.bf16.mxu0 0
        %8296 = vmatmul.mubr.bf16.gmra.mrb[0].mxu0 %v6755
        %v8297 = vpop.f32.mrb[0].mxu0
        %v8298 = vadd.f32 0.0, %v8297
        %v8299 = vpop.f32.mrb[0].mxu0
        %v8300 = vpop.f32.mrb[0].mxu0
        %v8301 = vadd.f32 0.0, %v8300
        %v8302 = vpop.f32.mrb[0].mxu0
        %8303 = vmatprep.mubr.bf16.mxu0 0
        %8304 = vmatmul.mubr.bf16.gmra.mrb[0].mxu0 %v6758
        %v8305 = vpop.f32.mrb[0].mxu0
        %v8306 = vadd.f32 0.0, %v8305
        %v8307 = vpop.f32.mrb[0].mxu0
        %v8308 = vpop.f32.mrb[0].mxu0
        %v8309 = vadd.f32 0.0, %v8308
        %v8310 = vpop.f32.mrb[0].mxu0
        %8311 = vmatprep.mubr.bf16.mxu0 0
        %8312 = vmatmul.mubr.bf16.gmra.mrb[0].mxu0 %v6761
        %v8313 = vpop.f32.mrb[0].mxu0
        %v8314 = vadd.f32 0.0, %v8313
        %v8315 = vpop.f32.mrb[0].mxu0
        %v8316 = vpop.f32.mrb[0].mxu0
        %v8317 = vadd.f32 0.0, %v8316
        %v8318 = vpop.f32.mrb[0].mxu0
        %8319 = vmatprep.mubr.bf16.mxu0 0
        %8320 = vmatmul.mubr.bf16.gmra.mrb[0].mxu0 %v6764
        %v8321 = vpop.f32.mrb[0].mxu0
        %v8322 = vadd.f32 0.0, %v8321
        %v8323 = vpop.f32.mrb[0].mxu0
        %v8324 = vpop.f32.mrb[0].mxu0
        %v8325 = vadd.f32 0.0, %v8324
        %v8326 = vpop.f32.mrb[0].mxu0
        %8327 = vmatprep.mubr.bf16.mxu0 0
        %8328 = vmatmul.mubr.bf16.gmra.mrb[0].mxu0 %v6767
        %v8329 = vpop.f32.mrb[0].mxu0
        %v8330 = vadd.f32 0.0, %v8329
        %v8331 = vpop.f32.mrb[0].mxu0
        %v8332 = vpop.f32.mrb[0].mxu0
        %v8333 = vadd.f32 0.0, %v8332
        %v8334 = vpop.f32.mrb[0].mxu0
        %8335 = vmatprep.mubr.bf16.mxu0 0
        %8336 = vmatmul.mubr.bf16.gmra.mrb[0].mxu0 %v6770
        %v8337 = vpop.f32.mrb[0].mxu0
        %v8338 = vadd.f32 0.0, %v8337
        %v8339 = vpop.f32.mrb[0].mxu0
        %v8340 = vpop.f32.mrb[0].mxu0
        %v8341 = vadd.f32 0.0, %v8340
        %v8342 = vpop.f32.mrb[0].mxu0
        %8343 = vmatprep.mubr.bf16.mxu0 0
        %8344 = vmatmul.mubr.bf16.gmra.mrb[0].mxu0 %v6773
        %v8345 = vpop.f32.mrb[0].mxu0
        %v8346 = vadd.f32 0.0, %v8345
        %v8347 = vpop.f32.mrb[0].mxu0
        %v8348 = vpop.f32.mrb[0].mxu0
        %v8349 = vadd.f32 0.0, %v8348
        %v8350 = vpop.f32.mrb[0].mxu0
        %8351 = vmatprep.mubr.bf16.mxu0 0
        %8352 = vmatmul.mubr.bf16.gmra.mrb[0].mxu0 %v7297
        %v8353 = vpop.f32.mrb[0].mxu0
        %v8354 = vadd.f32 0.0, %v8353
        %v8355 = vpop.f32.mrb[0].mxu0
        %v8356 = vpop.f32.mrb[0].mxu0
        %v8357 = vadd.f32 0.0, %v8356
        %v8358 = vpop.f32.mrb[0].mxu0
        %8359 = vmatprep.mubr.bf16.mxu0 0
        %8360 = vmatmul.mubr.bf16.gmra.mrb[0].mxu0 %v7870
        %v8361 = vpop.f32.mrb[0].mxu0
        %v8362 = vadd.f32 0.0, %v8361
        %v8363 = vpop.f32.mrb[0].mxu0
        %v8364 = vpop.f32.mrb[0].mxu0
        %v8365 = vadd.f32 0.0, %v8364
        %v8366 = vpop.f32.mrb[0].mxu0
        %8367 = vdwg.mxu0
        %v8368 = vrot.slane %v8274, 2
        %v8369 = vrot.slane %v8277, 2
        %v8370 = vrot.slane %v8282, 2
        %v8371 = vrot.slane %v8285, 2
        %v8372 = vrot.slane %v8290, 2
        %v8373 = vrot.slane %v8293, 2
        %v8374 = vrot.slane %v8298, 2
        %v8375 = vrot.slane %v8301, 2
        %v8376 = vrot.slane %v8306, 2
        %v8377 = vrot.slane %v8309, 2
        %v8378 = vrot.slane %v8314, 2
        %v8379 = vrot.slane %v8317, 2
        %v8380 = vrot.slane %v8322, 2
        %v8381 = vrot.slane %v8325, 2
        %v8382 = vrot.slane %v8330, 2
        %v8383 = vrot.slane %v8333, 2
        %v8384 = vrot.slane %v8338, 2
        %v8385 = vrot.slane %v8341, 2
        %v8386 = vrot.slane %v8346, 2
        %v8387 = vrot.slane %v8349, 2
        %v8388 = vrot.slane %v8354, 2
        %v8389 = vrot.slane %v8357, 2
        %v8390 = vrot.slane %v8362, 2
        %v8391 = vrot.slane %v8365, 2
        %v8392 = vsel %vm5196, %v8390, %v8391
        %v8393 = vsel %vm5196, %v8389, %v8390
        %v8394 = vsel %vm5196, %v8388, %v8389
        %v8395 = vsel %vm5196, %v8387, %v8388
        %v8396 = vsel %vm5196, %v8386, %v8387
        %v8397 = vsel %vm5196, %v8385, %v8386
        %v8398 = vsel %vm5196, %v8384, %v8385
        %v8399 = vsel %vm5196, %v8383, %v8384
        %v8400 = vsel %vm5196, %v8382, %v8383
        %v8401 = vsel %vm5196, %v8381, %v8382
        %v8402 = vsel %vm5196, %v8380, %v8381
        %v8403 = vsel %vm5196, %v8379, %v8380
        %v8404 = vsel %vm5196, %v8378, %v8379
        %v8405 = vsel %vm5196, %v8377, %v8378
        %v8406 = vsel %vm5196, %v8376, %v8377
        %v8407 = vsel %vm5196, %v8375, %v8376
        %v8408 = vsel %vm5196, %v8374, %v8375
        %v8409 = vsel %vm5196, %v8373, %v8374
        %v8410 = vsel %vm5196, %v8372, %v8373
        %v8411 = vsel %vm5196, %v8371, %v8372
        %v8412 = vsel %vm5196, %v8370, %v8371
        %v8413 = vsel %vm5196, %v8369, %v8370
        %v8414 = vsel %vm5196, %v8368, %v8369
        %v8415 = vsel %vm5196, %v8391, %v8368
        %v8416 = vadd.f32 %v8210, %v8414
        %v8417 = vadd.f32 %v8211, %v8413
        %v8418 = vadd.f32 %v8212, %v8412
        %v8419 = vadd.f32 %v8213, %v8411
        %v8420 = vadd.f32 %v8214, %v8410
        %v8421 = vadd.f32 %v8215, %v8409
        %v8422 = vadd.f32 %v8216, %v8408
        %v8423 = vadd.f32 %v8217, %v8407
        %v8424 = vadd.f32 %v8218, %v8406
        %v8425 = vadd.f32 %v8219, %v8405
        %v8426 = vadd.f32 %v8220, %v8404
        %v8427 = vadd.f32 %v8221, %v8403
        %v8428 = vadd.f32 %v8222, %v8402
        %v8429 = vadd.f32 %v8223, %v8401
        %v8430 = vadd.f32 %v8224, %v8400
        %v8431 = vadd.f32 %v8225, %v8399
        %v8432 = vadd.f32 %v8226, %v8398
        %v8433 = vadd.f32 %v8227, %v8397
        %v8434 = vadd.f32 %v8228, %v8396
        %v8435 = vadd.f32 %v8229, %v8395
        %v8436 = vadd.f32 %v8230, %v8394
        %v8437 = vadd.f32 %v8231, %v8393
        %v8438 = vadd.f32 %v8232, %v8392
        %v8439 = vadd.f32 %v8233, %v8415
        %v8440 = vld [vmem:[#allocation14] sm:$0x1]
        %v8442 = vlaneseq
        %v8443 = vshrl.u32 %v8442, 7
        %v8444 = vsub.s32 0, %v8443
        %v8445 = vrot.slane %v8440, %v8444
        %v8447 = vadd.f32 %v8416, %v8445
        %v8448 = vadd.f32 %v8417, %v8445
        %v8449 = vadd.f32 %v8418, %v8445
        %v8450 = vadd.f32 %v8419, %v8445
        %v8451 = vadd.f32 %v8420, %v8445
        %v8452 = vadd.f32 %v8421, %v8445
        %v8453 = vadd.f32 %v8422, %v8445
        %v8454 = vadd.f32 %v8423, %v8445
        %v8455 = vadd.f32 %v8424, %v8445
        %v8456 = vadd.f32 %v8425, %v8445
        %v8457 = vadd.f32 %v8426, %v8445
        %v8458 = vadd.f32 %v8427, %v8445
        %v8459 = vadd.f32 %v8428, %v8445
        %v8460 = vadd.f32 %v8429, %v8445
        %v8461 = vadd.f32 %v8430, %v8445
        %v8462 = vadd.f32 %v8431, %v8445
        %v8463 = vadd.f32 %v8432, %v8445
        %v8464 = vadd.f32 %v8433, %v8445
        %v8465 = vadd.f32 %v8434, %v8445
        %v8466 = vadd.f32 %v8435, %v8445
        %v8467 = vadd.f32 %v8436, %v8445
        %v8468 = vadd.f32 %v8437, %v8445
        %v8469 = vadd.f32 %v8438, %v8445
        %v8470 = vadd.f32 %v8439, %v8445
        %v8471 = vmax.f32 %v8447, 0.0
        %v8472 = vmax.f32 %v8448, 0.0
        %v8473 = vmax.f32 %v8449, 0.0
        %v8474 = vmax.f32 %v8450, 0.0
        %v8475 = vmax.f32 %v8451, 0.0
        %v8476 = vmax.f32 %v8452, 0.0
        %v8477 = vmax.f32 %v8453, 0.0
        %v8478 = vmax.f32 %v8454, 0.0
        %v8479 = vmax.f32 %v8455, 0.0
        %v8480 = vmax.f32 %v8456, 0.0
        %v8481 = vmax.f32 %v8457, 0.0
        %v8482 = vmax.f32 %v8458, 0.0
        %v8483 = vmax.f32 %v8459, 0.0
        %v8484 = vmax.f32 %v8460, 0.0
        %v8485 = vmax.f32 %v8461, 0.0
        %v8486 = vmax.f32 %v8462, 0.0
        %v8487 = vmax.f32 %v8463, 0.0
        %v8488 = vmax.f32 %v8464, 0.0
        %v8489 = vmax.f32 %v8465, 0.0
        %v8490 = vmax.f32 %v8466, 0.0
        %v8491 = vmax.f32 %v8467, 0.0
        %v8492 = vmax.f32 %v8468, 0.0
        %v8493 = vmax.f32 %v8469, 0.0
        %v8494 = vmax.f32 %v8470, 0.0
        %8495 = vst.msk [vmem:[%s404] sm:$0xff] %vm6738, %v8471
        %vm8496 = vcmask 27648
        %8497 = vst.msk [vmem:[%s404 + $0x8] sm:$0xf] %vm8496, %v8472
        %8498 = vst.msk [vmem:[%s404 + $0x10] sm:$0xff] %vm6738, %v8473
        %8499 = vst.msk [vmem:[%s404 + $0x18] sm:$0xf] %vm8496, %v8474
        %8500 = vst.msk [vmem:[%s404 + $0x20] sm:$0xff] %vm6738, %v8475
        %8501 = vst.msk [vmem:[%s404 + $0x28] sm:$0xf] %vm8496, %v8476
        %8502 = vst.msk [vmem:[%s404 + $0x30] sm:$0xff] %vm6738, %v8477
        %8503 = vst.msk [vmem:[%s404 + $0x38] sm:$0xf] %vm8496, %v8478
        %8504 = vst.msk [vmem:[%s404 + $0x40] sm:$0xff] %vm6738, %v8479
        %8505 = vst.msk [vmem:[%s404 + $0x48] sm:$0xf] %vm8496, %v8480
        %8506 = vst.msk [vmem:[%s404 + $0x50] sm:$0xff] %vm6738, %v8481
        %8507 = vst.msk [vmem:[%s404 + $0x58] sm:$0xf] %vm8496, %v8482
        %8508 = vst.msk [vmem:[%s404 + $0x60] sm:$0xff] %vm6738, %v8483
        %8509 = vst.msk [vmem:[%s404 + $0x68] sm:$0xf] %vm8496, %v8484
        %8510 = vst.msk [vmem:[%s404 + $0x70] sm:$0xff] %vm6738, %v8485
        %8511 = vst.msk [vmem:[%s404 + $0x78] sm:$0xf] %vm8496, %v8486
        %8512 = vst.msk [vmem:[%s404 + $0x80] sm:$0xff] %vm6738, %v8487
        %8513 = vst.msk [vmem:[%s404 + $0x88] sm:$0xf] %vm8496, %v8488
        %8514 = vst.msk [vmem:[%s404 + $0x90] sm:$0xff] %vm6738, %v8489
        %8515 = vst.msk [vmem:[%s404 + $0x98] sm:$0xf] %vm8496, %v8490
        %8516 = vst.msk [vmem:[%s404 + $0xa0] sm:$0xff] %vm6738, %v8491
        %8517 = vst.msk [vmem:[%s404 + $0xa8] sm:$0xf] %vm8496, %v8492
        %8518 = vst.msk [vmem:[%s404 + $0xb0] sm:$0xff] %vm6738, %v8493
        %8519 = vst.msk [vmem:[%s404 + $0xb8] sm:$0xf] %vm8496, %v8494
        %s8520 = sand.u32 %s194, 1
        %s8521 = scalar_lea.sflag [#allocation5], %s8520
        %s8522 = sand.u32 %s194, 1
        %s8523 = smul.addr %s8522, 192
        %s8524 = scalar_lea.vmem [#allocation15], %s8523
        // Predicated region
        $region77: #{unet_up_forward.1} parent=47 // pred_check
          %p8525 = pneg %p204
        $region78: #{unet_up_forward.1} parent=47 // pred_check_branch
          %8527 = sbr.rel (%p8525) target = $region80
        $region79: #{unet_up_forward.1} parent=47 // pred_region
          %s8529 = ssub.s32 3072, 3072
          %8530 = vsyncadd %s8521, %s8529
          %s8531 = smul.addr %s29, 24
          %s8532 = smul.addr %s8531, 128
          %s8533 = scalar_lea.hbm %s7, %s8532
          %s8534 = sshll.u32 %s8524, 4
          %s8535 = int_to_ptr.vmem [resolvable:$true] %s8534
          %8540 = dma.vmem_to_hbm [thread:$0]  %s8535, 3072, %s8533, %s8521, 128, 128, 8
        $region80: #{unet_up_forward.1} parent=47 // pred_fallthru
          _
      $region48: #{unet_up_forward.1} parent=5 // pred_fallthru
        _
      %p8541 = scmp.le.s32.totalorder 2, %s24
      // Predicated region
      $region81: #{unet_up_forward.1} parent=5 // pred_check
        %p8542 = pneg %p8541
      $region82: #{unet_up_forward.1} parent=5 // pred_check_branch
        %8544 = sbr.rel (%p8542) target = $region84
      $region83: #{unet_up_forward.1} parent=5 // pred_region
        %s8545 = ssub.s32 %s24, 2
        // Predicated region
        $region85: #{unet_up_forward.1} parent=83 // pred_check
          %p8546 = pneg %p210
        $region86: #{unet_up_forward.1} parent=83 // pred_check_branch
          %8548 = sbr.rel (%p8546) target = $region88
        $region87: #{unet_up_forward.1} parent=83 // pred_region
          %s8549 = sand.u32 %s195, 1
          %s8550 = scalar_lea.sflag [#allocation5], %s8549
          %s8551 = sand.u32 %s195, 1
          %s8552 = smul.addr %s8551, 192
          %s8553 = scalar_lea.vmem [#allocation15], %s8552
          %8554 = dma.done %s8550, 3072
        $region88: #{unet_up_forward.1} parent=83 // pred_fallthru
          _
      $region84: #{unet_up_forward.1} parent=5 // pred_fallthru
        _
    $region6: #{unet_up_forward.1} parent=1 // loop_footer
      %s28 = sadd.s32 1, %s24
    $region7: #{unet_up_forward.1} parent=1 // loop_footer_branch
      %23 = sbr.rel target = $region3
    $region8: #{unet_up_forward.1} parent=1 // loop_exit
      _
    %8555 = vsyncpa [#allocation4], 1
    %s8556 = scalar_lea.sflag [#allocation4], 1
    %8557 = vsyncpa %s8556, 1
    %8558 = vsyncpa [#allocation7], 1
    %s8559 = scalar_lea.sflag [#allocation7], 1
    %8560 = vsyncpa %s8559, 1
    %8561 = vsyncpa [#allocation10], 1
    %8562 = vsyncpa [#allocation13], 1
    %8563 = vsyncpa [#allocation5], 1
    %s8564 = scalar_lea.sflag [#allocation5], 1
    %8565 = vsyncpa %s8564, 1

</llo_original>
